<compile_context>
chip_gen: v6e
topology: v6e:2x2x1
jax: 0.10.0
libtpu: 0.0.40
codegen_flags: <defaults>
</compile_context>

<pallas_src>
import functools

import numpy as np
import jax
import jax.numpy as jnp
from jax.experimental import pallas as pl
from jax.experimental.pallas import tpu as pltpu


_EPS = 1e-5          # torch.nn.LayerNorm default
_MIN_STEPS = 4       # keep >= 4 grid steps (pipelining + 2 TCs on v7x)


# ----------------------------------------------------------------------------
# chip-aware budgets and tiling helpers
# ----------------------------------------------------------------------------
@functools.lru_cache(maxsize=None)
def _vmem_budget():
    """(vmem_limit_bytes, row_cap) derived from the chip's physical VMEM."""
    try:
        cap = int(pltpu.get_tpu_info().vmem_capacity_bytes)
    except Exception:                      # conservative fallback (v7x-sized)
        cap = 64 * 1024 * 1024
    limit = min((cap * 3) // 4, 100 * 1024 * 1024)   # 48 MiB on v7x, 96 MiB on v5e/v6e
    row_cap = 512 if cap >= (100 << 20) else 256
    return limit, row_cap


def _pick_row_tile(rows, row_cap, min_steps=_MIN_STEPS):
    """Largest divisor of `rows` <= row_cap, preferring sublane-aligned tiles
    and >= min_steps grid steps.  Never exceeds row_cap."""
    hi = max(1, min(rows, row_cap))
    divs = [d for d in range(1, hi + 1) if rows % d == 0]
    pref = [d for d in divs if rows // d >= min_steps] or divs
    pref8 = [d for d in pref if d % 8 == 0] or pref
    return max(pref8)


def _pick_window_block(n_groups, tokens_per_window, n_cols, row_cap,
                       min_steps=_MIN_STEPS):
    """Largest divisor of n_groups (window-rows batched per step) with
    wb * N <= row_cap, preferring a grid with >= min_steps total steps."""
    hi = max(1, min(n_groups, row_cap // max(1, tokens_per_window)))
    divs = [d for d in range(1, hi + 1) if n_groups % d == 0] or [1]
    pref = [d for d in divs if (n_groups // d) * n_cols >= min_steps] or divs
    return max(pref)


# ----------------------------------------------------------------------------
# in-kernel math helpers (f32 VPU/EUP math; bf16 only as MXU operands)
# ----------------------------------------------------------------------------
def _layer_norm_f32(x, gamma, beta):
    mu = jnp.mean(x, axis=-1, keepdims=True)
    xc = x - mu
    var = jnp.mean(xc * xc, axis=-1, keepdims=True)
    return xc * jax.lax.rsqrt(var + _EPS) * gamma + beta


def _softmax_lastdim(s):
    m = jnp.max(s, axis=-1, keepdims=True)
    e = jnp.exp(s - m)
    return e * pl.reciprocal(jnp.sum(e, axis=-1, keepdims=True), approx=True)


# ----------------------------------------------------------------------------
# Kernel A: fused  norm1 + dual-stream window attention + residual
#           (wb windows per grid step, window partition done by the BlockSpec)
# ----------------------------------------------------------------------------
def _fused_window_attn_kernel(x1_ref, x2_ref, g_ref, b_ref,
                              wqkv1_ref, bqkv1_ref, wv2_ref, bv2_ref,
                              wp1_ref, bp1_ref, wp2_ref, bp2_ref,
                              bias_ref, o1_ref, o2_ref, *, num_heads):
    wb, wsa, wsb, c = x1_ref.shape          # wb windows of (ws, ws, C)
    n = wsa * wsb
    rows = wb * n
    hd = c // num_heads
    cdt = wqkv1_ref.dtype                   # MXU operand dtype (bf16)

    g = g_ref[0].astype(jnp.float32)
    b = b_ref[0].astype(jnp.float32)

    # raw (pre-norm) rows; kept for the fused residual add at the end
    x1 = x1_ref[...].astype(jnp.float32).reshape(rows, c)
    x2 = x2_ref[...].astype(jnp.float32).reshape(rows, c)

    # norm1 fused in-kernel
    n1 = _layer_norm_f32(x1, g, b)
    n2 = _layer_norm_f32(x2, g, b)

    # Stream-1 full QKV (attention scale pre-folded into the Q columns).
    # Stream-2 only needs V: attn2 = softmax(attn1) in the reference, so
    # q2/k2 never influence the output.
    qkv1 = jnp.dot(n1.astype(cdt), wqkv1_ref[...],
                   preferred_element_type=jnp.float32) + bqkv1_ref[0]
    v2 = jnp.dot(n2.astype(cdt), wv2_ref[...],
                 preferred_element_type=jnp.float32) + bv2_ref[0]

    qkv1 = qkv1.reshape(wb, n, 3 * c)
    v2 = v2.reshape(wb, n, c)

    outs1, outs2 = [], []
    # Per-head loop retained: Mosaic's in-kernel dot_general supports a single
    # batch dim, so a (window, head)-double-batched einsum / major-dim
    # transpose is avoided.  Operands are bf16 (f32 accumulation) per review.
    for h in range(num_heads):
        q_h = qkv1[:, :, h * hd:(h + 1) * hd].astype(cdt)
        k_h = qkv1[:, :, c + h * hd:c + (h + 1) * hd].astype(cdt)
        v1_h = qkv1[:, :, 2 * c + h * hd:2 * c + (h + 1) * hd].astype(cdt)
        v2_h = v2[:, :, h * hd:(h + 1) * hd].astype(cdt)
        s = jnp.einsum('bnd,bmd->bnm', q_h, k_h,
                       preferred_element_type=jnp.float32)
        s = s + bias_ref[h][None]                 # relative position bias (N, N)
        a1 = _softmax_lastdim(s)
        a2 = _softmax_lastdim(a1)                 # faithful: attn2 = softmax(attn1)
        outs1.append(jnp.einsum('bnm,bmd->bnd', a1.astype(cdt), v1_h,
                                preferred_element_type=jnp.float32))
        outs2.append(jnp.einsum('bnm,bmd->bnd', a2.astype(cdt), v2_h,
                                preferred_element_type=jnp.float32))

    y1 = jnp.concatenate(outs1, axis=-1).reshape(rows, c)
    y2 = jnp.concatenate(outs2, axis=-1).reshape(rows, c)

    # output projections + fused post-attention residual (raw input rows)
    o1 = jnp.dot(y1.astype(cdt), wp1_ref[...],
                 preferred_element_type=jnp.float32) + bp1_ref[0] + x1
    o2 = jnp.dot(y2.astype(cdt), wp2_ref[...],
                 preferred_element_type=jnp.float32) + bp2_ref[0] + x2
    o1_ref[...] = o1.reshape(wb, wsa, wsb, c).astype(o1_ref.dtype)
    o2_ref[...] = o2.reshape(wb, wsa, wsb, c).astype(o2_ref.dtype)


def fused_window_attention(x1, x2, params, *, num_heads):
    """x1/x2: (B*H/ws, ws, W/ws, ws, C) metadata views of (B, H, W, C)."""
    G, wsa, n_ww, wsb, C = x1.shape
    N = wsa * wsb
    vmem_limit, row_cap = _vmem_budget()
    wb = _pick_window_block(G, N, n_ww, row_cap)
    grid = (G // wb, n_ww)

    def win_spec():
        # Dim 2 (window column) is squeezed; its block index is grid axis j.
        # The window-partition transpose is absorbed by this index_map, so no
        # wrapper-side HBM transpose passes are needed.
        return pl.BlockSpec((wb, wsa, None, wsb, C), lambda i, j: (i, 0, j, 0, 0))

    def const2(shape):
        return pl.BlockSpec(shape, lambda i, j: (0, 0))

    kernel = functools.partial(_fused_window_attn_kernel, num_heads=num_heads)
    out_sds = jax.ShapeDtypeStruct((G, wsa, n_ww, wsb, C), x1.dtype)
    return pl.pallas_call(
        kernel,
        out_shape=(out_sds, out_sds),
        grid=grid,
        in_specs=[
            win_spec(), win_spec(),
            const2((1, C)), const2((1, C)),                      # norm1 gamma/beta
            const2(params["wqkv1"].shape), const2((1, 3 * C)),
            const2(params["wv2"].shape), const2((1, C)),
            const2(params["wproj1"].shape), const2((1, C)),
            const2(params["wproj2"].shape), const2((1, C)),
            pl.BlockSpec(params["rel_bias"].shape, lambda i, j: (0, 0, 0)),
        ],
        out_specs=(win_spec(), win_spec()),
        compiler_params=pltpu.CompilerParams(
            dimension_semantics=("parallel", "parallel"),
            vmem_limit_bytes=vmem_limit),
    )(x1, x2,
      params["norm1_g"].reshape(1, C), params["norm1_b"].reshape(1, C),
      params["wqkv1"], params["bqkv1"].reshape(1, 3 * C),
      params["wv2"], params["bv2"].reshape(1, C),
      params["wproj1"], params["bproj1"].reshape(1, C),
      params["wproj2"], params["bproj2"].reshape(1, C),
      params["rel_bias"])


# ----------------------------------------------------------------------------
# Kernel B: fused  x + MLP(LayerNorm(x))  for BOTH streams (shared weights)
# ----------------------------------------------------------------------------
def _ln_mlp_res_dual_kernel(x1_ref, x2_ref, g_ref, b_ref,
                            w1_ref, b1_ref, w2_ref, b2_ref,
                            o1_ref, o2_ref):
    g = g_ref[0].astype(jnp.float32)
    b = b_ref[0].astype(jnp.float32)
    w1 = w1_ref[...]
    b1 = b1_ref[0]
    w2 = w2_ref[...]
    b2 = b2_ref[0]
    cdt = w1.dtype                  # bf16 MXU operands
    for x_ref, o_ref in ((x1_ref, o1_ref), (x2_ref, o2_ref)):
        x = x_ref[...].astype(jnp.float32)
        xn = _layer_norm_f32(x, g, b)
        h = jnp.dot(xn.astype(cdt), w1, preferred_element_type=jnp.float32) + b1
        # exact GELU (matches torch.nn.GELU default), f32 math
        h = 0.5 * h * (1.0 + jax.lax.erf(h * 0.7071067811865476))
        y = jnp.dot(h.astype(cdt), w2, preferred_element_type=jnp.float32) + b2
        o_ref[...] = (x + y).astype(o_ref.dtype)


def ln_mlp_residual_dual(x1, x2, gamma, beta, w1, b1, w2, b2):
    R, C = x1.shape
    Hd = w1.shape[1]
    vmem_limit, row_cap = _vmem_budget()
    rt = _pick_row_tile(R, row_cap)
    grid = (R // rt,)

    def row_spec():
        return pl.BlockSpec((rt, C), lambda i: (i, 0))

    def const(shape):
        return pl.BlockSpec(shape, lambda i: (0, 0))

    return pl.pallas_call(
        _ln_mlp_res_dual_kernel,
        out_shape=(jax.ShapeDtypeStruct((R, C), x1.dtype),
                   jax.ShapeDtypeStruct((R, C), x2.dtype)),
        grid=grid,
        in_specs=[row_spec(), row_spec(),
                  const((1, C)), const((1, C)),
                  const((C, Hd)), const((1, Hd)),
                  const((Hd, C)), const((1, C))],
        out_specs=(row_spec(), row_spec()),
        compiler_params=pltpu.CompilerParams(
            dimension_semantics=("parallel",),
            vmem_limit_bytes=vmem_limit),
    )(x1, x2, gamma.reshape(1, C), beta.reshape(1, C),
      w1, b1.reshape(1, Hd), w2, b2.reshape(1, C))


# ----------------------------------------------------------------------------
# Relative position bias index (host-side, one time)
# ----------------------------------------------------------------------------
def relative_position_index(ws):
    coords_h = np.arange(ws)
    coords_w = np.arange(ws)
    coords = np.stack(np.meshgrid(coords_h, coords_w, indexing="ij"))   # (2, ws, ws)
    coords_flatten = coords.reshape(2, -1)
    rel = coords_flatten[:, :, None] - coords_flatten[:, None, :]
    rel = rel.transpose(1, 2, 0).copy()
    rel[:, :, 0] += ws - 1
    rel[:, :, 1] += ws - 1
    rel[:, :, 0] *= 2 * ws - 1
    return rel.sum(-1)                                                  # (N, N)


# ----------------------------------------------------------------------------
# Parameter init (raw, PyTorch-style) and kernel-friendly preparation
# ----------------------------------------------------------------------------
def init_params(key, dim, num_heads, window_size, mlp_ratio=4.0):
    hidden = int(dim * mlp_ratio)
    ks = jax.random.split(key, 8)
    w = lambda k, din, dout: (0.02 * jax.random.normal(k, (din, dout))).astype(jnp.float32)
    z = lambda n: jnp.zeros((n,), jnp.float32)
    return {
        "norm1_g": jnp.ones((dim,), jnp.float32), "norm1_b": z(dim),
        "norm2_g": jnp.ones((dim,), jnp.float32), "norm2_b": z(dim),
        "wqkv1": w(ks[0], dim, 3 * dim), "bqkv1": z(3 * dim),
        "wqkv2": w(ks[1], dim, 3 * dim), "bqkv2": z(3 * dim),
        "wproj1": w(ks[2], dim, dim), "bproj1": z(dim),
        "wproj2": w(ks[3], dim, dim), "bproj2": z(dim),
        "w_fc1": w(ks[4], dim, hidden), "b_fc1": z(hidden),
        "w_fc2": w(ks[5], hidden, dim), "b_fc2": z(dim),
        "rel_table": (0.02 * jax.random.normal(
            ks[6], ((2 * window_size - 1) ** 2, num_heads))).astype(jnp.float32),
    }


def prepare_params(raw, *, window_size, num_heads, matmul_dtype=jnp.bfloat16):
    """One-time transform: fold attention scale into Q, slice stream-2 V,
    precompute the relative-position bias gather, cast weights to bf16."""
    C = raw["norm1_g"].shape[0]
    scale = float((C // num_heads) ** -0.5)

    wqkv1 = raw["wqkv1"].astype(jnp.float32).at[:, :C].multiply(scale)
    bqkv1 = raw["bqkv1"].astype(jnp.float32).at[:C].multiply(scale)
    wv2 = raw["wqkv2"][:, 2 * C:3 * C]          # stream-2 V columns only
    bv2 = raw["bqkv2"][2 * C:3 * C]

    N = window_size * window_size
    idx = relative_position_index(window_size).reshape(-1)
    rel = raw["rel_table"][idx].reshape(N, N, num_heads)
    rel_bias = jnp.transpose(rel, (2, 0, 1)).astype(jnp.float32)

    cast = lambda w: w.astype(matmul_dtype)
    return {
        "norm1_g": raw["norm1_g"], "norm1_b": raw["norm1_b"],
        "norm2_g": raw["norm2_g"], "norm2_b": raw["norm2_b"],
        "wqkv1": cast(wqkv1), "bqkv1": bqkv1,
        "wv2": cast(wv2), "bv2": bv2,
        "wproj1": cast(raw["wproj1"]), "bproj1": raw["bproj1"],
        "wproj2": cast(raw["wproj2"]), "bproj2": raw["bproj2"],
        "w_fc1": cast(raw["w_fc1"]), "b_fc1": raw["b_fc1"],
        "w_fc2": cast(raw["w_fc2"]), "b_fc2": raw["b_fc2"],
        "rel_bias": rel_bias,
    }


# ----------------------------------------------------------------------------
# Full SwinTransformerBlock forward (shift_size = 0 path)
# ----------------------------------------------------------------------------
def swin_transformer_block_forward(rgb, hs, mask_rgb, mask_hs, params,
                                   *, H, W, window_size, num_heads):
    # With shift_size=0 (module default) the mask windows are None in the
    # reference, so mask_rgb / mask_hs are never used (no TokenExchange).
    # TODO(synk): shift_size > 0 path (cyclic roll + attn mask + TokenExchange).
    del mask_rgb, mask_hs
    B, L, C = rgb.shape
    assert L == H * W
    assert H % window_size == 0 and W % window_size == 0   # no padding needed
    ws = window_size
    n_wh, n_ww = H // ws, W // ws

    # (B, L, C) -> (B*nWh, ws, nWw, ws, C): pure metadata reshape; the window
    # partition/reverse transposes are absorbed by Kernel A's BlockSpecs.
    x1 = rgb.reshape(B * n_wh, ws, n_ww, ws, C)
    x2 = hs.reshape(B * n_wh, ws, n_ww, ws, C)

    a1, a2 = fused_window_attention(x1, x2, params, num_heads=num_heads)

    # back to row layout (again metadata only) for the MLP kernel
    rgb_mid = a1.reshape(B * L, C)
    hs_mid = a2.reshape(B * L, C)

    # norm2 + MLP + residual for both streams in a single pallas_call
    rgb_out, hs_out = ln_mlp_residual_dual(
        rgb_mid, hs_mid,
        params["norm2_g"], params["norm2_b"],
        params["w_fc1"], params["b_fc1"],
        params["w_fc2"], params["b_fc2"])
    return rgb_out.reshape(B, L, C), hs_out.reshape(B, L, C)


# ----------------------------------------------------------------------------
# Example run
# ----------------------------------------------------------------------------
if __name__ == "__main__":
    B, H, W, C = 2, 16, 16, 32
    num_heads, window_size = 4, 8
    L = H * W

    key = jax.random.PRNGKey(0)
    k_p, k_rgb, k_hs, k_m1, k_m2 = jax.random.split(key, 5)
    raw = init_params(k_p, C, num_heads, window_size)
    params = prepare_params(raw, window_size=window_size, num_heads=num_heads)

    rgb = jax.random.normal(k_rgb, (B, L, C), jnp.float32)
    hs = jax.random.normal(k_hs, (B, L, C), jnp.float32)
    mask_rgb = jax.random.uniform(k_m1, (B, L), jnp.float32)
    mask_hs = jax.random.uniform(k_m2, (B, L), jnp.float32)

    fwd = jax.jit(functools.partial(
        swin_transformer_block_forward,
        H=H, W=W, window_size=window_size, num_heads=num_heads))

    out_rgb, out_hs = fwd(rgb, hs, mask_rgb, mask_hs, params)
    jax.block_until_ready((out_rgb, out_hs))
    assert out_rgb.shape == (B, L, C) and out_hs.shape == (B, L, C)
    assert bool(jnp.all(jnp.isfinite(out_rgb))) and bool(jnp.all(jnp.isfinite(out_hs)))
    print("KERNEL_OK")
</pallas_src>

<mosaic_0001>
module attributes {stable_mosaic.version = 11 : i64} {
  func.func @_fused_window_attn_kernel(%arg0: i32, %arg1: i32, %arg2: memref<2x8x1x8x32xf32, #tpu.memory_space<vmem>>, %arg3: memref<2x8x1x8x32xf32, #tpu.memory_space<vmem>>, %arg4: memref<1x32xf32, #tpu.memory_space<vmem>>, %arg5: memref<1x32xf32, #tpu.memory_space<vmem>>, %arg6: memref<32x96xbf16, #tpu.memory_space<vmem>>, %arg7: memref<1x96xf32, #tpu.memory_space<vmem>>, %arg8: memref<32x32xbf16, #tpu.memory_space<vmem>>, %arg9: memref<1x32xf32, #tpu.memory_space<vmem>>, %arg10: memref<32x32xbf16, #tpu.memory_space<vmem>>, %arg11: memref<1x32xf32, #tpu.memory_space<vmem>>, %arg12: memref<32x32xbf16, #tpu.memory_space<vmem>>, %arg13: memref<1x32xf32, #tpu.memory_space<vmem>>, %arg14: memref<4x64x64xf32, #tpu.memory_space<vmem>>, %arg15: memref<2x8x1x8x32xf32, #tpu.memory_space<vmem>>, %arg16: memref<2x8x1x8x32xf32, #tpu.memory_space<vmem>>) attributes {dimension_semantics = [#tpu.dimension_semantics<parallel>, #tpu.dimension_semantics<parallel>], iteration_bounds = array<i64: 2, 2>, scalar_prefetch = 0 : i64, scratch_operands = 0 : i64, tpu.core_type = #tpu.core_type<tc>, window_params = [{transform_indices = @transform_0, window_bounds = array<i64: 2, 8, 1, 8, 32>}, {transform_indices = @transform_1, window_bounds = array<i64: 2, 8, 1, 8, 32>}, {pipeline_mode = #tpu.pipeline_mode<synchronous>, transform_indices = @transform_2, window_bounds = array<i64: 1, 32>}, {pipeline_mode = #tpu.pipeline_mode<synchronous>, transform_indices = @transform_3, window_bounds = array<i64: 1, 32>}, {pipeline_mode = #tpu.pipeline_mode<synchronous>, transform_indices = @transform_4, window_bounds = array<i64: 32, 96>}, {pipeline_mode = #tpu.pipeline_mode<synchronous>, transform_indices = @transform_5, window_bounds = array<i64: 1, 96>}, {pipeline_mode = #tpu.pipeline_mode<synchronous>, transform_indices = @transform_6, window_bounds = array<i64: 32, 32>}, {pipeline_mode = #tpu.pipeline_mode<synchronous>, transform_indices = @transform_7, window_bounds = array<i64: 1, 32>}, {pipeline_mode = #tpu.pipeline_mode<synchronous>, transform_indices = @transform_8, window_bounds = array<i64: 32, 32>}, {pipeline_mode = #tpu.pipeline_mode<synchronous>, transform_indices = @transform_9, window_bounds = array<i64: 1, 32>}, {pipeline_mode = #tpu.pipeline_mode<synchronous>, transform_indices = @transform_10, window_bounds = array<i64: 32, 32>}, {pipeline_mode = #tpu.pipeline_mode<synchronous>, transform_indices = @transform_11, window_bounds = array<i64: 1, 32>}, {pipeline_mode = #tpu.pipeline_mode<synchronous>, transform_indices = @transform_12, window_bounds = array<i64: 4, 64, 64>}, {transform_indices = @transform_13, window_bounds = array<i64: 2, 8, 1, 8, 32>}, {transform_indices = @transform_14, window_bounds = array<i64: 2, 8, 1, 8, 32>}]} {
    %c0 = arith.constant 0 : index
    %c0_0 = arith.constant 0 : index
    %0 = vector.load %arg4[%c0, %c0_0] : memref<1x32xf32, #tpu.memory_space<vmem>>, vector<1x32xf32>
    %1 = vector.shape_cast %0 : vector<1x32xf32> to vector<32xf32>
    %c0_1 = arith.constant 0 : index
    %c0_2 = arith.constant 0 : index
    %2 = vector.load %arg5[%c0_1, %c0_2] : memref<1x32xf32, #tpu.memory_space<vmem>>, vector<1x32xf32>
    %3 = vector.shape_cast %2 : vector<1x32xf32> to vector<32xf32>
    %c0_3 = arith.constant 0 : index
    %c0_4 = arith.constant 0 : index
    %c0_5 = arith.constant 0 : index
    %c0_6 = arith.constant 0 : index
    %c0_7 = arith.constant 0 : index
    %4 = vector.load %arg2[%c0_3, %c0_4, %c0_5, %c0_6, %c0_7] : memref<2x8x1x8x32xf32, #tpu.memory_space<vmem>>, vector<2x8x1x8x32xf32>
    %5 = vector.shape_cast %4 : vector<2x8x1x8x32xf32> to vector<2x8x8x32xf32>
    %6 = vector.shape_cast %5 : vector<2x8x8x32xf32> to vector<128x32xf32>
    %c0_8 = arith.constant 0 : index
    %c0_9 = arith.constant 0 : index
    %c0_10 = arith.constant 0 : index
    %c0_11 = arith.constant 0 : index
    %c0_12 = arith.constant 0 : index
    %7 = vector.load %arg3[%c0_8, %c0_9, %c0_10, %c0_11, %c0_12] : memref<2x8x1x8x32xf32, #tpu.memory_space<vmem>>, vector<2x8x1x8x32xf32>
    %8 = vector.shape_cast %7 : vector<2x8x1x8x32xf32> to vector<2x8x8x32xf32>
    %9 = vector.shape_cast %8 : vector<2x8x8x32xf32> to vector<128x32xf32>
    %cst = arith.constant dense<0.000000e+00> : vector<128xf32>
    %10 = vector.multi_reduction <add>, %6, %cst [1] : vector<128x32xf32> to vector<128xf32>
    %11 = vector.shape_cast %10 : vector<128xf32> to vector<128x1xf32>
    %cst_13 = arith.constant 3.200000e+01 : f32
    %12 = vector.broadcast %cst_13 : f32 to vector<128x1xf32>
    %13 = arith.divf %11, %12 : vector<128x1xf32>
    %14 = vector.broadcast %13 : vector<128x1xf32> to vector<128x32xf32>
    %15 = arith.subf %6, %14 : vector<128x32xf32>
    %16 = arith.mulf %15, %15 : vector<128x32xf32>
    %cst_14 = arith.constant dense<0.000000e+00> : vector<128xf32>
    %17 = vector.multi_reduction <add>, %16, %cst_14 [1] : vector<128x32xf32> to vector<128xf32>
    %18 = vector.shape_cast %17 : vector<128xf32> to vector<128x1xf32>
    %cst_15 = arith.constant 3.200000e+01 : f32
    %19 = vector.broadcast %cst_15 : f32 to vector<128x1xf32>
    %20 = arith.divf %18, %19 : vector<128x1xf32>
    %cst_16 = arith.constant 9.99999974E-6 : f32
    %21 = vector.broadcast %cst_16 : f32 to vector<128x1xf32>
    %22 = arith.addf %20, %21 : vector<128x1xf32>
    %23 = math.rsqrt %22 : vector<128x1xf32>
    %24 = vector.broadcast %23 : vector<128x1xf32> to vector<128x32xf32>
    %25 = arith.mulf %15, %24 : vector<128x32xf32>
    %26 = vector.shape_cast %1 : vector<32xf32> to vector<1x32xf32>
    %27 = vector.broadcast %26 : vector<1x32xf32> to vector<128x32xf32>
    %28 = arith.mulf %25, %27 : vector<128x32xf32>
    %29 = vector.shape_cast %3 : vector<32xf32> to vector<1x32xf32>
    %30 = vector.broadcast %29 : vector<1x32xf32> to vector<128x32xf32>
    %31 = arith.addf %28, %30 : vector<128x32xf32>
    %cst_17 = arith.constant dense<0.000000e+00> : vector<128xf32>
    %32 = vector.multi_reduction <add>, %9, %cst_17 [1] : vector<128x32xf32> to vector<128xf32>
    %33 = vector.shape_cast %32 : vector<128xf32> to vector<128x1xf32>
    %cst_18 = arith.constant 3.200000e+01 : f32
    %34 = vector.broadcast %cst_18 : f32 to vector<128x1xf32>
    %35 = arith.divf %33, %34 : vector<128x1xf32>
    %36 = vector.broadcast %35 : vector<128x1xf32> to vector<128x32xf32>
    %37 = arith.subf %9, %36 : vector<128x32xf32>
    %38 = arith.mulf %37, %37 : vector<128x32xf32>
    %cst_19 = arith.constant dense<0.000000e+00> : vector<128xf32>
    %39 = vector.multi_reduction <add>, %38, %cst_19 [1] : vector<128x32xf32> to vector<128xf32>
    %40 = vector.shape_cast %39 : vector<128xf32> to vector<128x1xf32>
    %cst_20 = arith.constant 3.200000e+01 : f32
    %41 = vector.broadcast %cst_20 : f32 to vector<128x1xf32>
    %42 = arith.divf %40, %41 : vector<128x1xf32>
    %cst_21 = arith.constant 9.99999974E-6 : f32
    %43 = vector.broadcast %cst_21 : f32 to vector<128x1xf32>
    %44 = arith.addf %42, %43 : vector<128x1xf32>
    %45 = math.rsqrt %44 : vector<128x1xf32>
    %46 = vector.broadcast %45 : vector<128x1xf32> to vector<128x32xf32>
    %47 = arith.mulf %37, %46 : vector<128x32xf32>
    %48 = vector.shape_cast %1 : vector<32xf32> to vector<1x32xf32>
    %49 = vector.broadcast %48 : vector<1x32xf32> to vector<128x32xf32>
    %50 = arith.mulf %47, %49 : vector<128x32xf32>
    %51 = vector.shape_cast %3 : vector<32xf32> to vector<1x32xf32>
    %52 = vector.broadcast %51 : vector<1x32xf32> to vector<128x32xf32>
    %53 = arith.addf %50, %52 : vector<128x32xf32>
    %54 = arith.truncf %31 : vector<128x32xf32> to vector<128x32xbf16>
    %c0_22 = arith.constant 0 : index
    %c0_23 = arith.constant 0 : index
    %55 = vector.load %arg6[%c0_22, %c0_23] : memref<32x96xbf16, #tpu.memory_space<vmem>>, vector<32x96xbf16>
    %cst_24 = arith.constant dense<0.000000e+00> : vector<128x96xf32>
    %56 = tpu.matmul %54, %55, %cst_24 {dimension_numbers = #tpu.dot_dimension_numbers<[1], [0], [0], [1], [0, 0, 1, 1], [], []>} : vector<128x32xbf16>, vector<32x96xbf16>, vector<128x96xf32> -> vector<128x96xf32>
    %c0_25 = arith.constant 0 : index
    %c0_26 = arith.constant 0 : index
    %57 = vector.load %arg7[%c0_25, %c0_26] : memref<1x96xf32, #tpu.memory_space<vmem>>, vector<1x96xf32>
    %58 = vector.shape_cast %57 : vector<1x96xf32> to vector<96xf32>
    %59 = vector.shape_cast %58 : vector<96xf32> to vector<1x96xf32>
    %60 = vector.broadcast %59 : vector<1x96xf32> to vector<128x96xf32>
    %61 = arith.addf %56, %60 : vector<128x96xf32>
    %62 = arith.truncf %53 : vector<128x32xf32> to vector<128x32xbf16>
    %c0_27 = arith.constant 0 : index
    %c0_28 = arith.constant 0 : index
    %63 = vector.load %arg8[%c0_27, %c0_28] : memref<32x32xbf16, #tpu.memory_space<vmem>>, vector<32x32xbf16>
    %cst_29 = arith.constant dense<0.000000e+00> : vector<128x32xf32>
    %64 = tpu.matmul %62, %63, %cst_29 {dimension_numbers = #tpu.dot_dimension_numbers<[1], [0], [0], [1], [0, 0, 1, 1], [], []>} : vector<128x32xbf16>, vector<32x32xbf16>, vector<128x32xf32> -> vector<128x32xf32>
    %c0_30 = arith.constant 0 : index
    %c0_31 = arith.constant 0 : index
    %65 = vector.load %arg9[%c0_30, %c0_31] : memref<1x32xf32, #tpu.memory_space<vmem>>, vector<1x32xf32>
    %66 = vector.shape_cast %65 : vector<1x32xf32> to vector<32xf32>
    %67 = vector.shape_cast %66 : vector<32xf32> to vector<1x32xf32>
    %68 = vector.broadcast %67 : vector<1x32xf32> to vector<128x32xf32>
    %69 = arith.addf %64, %68 : vector<128x32xf32>
    %70 = vector.shape_cast %61 : vector<128x96xf32> to vector<2x64x96xf32>
    %71 = vector.shape_cast %69 : vector<128x32xf32> to vector<2x64x32xf32>
    %72 = vector.extract_strided_slice %70 {offsets = [0, 0, 0], sizes = [2, 64, 8], strides = [1, 1, 1]} : vector<2x64x96xf32> to vector<2x64x8xf32>
    %73 = arith.truncf %72 : vector<2x64x8xf32> to vector<2x64x8xbf16>
    %74 = vector.extract_strided_slice %70 {offsets = [0, 0, 32], sizes = [2, 64, 8], strides = [1, 1, 1]} : vector<2x64x96xf32> to vector<2x64x8xf32>
    %75 = arith.truncf %74 : vector<2x64x8xf32> to vector<2x64x8xbf16>
    %76 = vector.extract_strided_slice %70 {offsets = [0, 0, 64], sizes = [2, 64, 8], strides = [1, 1, 1]} : vector<2x64x96xf32> to vector<2x64x8xf32>
    %77 = arith.truncf %76 : vector<2x64x8xf32> to vector<2x64x8xbf16>
    %78 = vector.extract_strided_slice %71 {offsets = [0, 0, 0], sizes = [2, 64, 8], strides = [1, 1, 1]} : vector<2x64x32xf32> to vector<2x64x8xf32>
    %79 = arith.truncf %78 : vector<2x64x8xf32> to vector<2x64x8xbf16>
    "tpu.trace_start"() <{level = 10 : i32, message = "bnd,bmd->bnm"}> : () -> ()
    %cst_32 = arith.constant dense<0.000000e+00> : vector<2x64x64xf32>
    %80 = tpu.matmul %73, %75, %cst_32 {dimension_numbers = #tpu.dot_dimension_numbers<[2], [2], [1], [1], [0, 0, 0, 1, 1, 1], [0], [0]>} : vector<2x64x8xbf16>, vector<2x64x8xbf16>, vector<2x64x64xf32> -> vector<2x64x64xf32>
    "tpu.trace_stop"() : () -> ()
    %c0_33 = arith.constant 0 : index
    %c0_34 = arith.constant 0 : index
    %c0_35 = arith.constant 0 : index
    %81 = vector.load %arg14[%c0_33, %c0_34, %c0_35] : memref<4x64x64xf32, #tpu.memory_space<vmem>>, vector<1x64x64xf32>
    %82 = vector.shape_cast %81 : vector<1x64x64xf32> to vector<64x64xf32>
    %83 = vector.shape_cast %82 : vector<64x64xf32> to vector<1x64x64xf32>
    %84 = vector.broadcast %83 : vector<1x64x64xf32> to vector<2x64x64xf32>
    %85 = arith.addf %80, %84 : vector<2x64x64xf32>
    %cst_36 = arith.constant dense<0xFF800000> : vector<2x64xf32>
    %86 = vector.multi_reduction <maximumf>, %85, %cst_36 [2] : vector<2x64x64xf32> to vector<2x64xf32>
    %87 = vector.shape_cast %86 : vector<2x64xf32> to vector<2x64x1xf32>
    %88 = vector.broadcast %87 : vector<2x64x1xf32> to vector<2x64x64xf32>
    %89 = arith.subf %85, %88 : vector<2x64x64xf32>
    %90 = math.exp %89 : vector<2x64x64xf32>
    %cst_37 = arith.constant dense<0.000000e+00> : vector<2x64xf32>
    %91 = vector.multi_reduction <add>, %90, %cst_37 [2] : vector<2x64x64xf32> to vector<2x64xf32>
    %92 = vector.shape_cast %91 : vector<2x64xf32> to vector<2x64x1xf32>
    %93 = tpu.reciprocal %92 {approx = true} : vector<2x64x1xf32> -> vector<2x64x1xf32>
    %94 = vector.broadcast %93 : vector<2x64x1xf32> to vector<2x64x64xf32>
    %95 = arith.mulf %90, %94 : vector<2x64x64xf32>
    %cst_38 = arith.constant dense<0xFF800000> : vector<2x64xf32>
    %96 = vector.multi_reduction <maximumf>, %95, %cst_38 [2] : vector<2x64x64xf32> to vector<2x64xf32>
    %97 = vector.shape_cast %96 : vector<2x64xf32> to vector<2x64x1xf32>
    %98 = vector.broadcast %97 : vector<2x64x1xf32> to vector<2x64x64xf32>
    %99 = arith.subf %95, %98 : vector<2x64x64xf32>
    %100 = math.exp %99 : vector<2x64x64xf32>
    %cst_39 = arith.constant dense<0.000000e+00> : vector<2x64xf32>
    %101 = vector.multi_reduction <add>, %100, %cst_39 [2] : vector<2x64x64xf32> to vector<2x64xf32>
    %102 = vector.shape_cast %101 : vector<2x64xf32> to vector<2x64x1xf32>
    %103 = tpu.reciprocal %102 {approx = true} : vector<2x64x1xf32> -> vector<2x64x1xf32>
    %104 = vector.broadcast %103 : vector<2x64x1xf32> to vector<2x64x64xf32>
    %105 = arith.mulf %100, %104 : vector<2x64x64xf32>
    %106 = arith.truncf %95 : vector<2x64x64xf32> to vector<2x64x64xbf16>
    "tpu.trace_start"() <{level = 10 : i32, message = "bnm,bmd->bnd"}> : () -> ()
    %cst_40 = arith.constant dense<0.000000e+00> : vector<2x64x8xf32>
    %107 = tpu.matmul %106, %77, %cst_40 {dimension_numbers = #tpu.dot_dimension_numbers<[2], [1], [1], [2], [0, 0, 0, 1, 1, 2], [0], [0]>} : vector<2x64x64xbf16>, vector<2x64x8xbf16>, vector<2x64x8xf32> -> vector<2x64x8xf32>
    "tpu.trace_stop"() : () -> ()
    %108 = arith.truncf %105 : vector<2x64x64xf32> to vector<2x64x64xbf16>
    "tpu.trace_start"() <{level = 10 : i32, message = "bnm,bmd->bnd"}> : () -> ()
    %cst_41 = arith.constant dense<0.000000e+00> : vector<2x64x8xf32>
    %109 = tpu.matmul %108, %79, %cst_41 {dimension_numbers = #tpu.dot_dimension_numbers<[2], [1], [1], [2], [0, 0, 0, 1, 1, 2], [0], [0]>} : vector<2x64x64xbf16>, vector<2x64x8xbf16>, vector<2x64x8xf32> -> vector<2x64x8xf32>
    "tpu.trace_stop"() : () -> ()
    %110 = vector.extract_strided_slice %70 {offsets = [0, 0, 8], sizes = [2, 64, 8], strides = [1, 1, 1]} : vector<2x64x96xf32> to vector<2x64x8xf32>
    %111 = arith.truncf %110 : vector<2x64x8xf32> to vector<2x64x8xbf16>
    %112 = vector.extract_strided_slice %70 {offsets = [0, 0, 40], sizes = [2, 64, 8], strides = [1, 1, 1]} : vector<2x64x96xf32> to vector<2x64x8xf32>
    %113 = arith.truncf %112 : vector<2x64x8xf32> to vector<2x64x8xbf16>
    %114 = vector.extract_strided_slice %70 {offsets = [0, 0, 72], sizes = [2, 64, 8], strides = [1, 1, 1]} : vector<2x64x96xf32> to vector<2x64x8xf32>
    %115 = arith.truncf %114 : vector<2x64x8xf32> to vector<2x64x8xbf16>
    %116 = vector.extract_strided_slice %71 {offsets = [0, 0, 8], sizes = [2, 64, 8], strides = [1, 1, 1]} : vector<2x64x32xf32> to vector<2x64x8xf32>
    %117 = arith.truncf %116 : vector<2x64x8xf32> to vector<2x64x8xbf16>
    "tpu.trace_start"() <{level = 10 : i32, message = "bnd,bmd->bnm"}> : () -> ()
    %cst_42 = arith.constant dense<0.000000e+00> : vector<2x64x64xf32>
    %118 = tpu.matmul %111, %113, %cst_42 {dimension_numbers = #tpu.dot_dimension_numbers<[2], [2], [1], [1], [0, 0, 0, 1, 1, 1], [0], [0]>} : vector<2x64x8xbf16>, vector<2x64x8xbf16>, vector<2x64x64xf32> -> vector<2x64x64xf32>
    "tpu.trace_stop"() : () -> ()
    %c1 = arith.constant 1 : index
    %c0_43 = arith.constant 0 : index
    %c0_44 = arith.constant 0 : index
    %119 = vector.load %arg14[%c1, %c0_43, %c0_44] : memref<4x64x64xf32, #tpu.memory_space<vmem>>, vector<1x64x64xf32>
    %120 = vector.shape_cast %119 : vector<1x64x64xf32> to vector<64x64xf32>
    %121 = vector.shape_cast %120 : vector<64x64xf32> to vector<1x64x64xf32>
    %122 = vector.broadcast %121 : vector<1x64x64xf32> to vector<2x64x64xf32>
    %123 = arith.addf %118, %122 : vector<2x64x64xf32>
    %cst_45 = arith.constant dense<0xFF800000> : vector<2x64xf32>
    %124 = vector.multi_reduction <maximumf>, %123, %cst_45 [2] : vector<2x64x64xf32> to vector<2x64xf32>
    %125 = vector.shape_cast %124 : vector<2x64xf32> to vector<2x64x1xf32>
    %126 = vector.broadcast %125 : vector<2x64x1xf32> to vector<2x64x64xf32>
    %127 = arith.subf %123, %126 : vector<2x64x64xf32>
    %128 = math.exp %127 : vector<2x64x64xf32>
    %cst_46 = arith.constant dense<0.000000e+00> : vector<2x64xf32>
    %129 = vector.multi_reduction <add>, %128, %cst_46 [2] : vector<2x64x64xf32> to vector<2x64xf32>
    %130 = vector.shape_cast %129 : vector<2x64xf32> to vector<2x64x1xf32>
    %131 = tpu.reciprocal %130 {approx = true} : vector<2x64x1xf32> -> vector<2x64x1xf32>
    %132 = vector.broadcast %131 : vector<2x64x1xf32> to vector<2x64x64xf32>
    %133 = arith.mulf %128, %132 : vector<2x64x64xf32>
    %cst_47 = arith.constant dense<0xFF800000> : vector<2x64xf32>
    %134 = vector.multi_reduction <maximumf>, %133, %cst_47 [2] : vector<2x64x64xf32> to vector<2x64xf32>
    %135 = vector.shape_cast %134 : vector<2x64xf32> to vector<2x64x1xf32>
    %136 = vector.broadcast %135 : vector<2x64x1xf32> to vector<2x64x64xf32>
    %137 = arith.subf %133, %136 : vector<2x64x64xf32>
    %138 = math.exp %137 : vector<2x64x64xf32>
    %cst_48 = arith.constant dense<0.000000e+00> : vector<2x64xf32>
    %139 = vector.multi_reduction <add>, %138, %cst_48 [2] : vector<2x64x64xf32> to vector<2x64xf32>
    %140 = vector.shape_cast %139 : vector<2x64xf32> to vector<2x64x1xf32>
    %141 = tpu.reciprocal %140 {approx = true} : vector<2x64x1xf32> -> vector<2x64x1xf32>
    %142 = vector.broadcast %141 : vector<2x64x1xf32> to vector<2x64x64xf32>
    %143 = arith.mulf %138, %142 : vector<2x64x64xf32>
    %144 = arith.truncf %133 : vector<2x64x64xf32> to vector<2x64x64xbf16>
    "tpu.trace_start"() <{level = 10 : i32, message = "bnm,bmd->bnd"}> : () -> ()
    %cst_49 = arith.constant dense<0.000000e+00> : vector<2x64x8xf32>
    %145 = tpu.matmul %144, %115, %cst_49 {dimension_numbers = #tpu.dot_dimension_numbers<[2], [1], [1], [2], [0, 0, 0, 1, 1, 2], [0], [0]>} : vector<2x64x64xbf16>, vector<2x64x8xbf16>, vector<2x64x8xf32> -> vector<2x64x8xf32>
    "tpu.trace_stop"() : () -> ()
    %146 = arith.truncf %143 : vector<2x64x64xf32> to vector<2x64x64xbf16>
    "tpu.trace_start"() <{level = 10 : i32, message = "bnm,bmd->bnd"}> : () -> ()
    %cst_50 = arith.constant dense<0.000000e+00> : vector<2x64x8xf32>
    %147 = tpu.matmul %146, %117, %cst_50 {dimension_numbers = #tpu.dot_dimension_numbers<[2], [1], [1], [2], [0, 0, 0, 1, 1, 2], [0], [0]>} : vector<2x64x64xbf16>, vector<2x64x8xbf16>, vector<2x64x8xf32> -> vector<2x64x8xf32>
    "tpu.trace_stop"() : () -> ()
    %148 = vector.extract_strided_slice %70 {offsets = [0, 0, 16], sizes = [2, 64, 8], strides = [1, 1, 1]} : vector<2x64x96xf32> to vector<2x64x8xf32>
    %149 = arith.truncf %148 : vector<2x64x8xf32> to vector<2x64x8xbf16>
    %150 = vector.extract_strided_slice %70 {offsets = [0, 0, 48], sizes = [2, 64, 8], strides = [1, 1, 1]} : vector<2x64x96xf32> to vector<2x64x8xf32>
    %151 = arith.truncf %150 : vector<2x64x8xf32> to vector<2x64x8xbf16>
    %152 = vector.extract_strided_slice %70 {offsets = [0, 0, 80], sizes = [2, 64, 8], strides = [1, 1, 1]} : vector<2x64x96xf32> to vector<2x64x8xf32>
    %153 = arith.truncf %152 : vector<2x64x8xf32> to vector<2x64x8xbf16>
    %154 = vector.extract_strided_slice %71 {offsets = [0, 0, 16], sizes = [2, 64, 8], strides = [1, 1, 1]} : vector<2x64x32xf32> to vector<2x64x8xf32>
    %155 = arith.truncf %154 : vector<2x64x8xf32> to vector<2x64x8xbf16>
    "tpu.trace_start"() <{level = 10 : i32, message = "bnd,bmd->bnm"}> : () -> ()
    %cst_51 = arith.constant dense<0.000000e+00> : vector<2x64x64xf32>
    %156 = tpu.matmul %149, %151, %cst_51 {dimension_numbers = #tpu.dot_dimension_numbers<[2], [2], [1], [1], [0, 0, 0, 1, 1, 1], [0], [0]>} : vector<2x64x8xbf16>, vector<2x64x8xbf16>, vector<2x64x64xf32> -> vector<2x64x64xf32>
    "tpu.trace_stop"() : () -> ()
    %c2 = arith.constant 2 : index
    %c0_52 = arith.constant 0 : index
    %c0_53 = arith.constant 0 : index
    %157 = vector.load %arg14[%c2, %c0_52, %c0_53] : memref<4x64x64xf32, #tpu.memory_space<vmem>>, vector<1x64x64xf32>
    %158 = vector.shape_cast %157 : vector<1x64x64xf32> to vector<64x64xf32>
    %159 = vector.shape_cast %158 : vector<64x64xf32> to vector<1x64x64xf32>
    %160 = vector.broadcast %159 : vector<1x64x64xf32> to vector<2x64x64xf32>
    %161 = arith.addf %156, %160 : vector<2x64x64xf32>
    %cst_54 = arith.constant dense<0xFF800000> : vector<2x64xf32>
    %162 = vector.multi_reduction <maximumf>, %161, %cst_54 [2] : vector<2x64x64xf32> to vector<2x64xf32>
    %163 = vector.shape_cast %162 : vector<2x64xf32> to vector<2x64x1xf32>
    %164 = vector.broadcast %163 : vector<2x64x1xf32> to vector<2x64x64xf32>
    %165 = arith.subf %161, %164 : vector<2x64x64xf32>
    %166 = math.exp %165 : vector<2x64x64xf32>
    %cst_55 = arith.constant dense<0.000000e+00> : vector<2x64xf32>
    %167 = vector.multi_reduction <add>, %166, %cst_55 [2] : vector<2x64x64xf32> to vector<2x64xf32>
    %168 = vector.shape_cast %167 : vector<2x64xf32> to vector<2x64x1xf32>
    %169 = tpu.reciprocal %168 {approx = true} : vector<2x64x1xf32> -> vector<2x64x1xf32>
    %170 = vector.broadcast %169 : vector<2x64x1xf32> to vector<2x64x64xf32>
    %171 = arith.mulf %166, %170 : vector<2x64x64xf32>
    %cst_56 = arith.constant dense<0xFF800000> : vector<2x64xf32>
    %172 = vector.multi_reduction <maximumf>, %171, %cst_56 [2] : vector<2x64x64xf32> to vector<2x64xf32>
    %173 = vector.shape_cast %172 : vector<2x64xf32> to vector<2x64x1xf32>
    %174 = vector.broadcast %173 : vector<2x64x1xf32> to vector<2x64x64xf32>
    %175 = arith.subf %171, %174 : vector<2x64x64xf32>
    %176 = math.exp %175 : vector<2x64x64xf32>
    %cst_57 = arith.constant dense<0.000000e+00> : vector<2x64xf32>
    %177 = vector.multi_reduction <add>, %176, %cst_57 [2] : vector<2x64x64xf32> to vector<2x64xf32>
    %178 = vector.shape_cast %177 : vector<2x64xf32> to vector<2x64x1xf32>
    %179 = tpu.reciprocal %178 {approx = true} : vector<2x64x1xf32> -> vector<2x64x1xf32>
    %180 = vector.broadcast %179 : vector<2x64x1xf32> to vector<2x64x64xf32>
    %181 = arith.mulf %176, %180 : vector<2x64x64xf32>
    %182 = arith.truncf %171 : vector<2x64x64xf32> to vector<2x64x64xbf16>
    "tpu.trace_start"() <{level = 10 : i32, message = "bnm,bmd->bnd"}> : () -> ()
    %cst_58 = arith.constant dense<0.000000e+00> : vector<2x64x8xf32>
    %183 = tpu.matmul %182, %153, %cst_58 {dimension_numbers = #tpu.dot_dimension_numbers<[2], [1], [1], [2], [0, 0, 0, 1, 1, 2], [0], [0]>} : vector<2x64x64xbf16>, vector<2x64x8xbf16>, vector<2x64x8xf32> -> vector<2x64x8xf32>
    "tpu.trace_stop"() : () -> ()
    %184 = arith.truncf %181 : vector<2x64x64xf32> to vector<2x64x64xbf16>
    "tpu.trace_start"() <{level = 10 : i32, message = "bnm,bmd->bnd"}> : () -> ()
    %cst_59 = arith.constant dense<0.000000e+00> : vector<2x64x8xf32>
    %185 = tpu.matmul %184, %155, %cst_59 {dimension_numbers = #tpu.dot_dimension_numbers<[2], [1], [1], [2], [0, 0, 0, 1, 1, 2], [0], [0]>} : vector<2x64x64xbf16>, vector<2x64x8xbf16>, vector<2x64x8xf32> -> vector<2x64x8xf32>
    "tpu.trace_stop"() : () -> ()
    %186 = vector.extract_strided_slice %70 {offsets = [0, 0, 24], sizes = [2, 64, 8], strides = [1, 1, 1]} : vector<2x64x96xf32> to vector<2x64x8xf32>
    %187 = arith.truncf %186 : vector<2x64x8xf32> to vector<2x64x8xbf16>
    %188 = vector.extract_strided_slice %70 {offsets = [0, 0, 56], sizes = [2, 64, 8], strides = [1, 1, 1]} : vector<2x64x96xf32> to vector<2x64x8xf32>
    %189 = arith.truncf %188 : vector<2x64x8xf32> to vector<2x64x8xbf16>
    %190 = vector.extract_strided_slice %70 {offsets = [0, 0, 88], sizes = [2, 64, 8], strides = [1, 1, 1]} : vector<2x64x96xf32> to vector<2x64x8xf32>
    %191 = arith.truncf %190 : vector<2x64x8xf32> to vector<2x64x8xbf16>
    %192 = vector.extract_strided_slice %71 {offsets = [0, 0, 24], sizes = [2, 64, 8], strides = [1, 1, 1]} : vector<2x64x32xf32> to vector<2x64x8xf32>
    %193 = arith.truncf %192 : vector<2x64x8xf32> to vector<2x64x8xbf16>
    "tpu.trace_start"() <{level = 10 : i32, message = "bnd,bmd->bnm"}> : () -> ()
    %cst_60 = arith.constant dense<0.000000e+00> : vector<2x64x64xf32>
    %194 = tpu.matmul %187, %189, %cst_60 {dimension_numbers = #tpu.dot_dimension_numbers<[2], [2], [1], [1], [0, 0, 0, 1, 1, 1], [0], [0]>} : vector<2x64x8xbf16>, vector<2x64x8xbf16>, vector<2x64x64xf32> -> vector<2x64x64xf32>
    "tpu.trace_stop"() : () -> ()
    %c3 = arith.constant 3 : index
    %c0_61 = arith.constant 0 : index
    %c0_62 = arith.constant 0 : index
    %195 = vector.load %arg14[%c3, %c0_61, %c0_62] : memref<4x64x64xf32, #tpu.memory_space<vmem>>, vector<1x64x64xf32>
    %196 = vector.shape_cast %195 : vector<1x64x64xf32> to vector<64x64xf32>
    %197 = vector.shape_cast %196 : vector<64x64xf32> to vector<1x64x64xf32>
    %198 = vector.broadcast %197 : vector<1x64x64xf32> to vector<2x64x64xf32>
    %199 = arith.addf %194, %198 : vector<2x64x64xf32>
    %cst_63 = arith.constant dense<0xFF800000> : vector<2x64xf32>
    %200 = vector.multi_reduction <maximumf>, %199, %cst_63 [2] : vector<2x64x64xf32> to vector<2x64xf32>
    %201 = vector.shape_cast %200 : vector<2x64xf32> to vector<2x64x1xf32>
    %202 = vector.broadcast %201 : vector<2x64x1xf32> to vector<2x64x64xf32>
    %203 = arith.subf %199, %202 : vector<2x64x64xf32>
    %204 = math.exp %203 : vector<2x64x64xf32>
    %cst_64 = arith.constant dense<0.000000e+00> : vector<2x64xf32>
    %205 = vector.multi_reduction <add>, %204, %cst_64 [2] : vector<2x64x64xf32> to vector<2x64xf32>
    %206 = vector.shape_cast %205 : vector<2x64xf32> to vector<2x64x1xf32>
    %207 = tpu.reciprocal %206 {approx = true} : vector<2x64x1xf32> -> vector<2x64x1xf32>
    %208 = vector.broadcast %207 : vector<2x64x1xf32> to vector<2x64x64xf32>
    %209 = arith.mulf %204, %208 : vector<2x64x64xf32>
    %cst_65 = arith.constant dense<0xFF800000> : vector<2x64xf32>
    %210 = vector.multi_reduction <maximumf>, %209, %cst_65 [2] : vector<2x64x64xf32> to vector<2x64xf32>
    %211 = vector.shape_cast %210 : vector<2x64xf32> to vector<2x64x1xf32>
    %212 = vector.broadcast %211 : vector<2x64x1xf32> to vector<2x64x64xf32>
    %213 = arith.subf %209, %212 : vector<2x64x64xf32>
    %214 = math.exp %213 : vector<2x64x64xf32>
    %cst_66 = arith.constant dense<0.000000e+00> : vector<2x64xf32>
    %215 = vector.multi_reduction <add>, %214, %cst_66 [2] : vector<2x64x64xf32> to vector<2x64xf32>
    %216 = vector.shape_cast %215 : vector<2x64xf32> to vector<2x64x1xf32>
    %217 = tpu.reciprocal %216 {approx = true} : vector<2x64x1xf32> -> vector<2x64x1xf32>
    %218 = vector.broadcast %217 : vector<2x64x1xf32> to vector<2x64x64xf32>
    %219 = arith.mulf %214, %218 : vector<2x64x64xf32>
    %220 = arith.truncf %209 : vector<2x64x64xf32> to vector<2x64x64xbf16>
    "tpu.trace_start"() <{level = 10 : i32, message = "bnm,bmd->bnd"}> : () -> ()
    %cst_67 = arith.constant dense<0.000000e+00> : vector<2x64x8xf32>
    %221 = tpu.matmul %220, %191, %cst_67 {dimension_numbers = #tpu.dot_dimension_numbers<[2], [1], [1], [2], [0, 0, 0, 1, 1, 2], [0], [0]>} : vector<2x64x64xbf16>, vector<2x64x8xbf16>, vector<2x64x8xf32> -> vector<2x64x8xf32>
    "tpu.trace_stop"() : () -> ()
    %222 = arith.truncf %219 : vector<2x64x64xf32> to vector<2x64x64xbf16>
    "tpu.trace_start"() <{level = 10 : i32, message = "bnm,bmd->bnd"}> : () -> ()
    %cst_68 = arith.constant dense<0.000000e+00> : vector<2x64x8xf32>
    %223 = tpu.matmul %222, %193, %cst_68 {dimension_numbers = #tpu.dot_dimension_numbers<[2], [1], [1], [2], [0, 0, 0, 1, 1, 2], [0], [0]>} : vector<2x64x64xbf16>, vector<2x64x8xbf16>, vector<2x64x8xf32> -> vector<2x64x8xf32>
    "tpu.trace_stop"() : () -> ()
    %224 = tpu.concatenate %107, %145, %183, %221 in 2 : vector<2x64x8xf32>, vector<2x64x8xf32>, vector<2x64x8xf32>, vector<2x64x8xf32> -> vector<2x64x32xf32>
    %225 = vector.shape_cast %224 : vector<2x64x32xf32> to vector<128x32xf32>
    %226 = tpu.concatenate %109, %147, %185, %223 in 2 : vector<2x64x8xf32>, vector<2x64x8xf32>, vector<2x64x8xf32>, vector<2x64x8xf32> -> vector<2x64x32xf32>
    %227 = vector.shape_cast %226 : vector<2x64x32xf32> to vector<128x32xf32>
    %228 = arith.truncf %225 : vector<128x32xf32> to vector<128x32xbf16>
    %c0_69 = arith.constant 0 : index
    %c0_70 = arith.constant 0 : index
    %229 = vector.load %arg10[%c0_69, %c0_70] : memref<32x32xbf16, #tpu.memory_space<vmem>>, vector<32x32xbf16>
    %cst_71 = arith.constant dense<0.000000e+00> : vector<128x32xf32>
    %230 = tpu.matmul %228, %229, %cst_71 {dimension_numbers = #tpu.dot_dimension_numbers<[1], [0], [0], [1], [0, 0, 1, 1], [], []>} : vector<128x32xbf16>, vector<32x32xbf16>, vector<128x32xf32> -> vector<128x32xf32>
    %c0_72 = arith.constant 0 : index
    %c0_73 = arith.constant 0 : index
    %231 = vector.load %arg11[%c0_72, %c0_73] : memref<1x32xf32, #tpu.memory_space<vmem>>, vector<1x32xf32>
    %232 = vector.shape_cast %231 : vector<1x32xf32> to vector<32xf32>
    %233 = vector.shape_cast %232 : vector<32xf32> to vector<1x32xf32>
    %234 = vector.broadcast %233 : vector<1x32xf32> to vector<128x32xf32>
    %235 = arith.addf %230, %234 : vector<128x32xf32>
    %236 = arith.addf %235, %6 : vector<128x32xf32>
    %237 = arith.truncf %227 : vector<128x32xf32> to vector<128x32xbf16>
    %c0_74 = arith.constant 0 : index
    %c0_75 = arith.constant 0 : index
    %238 = vector.load %arg12[%c0_74, %c0_75] : memref<32x32xbf16, #tpu.memory_space<vmem>>, vector<32x32xbf16>
    %cst_76 = arith.constant dense<0.000000e+00> : vector<128x32xf32>
    %239 = tpu.matmul %237, %238, %cst_76 {dimension_numbers = #tpu.dot_dimension_numbers<[1], [0], [0], [1], [0, 0, 1, 1], [], []>} : vector<128x32xbf16>, vector<32x32xbf16>, vector<128x32xf32> -> vector<128x32xf32>
    %c0_77 = arith.constant 0 : index
    %c0_78 = arith.constant 0 : index
    %240 = vector.load %arg13[%c0_77, %c0_78] : memref<1x32xf32, #tpu.memory_space<vmem>>, vector<1x32xf32>
    %241 = vector.shape_cast %240 : vector<1x32xf32> to vector<32xf32>
    %242 = vector.shape_cast %241 : vector<32xf32> to vector<1x32xf32>
    %243 = vector.broadcast %242 : vector<1x32xf32> to vector<128x32xf32>
    %244 = arith.addf %239, %243 : vector<128x32xf32>
    %245 = arith.addf %244, %9 : vector<128x32xf32>
    %246 = vector.shape_cast %236 : vector<128x32xf32> to vector<2x8x8x32xf32>
    %c0_79 = arith.constant 0 : index
    %c0_80 = arith.constant 0 : index
    %c0_81 = arith.constant 0 : index
    %c0_82 = arith.constant 0 : index
    %c0_83 = arith.constant 0 : index
    %247 = vector.load %arg15[%c0_79, %c0_80, %c0_81, %c0_82, %c0_83] : memref<2x8x1x8x32xf32, #tpu.memory_space<vmem>>, vector<2x8x1x8x32xf32>
    %248 = vector.shape_cast %247 : vector<2x8x1x8x32xf32> to vector<2x8x8x32xf32>
    %249 = vector.shape_cast %246 : vector<2x8x8x32xf32> to vector<2x8x1x8x32xf32>
    tpu.vector_store %arg15[%c0_79, %c0_80, %c0_81, %c0_82, %c0_83], %249 {strides = array<i32>} : memref<2x8x1x8x32xf32, #tpu.memory_space<vmem>>, vector<2x8x1x8x32xf32>,
    %250 = vector.shape_cast %245 : vector<128x32xf32> to vector<2x8x8x32xf32>
    %c0_84 = arith.constant 0 : index
    %c0_85 = arith.constant 0 : index
    %c0_86 = arith.constant 0 : index
    %c0_87 = arith.constant 0 : index
    %c0_88 = arith.constant 0 : index
    %251 = vector.load %arg16[%c0_84, %c0_85, %c0_86, %c0_87, %c0_88] : memref<2x8x1x8x32xf32, #tpu.memory_space<vmem>>, vector<2x8x1x8x32xf32>
    %252 = vector.shape_cast %251 : vector<2x8x1x8x32xf32> to vector<2x8x8x32xf32>
    %253 = vector.shape_cast %250 : vector<2x8x8x32xf32> to vector<2x8x1x8x32xf32>
    tpu.vector_store %arg16[%c0_84, %c0_85, %c0_86, %c0_87, %c0_88], %253 {strides = array<i32>} : memref<2x8x1x8x32xf32, #tpu.memory_space<vmem>>, vector<2x8x1x8x32xf32>,
    return
  }
  func.func @transform_0(%arg0: i32, %arg1: i32) -> (i32, i32, i32, i32, i32) {
    %c0_i32 = arith.constant 0 : i32
    %c0_i32_0 = arith.constant 0 : i32
    %c0_i32_1 = arith.constant 0 : i32
    %c0_i32_2 = arith.constant 0 : i32
    return %arg0, %c0_i32, %arg1, %c0_i32_0, %c0_i32_1 : i32, i32, i32, i32, i32
  }
  func.func @transform_1(%arg0: i32, %arg1: i32) -> (i32, i32, i32, i32, i32) {
    %c0_i32 = arith.constant 0 : i32
    %c0_i32_0 = arith.constant 0 : i32
    %c0_i32_1 = arith.constant 0 : i32
    %c0_i32_2 = arith.constant 0 : i32
    return %arg0, %c0_i32, %arg1, %c0_i32_0, %c0_i32_1 : i32, i32, i32, i32, i32
  }
  func.func @transform_2(%arg0: i32, %arg1: i32) -> (i32, i32) {
    %c0_i32 = arith.constant 0 : i32
    %c0_i32_0 = arith.constant 0 : i32
    %c0_i32_1 = arith.constant 0 : i32
    return %c0_i32, %c0_i32_0 : i32, i32
  }
  func.func @transform_3(%arg0: i32, %arg1: i32) -> (i32, i32) {
    %c0_i32 = arith.constant 0 : i32
    %c0_i32_0 = arith.constant 0 : i32
    %c0_i32_1 = arith.constant 0 : i32
    return %c0_i32, %c0_i32_0 : i32, i32
  }
  func.func @transform_4(%arg0: i32, %arg1: i32) -> (i32, i32) {
    %c0_i32 = arith.constant 0 : i32
    %c0_i32_0 = arith.constant 0 : i32
    %c0_i32_1 = arith.constant 0 : i32
    return %c0_i32, %c0_i32_0 : i32, i32
  }
  func.func @transform_5(%arg0: i32, %arg1: i32) -> (i32, i32) {
    %c0_i32 = arith.constant 0 : i32
    %c0_i32_0 = arith.constant 0 : i32
    %c0_i32_1 = arith.constant 0 : i32
    return %c0_i32, %c0_i32_0 : i32, i32
  }
  func.func @transform_6(%arg0: i32, %arg1: i32) -> (i32, i32) {
    %c0_i32 = arith.constant 0 : i32
    %c0_i32_0 = arith.constant 0 : i32
    %c0_i32_1 = arith.constant 0 : i32
    return %c0_i32, %c0_i32_0 : i32, i32
  }
  func.func @transform_7(%arg0: i32, %arg1: i32) -> (i32, i32) {
    %c0_i32 = arith.constant 0 : i32
    %c0_i32_0 = arith.constant 0 : i32
    %c0_i32_1 = arith.constant 0 : i32
    return %c0_i32, %c0_i32_0 : i32, i32
  }
  func.func @transform_8(%arg0: i32, %arg1: i32) -> (i32, i32) {
    %c0_i32 = arith.constant 0 : i32
    %c0_i32_0 = arith.constant 0 : i32
    %c0_i32_1 = arith.constant 0 : i32
    return %c0_i32, %c0_i32_0 : i32, i32
  }
  func.func @transform_9(%arg0: i32, %arg1: i32) -> (i32, i32) {
    %c0_i32 = arith.constant 0 : i32
    %c0_i32_0 = arith.constant 0 : i32
    %c0_i32_1 = arith.constant 0 : i32
    return %c0_i32, %c0_i32_0 : i32, i32
  }
  func.func @transform_10(%arg0: i32, %arg1: i32) -> (i32, i32) {
    %c0_i32 = arith.constant 0 : i32
    %c0_i32_0 = arith.constant 0 : i32
    %c0_i32_1 = arith.constant 0 : i32
    return %c0_i32, %c0_i32_0 : i32, i32
  }
  func.func @transform_11(%arg0: i32, %arg1: i32) -> (i32, i32) {
    %c0_i32 = arith.constant 0 : i32
    %c0_i32_0 = arith.constant 0 : i32
    %c0_i32_1 = arith.constant 0 : i32
    return %c0_i32, %c0_i32_0 : i32, i32
  }
  func.func @transform_12(%arg0: i32, %arg1: i32) -> (i32, i32, i32) {
    %c0_i32 = arith.constant 0 : i32
    %c0_i32_0 = arith.constant 0 : i32
    %c0_i32_1 = arith.constant 0 : i32
    %c0_i32_2 = arith.constant 0 : i32
    return %c0_i32, %c0_i32_0, %c0_i32_1 : i32, i32, i32
  }
  func.func @transform_13(%arg0: i32, %arg1: i32) -> (i32, i32, i32, i32, i32) {
    %c0_i32 = arith.constant 0 : i32
    %c0_i32_0 = arith.constant 0 : i32
    %c0_i32_1 = arith.constant 0 : i32
    %c0_i32_2 = arith.constant 0 : i32
    return %arg0, %c0_i32, %arg1, %c0_i32_0, %c0_i32_1 : i32, i32, i32, i32, i32
  }
  func.func @transform_14(%arg0: i32, %arg1: i32) -> (i32, i32, i32, i32, i32) {
    %c0_i32 = arith.constant 0 : i32
    %c0_i32_0 = arith.constant 0 : i32
    %c0_i32_1 = arith.constant 0 : i32
    %c0_i32_2 = arith.constant 0 : i32
    return %arg0, %c0_i32, %arg1, %c0_i32_0, %c0_i32_1 : i32, i32, i32, i32, i32
  }
}

module attributes {stable_mosaic.version = 11 : i64} {
  func.func @_ln_mlp_res_dual_kernel(%arg0: i32, %arg1: memref<128x32xf32, #tpu.memory_space<vmem>>, %arg2: memref<128x32xf32, #tpu.memory_space<vmem>>, %arg3: memref<1x32xf32, #tpu.memory_space<vmem>>, %arg4: memref<1x32xf32, #tpu.memory_space<vmem>>, %arg5: memref<32x128xbf16, #tpu.memory_space<vmem>>, %arg6: memref<1x128xf32, #tpu.memory_space<vmem>>, %arg7: memref<128x32xbf16, #tpu.memory_space<vmem>>, %arg8: memref<1x32xf32, #tpu.memory_space<vmem>>, %arg9: memref<128x32xf32, #tpu.memory_space<vmem>>, %arg10: memref<128x32xf32, #tpu.memory_space<vmem>>) attributes {dimension_semantics = [#tpu.dimension_semantics<parallel>], iteration_bounds = array<i64: 4>, scalar_prefetch = 0 : i64, scratch_operands = 0 : i64, tpu.core_type = #tpu.core_type<tc>, window_params = [{transform_indices = @transform_0, window_bounds = array<i64: 128, 32>}, {transform_indices = @transform_1, window_bounds = array<i64: 128, 32>}, {pipeline_mode = #tpu.pipeline_mode<synchronous>, transform_indices = @transform_2, window_bounds = array<i64: 1, 32>}, {pipeline_mode = #tpu.pipeline_mode<synchronous>, transform_indices = @transform_3, window_bounds = array<i64: 1, 32>}, {pipeline_mode = #tpu.pipeline_mode<synchronous>, transform_indices = @transform_4, window_bounds = array<i64: 32, 128>}, {pipeline_mode = #tpu.pipeline_mode<synchronous>, transform_indices = @transform_5, window_bounds = array<i64: 1, 128>}, {pipeline_mode = #tpu.pipeline_mode<synchronous>, transform_indices = @transform_6, window_bounds = array<i64: 128, 32>}, {pipeline_mode = #tpu.pipeline_mode<synchronous>, transform_indices = @transform_7, window_bounds = array<i64: 1, 32>}, {transform_indices = @transform_8, window_bounds = array<i64: 128, 32>}, {transform_indices = @transform_9, window_bounds = array<i64: 128, 32>}]} {
    %c0 = arith.constant 0 : index
    %c0_0 = arith.constant 0 : index
    %0 = vector.load %arg3[%c0, %c0_0] : memref<1x32xf32, #tpu.memory_space<vmem>>, vector<1x32xf32>
    %1 = vector.shape_cast %0 : vector<1x32xf32> to vector<32xf32>
    %c0_1 = arith.constant 0 : index
    %c0_2 = arith.constant 0 : index
    %2 = vector.load %arg4[%c0_1, %c0_2] : memref<1x32xf32, #tpu.memory_space<vmem>>, vector<1x32xf32>
    %3 = vector.shape_cast %2 : vector<1x32xf32> to vector<32xf32>
    %c0_3 = arith.constant 0 : index
    %c0_4 = arith.constant 0 : index
    %4 = vector.load %arg5[%c0_3, %c0_4] : memref<32x128xbf16, #tpu.memory_space<vmem>>, vector<32x128xbf16>
    %c0_5 = arith.constant 0 : index
    %c0_6 = arith.constant 0 : index
    %5 = vector.load %arg6[%c0_5, %c0_6] : memref<1x128xf32, #tpu.memory_space<vmem>>, vector<1x128xf32>
    %6 = vector.shape_cast %5 : vector<1x128xf32> to vector<128xf32>
    %c0_7 = arith.constant 0 : index
    %c0_8 = arith.constant 0 : index
    %7 = vector.load %arg7[%c0_7, %c0_8] : memref<128x32xbf16, #tpu.memory_space<vmem>>, vector<128x32xbf16>
    %c0_9 = arith.constant 0 : index
    %c0_10 = arith.constant 0 : index
    %8 = vector.load %arg8[%c0_9, %c0_10] : memref<1x32xf32, #tpu.memory_space<vmem>>, vector<1x32xf32>
    %9 = vector.shape_cast %8 : vector<1x32xf32> to vector<32xf32>
    %c0_11 = arith.constant 0 : index
    %c0_12 = arith.constant 0 : index
    %10 = vector.load %arg1[%c0_11, %c0_12] : memref<128x32xf32, #tpu.memory_space<vmem>>, vector<128x32xf32>
    %cst = arith.constant dense<0.000000e+00> : vector<128xf32>
    %11 = vector.multi_reduction <add>, %10, %cst [1] : vector<128x32xf32> to vector<128xf32>
    %12 = vector.shape_cast %11 : vector<128xf32> to vector<128x1xf32>
    %cst_13 = arith.constant 3.200000e+01 : f32
    %13 = vector.broadcast %cst_13 : f32 to vector<128x1xf32>
    %14 = arith.divf %12, %13 : vector<128x1xf32>
    %15 = vector.broadcast %14 : vector<128x1xf32> to vector<128x32xf32>
    %16 = arith.subf %10, %15 : vector<128x32xf32>
    %17 = arith.mulf %16, %16 : vector<128x32xf32>
    %cst_14 = arith.constant dense<0.000000e+00> : vector<128xf32>
    %18 = vector.multi_reduction <add>, %17, %cst_14 [1] : vector<128x32xf32> to vector<128xf32>
    %19 = vector.shape_cast %18 : vector<128xf32> to vector<128x1xf32>
    %cst_15 = arith.constant 3.200000e+01 : f32
    %20 = vector.broadcast %cst_15 : f32 to vector<128x1xf32>
    %21 = arith.divf %19, %20 : vector<128x1xf32>
    %cst_16 = arith.constant 9.99999974E-6 : f32
    %22 = vector.broadcast %cst_16 : f32 to vector<128x1xf32>
    %23 = arith.addf %21, %22 : vector<128x1xf32>
    %24 = math.rsqrt %23 : vector<128x1xf32>
    %25 = vector.broadcast %24 : vector<128x1xf32> to vector<128x32xf32>
    %26 = arith.mulf %16, %25 : vector<128x32xf32>
    %27 = vector.shape_cast %1 : vector<32xf32> to vector<1x32xf32>
    %28 = vector.broadcast %27 : vector<1x32xf32> to vector<128x32xf32>
    %29 = arith.mulf %26, %28 : vector<128x32xf32>
    %30 = vector.shape_cast %3 : vector<32xf32> to vector<1x32xf32>
    %31 = vector.broadcast %30 : vector<1x32xf32> to vector<128x32xf32>
    %32 = arith.addf %29, %31 : vector<128x32xf32>
    %33 = arith.truncf %32 : vector<128x32xf32> to vector<128x32xbf16>
    %cst_17 = arith.constant dense<0.000000e+00> : vector<128x128xf32>
    %34 = tpu.matmul %33, %4, %cst_17 {dimension_numbers = #tpu.dot_dimension_numbers<[1], [0], [0], [1], [0, 0, 1, 1], [], []>} : vector<128x32xbf16>, vector<32x128xbf16>, vector<128x128xf32> -> vector<128x128xf32>
    %35 = vector.shape_cast %6 : vector<128xf32> to vector<1x128xf32>
    %36 = vector.broadcast %35 : vector<1x128xf32> to vector<128x128xf32>
    %37 = arith.addf %34, %36 : vector<128x128xf32>
    %cst_18 = arith.constant 5.000000e-01 : f32
    %38 = vector.broadcast %cst_18 : f32 to vector<128x128xf32>
    %39 = arith.mulf %38, %37 : vector<128x128xf32>
    %cst_19 = arith.constant 0.707106769 : f32
    %40 = vector.broadcast %cst_19 : f32 to vector<128x128xf32>
    %41 = arith.mulf %37, %40 : vector<128x128xf32>
    %42 = math.erf %41 : vector<128x128xf32>
    %cst_20 = arith.constant 1.000000e+00 : f32
    %43 = vector.broadcast %cst_20 : f32 to vector<128x128xf32>
    %44 = arith.addf %43, %42 : vector<128x128xf32>
    %45 = arith.mulf %39, %44 : vector<128x128xf32>
    %46 = arith.truncf %45 : vector<128x128xf32> to vector<128x128xbf16>
    %cst_21 = arith.constant dense<0.000000e+00> : vector<128x32xf32>
    %47 = tpu.matmul %46, %7, %cst_21 {dimension_numbers = #tpu.dot_dimension_numbers<[1], [0], [0], [1], [0, 0, 1, 1], [], []>} : vector<128x128xbf16>, vector<128x32xbf16>, vector<128x32xf32> -> vector<128x32xf32>
    %48 = vector.shape_cast %9 : vector<32xf32> to vector<1x32xf32>
    %49 = vector.broadcast %48 : vector<1x32xf32> to vector<128x32xf32>
    %50 = arith.addf %47, %49 : vector<128x32xf32>
    %51 = arith.addf %10, %50 : vector<128x32xf32>
    %c0_22 = arith.constant 0 : index
    %c0_23 = arith.constant 0 : index
    %52 = vector.load %arg9[%c0_22, %c0_23] : memref<128x32xf32, #tpu.memory_space<vmem>>, vector<128x32xf32>
    tpu.vector_store %arg9[%c0_22, %c0_23], %51 {strides = array<i32>} : memref<128x32xf32, #tpu.memory_space<vmem>>, vector<128x32xf32>,
    %c0_24 = arith.constant 0 : index
    %c0_25 = arith.constant 0 : index
    %53 = vector.load %arg2[%c0_24, %c0_25] : memref<128x32xf32, #tpu.memory_space<vmem>>, vector<128x32xf32>
    %cst_26 = arith.constant dense<0.000000e+00> : vector<128xf32>
    %54 = vector.multi_reduction <add>, %53, %cst_26 [1] : vector<128x32xf32> to vector<128xf32>
    %55 = vector.shape_cast %54 : vector<128xf32> to vector<128x1xf32>
    %cst_27 = arith.constant 3.200000e+01 : f32
    %56 = vector.broadcast %cst_27 : f32 to vector<128x1xf32>
    %57 = arith.divf %55, %56 : vector<128x1xf32>
    %58 = vector.broadcast %57 : vector<128x1xf32> to vector<128x32xf32>
    %59 = arith.subf %53, %58 : vector<128x32xf32>
    %60 = arith.mulf %59, %59 : vector<128x32xf32>
    %cst_28 = arith.constant dense<0.000000e+00> : vector<128xf32>
    %61 = vector.multi_reduction <add>, %60, %cst_28 [1] : vector<128x32xf32> to vector<128xf32>
    %62 = vector.shape_cast %61 : vector<128xf32> to vector<128x1xf32>
    %cst_29 = arith.constant 3.200000e+01 : f32
    %63 = vector.broadcast %cst_29 : f32 to vector<128x1xf32>
    %64 = arith.divf %62, %63 : vector<128x1xf32>
    %cst_30 = arith.constant 9.99999974E-6 : f32
    %65 = vector.broadcast %cst_30 : f32 to vector<128x1xf32>
    %66 = arith.addf %64, %65 : vector<128x1xf32>
    %67 = math.rsqrt %66 : vector<128x1xf32>
    %68 = vector.broadcast %67 : vector<128x1xf32> to vector<128x32xf32>
    %69 = arith.mulf %59, %68 : vector<128x32xf32>
    %70 = vector.shape_cast %1 : vector<32xf32> to vector<1x32xf32>
    %71 = vector.broadcast %70 : vector<1x32xf32> to vector<128x32xf32>
    %72 = arith.mulf %69, %71 : vector<128x32xf32>
    %73 = vector.shape_cast %3 : vector<32xf32> to vector<1x32xf32>
    %74 = vector.broadcast %73 : vector<1x32xf32> to vector<128x32xf32>
    %75 = arith.addf %72, %74 : vector<128x32xf32>
    %76 = arith.truncf %75 : vector<128x32xf32> to vector<128x32xbf16>
    %cst_31 = arith.constant dense<0.000000e+00> : vector<128x128xf32>
    %77 = tpu.matmul %76, %4, %cst_31 {dimension_numbers = #tpu.dot_dimension_numbers<[1], [0], [0], [1], [0, 0, 1, 1], [], []>} : vector<128x32xbf16>, vector<32x128xbf16>, vector<128x128xf32> -> vector<128x128xf32>
    %78 = vector.shape_cast %6 : vector<128xf32> to vector<1x128xf32>
    %79 = vector.broadcast %78 : vector<1x128xf32> to vector<128x128xf32>
    %80 = arith.addf %77, %79 : vector<128x128xf32>
    %cst_32 = arith.constant 5.000000e-01 : f32
    %81 = vector.broadcast %cst_32 : f32 to vector<128x128xf32>
    %82 = arith.mulf %81, %80 : vector<128x128xf32>
    %cst_33 = arith.constant 0.707106769 : f32
    %83 = vector.broadcast %cst_33 : f32 to vector<128x128xf32>
    %84 = arith.mulf %80, %83 : vector<128x128xf32>
    %85 = math.erf %84 : vector<128x128xf32>
    %cst_34 = arith.constant 1.000000e+00 : f32
    %86 = vector.broadcast %cst_34 : f32 to vector<128x128xf32>
    %87 = arith.addf %86, %85 : vector<128x128xf32>
    %88 = arith.mulf %82, %87 : vector<128x128xf32>
    %89 = arith.truncf %88 : vector<128x128xf32> to vector<128x128xbf16>
    %cst_35 = arith.constant dense<0.000000e+00> : vector<128x32xf32>
    %90 = tpu.matmul %89, %7, %cst_35 {dimension_numbers = #tpu.dot_dimension_numbers<[1], [0], [0], [1], [0, 0, 1, 1], [], []>} : vector<128x128xbf16>, vector<128x32xbf16>, vector<128x32xf32> -> vector<128x32xf32>
    %91 = vector.shape_cast %9 : vector<32xf32> to vector<1x32xf32>
    %92 = vector.broadcast %91 : vector<1x32xf32> to vector<128x32xf32>
    %93 = arith.addf %90, %92 : vector<128x32xf32>
    %94 = arith.addf %53, %93 : vector<128x32xf32>
    %c0_36 = arith.constant 0 : index
    %c0_37 = arith.constant 0 : index
    %95 = vector.load %arg10[%c0_36, %c0_37] : memref<128x32xf32, #tpu.memory_space<vmem>>, vector<128x32xf32>
    tpu.vector_store %arg10[%c0_36, %c0_37], %94 {strides = array<i32>} : memref<128x32xf32, #tpu.memory_space<vmem>>, vector<128x32xf32>,
    return
  }
  func.func @transform_0(%arg0: i32) -> (i32, i32) {
    %c0_i32 = arith.constant 0 : i32
    %c0_i32_0 = arith.constant 0 : i32
    return %arg0, %c0_i32 : i32, i32
  }
  func.func @transform_1(%arg0: i32) -> (i32, i32) {
    %c0_i32 = arith.constant 0 : i32
    %c0_i32_0 = arith.constant 0 : i32
    return %arg0, %c0_i32 : i32, i32
  }
  func.func @transform_2(%arg0: i32) -> (i32, i32) {
    %c0_i32 = arith.constant 0 : i32
    %c0_i32_0 = arith.constant 0 : i32
    %c0_i32_1 = arith.constant 0 : i32
    return %c0_i32, %c0_i32_0 : i32, i32
  }
  func.func @transform_3(%arg0: i32) -> (i32, i32) {
    %c0_i32 = arith.constant 0 : i32
    %c0_i32_0 = arith.constant 0 : i32
    %c0_i32_1 = arith.constant 0 : i32
    return %c0_i32, %c0_i32_0 : i32, i32
  }
  func.func @transform_4(%arg0: i32) -> (i32, i32) {
    %c0_i32 = arith.constant 0 : i32
    %c0_i32_0 = arith.constant 0 : i32
    %c0_i32_1 = arith.constant 0 : i32
    return %c0_i32, %c0_i32_0 : i32, i32
  }
  func.func @transform_5(%arg0: i32) -> (i32, i32) {
    %c0_i32 = arith.constant 0 : i32
    %c0_i32_0 = arith.constant 0 : i32
    %c0_i32_1 = arith.constant 0 : i32
    return %c0_i32, %c0_i32_0 : i32, i32
  }
  func.func @transform_6(%arg0: i32) -> (i32, i32) {
    %c0_i32 = arith.constant 0 : i32
    %c0_i32_0 = arith.constant 0 : i32
    %c0_i32_1 = arith.constant 0 : i32
    return %c0_i32, %c0_i32_0 : i32, i32
  }
  func.func @transform_7(%arg0: i32) -> (i32, i32) {
    %c0_i32 = arith.constant 0 : i32
    %c0_i32_0 = arith.constant 0 : i32
    %c0_i32_1 = arith.constant 0 : i32
    return %c0_i32, %c0_i32_0 : i32, i32
  }
  func.func @transform_8(%arg0: i32) -> (i32, i32) {
    %c0_i32 = arith.constant 0 : i32
    %c0_i32_0 = arith.constant 0 : i32
    return %arg0, %c0_i32 : i32, i32
  }
  func.func @transform_9(%arg0: i32) -> (i32, i32) {
    %c0_i32 = arith.constant 0 : i32
    %c0_i32_0 = arith.constant 0 : i32
    return %arg0, %c0_i32 : i32, i32
  }
}

</mosaic_0001>

<llo_original>
// kernel: swin_transformer_block_forward.3
$region0: #{swin_transformer_block_forward.3}
  #allocation0 [shape = 'u32[]', space=smem, size = 0x4, offset = 0x4, fixed_abs, tag = 'smem constant byte address 0x4 - core index']
  #allocation1 [shape = 'u32[144,128]{1,0:T(1,128)}', space=vmem, size = 0x12000, scoped, tag = 'internal scratch']
  %s0 = inlined_call_operand.vmem [shape: f32[512,32], index: 0, kind: input, shape index: {}]
  %s1 = inlined_call_operand.vmem [shape: f32[512,32], index: 1, kind: input, shape index: {}]
  %s2 = inlined_call_operand.vmem [shape: f32[1,32], index: 2, kind: input, shape index: {}]
  %s3 = inlined_call_operand.vmem [shape: f32[1,32], index: 3, kind: input, shape index: {}]
  %s4 = inlined_call_operand.vmem [shape: bf16[32,128], index: 4, kind: input, shape index: {}]
  %s5 = inlined_call_operand.vmem [shape: f32[1,128], index: 5, kind: input, shape index: {}]
  %s6 = inlined_call_operand.vmem [shape: bf16[128,32], index: 6, kind: input, shape index: {}]
  %s7 = inlined_call_operand.vmem [shape: f32[1,32], index: 7, kind: input, shape index: {}]
  %s8 = inlined_call_operand.vmem [shape: f32[512,32], index: 8, kind: output, shape index: {0}]
  %s9 = inlined_call_operand.vmem [shape: f32[512,32], index: 9, kind: output, shape index: {1}]
  %10 = xla_tuple %s8, %s9
  %s11 = sld [smem:[#allocation0]]
  $region73: #{swin_transformer_block_forward.3} parent=0
    _
  %s13 = ssub.s32 1, %s11
  %s14 = scalar_select 0, %s13, %s11
  loop: start=0, step=1, limit=6
  $region2: #{swin_transformer_block_forward.3} parent=0 // loop_pre_header
    _
  $region3: #{swin_transformer_block_forward.3} parent=0 // loop_header
    %s16 = sphi 0, %s20
    %p17 = scmp.ge.s32.totalorder %s16, 6
    %s26 = sphi 0, %s28
    %s29 = sphi 0, %s26
    %s30 = sphi 0, %s29
    %s46 = sphi 0, %s30
    %s52 = sphi 0, %s54
    %s55 = sphi 0, %s52
    %s56 = sphi 0, %s55
    %s72 = sphi 0, %s56
    %s76 = sphi 0, %s76
    %s78 = sphi 0, %s76
    %s79 = sphi 0, %s78
    %s93 = sphi 0, %s79
    %s97 = sphi 0, %s97
    %s99 = sphi 0, %s97
    %s100 = sphi 0, %s99
    %s114 = sphi 0, %s100
    %s118 = sphi 0, %s118
    %s120 = sphi 0, %s118
    %s121 = sphi 0, %s120
    %s135 = sphi 0, %s121
    %s139 = sphi 0, %s139
    %s141 = sphi 0, %s139
    %s142 = sphi 0, %s141
    %s156 = sphi 0, %s142
    %s160 = sphi 0, %s160
    %s162 = sphi 0, %s160
    %s163 = sphi 0, %s162
    %s177 = sphi 0, %s163
    %s181 = sphi 0, %s181
    %s183 = sphi 0, %s181
    %s184 = sphi 0, %s183
    %s198 = sphi 0, %s184
    %s204 = sphi 0, %s206
    %s207 = sphi 0, %s204
    %s208 = sphi 0, %s207
    %s224 = sphi 0, %s208
    %s230 = sphi 0, %s232
    %s233 = sphi 0, %s230
    %s234 = sphi 0, %s233
    %s250 = sphi 0, %s234
  $region4: #{swin_transformer_block_forward.3} parent=0 // loop_header_branch
    %19 = sbr.rel (%p17) target = $region8
  $region5: #{swin_transformer_block_forward.3} parent=0 // loop_body
    %s21 = ssub.s32 %s16, 1
    %s22 = ssub.s32 %s16, 2
    %s23 = sadd.s32 %s16, 1
    %s24 = ssub.s32 %s16, %s23
    %p25 = scmp.eq.s32.totalorder %s24, 0
    %s27 = sadd.s32 %s26, 1
    %s28 = scalar_select %p25, %s26, %s27
    %p31 = pneg %p25
    %p32 = scmp.eq.s32.totalorder %s16, 3
    %p33 = por %p31, %p32
    %p34 = scmp.ne.s32.totalorder %s26, %s29
    %p35 = scmp.eq.s32.totalorder %s16, 0
    %p36 = por %p34, %p35
    %p37 = scmp.ne.s32.totalorder %s26, %s29
    %p38 = scmp.eq.s32.totalorder %s21, 3
    %p39 = por %p37, %p38
    %p40 = scmp.ne.s32.totalorder %s29, %s30
    %p41 = scmp.eq.s32.totalorder %s21, 0
    %p42 = por %p40, %p41
    %p43 = scmp.ne.s32.totalorder %s29, %s30
    %p44 = scmp.eq.s32.totalorder %s22, 3
    %p45 = por %p43, %p44
    %p47 = scmp.ne.s32.totalorder %s30, %s46
    %p48 = scmp.eq.s32.totalorder %s22, 0
    %p49 = por %p47, %p48
    %s50 = ssub.s32 %s16, %s23
    %p51 = scmp.eq.s32.totalorder %s50, 0
    %s53 = sadd.s32 %s52, 1
    %s54 = scalar_select %p51, %s52, %s53
    %p57 = pneg %p51
    %p58 = scmp.eq.s32.totalorder %s16, 3
    %p59 = por %p57, %p58
    %p60 = scmp.ne.s32.totalorder %s52, %s55
    %p61 = scmp.eq.s32.totalorder %s16, 0
    %p62 = por %p60, %p61
    %p63 = scmp.ne.s32.totalorder %s52, %s55
    %p64 = scmp.eq.s32.totalorder %s21, 3
    %p65 = por %p63, %p64
    %p66 = scmp.ne.s32.totalorder %s55, %s56
    %p67 = scmp.eq.s32.totalorder %s21, 0
    %p68 = por %p66, %p67
    %p69 = scmp.ne.s32.totalorder %s55, %s56
    %p70 = scmp.eq.s32.totalorder %s22, 3
    %p71 = por %p69, %p70
    %p73 = scmp.ne.s32.totalorder %s56, %s72
    %p74 = scmp.eq.s32.totalorder %s22, 0
    %p75 = por %p73, %p74
    %s77 = sadd.s32 %s76, 1
    %p80 = scmp.eq.s32.totalorder %s16, 3
    %p81 = scmp.ne.s32.totalorder %s76, %s78
    %p82 = scmp.eq.s32.totalorder %s16, 0
    %p83 = por %p81, %p82
    %p84 = scmp.ne.s32.totalorder %s76, %s78
    %p85 = scmp.eq.s32.totalorder %s21, 3
    %p86 = por %p84, %p85
    %p87 = scmp.ne.s32.totalorder %s78, %s79
    %p88 = scmp.eq.s32.totalorder %s21, 0
    %p89 = por %p87, %p88
    %p90 = scmp.ne.s32.totalorder %s78, %s79
    %p91 = scmp.eq.s32.totalorder %s22, 3
    %p92 = por %p90, %p91
    %p94 = scmp.ne.s32.totalorder %s79, %s93
    %p95 = scmp.eq.s32.totalorder %s22, 0
    %p96 = por %p94, %p95
    %s98 = sadd.s32 %s97, 1
    %p101 = scmp.eq.s32.totalorder %s16, 3
    %p102 = scmp.ne.s32.totalorder %s97, %s99
    %p103 = scmp.eq.s32.totalorder %s16, 0
    %p104 = por %p102, %p103
    %p105 = scmp.ne.s32.totalorder %s97, %s99
    %p106 = scmp.eq.s32.totalorder %s21, 3
    %p107 = por %p105, %p106
    %p108 = scmp.ne.s32.totalorder %s99, %s100
    %p109 = scmp.eq.s32.totalorder %s21, 0
    %p110 = por %p108, %p109
    %p111 = scmp.ne.s32.totalorder %s99, %s100
    %p112 = scmp.eq.s32.totalorder %s22, 3
    %p113 = por %p111, %p112
    %p115 = scmp.ne.s32.totalorder %s100, %s114
    %p116 = scmp.eq.s32.totalorder %s22, 0
    %p117 = por %p115, %p116
    %s119 = sadd.s32 %s118, 1
    %p122 = scmp.eq.s32.totalorder %s16, 3
    %p123 = scmp.ne.s32.totalorder %s118, %s120
    %p124 = scmp.eq.s32.totalorder %s16, 0
    %p125 = por %p123, %p124
    %p126 = scmp.ne.s32.totalorder %s118, %s120
    %p127 = scmp.eq.s32.totalorder %s21, 3
    %p128 = por %p126, %p127
    %p129 = scmp.ne.s32.totalorder %s120, %s121
    %p130 = scmp.eq.s32.totalorder %s21, 0
    %p131 = por %p129, %p130
    %p132 = scmp.ne.s32.totalorder %s120, %s121
    %p133 = scmp.eq.s32.totalorder %s22, 3
    %p134 = por %p132, %p133
    %p136 = scmp.ne.s32.totalorder %s121, %s135
    %p137 = scmp.eq.s32.totalorder %s22, 0
    %p138 = por %p136, %p137
    %s140 = sadd.s32 %s139, 1
    %p143 = scmp.eq.s32.totalorder %s16, 3
    %p144 = scmp.ne.s32.totalorder %s139, %s141
    %p145 = scmp.eq.s32.totalorder %s16, 0
    %p146 = por %p144, %p145
    %p147 = scmp.ne.s32.totalorder %s139, %s141
    %p148 = scmp.eq.s32.totalorder %s21, 3
    %p149 = por %p147, %p148
    %p150 = scmp.ne.s32.totalorder %s141, %s142
    %p151 = scmp.eq.s32.totalorder %s21, 0
    %p152 = por %p150, %p151
    %p153 = scmp.ne.s32.totalorder %s141, %s142
    %p154 = scmp.eq.s32.totalorder %s22, 3
    %p155 = por %p153, %p154
    %p157 = scmp.ne.s32.totalorder %s142, %s156
    %p158 = scmp.eq.s32.totalorder %s22, 0
    %p159 = por %p157, %p158
    %s161 = sadd.s32 %s160, 1
    %p164 = scmp.eq.s32.totalorder %s16, 3
    %p165 = scmp.ne.s32.totalorder %s160, %s162
    %p166 = scmp.eq.s32.totalorder %s16, 0
    %p167 = por %p165, %p166
    %p168 = scmp.ne.s32.totalorder %s160, %s162
    %p169 = scmp.eq.s32.totalorder %s21, 3
    %p170 = por %p168, %p169
    %p171 = scmp.ne.s32.totalorder %s162, %s163
    %p172 = scmp.eq.s32.totalorder %s21, 0
    %p173 = por %p171, %p172
    %p174 = scmp.ne.s32.totalorder %s162, %s163
    %p175 = scmp.eq.s32.totalorder %s22, 3
    %p176 = por %p174, %p175
    %p178 = scmp.ne.s32.totalorder %s163, %s177
    %p179 = scmp.eq.s32.totalorder %s22, 0
    %p180 = por %p178, %p179
    %s182 = sadd.s32 %s181, 1
    %p185 = scmp.eq.s32.totalorder %s16, 3
    %p186 = scmp.ne.s32.totalorder %s181, %s183
    %p187 = scmp.eq.s32.totalorder %s16, 0
    %p188 = por %p186, %p187
    %p189 = scmp.ne.s32.totalorder %s181, %s183
    %p190 = scmp.eq.s32.totalorder %s21, 3
    %p191 = por %p189, %p190
    %p192 = scmp.ne.s32.totalorder %s183, %s184
    %p193 = scmp.eq.s32.totalorder %s21, 0
    %p194 = por %p192, %p193
    %p195 = scmp.ne.s32.totalorder %s183, %s184
    %p196 = scmp.eq.s32.totalorder %s22, 3
    %p197 = por %p195, %p196
    %p199 = scmp.ne.s32.totalorder %s184, %s198
    %p200 = scmp.eq.s32.totalorder %s22, 0
    %p201 = por %p199, %p200
    %s202 = ssub.s32 %s16, %s23
    %p203 = scmp.eq.s32.totalorder %s202, 0
    %s205 = sadd.s32 %s204, 1
    %s206 = scalar_select %p203, %s204, %s205
    %p209 = pneg %p203
    %p210 = scmp.eq.s32.totalorder %s16, 3
    %p211 = por %p209, %p210
    %p212 = scmp.ne.s32.totalorder %s204, %s207
    %p213 = scmp.eq.s32.totalorder %s16, 0
    %p214 = por %p212, %p213
    %p215 = scmp.ne.s32.totalorder %s204, %s207
    %p216 = scmp.eq.s32.totalorder %s21, 3
    %p217 = por %p215, %p216
    %p218 = scmp.ne.s32.totalorder %s207, %s208
    %p219 = scmp.eq.s32.totalorder %s21, 0
    %p220 = por %p218, %p219
    %p221 = scmp.ne.s32.totalorder %s207, %s208
    %p222 = scmp.eq.s32.totalorder %s22, 3
    %p223 = por %p221, %p222
    %p225 = scmp.ne.s32.totalorder %s208, %s224
    %p226 = scmp.eq.s32.totalorder %s22, 0
    %p227 = por %p225, %p226
    %s228 = ssub.s32 %s16, %s23
    %p229 = scmp.eq.s32.totalorder %s228, 0
    %s231 = sadd.s32 %s230, 1
    %s232 = scalar_select %p229, %s230, %s231
    %p235 = pneg %p229
    %p236 = scmp.eq.s32.totalorder %s16, 3
    %p237 = por %p235, %p236
    %p238 = scmp.ne.s32.totalorder %s230, %s233
    %p239 = scmp.eq.s32.totalorder %s16, 0
    %p240 = por %p238, %p239
    %p241 = scmp.ne.s32.totalorder %s230, %s233
    %p242 = scmp.eq.s32.totalorder %s21, 3
    %p243 = por %p241, %p242
    %p244 = scmp.ne.s32.totalorder %s233, %s234
    %p245 = scmp.eq.s32.totalorder %s21, 0
    %p246 = por %p244, %p245
    %p247 = scmp.ne.s32.totalorder %s233, %s234
    %p248 = scmp.eq.s32.totalorder %s22, 3
    %p249 = por %p247, %p248
    %p251 = scmp.ne.s32.totalorder %s234, %s250
    %p252 = scmp.eq.s32.totalorder %s22, 0
    %p253 = por %p251, %p252
    %p254 = scmp.le.s32.totalorder 1, %s16
    %p255 = scmp.lt.s32.totalorder %s16, 5
    %p256 = pnand %p254, %p255
    %p257 = pneg %p256
    // Predicated region
    $region9: #{swin_transformer_block_forward.3} parent=5 // pred_check
      _
    $region10: #{swin_transformer_block_forward.3} parent=5 // pred_check_branch
      %259 = sbr.rel (%p256) target = $region12
    $region11: #{swin_transformer_block_forward.3} parent=5 // pred_region
      %s260 = ssub.s32 %s16, 1
      // Predicated region
      $region13: #{swin_transformer_block_forward.3} parent=11 // pred_check
        %p261 = pneg %p89
      $region14: #{swin_transformer_block_forward.3} parent=11 // pred_check_branch
        %263 = sbr.rel (%p261) target = $region16
      $region15: #{swin_transformer_block_forward.3} parent=11 // pred_region
        _
      $region16: #{swin_transformer_block_forward.3} parent=11 // pred_fallthru
        _
      // Predicated region
      $region17: #{swin_transformer_block_forward.3} parent=11 // pred_check
        %p264 = pneg %p110
      $region18: #{swin_transformer_block_forward.3} parent=11 // pred_check_branch
        %266 = sbr.rel (%p264) target = $region20
      $region19: #{swin_transformer_block_forward.3} parent=11 // pred_region
        _
      $region20: #{swin_transformer_block_forward.3} parent=11 // pred_fallthru
        _
      // Predicated region
      $region21: #{swin_transformer_block_forward.3} parent=11 // pred_check
        %p267 = pneg %p131
      $region22: #{swin_transformer_block_forward.3} parent=11 // pred_check_branch
        %269 = sbr.rel (%p267) target = $region24
      $region23: #{swin_transformer_block_forward.3} parent=11 // pred_region
        _
      $region24: #{swin_transformer_block_forward.3} parent=11 // pred_fallthru
        _
      // Predicated region
      $region25: #{swin_transformer_block_forward.3} parent=11 // pred_check
        %p270 = pneg %p152
      $region26: #{swin_transformer_block_forward.3} parent=11 // pred_check_branch
        %272 = sbr.rel (%p270) target = $region28
      $region27: #{swin_transformer_block_forward.3} parent=11 // pred_region
        _
      $region28: #{swin_transformer_block_forward.3} parent=11 // pred_fallthru
        _
      // Predicated region
      $region29: #{swin_transformer_block_forward.3} parent=11 // pred_check
        %p273 = pneg %p173
      $region30: #{swin_transformer_block_forward.3} parent=11 // pred_check_branch
        %275 = sbr.rel (%p273) target = $region32
      $region31: #{swin_transformer_block_forward.3} parent=11 // pred_region
        _
      $region32: #{swin_transformer_block_forward.3} parent=11 // pred_fallthru
        _
      // Predicated region
      $region33: #{swin_transformer_block_forward.3} parent=11 // pred_check
        %p276 = pneg %p194
      $region34: #{swin_transformer_block_forward.3} parent=11 // pred_check_branch
        %278 = sbr.rel (%p276) target = $region36
      $region35: #{swin_transformer_block_forward.3} parent=11 // pred_region
        _
      $region36: #{swin_transformer_block_forward.3} parent=11 // pred_fallthru
        _
    $region12: #{swin_transformer_block_forward.3} parent=5 // pred_fallthru
      _
    %p279 = scmp.lt.s32.totalorder %s16, 4
    // Predicated region
    $region37: #{swin_transformer_block_forward.3} parent=5 // pred_check
      %p280 = pneg %p279
    $region38: #{swin_transformer_block_forward.3} parent=5 // pred_check_branch
      %282 = sbr.rel (%p280) target = $region40
    $region39: #{swin_transformer_block_forward.3} parent=5 // pred_region
      // Predicated region
      $region41: #{swin_transformer_block_forward.3} parent=39 // pred_check
        %p283 = pneg %p36
      $region42: #{swin_transformer_block_forward.3} parent=39 // pred_check_branch
        %285 = sbr.rel (%p283) target = $region44
      $region43: #{swin_transformer_block_forward.3} parent=39 // pred_region
        %s286 = smul.u32 16, %s16
        %p287 = scmp.lt.s32.totalorder %s286, 63
        %s288 = scalar_select %p287, %s286, 63
        %s289 = smul.addr %s288, 8
        %s290 = scalar_lea.vmem %s0, %s289
        %s291 = smul.u32 16, %s16
      $region44: #{swin_transformer_block_forward.3} parent=39 // pred_fallthru
        _
      // Predicated region
      $region45: #{swin_transformer_block_forward.3} parent=39 // pred_check
        %p292 = pneg %p62
      $region46: #{swin_transformer_block_forward.3} parent=39 // pred_check_branch
        %294 = sbr.rel (%p292) target = $region48
      $region47: #{swin_transformer_block_forward.3} parent=39 // pred_region
        %s295 = smul.u32 16, %s16
        %p296 = scmp.lt.s32.totalorder %s295, 63
        %s297 = scalar_select %p296, %s295, 63
        %s298 = smul.addr %s297, 8
        %s299 = scalar_lea.vmem %s1, %s298
        %s300 = smul.u32 16, %s16
      $region48: #{swin_transformer_block_forward.3} parent=39 // pred_fallthru
        _
    $region40: #{swin_transformer_block_forward.3} parent=5 // pred_fallthru
      _
    %p301 = scmp.le.s32.totalorder 1, %s16
    %p302 = scmp.lt.s32.totalorder %s16, 5
    %p303 = pnand %p301, %p302
    %p304 = pneg %p303
    // Predicated region
    $region49: #{swin_transformer_block_forward.3} parent=5 // pred_check
      _
    $region50: #{swin_transformer_block_forward.3} parent=5 // pred_check_branch
      %306 = sbr.rel (%p303) target = $region52
    $region51: #{swin_transformer_block_forward.3} parent=5 // pred_region
      %s307 = ssub.s32 %s16, 1
      %s308 = smul.u32 16, %s21
      %p309 = scmp.lt.s32.totalorder %s308, 63
      %s310 = scalar_select %p309, %s308, 63
      %s311 = smul.addr %s310, 8
      %s312 = scalar_lea.vmem %s0, %s311
      %p313 = pneg %p42
      %p314 = pneg %p39
      %s315 = smul.u32 16, %s21
      %p316 = scmp.lt.s32.totalorder %s315, 63
      %s317 = scalar_select %p316, %s315, 63
      %s318 = smul.addr %s317, 8
      %s319 = scalar_lea.vmem %s1, %s318
      %p320 = pneg %p68
      %p321 = pneg %p65
      %p322 = pneg %p89
      %p323 = pneg %p86
      %p324 = pneg %p110
      %p325 = pneg %p107
      %p326 = pneg %p131
      %p327 = pneg %p128
      %p328 = pneg %p152
      %p329 = pneg %p149
      %p330 = pneg %p173
      %p331 = pneg %p170
      %p332 = pneg %p194
      %p333 = pneg %p191
      %p334 = pneg %p220
      %p335 = pneg %p217
      %s336 = smul.u32 16, %s21
      %p337 = scmp.lt.s32.totalorder %s336, 63
      %s338 = scalar_select %p337, %s336, 63
      %s339 = smul.addr %s338, 8
      %s340 = scalar_lea.vmem %s8, %s339
      %p341 = pneg %p246
      %p342 = pneg %p243
      %s343 = smul.u32 16, %s21
      %p344 = scmp.lt.s32.totalorder %s343, 63
      %s345 = scalar_select %p344, %s343, 63
      %s346 = smul.addr %s345, 8
      %s347 = scalar_lea.vmem %s9, %s346
      %s348 = smul.u32 16, %s21
      %p349 = scmp.lt.s32.totalorder %s348, 63
      %s350 = scalar_select %p349, %s348, 63
      %s351 = smul.addr %s350, 8
      %s352 = scalar_lea.vmem %s0, %s351
      %s353 = smul.u32 16, %s21
      %s354 = smul.u32 16, %s21
      %p355 = scmp.lt.s32.totalorder %s354, 63
      %s356 = scalar_select %p355, %s354, 63
      %s357 = smul.addr %s356, 8
      %s358 = scalar_lea.vmem %s1, %s357
      %s359 = smul.u32 16, %s21
      %s360 = smul.u32 16, %s21
      %p361 = scmp.lt.s32.totalorder %s360, 63
      %s362 = scalar_select %p361, %s360, 63
      %s363 = smul.addr %s362, 8
      %s364 = scalar_lea.vmem %s8, %s363
      %s365 = smul.u32 16, %s21
      %s366 = smul.u32 16, %s21
      %p367 = scmp.lt.s32.totalorder %s366, 63
      %s368 = scalar_select %p367, %s366, 63
      %s369 = smul.addr %s368, 8
      %s370 = scalar_lea.vmem %s9, %s369
      %s371 = smul.u32 16, %s21
      %v373 = vld [vmem:[%s2] sm:$0x1]
      %v374 = vld [vmem:[%s3] sm:$0x1]
      %v375 = vld [vmem:[%s4] sm:$0xf]
      %v376 = vld [vmem:[%s4 + $0x4] sm:$0xf]
      %v377 = vld [vmem:[%s4 + $0x8] sm:$0xf]
      %v378 = vld [vmem:[%s4 + $0xc] sm:$0xf]
      %v379 = vld [vmem:[%s5] sm:$0x1]
      %v380 = vld [vmem:[%s6] sm:$0xf]
      %v381 = vld [vmem:[%s6 + $0x4] sm:$0xf]
      %v382 = vld [vmem:[%s6 + $0x8] sm:$0xf]
      %v383 = vld [vmem:[%s6 + $0xc] sm:$0xf]
      %v384 = vld [vmem:[%s6 + $0x10] sm:$0xf]
      %v385 = vld [vmem:[%s6 + $0x14] sm:$0xf]
      %v386 = vld [vmem:[%s6 + $0x18] sm:$0xf]
      %v387 = vld [vmem:[%s6 + $0x1c] sm:$0xf]
      %v388 = vld [vmem:[%s6 + $0x20] sm:$0xf]
      %v389 = vld [vmem:[%s6 + $0x24] sm:$0xf]
      %v390 = vld [vmem:[%s6 + $0x28] sm:$0xf]
      %v391 = vld [vmem:[%s6 + $0x2c] sm:$0xf]
      %v392 = vld [vmem:[%s6 + $0x30] sm:$0xf]
      %v393 = vld [vmem:[%s6 + $0x34] sm:$0xf]
      %v394 = vld [vmem:[%s6 + $0x38] sm:$0xf]
      %v395 = vld [vmem:[%s6 + $0x3c] sm:$0xf]
      %v396 = vld [vmem:[%s7] sm:$0x1]
      %v397 = vld [vmem:[%s352] sm:$0xff]
      %v398 = vld [vmem:[%s352 + $0x8] sm:$0xff]
      %v399 = vld [vmem:[%s352 + $0x10] sm:$0xff]
      %v400 = vld [vmem:[%s352 + $0x18] sm:$0xff]
      %v401 = vld [vmem:[%s352 + $0x20] sm:$0xff]
      %v402 = vld [vmem:[%s352 + $0x28] sm:$0xff]
      %v403 = vld [vmem:[%s352 + $0x30] sm:$0xff]
      %v404 = vld [vmem:[%s352 + $0x38] sm:$0xff]
      %v405 = vld [vmem:[%s352 + $0x40] sm:$0xff]
      %v406 = vld [vmem:[%s352 + $0x48] sm:$0xff]
      %v407 = vld [vmem:[%s352 + $0x50] sm:$0xff]
      %v408 = vld [vmem:[%s352 + $0x58] sm:$0xff]
      %v409 = vld [vmem:[%s352 + $0x60] sm:$0xff]
      %v410 = vld [vmem:[%s352 + $0x68] sm:$0xff]
      %v411 = vld [vmem:[%s352 + $0x70] sm:$0xff]
      %v412 = vld [vmem:[%s352 + $0x78] sm:$0xff]
      %vm413 = vcmask 261120
      %v414 = vsel %vm413, %v397, 0.0
      %415 = vadd.xlane.f32.xlu0 %v414
      %v416 = vpop.xlane.xlu0 %415
      %v417 = vsel %vm413, %v398, 0.0
      %418 = vadd.xlane.f32.xlu0 %v417
      %v419 = vpop.xlane.xlu0 %418
      %v420 = vsel %vm413, %v399, 0.0
      %421 = vadd.xlane.f32.xlu0 %v420
      %v422 = vpop.xlane.xlu0 %421
      %v423 = vsel %vm413, %v400, 0.0
      %424 = vadd.xlane.f32.xlu0 %v423
      %v425 = vpop.xlane.xlu0 %424
      %v426 = vsel %vm413, %v401, 0.0
      %427 = vadd.xlane.f32.xlu0 %v426
      %v428 = vpop.xlane.xlu0 %427
      %v429 = vsel %vm413, %v402, 0.0
      %430 = vadd.xlane.f32.xlu0 %v429
      %v431 = vpop.xlane.xlu0 %430
      %v432 = vsel %vm413, %v403, 0.0
      %433 = vadd.xlane.f32.xlu0 %v432
      %v434 = vpop.xlane.xlu0 %433
      %v435 = vsel %vm413, %v404, 0.0
      %436 = vadd.xlane.f32.xlu0 %v435
      %v437 = vpop.xlane.xlu0 %436
      %v438 = vsel %vm413, %v405, 0.0
      %439 = vadd.xlane.f32.xlu0 %v438
      %v440 = vpop.xlane.xlu0 %439
      %v441 = vsel %vm413, %v406, 0.0
      %442 = vadd.xlane.f32.xlu0 %v441
      %v443 = vpop.xlane.xlu0 %442
      %v444 = vsel %vm413, %v407, 0.0
      %445 = vadd.xlane.f32.xlu0 %v444
      %v446 = vpop.xlane.xlu0 %445
      %v447 = vsel %vm413, %v408, 0.0
      %448 = vadd.xlane.f32.xlu0 %v447
      %v449 = vpop.xlane.xlu0 %448
      %v450 = vsel %vm413, %v409, 0.0
      %451 = vadd.xlane.f32.xlu0 %v450
      %v452 = vpop.xlane.xlu0 %451
      %v453 = vsel %vm413, %v410, 0.0
      %454 = vadd.xlane.f32.xlu0 %v453
      %v455 = vpop.xlane.xlu0 %454
      %v456 = vsel %vm413, %v411, 0.0
      %457 = vadd.xlane.f32.xlu0 %v456
      %v458 = vpop.xlane.xlu0 %457
      %v459 = vsel %vm413, %v412, 0.0
      %460 = vadd.xlane.f32.xlu0 %v459
      %v461 = vpop.xlane.xlu0 %460
      %v462 = vrcp.pop 32.0
      %v463 = vmul.f32 %v416, %v462
      %v464 = vmul.f32 %v419, %v462
      %v465 = vmul.f32 %v422, %v462
      %v466 = vmul.f32 %v425, %v462
      %v467 = vmul.f32 %v428, %v462
      %v468 = vmul.f32 %v431, %v462
      %v469 = vmul.f32 %v434, %v462
      %v470 = vmul.f32 %v437, %v462
      %v471 = vmul.f32 %v440, %v462
      %v472 = vmul.f32 %v443, %v462
      %v473 = vmul.f32 %v446, %v462
      %v474 = vmul.f32 %v449, %v462
      %v475 = vmul.f32 %v452, %v462
      %v476 = vmul.f32 %v455, %v462
      %v477 = vmul.f32 %v458, %v462
      %v478 = vmul.f32 %v461, %v462
      %v479 = vsub.f32 %v397, %v463
      %v480 = vsub.f32 %v398, %v464
      %v481 = vsub.f32 %v399, %v465
      %v482 = vsub.f32 %v400, %v466
      %v483 = vsub.f32 %v401, %v467
      %v484 = vsub.f32 %v402, %v468
      %v485 = vsub.f32 %v403, %v469
      %v486 = vsub.f32 %v404, %v470
      %v487 = vsub.f32 %v405, %v471
      %v488 = vsub.f32 %v406, %v472
      %v489 = vsub.f32 %v407, %v473
      %v490 = vsub.f32 %v408, %v474
      %v491 = vsub.f32 %v409, %v475
      %v492 = vsub.f32 %v410, %v476
      %v493 = vsub.f32 %v411, %v477
      %v494 = vsub.f32 %v412, %v478
      %v495 = vmul.f32 %v479, %v479
      %v496 = vmul.f32 %v480, %v480
      %v497 = vmul.f32 %v481, %v481
      %v498 = vmul.f32 %v482, %v482
      %v499 = vmul.f32 %v483, %v483
      %v500 = vmul.f32 %v484, %v484
      %v501 = vmul.f32 %v485, %v485
      %v502 = vmul.f32 %v486, %v486
      %v503 = vmul.f32 %v487, %v487
      %v504 = vmul.f32 %v488, %v488
      %v505 = vmul.f32 %v489, %v489
      %v506 = vmul.f32 %v490, %v490
      %v507 = vmul.f32 %v491, %v491
      %v508 = vmul.f32 %v492, %v492
      %v509 = vmul.f32 %v493, %v493
      %v510 = vmul.f32 %v494, %v494
      %v511 = vsel %vm413, %v495, 0.0
      %512 = vadd.xlane.f32.xlu0 %v511
      %v513 = vpop.xlane.xlu0 %512
      %v514 = vsel %vm413, %v496, 0.0
      %515 = vadd.xlane.f32.xlu0 %v514
      %v516 = vpop.xlane.xlu0 %515
      %v517 = vsel %vm413, %v497, 0.0
      %518 = vadd.xlane.f32.xlu0 %v517
      %v519 = vpop.xlane.xlu0 %518
      %v520 = vsel %vm413, %v498, 0.0
      %521 = vadd.xlane.f32.xlu0 %v520
      %v522 = vpop.xlane.xlu0 %521
      %v523 = vsel %vm413, %v499, 0.0
      %524 = vadd.xlane.f32.xlu0 %v523
      %v525 = vpop.xlane.xlu0 %524
      %v526 = vsel %vm413, %v500, 0.0
      %527 = vadd.xlane.f32.xlu0 %v526
      %v528 = vpop.xlane.xlu0 %527
      %v529 = vsel %vm413, %v501, 0.0
      %530 = vadd.xlane.f32.xlu0 %v529
      %v531 = vpop.xlane.xlu0 %530
      %v532 = vsel %vm413, %v502, 0.0
      %533 = vadd.xlane.f32.xlu0 %v532
      %v534 = vpop.xlane.xlu0 %533
      %v535 = vsel %vm413, %v503, 0.0
      %536 = vadd.xlane.f32.xlu0 %v535
      %v537 = vpop.xlane.xlu0 %536
      %v538 = vsel %vm413, %v504, 0.0
      %539 = vadd.xlane.f32.xlu0 %v538
      %v540 = vpop.xlane.xlu0 %539
      %v541 = vsel %vm413, %v505, 0.0
      %542 = vadd.xlane.f32.xlu0 %v541
      %v543 = vpop.xlane.xlu0 %542
      %v544 = vsel %vm413, %v506, 0.0
      %545 = vadd.xlane.f32.xlu0 %v544
      %v546 = vpop.xlane.xlu0 %545
      %v547 = vsel %vm413, %v507, 0.0
      %548 = vadd.xlane.f32.xlu0 %v547
      %v549 = vpop.xlane.xlu0 %548
      %v550 = vsel %vm413, %v508, 0.0
      %551 = vadd.xlane.f32.xlu0 %v550
      %v552 = vpop.xlane.xlu0 %551
      %v553 = vsel %vm413, %v509, 0.0
      %554 = vadd.xlane.f32.xlu0 %v553
      %v555 = vpop.xlane.xlu0 %554
      %v556 = vsel %vm413, %v510, 0.0
      %557 = vadd.xlane.f32.xlu0 %v556
      %v558 = vpop.xlane.xlu0 %557
      %v559 = vmul.f32 %v513, %v462
      %v560 = vmul.f32 %v516, %v462
      %v561 = vmul.f32 %v519, %v462
      %v562 = vmul.f32 %v522, %v462
      %v563 = vmul.f32 %v525, %v462
      %v564 = vmul.f32 %v528, %v462
      %v565 = vmul.f32 %v531, %v462
      %v566 = vmul.f32 %v534, %v462
      %v567 = vmul.f32 %v537, %v462
      %v568 = vmul.f32 %v540, %v462
      %v569 = vmul.f32 %v543, %v462
      %v570 = vmul.f32 %v546, %v462
      %v571 = vmul.f32 %v549, %v462
      %v572 = vmul.f32 %v552, %v462
      %v573 = vmul.f32 %v555, %v462
      %v574 = vmul.f32 %v558, %v462
      %v575 = vadd.f32 %v559, 1e-05
      %v576 = vadd.f32 %v560, 1e-05
      %v577 = vadd.f32 %v561, 1e-05
      %v578 = vadd.f32 %v562, 1e-05
      %v579 = vadd.f32 %v563, 1e-05
      %v580 = vadd.f32 %v564, 1e-05
      %v581 = vadd.f32 %v565, 1e-05
      %v582 = vadd.f32 %v566, 1e-05
      %v583 = vadd.f32 %v567, 1e-05
      %v584 = vadd.f32 %v568, 1e-05
      %v585 = vadd.f32 %v569, 1e-05
      %v586 = vadd.f32 %v570, 1e-05
      %v587 = vadd.f32 %v571, 1e-05
      %v588 = vadd.f32 %v572, 1e-05
      %v589 = vadd.f32 %v573, 1e-05
      %v590 = vadd.f32 %v574, 1e-05
      %v591 = vrsqrt.pop %v575
      %v592 = vrsqrt.pop %v576
      %v593 = vrsqrt.pop %v577
      %v594 = vrsqrt.pop %v578
      %v595 = vrsqrt.pop %v579
      %v596 = vrsqrt.pop %v580
      %v597 = vrsqrt.pop %v581
      %v598 = vrsqrt.pop %v582
      %v599 = vrsqrt.pop %v583
      %v600 = vrsqrt.pop %v584
      %v601 = vrsqrt.pop %v585
      %v602 = vrsqrt.pop %v586
      %v603 = vrsqrt.pop %v587
      %v604 = vrsqrt.pop %v588
      %v605 = vrsqrt.pop %v589
      %v606 = vrsqrt.pop %v590
      %v607 = vmul.f32 %v479, %v591
      %v608 = vmul.f32 %v480, %v592
      %v609 = vmul.f32 %v481, %v593
      %v610 = vmul.f32 %v482, %v594
      %v611 = vmul.f32 %v483, %v595
      %v612 = vmul.f32 %v484, %v596
      %v613 = vmul.f32 %v485, %v597
      %v614 = vmul.f32 %v486, %v598
      %v615 = vmul.f32 %v487, %v599
      %v616 = vmul.f32 %v488, %v600
      %v617 = vmul.f32 %v489, %v601
      %v618 = vmul.f32 %v490, %v602
      %v619 = vmul.f32 %v491, %v603
      %v620 = vmul.f32 %v492, %v604
      %v621 = vmul.f32 %v493, %v605
      %v622 = vmul.f32 %v494, %v606
      %v624 = vlaneseq
      %v625 = vshrl.u32 %v624, 7
      %v626 = vsub.s32 0, %v625
      %v627 = vrot.slane %v373, %v626
      %v629 = vmul.f32 %v607, %v627
      %v630 = vmul.f32 %v608, %v627
      %v631 = vmul.f32 %v609, %v627
      %v632 = vmul.f32 %v610, %v627
      %v633 = vmul.f32 %v611, %v627
      %v634 = vmul.f32 %v612, %v627
      %v635 = vmul.f32 %v613, %v627
      %v636 = vmul.f32 %v614, %v627
      %v637 = vmul.f32 %v615, %v627
      %v638 = vmul.f32 %v616, %v627
      %v639 = vmul.f32 %v617, %v627
      %v640 = vmul.f32 %v618, %v627
      %v641 = vmul.f32 %v619, %v627
      %v642 = vmul.f32 %v620, %v627
      %v643 = vmul.f32 %v621, %v627
      %v644 = vmul.f32 %v622, %v627
      %v646 = vlaneseq
      %v647 = vshrl.u32 %v646, 7
      %v648 = vsub.s32 0, %v647
      %v649 = vrot.slane %v374, %v648
      %v651 = vadd.f32 %v629, %v649
      %v652 = vadd.f32 %v630, %v649
      %v653 = vadd.f32 %v631, %v649
      %v654 = vadd.f32 %v632, %v649
      %v655 = vadd.f32 %v633, %v649
      %v656 = vadd.f32 %v634, %v649
      %v657 = vadd.f32 %v635, %v649
      %v658 = vadd.f32 %v636, %v649
      %v659 = vadd.f32 %v637, %v649
      %v660 = vadd.f32 %v638, %v649
      %v661 = vadd.f32 %v639, %v649
      %v662 = vadd.f32 %v640, %v649
      %v663 = vadd.f32 %v641, %v649
      %v664 = vadd.f32 %v642, %v649
      %v665 = vadd.f32 %v643, %v649
      %v666 = vadd.f32 %v644, %v649
      %v667 = vpack.c.bf16 %v652, %v651
      %v668 = vpack.c.bf16 %v654, %v653
      %v669 = vpack.c.bf16 %v656, %v655
      %v670 = vpack.c.bf16 %v658, %v657
      %v671 = vpack.c.bf16 %v660, %v659
      %v672 = vpack.c.bf16 %v662, %v661
      %v673 = vpack.c.bf16 %v664, %v663
      %v674 = vpack.c.bf16 %v666, %v665
      %v676 = vlaneseq
      %v677 = vshrl.u32 %v676, 7
      %v678 = vsub.s32 0, %v677
      %v679 = vrot.slane %v379, %v678
      %v685 = vunpack.c.l.b16 %v375
      %v686 = vunpack.c.l.b16 %v376
      %v687 = vunpack.c.l.b16 %v377
      %v688 = vunpack.c.l.b16 %v378
      %v689 = vpack.c.b16 %v686, %v685
      %v690 = vpack.c.b16 %v688, %v687
      %v694 = vsel %vm413, %v667, 0
      %v697 = vsel %vm413, %v668, 0
      %v700 = vsel %vm413, %v669, 0
      %v703 = vsel %vm413, %v670, 0
      %v706 = vsel %vm413, %v671, 0
      %v709 = vsel %vm413, %v672, 0
      %v712 = vsel %vm413, %v673, 0
      %v715 = vsel %vm413, %v674, 0
      %717 = vmatprep.subr.bf16.mxu0 0
      %718 = vmatpush1.bf16.msra.mxu0 0
      %719 = vmatprep.subr.bf16.mxu0 0
      %720 = vmatpush1.bf16.msra.mxu0 0
      %721 = vmatprep.subr.bf16.mxu0 0
      %722 = vmatpush1.bf16.msra.mxu0 0
      %723 = vmatprep.subr.bf16.mxu0 0
      %724 = vmatpush1.bf16.msra.mxu0 0
      %725 = vmatprep.subr.bf16.mxu0 0
      %726 = vmatpush1.bf16.msra.mxu0 0
      %727 = vmatprep.subr.bf16.mxu0 0
      %728 = vmatpush1.bf16.msra.mxu0 0
      %729 = vmatprep.subr.bf16.mxu0 0
      %730 = vmatpush1.bf16.msra.mxu0 %v690
      %731 = vmatprep.subr.bf16.mxu0 0
      %732 = vmatpush1.bf16.msra.mxu0 %v689
      %733 = vmatprep.subr.bf16.mxu0 0
      %734 = vmatpush2.bf16.msra.mxu0 0
      %735 = vmatprep.subr.bf16.mxu0 0
      %736 = vmatpush2.bf16.msra.mxu0 0
      %737 = vmatprep.subr.bf16.mxu0 0
      %738 = vmatpush2.bf16.msra.mxu0 0
      %739 = vmatprep.subr.bf16.mxu0 0
      %740 = vmatpush2.bf16.msra.mxu0 0
      %741 = vmatprep.subr.bf16.mxu0 0
      %742 = vmatpush2.bf16.msra.mxu0 0
      %743 = vmatprep.subr.bf16.mxu0 0
      %744 = vmatpush2.bf16.msra.mxu0 0
      %745 = vmatprep.subr.bf16.mxu0 0
      %746 = vmatpush2.bf16.msra.mxu0 0
      %747 = vmatprep.subr.bf16.mxu0 0
      %748 = vmatpush2.bf16.msra.mxu0 0
      %749 = vmatprep.mubr.bf16.mxu0 0
      %750 = vmatmul.mubr.bf16.gmra.mxu0 %v694
      %v751 = vpop.f32.mrf.mxu0
      %v752 = vadd.f32 %v679, %v751
      %v753 = vpop.f32.mrf.mxu0
      %v754 = vpop.f32.mrf.mxu0
      %v755 = vadd.f32 %v679, %v754
      %v756 = vpop.f32.mrf.mxu0
      %757 = vmatprep.mubr.bf16.mxu0 0
      %758 = vmatmul.mubr.bf16.gmra.mxu0 %v697
      %v759 = vpop.f32.mrf.mxu0
      %v760 = vadd.f32 %v679, %v759
      %v761 = vpop.f32.mrf.mxu0
      %v762 = vpop.f32.mrf.mxu0
      %v763 = vadd.f32 %v679, %v762
      %v764 = vpop.f32.mrf.mxu0
      %765 = vmatprep.mubr.bf16.mxu0 0
      %766 = vmatmul.mubr.bf16.gmra.mxu0 %v700
      %v767 = vpop.f32.mrf.mxu0
      %v768 = vadd.f32 %v679, %v767
      %v769 = vpop.f32.mrf.mxu0
      %v770 = vpop.f32.mrf.mxu0
      %v771 = vadd.f32 %v679, %v770
      %v772 = vpop.f32.mrf.mxu0
      %773 = vmatprep.mubr.bf16.mxu0 0
      %774 = vmatmul.mubr.bf16.gmra.mxu0 %v703
      %v775 = vpop.f32.mrf.mxu0
      %v776 = vadd.f32 %v679, %v775
      %v777 = vpop.f32.mrf.mxu0
      %v778 = vpop.f32.mrf.mxu0
      %v779 = vadd.f32 %v679, %v778
      %v780 = vpop.f32.mrf.mxu0
      %781 = vmatprep.mubr.bf16.mxu0 0
      %782 = vmatmul.mubr.bf16.gmra.mxu0 %v706
      %v783 = vpop.f32.mrf.mxu0
      %v784 = vadd.f32 %v679, %v783
      %v785 = vpop.f32.mrf.mxu0
      %v786 = vpop.f32.mrf.mxu0
      %v787 = vadd.f32 %v679, %v786
      %v788 = vpop.f32.mrf.mxu0
      %789 = vmatprep.mubr.bf16.mxu0 0
      %790 = vmatmul.mubr.bf16.gmra.mxu0 %v709
      %v791 = vpop.f32.mrf.mxu0
      %v792 = vadd.f32 %v679, %v791
      %v793 = vpop.f32.mrf.mxu0
      %v794 = vpop.f32.mrf.mxu0
      %v795 = vadd.f32 %v679, %v794
      %v796 = vpop.f32.mrf.mxu0
      %797 = vmatprep.mubr.bf16.mxu0 0
      %798 = vmatmul.mubr.bf16.gmra.mxu0 %v712
      %v799 = vpop.f32.mrf.mxu0
      %v800 = vadd.f32 %v679, %v799
      %v801 = vpop.f32.mrf.mxu0
      %v802 = vpop.f32.mrf.mxu0
      %v803 = vadd.f32 %v679, %v802
      %v804 = vpop.f32.mrf.mxu0
      %805 = vmatprep.mubr.bf16.mxu0 0
      %806 = vmatmul.mubr.bf16.gmra.mxu0 %v715
      %v807 = vpop.f32.mrf.mxu0
      %v808 = vadd.f32 %v679, %v807
      %v809 = vpop.f32.mrf.mxu0
      %v810 = vpop.f32.mrf.mxu0
      %v811 = vadd.f32 %v679, %v810
      %v812 = vpop.f32.mrf.mxu0
      %813 = vdwg.mxu0
      %v814 = vmul.f32 %v752, 0.5
      %v815 = vmul.f32 %v755, 0.5
      %v816 = vmul.f32 %v760, 0.5
      %v817 = vmul.f32 %v763, 0.5
      %v818 = vmul.f32 %v768, 0.5
      %v819 = vmul.f32 %v771, 0.5
      %v820 = vmul.f32 %v776, 0.5
      %v821 = vmul.f32 %v779, 0.5
      %v822 = vmul.f32 %v784, 0.5
      %v823 = vmul.f32 %v787, 0.5
      %v824 = vmul.f32 %v792, 0.5
      %v825 = vmul.f32 %v795, 0.5
      %v826 = vmul.f32 %v800, 0.5
      %v827 = vmul.f32 %v803, 0.5
      %v828 = vmul.f32 %v808, 0.5
      %v829 = vmul.f32 %v811, 0.5
      %v830 = vmul.f32 %v752, 0.70710677
      %v831 = vmul.f32 %v755, 0.70710677
      %v832 = vmul.f32 %v760, 0.70710677
      %v833 = vmul.f32 %v763, 0.70710677
      %v834 = vmul.f32 %v768, 0.70710677
      %v835 = vmul.f32 %v771, 0.70710677
      %v836 = vmul.f32 %v776, 0.70710677
      %v837 = vmul.f32 %v779, 0.70710677
      %v838 = vmul.f32 %v784, 0.70710677
      %v839 = vmul.f32 %v787, 0.70710677
      %v840 = vmul.f32 %v792, 0.70710677
      %v841 = vmul.f32 %v795, 0.70710677
      %v842 = vmul.f32 %v800, 0.70710677
      %v843 = vmul.f32 %v803, 0.70710677
      %v844 = vmul.f32 %v808, 0.70710677
      %v845 = vmul.f32 %v811, 0.70710677
      %v846 = verf.f32.pop %v830
      %v847 = verf.f32.pop %v831
      %v848 = verf.f32.pop %v832
      %v849 = verf.f32.pop %v833
      %v850 = verf.f32.pop %v834
      %v851 = verf.f32.pop %v835
      %v852 = verf.f32.pop %v836
      %v853 = verf.f32.pop %v837
      %v854 = verf.f32.pop %v838
      %v855 = verf.f32.pop %v839
      %v856 = verf.f32.pop %v840
      %v857 = verf.f32.pop %v841
      %v858 = verf.f32.pop %v842
      %v859 = verf.f32.pop %v843
      %v860 = verf.f32.pop %v844
      %v861 = verf.f32.pop %v845
      %v862 = vadd.f32 %v846, 1.0
      %v863 = vadd.f32 %v847, 1.0
      %v864 = vadd.f32 %v848, 1.0
      %v865 = vadd.f32 %v849, 1.0
      %v866 = vadd.f32 %v850, 1.0
      %v867 = vadd.f32 %v851, 1.0
      %v868 = vadd.f32 %v852, 1.0
      %v869 = vadd.f32 %v853, 1.0
      %v870 = vadd.f32 %v854, 1.0
      %v871 = vadd.f32 %v855, 1.0
      %v872 = vadd.f32 %v856, 1.0
      %v873 = vadd.f32 %v857, 1.0
      %v874 = vadd.f32 %v858, 1.0
      %v875 = vadd.f32 %v859, 1.0
      %v876 = vadd.f32 %v860, 1.0
      %v877 = vadd.f32 %v861, 1.0
      %v878 = vmul.f32 %v814, %v862
      %v879 = vmul.f32 %v815, %v863
      %v880 = vmul.f32 %v816, %v864
      %v881 = vmul.f32 %v817, %v865
      %v882 = vmul.f32 %v818, %v866
      %v883 = vmul.f32 %v819, %v867
      %v884 = vmul.f32 %v820, %v868
      %v885 = vmul.f32 %v821, %v869
      %v886 = vmul.f32 %v822, %v870
      %v887 = vmul.f32 %v823, %v871
      %v888 = vmul.f32 %v824, %v872
      %v889 = vmul.f32 %v825, %v873
      %v890 = vmul.f32 %v826, %v874
      %v891 = vmul.f32 %v827, %v875
      %v892 = vmul.f32 %v828, %v876
      %v893 = vmul.f32 %v829, %v877
      %v894 = vpack.c.bf16 %v879, %v878
      %v895 = vpack.c.bf16 %v881, %v880
      %v896 = vpack.c.bf16 %v883, %v882
      %v897 = vpack.c.bf16 %v885, %v884
      %v898 = vpack.c.bf16 %v887, %v886
      %v899 = vpack.c.bf16 %v889, %v888
      %v900 = vpack.c.bf16 %v891, %v890
      %v901 = vpack.c.bf16 %v893, %v892
      %v903 = vlaneseq
      %v904 = vshrl.u32 %v903, 7
      %v905 = vsub.s32 0, %v904
      %v906 = vrot.slane %v396, %v905
      %v924 = vunpack.c.l.b16 %v380
      %v925 = vunpack.c.l.b16 %v381
      %v926 = vunpack.c.l.b16 %v382
      %v927 = vunpack.c.l.b16 %v383
      %v928 = vunpack.c.l.b16 %v384
      %v929 = vunpack.c.l.b16 %v385
      %v930 = vunpack.c.l.b16 %v386
      %v931 = vunpack.c.l.b16 %v387
      %v932 = vunpack.c.l.b16 %v388
      %v933 = vunpack.c.l.b16 %v389
      %v934 = vunpack.c.l.b16 %v390
      %v935 = vunpack.c.l.b16 %v391
      %v936 = vunpack.c.l.b16 %v392
      %v937 = vunpack.c.l.b16 %v393
      %v938 = vunpack.c.l.b16 %v394
      %v939 = vunpack.c.l.b16 %v395
      %v940 = vpack.c.b16 %v925, %v924
      %v941 = vpack.c.b16 %v927, %v926
      %v942 = vpack.c.b16 %v929, %v928
      %v943 = vpack.c.b16 %v931, %v930
      %v944 = vpack.c.b16 %v933, %v932
      %v945 = vpack.c.b16 %v935, %v934
      %v946 = vpack.c.b16 %v937, %v936
      %v947 = vpack.c.b16 %v939, %v938
      %956 = vmatprep.subr.bf16.mxu0 0
      %957 = vmatpush1.bf16.msra.mxu0 %v947
      %958 = vmatprep.subr.bf16.mxu0 0
      %959 = vmatpush1.bf16.msra.mxu0 %v946
      %960 = vmatprep.subr.bf16.mxu0 0
      %961 = vmatpush1.bf16.msra.mxu0 %v945
      %962 = vmatprep.subr.bf16.mxu0 0
      %963 = vmatpush1.bf16.msra.mxu0 %v944
      %964 = vmatprep.subr.bf16.mxu0 0
      %965 = vmatpush1.bf16.msra.mxu0 %v943
      %966 = vmatprep.subr.bf16.mxu0 0
      %967 = vmatpush1.bf16.msra.mxu0 %v942
      %968 = vmatprep.subr.bf16.mxu0 0
      %969 = vmatpush1.bf16.msra.mxu0 %v941
      %970 = vmatprep.subr.bf16.mxu0 0
      %971 = vmatpush1.bf16.msra.mxu0 %v940
      %972 = vmatprep.subr.bf16.mxu0 0
      %973 = vmatpush2.bf16.msra.mxu0 0
      %974 = vmatprep.subr.bf16.mxu0 0
      %975 = vmatpush2.bf16.msra.mxu0 0
      %976 = vmatprep.subr.bf16.mxu0 0
      %977 = vmatpush2.bf16.msra.mxu0 0
      %978 = vmatprep.subr.bf16.mxu0 0
      %979 = vmatpush2.bf16.msra.mxu0 0
      %980 = vmatprep.subr.bf16.mxu0 0
      %981 = vmatpush2.bf16.msra.mxu0 0
      %982 = vmatprep.subr.bf16.mxu0 0
      %983 = vmatpush2.bf16.msra.mxu0 0
      %984 = vmatprep.subr.bf16.mxu0 0
      %985 = vmatpush2.bf16.msra.mxu0 0
      %986 = vmatprep.subr.bf16.mxu0 0
      %987 = vmatpush2.bf16.msra.mxu0 0
      %988 = vmatprep.mubr.bf16.mxu0 0
      %989 = vmatmul.mubr.bf16.gmra.mxu0 %v894
      %v990 = vpop.f32.mrf.mxu0
      %v991 = vadd.f32 %v906, %v990
      %v992 = vpop.f32.mrf.mxu0
      %v993 = vpop.f32.mrf.mxu0
      %v994 = vadd.f32 %v906, %v993
      %v995 = vpop.f32.mrf.mxu0
      %996 = vmatprep.mubr.bf16.mxu0 0
      %997 = vmatmul.mubr.bf16.gmra.mxu0 %v895
      %v998 = vpop.f32.mrf.mxu0
      %v999 = vadd.f32 %v906, %v998
      %v1000 = vpop.f32.mrf.mxu0
      %v1001 = vpop.f32.mrf.mxu0
      %v1002 = vadd.f32 %v906, %v1001
      %v1003 = vpop.f32.mrf.mxu0
      %1004 = vmatprep.mubr.bf16.mxu0 0
      %1005 = vmatmul.mubr.bf16.gmra.mxu0 %v896
      %v1006 = vpop.f32.mrf.mxu0
      %v1007 = vadd.f32 %v906, %v1006
      %v1008 = vpop.f32.mrf.mxu0
      %v1009 = vpop.f32.mrf.mxu0
      %v1010 = vadd.f32 %v906, %v1009
      %v1011 = vpop.f32.mrf.mxu0
      %1012 = vmatprep.mubr.bf16.mxu0 0
      %1013 = vmatmul.mubr.bf16.gmra.mxu0 %v897
      %v1014 = vpop.f32.mrf.mxu0
      %v1015 = vadd.f32 %v906, %v1014
      %v1016 = vpop.f32.mrf.mxu0
      %v1017 = vpop.f32.mrf.mxu0
      %v1018 = vadd.f32 %v906, %v1017
      %v1019 = vpop.f32.mrf.mxu0
      %1020 = vmatprep.mubr.bf16.mxu0 0
      %1021 = vmatmul.mubr.bf16.gmra.mxu0 %v898
      %v1022 = vpop.f32.mrf.mxu0
      %v1023 = vadd.f32 %v906, %v1022
      %v1024 = vpop.f32.mrf.mxu0
      %v1025 = vpop.f32.mrf.mxu0
      %v1026 = vadd.f32 %v906, %v1025
      %v1027 = vpop.f32.mrf.mxu0
      %1028 = vmatprep.mubr.bf16.mxu0 0
      %1029 = vmatmul.mubr.bf16.gmra.mxu0 %v899
      %v1030 = vpop.f32.mrf.mxu0
      %v1031 = vadd.f32 %v906, %v1030
      %v1032 = vpop.f32.mrf.mxu0
      %v1033 = vpop.f32.mrf.mxu0
      %v1034 = vadd.f32 %v906, %v1033
      %v1035 = vpop.f32.mrf.mxu0
      %1036 = vmatprep.mubr.bf16.mxu0 0
      %1037 = vmatmul.mubr.bf16.gmra.mxu0 %v900
      %v1038 = vpop.f32.mrf.mxu0
      %v1039 = vadd.f32 %v906, %v1038
      %v1040 = vpop.f32.mrf.mxu0
      %v1041 = vpop.f32.mrf.mxu0
      %v1042 = vadd.f32 %v906, %v1041
      %v1043 = vpop.f32.mrf.mxu0
      %1044 = vmatprep.mubr.bf16.mxu0 0
      %1045 = vmatmul.mubr.bf16.gmra.mxu0 %v901
      %v1046 = vpop.f32.mrf.mxu0
      %v1047 = vadd.f32 %v906, %v1046
      %v1048 = vpop.f32.mrf.mxu0
      %v1049 = vpop.f32.mrf.mxu0
      %v1050 = vadd.f32 %v906, %v1049
      %v1051 = vpop.f32.mrf.mxu0
      %1052 = vdwg.mxu0
      %v1053 = vadd.f32 %v397, %v991
      %v1054 = vadd.f32 %v398, %v994
      %v1055 = vadd.f32 %v399, %v999
      %v1056 = vadd.f32 %v400, %v1002
      %v1057 = vadd.f32 %v401, %v1007
      %v1058 = vadd.f32 %v402, %v1010
      %v1059 = vadd.f32 %v403, %v1015
      %v1060 = vadd.f32 %v404, %v1018
      %v1061 = vadd.f32 %v405, %v1023
      %v1062 = vadd.f32 %v406, %v1026
      %v1063 = vadd.f32 %v407, %v1031
      %v1064 = vadd.f32 %v408, %v1034
      %v1065 = vadd.f32 %v409, %v1039
      %v1066 = vadd.f32 %v410, %v1042
      %v1067 = vadd.f32 %v411, %v1047
      %v1068 = vadd.f32 %v412, %v1050
      %1069 = vst.msk [vmem:[%s364] sm:$0xff] %vm413, %v1053
      %1070 = vst.msk [vmem:[%s364 + $0x8] sm:$0xff] %vm413, %v1054
      %1071 = vst.msk [vmem:[%s364 + $0x10] sm:$0xff] %vm413, %v1055
      %1072 = vst.msk [vmem:[%s364 + $0x18] sm:$0xff] %vm413, %v1056
      %1073 = vst.msk [vmem:[%s364 + $0x20] sm:$0xff] %vm413, %v1057
      %1074 = vst.msk [vmem:[%s364 + $0x28] sm:$0xff] %vm413, %v1058
      %1075 = vst.msk [vmem:[%s364 + $0x30] sm:$0xff] %vm413, %v1059
      %1076 = vst.msk [vmem:[%s364 + $0x38] sm:$0xff] %vm413, %v1060
      %1077 = vst.msk [vmem:[%s364 + $0x40] sm:$0xff] %vm413, %v1061
      %1078 = vst.msk [vmem:[%s364 + $0x48] sm:$0xff] %vm413, %v1062
      %1079 = vst.msk [vmem:[%s364 + $0x50] sm:$0xff] %vm413, %v1063
      %1080 = vst.msk [vmem:[%s364 + $0x58] sm:$0xff] %vm413, %v1064
      %1081 = vst.msk [vmem:[%s364 + $0x60] sm:$0xff] %vm413, %v1065
      %1082 = vst.msk [vmem:[%s364 + $0x68] sm:$0xff] %vm413, %v1066
      %1083 = vst.msk [vmem:[%s364 + $0x70] sm:$0xff] %vm413, %v1067
      %1084 = vst.msk [vmem:[%s364 + $0x78] sm:$0xff] %vm413, %v1068
      %v1085 = vld [vmem:[%s358] sm:$0xff]
      %v1086 = vld [vmem:[%s358 + $0x8] sm:$0xff]
      %v1087 = vld [vmem:[%s358 + $0x10] sm:$0xff]
      %v1088 = vld [vmem:[%s358 + $0x18] sm:$0xff]
      %v1089 = vld [vmem:[%s358 + $0x20] sm:$0xff]
      %v1090 = vld [vmem:[%s358 + $0x28] sm:$0xff]
      %v1091 = vld [vmem:[%s358 + $0x30] sm:$0xff]
      %v1092 = vld [vmem:[%s358 + $0x38] sm:$0xff]
      %v1093 = vld [vmem:[%s358 + $0x40] sm:$0xff]
      %v1094 = vld [vmem:[%s358 + $0x48] sm:$0xff]
      %v1095 = vld [vmem:[%s358 + $0x50] sm:$0xff]
      %v1096 = vld [vmem:[%s358 + $0x58] sm:$0xff]
      %v1097 = vld [vmem:[%s358 + $0x60] sm:$0xff]
      %v1098 = vld [vmem:[%s358 + $0x68] sm:$0xff]
      %v1099 = vld [vmem:[%s358 + $0x70] sm:$0xff]
      %v1100 = vld [vmem:[%s358 + $0x78] sm:$0xff]
      %v1101 = vsel %vm413, %v1085, 0.0
      %1102 = vadd.xlane.f32.xlu0 %v1101
      %v1103 = vpop.xlane.xlu0 %1102
      %v1104 = vsel %vm413, %v1086, 0.0
      %1105 = vadd.xlane.f32.xlu0 %v1104
      %v1106 = vpop.xlane.xlu0 %1105
      %v1107 = vsel %vm413, %v1087, 0.0
      %1108 = vadd.xlane.f32.xlu0 %v1107
      %v1109 = vpop.xlane.xlu0 %1108
      %v1110 = vsel %vm413, %v1088, 0.0
      %1111 = vadd.xlane.f32.xlu0 %v1110
      %v1112 = vpop.xlane.xlu0 %1111
      %v1113 = vsel %vm413, %v1089, 0.0
      %1114 = vadd.xlane.f32.xlu0 %v1113
      %v1115 = vpop.xlane.xlu0 %1114
      %v1116 = vsel %vm413, %v1090, 0.0
      %1117 = vadd.xlane.f32.xlu0 %v1116
      %v1118 = vpop.xlane.xlu0 %1117
      %v1119 = vsel %vm413, %v1091, 0.0
      %1120 = vadd.xlane.f32.xlu0 %v1119
      %v1121 = vpop.xlane.xlu0 %1120
      %v1122 = vsel %vm413, %v1092, 0.0
      %1123 = vadd.xlane.f32.xlu0 %v1122
      %v1124 = vpop.xlane.xlu0 %1123
      %v1125 = vsel %vm413, %v1093, 0.0
      %1126 = vadd.xlane.f32.xlu0 %v1125
      %v1127 = vpop.xlane.xlu0 %1126
      %v1128 = vsel %vm413, %v1094, 0.0
      %1129 = vadd.xlane.f32.xlu0 %v1128
      %v1130 = vpop.xlane.xlu0 %1129
      %v1131 = vsel %vm413, %v1095, 0.0
      %1132 = vadd.xlane.f32.xlu0 %v1131
      %v1133 = vpop.xlane.xlu0 %1132
      %v1134 = vsel %vm413, %v1096, 0.0
      %1135 = vadd.xlane.f32.xlu0 %v1134
      %v1136 = vpop.xlane.xlu0 %1135
      %v1137 = vsel %vm413, %v1097, 0.0
      %1138 = vadd.xlane.f32.xlu0 %v1137
      %v1139 = vpop.xlane.xlu0 %1138
      %v1140 = vsel %vm413, %v1098, 0.0
      %1141 = vadd.xlane.f32.xlu0 %v1140
      %v1142 = vpop.xlane.xlu0 %1141
      %v1143 = vsel %vm413, %v1099, 0.0
      %1144 = vadd.xlane.f32.xlu0 %v1143
      %v1145 = vpop.xlane.xlu0 %1144
      %v1146 = vsel %vm413, %v1100, 0.0
      %1147 = vadd.xlane.f32.xlu0 %v1146
      %v1148 = vpop.xlane.xlu0 %1147
      %v1149 = vmul.f32 %v1103, %v462
      %v1150 = vmul.f32 %v1106, %v462
      %v1151 = vmul.f32 %v1109, %v462
      %v1152 = vmul.f32 %v1112, %v462
      %v1153 = vmul.f32 %v1115, %v462
      %v1154 = vmul.f32 %v1118, %v462
      %v1155 = vmul.f32 %v1121, %v462
      %v1156 = vmul.f32 %v1124, %v462
      %v1157 = vmul.f32 %v1127, %v462
      %v1158 = vmul.f32 %v1130, %v462
      %v1159 = vmul.f32 %v1133, %v462
      %v1160 = vmul.f32 %v1136, %v462
      %v1161 = vmul.f32 %v1139, %v462
      %v1162 = vmul.f32 %v1142, %v462
      %v1163 = vmul.f32 %v1145, %v462
      %v1164 = vmul.f32 %v1148, %v462
      %v1165 = vsub.f32 %v1085, %v1149
      %v1166 = vsub.f32 %v1086, %v1150
      %v1167 = vsub.f32 %v1087, %v1151
      %v1168 = vsub.f32 %v1088, %v1152
      %v1169 = vsub.f32 %v1089, %v1153
      %v1170 = vsub.f32 %v1090, %v1154
      %v1171 = vsub.f32 %v1091, %v1155
      %v1172 = vsub.f32 %v1092, %v1156
      %v1173 = vsub.f32 %v1093, %v1157
      %v1174 = vsub.f32 %v1094, %v1158
      %v1175 = vsub.f32 %v1095, %v1159
      %v1176 = vsub.f32 %v1096, %v1160
      %v1177 = vsub.f32 %v1097, %v1161
      %v1178 = vsub.f32 %v1098, %v1162
      %v1179 = vsub.f32 %v1099, %v1163
      %v1180 = vsub.f32 %v1100, %v1164
      %v1181 = vmul.f32 %v1165, %v1165
      %v1182 = vmul.f32 %v1166, %v1166
      %v1183 = vmul.f32 %v1167, %v1167
      %v1184 = vmul.f32 %v1168, %v1168
      %v1185 = vmul.f32 %v1169, %v1169
      %v1186 = vmul.f32 %v1170, %v1170
      %v1187 = vmul.f32 %v1171, %v1171
      %v1188 = vmul.f32 %v1172, %v1172
      %v1189 = vmul.f32 %v1173, %v1173
      %v1190 = vmul.f32 %v1174, %v1174
      %v1191 = vmul.f32 %v1175, %v1175
      %v1192 = vmul.f32 %v1176, %v1176
      %v1193 = vmul.f32 %v1177, %v1177
      %v1194 = vmul.f32 %v1178, %v1178
      %v1195 = vmul.f32 %v1179, %v1179
      %v1196 = vmul.f32 %v1180, %v1180
      %v1197 = vsel %vm413, %v1181, 0.0
      %1198 = vadd.xlane.f32.xlu0 %v1197
      %v1199 = vpop.xlane.xlu0 %1198
      %v1200 = vsel %vm413, %v1182, 0.0
      %1201 = vadd.xlane.f32.xlu0 %v1200
      %v1202 = vpop.xlane.xlu0 %1201
      %v1203 = vsel %vm413, %v1183, 0.0
      %1204 = vadd.xlane.f32.xlu0 %v1203
      %v1205 = vpop.xlane.xlu0 %1204
      %v1206 = vsel %vm413, %v1184, 0.0
      %1207 = vadd.xlane.f32.xlu0 %v1206
      %v1208 = vpop.xlane.xlu0 %1207
      %v1209 = vsel %vm413, %v1185, 0.0
      %1210 = vadd.xlane.f32.xlu0 %v1209
      %v1211 = vpop.xlane.xlu0 %1210
      %v1212 = vsel %vm413, %v1186, 0.0
      %1213 = vadd.xlane.f32.xlu0 %v1212
      %v1214 = vpop.xlane.xlu0 %1213
      %v1215 = vsel %vm413, %v1187, 0.0
      %1216 = vadd.xlane.f32.xlu0 %v1215
      %v1217 = vpop.xlane.xlu0 %1216
      %v1218 = vsel %vm413, %v1188, 0.0
      %1219 = vadd.xlane.f32.xlu0 %v1218
      %v1220 = vpop.xlane.xlu0 %1219
      %v1221 = vsel %vm413, %v1189, 0.0
      %1222 = vadd.xlane.f32.xlu0 %v1221
      %v1223 = vpop.xlane.xlu0 %1222
      %v1224 = vsel %vm413, %v1190, 0.0
      %1225 = vadd.xlane.f32.xlu0 %v1224
      %v1226 = vpop.xlane.xlu0 %1225
      %v1227 = vsel %vm413, %v1191, 0.0
      %1228 = vadd.xlane.f32.xlu0 %v1227
      %v1229 = vpop.xlane.xlu0 %1228
      %v1230 = vsel %vm413, %v1192, 0.0
      %1231 = vadd.xlane.f32.xlu0 %v1230
      %v1232 = vpop.xlane.xlu0 %1231
      %v1233 = vsel %vm413, %v1193, 0.0
      %1234 = vadd.xlane.f32.xlu0 %v1233
      %v1235 = vpop.xlane.xlu0 %1234
      %v1236 = vsel %vm413, %v1194, 0.0
      %1237 = vadd.xlane.f32.xlu0 %v1236
      %v1238 = vpop.xlane.xlu0 %1237
      %v1239 = vsel %vm413, %v1195, 0.0
      %1240 = vadd.xlane.f32.xlu0 %v1239
      %v1241 = vpop.xlane.xlu0 %1240
      %v1242 = vsel %vm413, %v1196, 0.0
      %1243 = vadd.xlane.f32.xlu0 %v1242
      %v1244 = vpop.xlane.xlu0 %1243
      %v1245 = vmul.f32 %v1199, %v462
      %v1246 = vmul.f32 %v1202, %v462
      %v1247 = vmul.f32 %v1205, %v462
      %v1248 = vmul.f32 %v1208, %v462
      %v1249 = vmul.f32 %v1211, %v462
      %v1250 = vmul.f32 %v1214, %v462
      %v1251 = vmul.f32 %v1217, %v462
      %v1252 = vmul.f32 %v1220, %v462
      %v1253 = vmul.f32 %v1223, %v462
      %v1254 = vmul.f32 %v1226, %v462
      %v1255 = vmul.f32 %v1229, %v462
      %v1256 = vmul.f32 %v1232, %v462
      %v1257 = vmul.f32 %v1235, %v462
      %v1258 = vmul.f32 %v1238, %v462
      %v1259 = vmul.f32 %v1241, %v462
      %v1260 = vmul.f32 %v1244, %v462
      %v1261 = vadd.f32 %v1245, 1e-05
      %v1262 = vadd.f32 %v1246, 1e-05
      %v1263 = vadd.f32 %v1247, 1e-05
      %v1264 = vadd.f32 %v1248, 1e-05
      %v1265 = vadd.f32 %v1249, 1e-05
      %v1266 = vadd.f32 %v1250, 1e-05
      %v1267 = vadd.f32 %v1251, 1e-05
      %v1268 = vadd.f32 %v1252, 1e-05
      %v1269 = vadd.f32 %v1253, 1e-05
      %v1270 = vadd.f32 %v1254, 1e-05
      %v1271 = vadd.f32 %v1255, 1e-05
      %v1272 = vadd.f32 %v1256, 1e-05
      %v1273 = vadd.f32 %v1257, 1e-05
      %v1274 = vadd.f32 %v1258, 1e-05
      %v1275 = vadd.f32 %v1259, 1e-05
      %v1276 = vadd.f32 %v1260, 1e-05
      %v1277 = vrsqrt.pop %v1261
      %v1278 = vrsqrt.pop %v1262
      %v1279 = vrsqrt.pop %v1263
      %v1280 = vrsqrt.pop %v1264
      %v1281 = vrsqrt.pop %v1265
      %v1282 = vrsqrt.pop %v1266
      %v1283 = vrsqrt.pop %v1267
      %v1284 = vrsqrt.pop %v1268
      %v1285 = vrsqrt.pop %v1269
      %v1286 = vrsqrt.pop %v1270
      %v1287 = vrsqrt.pop %v1271
      %v1288 = vrsqrt.pop %v1272
      %v1289 = vrsqrt.pop %v1273
      %v1290 = vrsqrt.pop %v1274
      %v1291 = vrsqrt.pop %v1275
      %v1292 = vrsqrt.pop %v1276
      %v1293 = vmul.f32 %v1165, %v1277
      %v1294 = vmul.f32 %v1166, %v1278
      %v1295 = vmul.f32 %v1167, %v1279
      %v1296 = vmul.f32 %v1168, %v1280
      %v1297 = vmul.f32 %v1169, %v1281
      %v1298 = vmul.f32 %v1170, %v1282
      %v1299 = vmul.f32 %v1171, %v1283
      %v1300 = vmul.f32 %v1172, %v1284
      %v1301 = vmul.f32 %v1173, %v1285
      %v1302 = vmul.f32 %v1174, %v1286
      %v1303 = vmul.f32 %v1175, %v1287
      %v1304 = vmul.f32 %v1176, %v1288
      %v1305 = vmul.f32 %v1177, %v1289
      %v1306 = vmul.f32 %v1178, %v1290
      %v1307 = vmul.f32 %v1179, %v1291
      %v1308 = vmul.f32 %v1180, %v1292
      %v1309 = vmul.f32 %v1293, %v627
      %v1310 = vmul.f32 %v1294, %v627
      %v1311 = vmul.f32 %v1295, %v627
      %v1312 = vmul.f32 %v1296, %v627
      %v1313 = vmul.f32 %v1297, %v627
      %v1314 = vmul.f32 %v1298, %v627
      %v1315 = vmul.f32 %v1299, %v627
      %v1316 = vmul.f32 %v1300, %v627
      %v1317 = vmul.f32 %v1301, %v627
      %v1318 = vmul.f32 %v1302, %v627
      %v1319 = vmul.f32 %v1303, %v627
      %v1320 = vmul.f32 %v1304, %v627
      %v1321 = vmul.f32 %v1305, %v627
      %v1322 = vmul.f32 %v1306, %v627
      %v1323 = vmul.f32 %v1307, %v627
      %v1324 = vmul.f32 %v1308, %v627
      %v1325 = vadd.f32 %v1309, %v649
      %v1326 = vadd.f32 %v1310, %v649
      %v1327 = vadd.f32 %v1311, %v649
      %v1328 = vadd.f32 %v1312, %v649
      %v1329 = vadd.f32 %v1313, %v649
      %v1330 = vadd.f32 %v1314, %v649
      %v1331 = vadd.f32 %v1315, %v649
      %v1332 = vadd.f32 %v1316, %v649
      %v1333 = vadd.f32 %v1317, %v649
      %v1334 = vadd.f32 %v1318, %v649
      %v1335 = vadd.f32 %v1319, %v649
      %v1336 = vadd.f32 %v1320, %v649
      %v1337 = vadd.f32 %v1321, %v649
      %v1338 = vadd.f32 %v1322, %v649
      %v1339 = vadd.f32 %v1323, %v649
      %v1340 = vadd.f32 %v1324, %v649
      %v1341 = vpack.c.bf16 %v1326, %v1325
      %v1342 = vpack.c.bf16 %v1328, %v1327
      %v1343 = vpack.c.bf16 %v1330, %v1329
      %v1344 = vpack.c.bf16 %v1332, %v1331
      %v1345 = vpack.c.bf16 %v1334, %v1333
      %v1346 = vpack.c.bf16 %v1336, %v1335
      %v1347 = vpack.c.bf16 %v1338, %v1337
      %v1348 = vpack.c.bf16 %v1340, %v1339
      %v1350 = vsel %vm413, %v1341, 0
      %v1353 = vsel %vm413, %v1342, 0
      %v1356 = vsel %vm413, %v1343, 0
      %v1359 = vsel %vm413, %v1344, 0
      %v1362 = vsel %vm413, %v1345, 0
      %v1365 = vsel %vm413, %v1346, 0
      %v1368 = vsel %vm413, %v1347, 0
      %v1371 = vsel %vm413, %v1348, 0
      %1373 = vmatprep.subr.bf16.mxu0 0
      %1374 = vmatpush1.bf16.msra.mxu0 0
      %1375 = vmatprep.subr.bf16.mxu0 0
      %1376 = vmatpush1.bf16.msra.mxu0 0
      %1377 = vmatprep.subr.bf16.mxu0 0
      %1378 = vmatpush1.bf16.msra.mxu0 0
      %1379 = vmatprep.subr.bf16.mxu0 0
      %1380 = vmatpush1.bf16.msra.mxu0 0
      %1381 = vmatprep.subr.bf16.mxu0 0
      %1382 = vmatpush1.bf16.msra.mxu0 0
      %1383 = vmatprep.subr.bf16.mxu0 0
      %1384 = vmatpush1.bf16.msra.mxu0 0
      %1385 = vmatprep.subr.bf16.mxu0 0
      %1386 = vmatpush1.bf16.msra.mxu0 %v690
      %1387 = vmatprep.subr.bf16.mxu0 0
      %1388 = vmatpush1.bf16.msra.mxu0 %v689
      %1389 = vmatprep.subr.bf16.mxu0 0
      %1390 = vmatpush2.bf16.msra.mxu0 0
      %1391 = vmatprep.subr.bf16.mxu0 0
      %1392 = vmatpush2.bf16.msra.mxu0 0
      %1393 = vmatprep.subr.bf16.mxu0 0
      %1394 = vmatpush2.bf16.msra.mxu0 0
      %1395 = vmatprep.subr.bf16.mxu0 0
      %1396 = vmatpush2.bf16.msra.mxu0 0
      %1397 = vmatprep.subr.bf16.mxu0 0
      %1398 = vmatpush2.bf16.msra.mxu0 0
      %1399 = vmatprep.subr.bf16.mxu0 0
      %1400 = vmatpush2.bf16.msra.mxu0 0
      %1401 = vmatprep.subr.bf16.mxu0 0
      %1402 = vmatpush2.bf16.msra.mxu0 0
      %1403 = vmatprep.subr.bf16.mxu0 0
      %1404 = vmatpush2.bf16.msra.mxu0 0
      %1405 = vmatprep.mubr.bf16.mxu0 0
      %1406 = vmatmul.mubr.bf16.gmra.mxu0 %v1350
      %v1407 = vpop.f32.mrf.mxu0
      %v1408 = vadd.f32 %v679, %v1407
      %v1409 = vpop.f32.mrf.mxu0
      %v1410 = vpop.f32.mrf.mxu0
      %v1411 = vadd.f32 %v679, %v1410
      %v1412 = vpop.f32.mrf.mxu0
      %1413 = vmatprep.mubr.bf16.mxu0 0
      %1414 = vmatmul.mubr.bf16.gmra.mxu0 %v1353
      %v1415 = vpop.f32.mrf.mxu0
      %v1416 = vadd.f32 %v679, %v1415
      %v1417 = vpop.f32.mrf.mxu0
      %v1418 = vpop.f32.mrf.mxu0
      %v1419 = vadd.f32 %v679, %v1418
      %v1420 = vpop.f32.mrf.mxu0
      %1421 = vmatprep.mubr.bf16.mxu0 0
      %1422 = vmatmul.mubr.bf16.gmra.mxu0 %v1356
      %v1423 = vpop.f32.mrf.mxu0
      %v1424 = vadd.f32 %v679, %v1423
      %v1425 = vpop.f32.mrf.mxu0
      %v1426 = vpop.f32.mrf.mxu0
      %v1427 = vadd.f32 %v679, %v1426
      %v1428 = vpop.f32.mrf.mxu0
      %1429 = vmatprep.mubr.bf16.mxu0 0
      %1430 = vmatmul.mubr.bf16.gmra.mxu0 %v1359
      %v1431 = vpop.f32.mrf.mxu0
      %v1432 = vadd.f32 %v679, %v1431
      %v1433 = vpop.f32.mrf.mxu0
      %v1434 = vpop.f32.mrf.mxu0
      %v1435 = vadd.f32 %v679, %v1434
      %v1436 = vpop.f32.mrf.mxu0
      %1437 = vmatprep.mubr.bf16.mxu0 0
      %1438 = vmatmul.mubr.bf16.gmra.mxu0 %v1362
      %v1439 = vpop.f32.mrf.mxu0
      %v1440 = vadd.f32 %v679, %v1439
      %v1441 = vpop.f32.mrf.mxu0
      %v1442 = vpop.f32.mrf.mxu0
      %v1443 = vadd.f32 %v679, %v1442
      %v1444 = vpop.f32.mrf.mxu0
      %1445 = vmatprep.mubr.bf16.mxu0 0
      %1446 = vmatmul.mubr.bf16.gmra.mxu0 %v1365
      %v1447 = vpop.f32.mrf.mxu0
      %v1448 = vadd.f32 %v679, %v1447
      %v1449 = vpop.f32.mrf.mxu0
      %v1450 = vpop.f32.mrf.mxu0
      %v1451 = vadd.f32 %v679, %v1450
      %v1452 = vpop.f32.mrf.mxu0
      %1453 = vmatprep.mubr.bf16.mxu0 0
      %1454 = vmatmul.mubr.bf16.gmra.mxu0 %v1368
      %v1455 = vpop.f32.mrf.mxu0
      %v1456 = vadd.f32 %v679, %v1455
      %v1457 = vpop.f32.mrf.mxu0
      %v1458 = vpop.f32.mrf.mxu0
      %v1459 = vadd.f32 %v679, %v1458
      %v1460 = vpop.f32.mrf.mxu0
      %1461 = vmatprep.mubr.bf16.mxu0 0
      %1462 = vmatmul.mubr.bf16.gmra.mxu0 %v1371
      %v1463 = vpop.f32.mrf.mxu0
      %v1464 = vadd.f32 %v679, %v1463
      %v1465 = vpop.f32.mrf.mxu0
      %v1466 = vpop.f32.mrf.mxu0
      %v1467 = vadd.f32 %v679, %v1466
      %v1468 = vpop.f32.mrf.mxu0
      %1469 = vdwg.mxu0
      %v1470 = vmul.f32 %v1408, 0.5
      %v1471 = vmul.f32 %v1411, 0.5
      %v1472 = vmul.f32 %v1416, 0.5
      %v1473 = vmul.f32 %v1419, 0.5
      %v1474 = vmul.f32 %v1424, 0.5
      %v1475 = vmul.f32 %v1427, 0.5
      %v1476 = vmul.f32 %v1432, 0.5
      %v1477 = vmul.f32 %v1435, 0.5
      %v1478 = vmul.f32 %v1440, 0.5
      %v1479 = vmul.f32 %v1443, 0.5
      %v1480 = vmul.f32 %v1448, 0.5
      %v1481 = vmul.f32 %v1451, 0.5
      %v1482 = vmul.f32 %v1456, 0.5
      %v1483 = vmul.f32 %v1459, 0.5
      %v1484 = vmul.f32 %v1464, 0.5
      %v1485 = vmul.f32 %v1467, 0.5
      %v1486 = vmul.f32 %v1408, 0.70710677
      %v1487 = vmul.f32 %v1411, 0.70710677
      %v1488 = vmul.f32 %v1416, 0.70710677
      %v1489 = vmul.f32 %v1419, 0.70710677
      %v1490 = vmul.f32 %v1424, 0.70710677
      %v1491 = vmul.f32 %v1427, 0.70710677
      %v1492 = vmul.f32 %v1432, 0.70710677
      %v1493 = vmul.f32 %v1435, 0.70710677
      %v1494 = vmul.f32 %v1440, 0.70710677
      %v1495 = vmul.f32 %v1443, 0.70710677
      %v1496 = vmul.f32 %v1448, 0.70710677
      %v1497 = vmul.f32 %v1451, 0.70710677
      %v1498 = vmul.f32 %v1456, 0.70710677
      %v1499 = vmul.f32 %v1459, 0.70710677
      %v1500 = vmul.f32 %v1464, 0.70710677
      %v1501 = vmul.f32 %v1467, 0.70710677
      %v1502 = verf.f32.pop %v1486
      %v1503 = verf.f32.pop %v1487
      %v1504 = verf.f32.pop %v1488
      %v1505 = verf.f32.pop %v1489
      %v1506 = verf.f32.pop %v1490
      %v1507 = verf.f32.pop %v1491
      %v1508 = verf.f32.pop %v1492
      %v1509 = verf.f32.pop %v1493
      %v1510 = verf.f32.pop %v1494
      %v1511 = verf.f32.pop %v1495
      %v1512 = verf.f32.pop %v1496
      %v1513 = verf.f32.pop %v1497
      %v1514 = verf.f32.pop %v1498
      %v1515 = verf.f32.pop %v1499
      %v1516 = verf.f32.pop %v1500
      %v1517 = verf.f32.pop %v1501
      %v1518 = vadd.f32 %v1502, 1.0
      %v1519 = vadd.f32 %v1503, 1.0
      %v1520 = vadd.f32 %v1504, 1.0
      %v1521 = vadd.f32 %v1505, 1.0
      %v1522 = vadd.f32 %v1506, 1.0
      %v1523 = vadd.f32 %v1507, 1.0
      %v1524 = vadd.f32 %v1508, 1.0
      %v1525 = vadd.f32 %v1509, 1.0
      %v1526 = vadd.f32 %v1510, 1.0
      %v1527 = vadd.f32 %v1511, 1.0
      %v1528 = vadd.f32 %v1512, 1.0
      %v1529 = vadd.f32 %v1513, 1.0
      %v1530 = vadd.f32 %v1514, 1.0
      %v1531 = vadd.f32 %v1515, 1.0
      %v1532 = vadd.f32 %v1516, 1.0
      %v1533 = vadd.f32 %v1517, 1.0
      %v1534 = vmul.f32 %v1470, %v1518
      %v1535 = vmul.f32 %v1471, %v1519
      %v1536 = vmul.f32 %v1472, %v1520
      %v1537 = vmul.f32 %v1473, %v1521
      %v1538 = vmul.f32 %v1474, %v1522
      %v1539 = vmul.f32 %v1475, %v1523
      %v1540 = vmul.f32 %v1476, %v1524
      %v1541 = vmul.f32 %v1477, %v1525
      %v1542 = vmul.f32 %v1478, %v1526
      %v1543 = vmul.f32 %v1479, %v1527
      %v1544 = vmul.f32 %v1480, %v1528
      %v1545 = vmul.f32 %v1481, %v1529
      %v1546 = vmul.f32 %v1482, %v1530
      %v1547 = vmul.f32 %v1483, %v1531
      %v1548 = vmul.f32 %v1484, %v1532
      %v1549 = vmul.f32 %v1485, %v1533
      %v1550 = vpack.c.bf16 %v1535, %v1534
      %v1551 = vpack.c.bf16 %v1537, %v1536
      %v1552 = vpack.c.bf16 %v1539, %v1538
      %v1553 = vpack.c.bf16 %v1541, %v1540
      %v1554 = vpack.c.bf16 %v1543, %v1542
      %v1555 = vpack.c.bf16 %v1545, %v1544
      %v1556 = vpack.c.bf16 %v1547, %v1546
      %v1557 = vpack.c.bf16 %v1549, %v1548
      %1558 = vmatprep.subr.bf16.mxu0 0
      %1559 = vmatpush1.bf16.msra.mxu0 %v947
      %1560 = vmatprep.subr.bf16.mxu0 0
      %1561 = vmatpush1.bf16.msra.mxu0 %v946
      %1562 = vmatprep.subr.bf16.mxu0 0
      %1563 = vmatpush1.bf16.msra.mxu0 %v945
      %1564 = vmatprep.subr.bf16.mxu0 0
      %1565 = vmatpush1.bf16.msra.mxu0 %v944
      %1566 = vmatprep.subr.bf16.mxu0 0
      %1567 = vmatpush1.bf16.msra.mxu0 %v943
      %1568 = vmatprep.subr.bf16.mxu0 0
      %1569 = vmatpush1.bf16.msra.mxu0 %v942
      %1570 = vmatprep.subr.bf16.mxu0 0
      %1571 = vmatpush1.bf16.msra.mxu0 %v941
      %1572 = vmatprep.subr.bf16.mxu0 0
      %1573 = vmatpush1.bf16.msra.mxu0 %v940
      %1574 = vmatprep.subr.bf16.mxu0 0
      %1575 = vmatpush2.bf16.msra.mxu0 0
      %1576 = vmatprep.subr.bf16.mxu0 0
      %1577 = vmatpush2.bf16.msra.mxu0 0
      %1578 = vmatprep.subr.bf16.mxu0 0
      %1579 = vmatpush2.bf16.msra.mxu0 0
      %1580 = vmatprep.subr.bf16.mxu0 0
      %1581 = vmatpush2.bf16.msra.mxu0 0
      %1582 = vmatprep.subr.bf16.mxu0 0
      %1583 = vmatpush2.bf16.msra.mxu0 0
      %1584 = vmatprep.subr.bf16.mxu0 0
      %1585 = vmatpush2.bf16.msra.mxu0 0
      %1586 = vmatprep.subr.bf16.mxu0 0
      %1587 = vmatpush2.bf16.msra.mxu0 0
      %1588 = vmatprep.subr.bf16.mxu0 0
      %1589 = vmatpush2.bf16.msra.mxu0 0
      %1590 = vmatprep.mubr.bf16.mxu0 0
      %1591 = vmatmul.mubr.bf16.gmra.mxu0 %v1550
      %v1592 = vpop.f32.mrf.mxu0
      %v1593 = vadd.f32 %v906, %v1592
      %v1594 = vpop.f32.mrf.mxu0
      %v1595 = vpop.f32.mrf.mxu0
      %v1596 = vadd.f32 %v906, %v1595
      %v1597 = vpop.f32.mrf.mxu0
      %1598 = vmatprep.mubr.bf16.mxu0 0
      %1599 = vmatmul.mubr.bf16.gmra.mxu0 %v1551
      %v1600 = vpop.f32.mrf.mxu0
      %v1601 = vadd.f32 %v906, %v1600
      %v1602 = vpop.f32.mrf.mxu0
      %v1603 = vpop.f32.mrf.mxu0
      %v1604 = vadd.f32 %v906, %v1603
      %v1605 = vpop.f32.mrf.mxu0
      %1606 = vmatprep.mubr.bf16.mxu0 0
      %1607 = vmatmul.mubr.bf16.gmra.mxu0 %v1552
      %v1608 = vpop.f32.mrf.mxu0
      %v1609 = vadd.f32 %v906, %v1608
      %v1610 = vpop.f32.mrf.mxu0
      %v1611 = vpop.f32.mrf.mxu0
      %v1612 = vadd.f32 %v906, %v1611
      %v1613 = vpop.f32.mrf.mxu0
      %1614 = vmatprep.mubr.bf16.mxu0 0
      %1615 = vmatmul.mubr.bf16.gmra.mxu0 %v1553
      %v1616 = vpop.f32.mrf.mxu0
      %v1617 = vadd.f32 %v906, %v1616
      %v1618 = vpop.f32.mrf.mxu0
      %v1619 = vpop.f32.mrf.mxu0
      %v1620 = vadd.f32 %v906, %v1619
      %v1621 = vpop.f32.mrf.mxu0
      %1622 = vmatprep.mubr.bf16.mxu0 0
      %1623 = vmatmul.mubr.bf16.gmra.mxu0 %v1554
      %v1624 = vpop.f32.mrf.mxu0
      %v1625 = vadd.f32 %v906, %v1624
      %v1626 = vpop.f32.mrf.mxu0
      %v1627 = vpop.f32.mrf.mxu0
      %v1628 = vadd.f32 %v906, %v1627
      %v1629 = vpop.f32.mrf.mxu0
      %1630 = vmatprep.mubr.bf16.mxu0 0
      %1631 = vmatmul.mubr.bf16.gmra.mxu0 %v1555
      %v1632 = vpop.f32.mrf.mxu0
      %v1633 = vadd.f32 %v906, %v1632
      %v1634 = vpop.f32.mrf.mxu0
      %v1635 = vpop.f32.mrf.mxu0
      %v1636 = vadd.f32 %v906, %v1635
      %v1637 = vpop.f32.mrf.mxu0
      %1638 = vmatprep.mubr.bf16.mxu0 0
      %1639 = vmatmul.mubr.bf16.gmra.mxu0 %v1556
      %v1640 = vpop.f32.mrf.mxu0
      %v1641 = vadd.f32 %v906, %v1640
      %v1642 = vpop.f32.mrf.mxu0
      %v1643 = vpop.f32.mrf.mxu0
      %v1644 = vadd.f32 %v906, %v1643
      %v1645 = vpop.f32.mrf.mxu0
      %1646 = vmatprep.mubr.bf16.mxu0 0
      %1647 = vmatmul.mubr.bf16.gmra.mxu0 %v1557
      %v1648 = vpop.f32.mrf.mxu0
      %v1649 = vadd.f32 %v906, %v1648
      %v1650 = vpop.f32.mrf.mxu0
      %v1651 = vpop.f32.mrf.mxu0
      %v1652 = vadd.f32 %v906, %v1651
      %v1653 = vpop.f32.mrf.mxu0
      %1654 = vdwg.mxu0
      %v1655 = vadd.f32 %v1085, %v1593
      %v1656 = vadd.f32 %v1086, %v1596
      %v1657 = vadd.f32 %v1087, %v1601
      %v1658 = vadd.f32 %v1088, %v1604
      %v1659 = vadd.f32 %v1089, %v1609
      %v1660 = vadd.f32 %v1090, %v1612
      %v1661 = vadd.f32 %v1091, %v1617
      %v1662 = vadd.f32 %v1092, %v1620
      %v1663 = vadd.f32 %v1093, %v1625
      %v1664 = vadd.f32 %v1094, %v1628
      %v1665 = vadd.f32 %v1095, %v1633
      %v1666 = vadd.f32 %v1096, %v1636
      %v1667 = vadd.f32 %v1097, %v1641
      %v1668 = vadd.f32 %v1098, %v1644
      %v1669 = vadd.f32 %v1099, %v1649
      %v1670 = vadd.f32 %v1100, %v1652
      %1671 = vst.msk [vmem:[%s370] sm:$0xff] %vm413, %v1655
      %1672 = vst.msk [vmem:[%s370 + $0x8] sm:$0xff] %vm413, %v1656
      %1673 = vst.msk [vmem:[%s370 + $0x10] sm:$0xff] %vm413, %v1657
      %1674 = vst.msk [vmem:[%s370 + $0x18] sm:$0xff] %vm413, %v1658
      %1675 = vst.msk [vmem:[%s370 + $0x20] sm:$0xff] %vm413, %v1659
      %1676 = vst.msk [vmem:[%s370 + $0x28] sm:$0xff] %vm413, %v1660
      %1677 = vst.msk [vmem:[%s370 + $0x30] sm:$0xff] %vm413, %v1661
      %1678 = vst.msk [vmem:[%s370 + $0x38] sm:$0xff] %vm413, %v1662
      %1679 = vst.msk [vmem:[%s370 + $0x40] sm:$0xff] %vm413, %v1663
      %1680 = vst.msk [vmem:[%s370 + $0x48] sm:$0xff] %vm413, %v1664
      %1681 = vst.msk [vmem:[%s370 + $0x50] sm:$0xff] %vm413, %v1665
      %1682 = vst.msk [vmem:[%s370 + $0x58] sm:$0xff] %vm413, %v1666
      %1683 = vst.msk [vmem:[%s370 + $0x60] sm:$0xff] %vm413, %v1667
      %1684 = vst.msk [vmem:[%s370 + $0x68] sm:$0xff] %vm413, %v1668
      %1685 = vst.msk [vmem:[%s370 + $0x70] sm:$0xff] %vm413, %v1669
      %1686 = vst.msk [vmem:[%s370 + $0x78] sm:$0xff] %vm413, %v1670
      %s1687 = smul.u32 16, %s21
      %p1688 = scmp.lt.s32.totalorder %s1687, 63
      %s1689 = scalar_select %p1688, %s1687, 63
      %s1690 = smul.addr %s1689, 8
      %s1691 = scalar_lea.vmem %s8, %s1690
      %s1692 = smul.u32 16, %s21
      %p1693 = scmp.lt.s32.totalorder %s1692, 63
      %s1694 = scalar_select %p1693, %s1692, 63
      %s1695 = smul.addr %s1694, 8
      %s1696 = scalar_lea.vmem %s9, %s1695
      // Predicated region
      $region53: #{swin_transformer_block_forward.3} parent=51 // pred_check
        %p1697 = pneg %p217
      $region54: #{swin_transformer_block_forward.3} parent=51 // pred_check_branch
        %1699 = sbr.rel (%p1697) target = $region56
      $region55: #{swin_transformer_block_forward.3} parent=51 // pred_region
        %s1700 = smul.u32 16, %s21
      $region56: #{swin_transformer_block_forward.3} parent=51 // pred_fallthru
        _
      // Predicated region
      $region57: #{swin_transformer_block_forward.3} parent=51 // pred_check
        %p1701 = pneg %p243
      $region58: #{swin_transformer_block_forward.3} parent=51 // pred_check_branch
        %1703 = sbr.rel (%p1701) target = $region60
      $region59: #{swin_transformer_block_forward.3} parent=51 // pred_region
        %s1704 = smul.u32 16, %s21
      $region60: #{swin_transformer_block_forward.3} parent=51 // pred_fallthru
        _
    $region52: #{swin_transformer_block_forward.3} parent=5 // pred_fallthru
      _
    %p1705 = scmp.le.s32.totalorder 2, %s16
    // Predicated region
    $region61: #{swin_transformer_block_forward.3} parent=5 // pred_check
      %p1706 = pneg %p1705
    $region62: #{swin_transformer_block_forward.3} parent=5 // pred_check_branch
      %1708 = sbr.rel (%p1706) target = $region64
    $region63: #{swin_transformer_block_forward.3} parent=5 // pred_region
      %s1709 = ssub.s32 %s16, 2
      // Predicated region
      $region65: #{swin_transformer_block_forward.3} parent=63 // pred_check
        %p1710 = pneg %p223
      $region66: #{swin_transformer_block_forward.3} parent=63 // pred_check_branch
        %1712 = sbr.rel (%p1710) target = $region68
      $region67: #{swin_transformer_block_forward.3} parent=63 // pred_region
        %s1713 = smul.u32 16, %s22
        %p1714 = scmp.lt.s32.totalorder %s1713, 63
        %s1715 = scalar_select %p1714, %s1713, 63
        %s1716 = smul.addr %s1715, 8
        %s1717 = scalar_lea.vmem %s8, %s1716
      $region68: #{swin_transformer_block_forward.3} parent=63 // pred_fallthru
        _
      // Predicated region
      $region69: #{swin_transformer_block_forward.3} parent=63 // pred_check
        %p1718 = pneg %p249
      $region70: #{swin_transformer_block_forward.3} parent=63 // pred_check_branch
        %1720 = sbr.rel (%p1718) target = $region72
      $region71: #{swin_transformer_block_forward.3} parent=63 // pred_region
        %s1721 = smul.u32 16, %s22
        %p1722 = scmp.lt.s32.totalorder %s1721, 63
        %s1723 = scalar_select %p1722, %s1721, 63
        %s1724 = smul.addr %s1723, 8
        %s1725 = scalar_lea.vmem %s9, %s1724
      $region72: #{swin_transformer_block_forward.3} parent=63 // pred_fallthru
        _
    $region64: #{swin_transformer_block_forward.3} parent=5 // pred_fallthru
      _
  $region6: #{swin_transformer_block_forward.3} parent=0 // loop_footer
    %s20 = sadd.s32 1, %s16
  $region7: #{swin_transformer_block_forward.3} parent=0 // loop_footer_branch
    %15 = sbr.rel target = $region3
  $region8: #{swin_transformer_block_forward.3} parent=0 // loop_exit
    _

// kernel: swin_transformer_block_forward.2
$region0: #{swin_transformer_block_forward.2}
  #allocation0 [shape = 'u32[]', space=smem, size = 0x4, offset = 0x4, fixed_abs, tag = 'smem constant byte address 0x4 - core index']
  #allocation1 [shape = 'u32[144,128]{1,0:T(1,128)}', space=vmem, size = 0x12000, scoped, tag = 'internal scratch']
  %s0 = inlined_call_operand.vmem [shape: f32[4,8,2,8,32], index: 0, kind: input, shape index: {}]
  %s1 = inlined_call_operand.vmem [shape: f32[4,8,2,8,32], index: 1, kind: input, shape index: {}]
  %s2 = inlined_call_operand.vmem [shape: f32[1,32], index: 2, kind: input, shape index: {}]
  %s3 = inlined_call_operand.vmem [shape: f32[1,32], index: 3, kind: input, shape index: {}]
  %s4 = inlined_call_operand.vmem [shape: bf16[32,96], index: 4, kind: input, shape index: {}]
  %s5 = inlined_call_operand.vmem [shape: f32[1,96], index: 5, kind: input, shape index: {}]
  %s6 = inlined_call_operand.vmem [shape: bf16[32,32], index: 6, kind: input, shape index: {}]
  %s7 = inlined_call_operand.vmem [shape: f32[1,32], index: 7, kind: input, shape index: {}]
  %s8 = inlined_call_operand.vmem [shape: bf16[32,32], index: 8, kind: input, shape index: {}]
  %s9 = inlined_call_operand.vmem [shape: f32[1,32], index: 9, kind: input, shape index: {}]
  %s10 = inlined_call_operand.vmem [shape: bf16[32,32], index: 10, kind: input, shape index: {}]
  %s11 = inlined_call_operand.vmem [shape: f32[1,32], index: 11, kind: input, shape index: {}]
  %s12 = inlined_call_operand.vmem [shape: f32[4,64,64], index: 12, kind: input, shape index: {}]
  %s13 = inlined_call_operand.vmem [shape: f32[4,8,2,8,32], index: 13, kind: output, shape index: {0}]
  %s14 = inlined_call_operand.vmem [shape: f32[4,8,2,8,32], index: 14, kind: output, shape index: {1}]
  %15 = xla_tuple %s13, %s14
  %s16 = sld [smem:[#allocation0]]
  $region237: #{swin_transformer_block_forward.2} parent=0
    _
  %s18 = ssub.s32 1, %s16
  %s19 = scalar_select 0, %s18, %s16
  $region1: #{swin_transformer_block_forward.2} parent=0
    #allocation2 [shape = 'u8[131072]{0}', space=vmem, size = 0x20000, scoped, tag = 'input window, operand 0']
    #allocation3 [shape = 'u8[131072]{0}', space=vmem, size = 0x20000, scoped, tag = 'input window, operand 1']
    #allocation4 [shape = 'u8[131072]{0}', space=vmem, size = 0x20000, scoped, tag = 'output window, operand 0']
    #allocation5 [shape = 'u8[131072]{0}', space=vmem, size = 0x20000, scoped, tag = 'output window, operand 1']
    loop: start=0, step=1, limit=6
    $region2: #{swin_transformer_block_forward.2} parent=1 // loop_pre_header
      _
    $region3: #{swin_transformer_block_forward.2} parent=1 // loop_header
      %s21 = sphi 0, %s25
      %p22 = scmp.ge.s32.totalorder %s21, 6
      %s28 = sphi 0, %s40
      %s29 = sphi 0, %s36
      %s30 = sphi 0, %s28
      %s31 = sphi 0, %s29
      %s32 = sphi 0, %s30
      %s33 = sphi 0, %s31
      %s45 = sphi 0, %s47
      %s48 = sphi 0, %s45
      %s49 = sphi 0, %s48
      %s65 = sphi 0, %s49
      %s73 = sphi 0, %s75
      %s76 = sphi 0, %s73
      %s77 = sphi 0, %s76
      %s93 = sphi 0, %s77
      %s97 = sphi 0, %s97
      %s99 = sphi 0, %s97
      %s100 = sphi 0, %s99
      %s114 = sphi 0, %s100
      %s118 = sphi 0, %s118
      %s120 = sphi 0, %s118
      %s121 = sphi 0, %s120
      %s135 = sphi 0, %s121
      %s139 = sphi 0, %s139
      %s141 = sphi 0, %s139
      %s142 = sphi 0, %s141
      %s156 = sphi 0, %s142
      %s160 = sphi 0, %s160
      %s162 = sphi 0, %s160
      %s163 = sphi 0, %s162
      %s177 = sphi 0, %s163
      %s181 = sphi 0, %s181
      %s183 = sphi 0, %s181
      %s184 = sphi 0, %s183
      %s198 = sphi 0, %s184
      %s202 = sphi 0, %s202
      %s204 = sphi 0, %s202
      %s205 = sphi 0, %s204
      %s219 = sphi 0, %s205
      %s223 = sphi 0, %s223
      %s225 = sphi 0, %s223
      %s226 = sphi 0, %s225
      %s240 = sphi 0, %s226
      %s244 = sphi 0, %s244
      %s246 = sphi 0, %s244
      %s247 = sphi 0, %s246
      %s261 = sphi 0, %s247
      %s265 = sphi 0, %s265
      %s267 = sphi 0, %s265
      %s268 = sphi 0, %s267
      %s282 = sphi 0, %s268
      %s286 = sphi 0, %s286
      %s288 = sphi 0, %s286
      %s289 = sphi 0, %s288
      %s303 = sphi 0, %s289
      %s307 = sphi 0, %s307
      %s309 = sphi 0, %s307
      %s310 = sphi 0, %s309
      %s324 = sphi 0, %s310
      %s332 = sphi 0, %s334
      %s335 = sphi 0, %s332
      %s336 = sphi 0, %s335
      %s352 = sphi 0, %s336
      %s360 = sphi 0, %s362
      %s363 = sphi 0, %s360
      %s364 = sphi 0, %s363
      %s380 = sphi 0, %s364
    $region4: #{swin_transformer_block_forward.2} parent=1 // loop_header_branch
      %24 = sbr.rel (%p22) target = $region8
    $region5: #{swin_transformer_block_forward.2} parent=1 // loop_body
      %s26 = ssub.s32 %s21, 1
      %s27 = ssub.s32 %s21, 2
      %s34 = sadd.s32 1, %s29
      %p35 = scmp.ge.s32.totalorder %s34, 2
      %s36 = scalar_select %p35, 0, %s34
      %s37 = sadd.s32 1, %s28
      %s38 = scalar_select %p35, %s37, %s28
      %p39 = scmp.ge.s32.totalorder %s38, 2
      %s40 = scalar_select %p39, 0, %s38
      %s41 = ssub.s32 %s28, %s40
      %s42 = ssub.s32 %s29, %s36
      %s43 = sor.u32 %s41, %s42
      %p44 = scmp.eq.s32.totalorder %s43, 0
      %s46 = sadd.s32 %s45, 1
      %s47 = scalar_select %p44, %s45, %s46
      %p50 = pneg %p44
      %p51 = scmp.eq.s32.totalorder %s21, 3
      %p52 = por %p50, %p51
      %p53 = scmp.ne.s32.totalorder %s45, %s48
      %p54 = scmp.eq.s32.totalorder %s21, 0
      %p55 = por %p53, %p54
      %p56 = scmp.ne.s32.totalorder %s45, %s48
      %p57 = scmp.eq.s32.totalorder %s26, 3
      %p58 = por %p56, %p57
      %p59 = scmp.ne.s32.totalorder %s48, %s49
      %p60 = scmp.eq.s32.totalorder %s26, 0
      %p61 = por %p59, %p60
      %p62 = scmp.ne.s32.totalorder %s48, %s49
      %p63 = scmp.eq.s32.totalorder %s27, 3
      %p64 = por %p62, %p63
      %p66 = scmp.ne.s32.totalorder %s49, %s65
      %p67 = scmp.eq.s32.totalorder %s27, 0
      %p68 = por %p66, %p67
      %s69 = ssub.s32 %s28, %s40
      %s70 = ssub.s32 %s29, %s36
      %s71 = sor.u32 %s69, %s70
      %p72 = scmp.eq.s32.totalorder %s71, 0
      %s74 = sadd.s32 %s73, 1
      %s75 = scalar_select %p72, %s73, %s74
      %p78 = pneg %p72
      %p79 = scmp.eq.s32.totalorder %s21, 3
      %p80 = por %p78, %p79
      %p81 = scmp.ne.s32.totalorder %s73, %s76
      %p82 = scmp.eq.s32.totalorder %s21, 0
      %p83 = por %p81, %p82
      %p84 = scmp.ne.s32.totalorder %s73, %s76
      %p85 = scmp.eq.s32.totalorder %s26, 3
      %p86 = por %p84, %p85
      %p87 = scmp.ne.s32.totalorder %s76, %s77
      %p88 = scmp.eq.s32.totalorder %s26, 0
      %p89 = por %p87, %p88
      %p90 = scmp.ne.s32.totalorder %s76, %s77
      %p91 = scmp.eq.s32.totalorder %s27, 3
      %p92 = por %p90, %p91
      %p94 = scmp.ne.s32.totalorder %s77, %s93
      %p95 = scmp.eq.s32.totalorder %s27, 0
      %p96 = por %p94, %p95
      %s98 = sadd.s32 %s97, 1
      %p101 = scmp.eq.s32.totalorder %s21, 3
      %p102 = scmp.ne.s32.totalorder %s97, %s99
      %p103 = scmp.eq.s32.totalorder %s21, 0
      %p104 = por %p102, %p103
      %p105 = scmp.ne.s32.totalorder %s97, %s99
      %p106 = scmp.eq.s32.totalorder %s26, 3
      %p107 = por %p105, %p106
      %p108 = scmp.ne.s32.totalorder %s99, %s100
      %p109 = scmp.eq.s32.totalorder %s26, 0
      %p110 = por %p108, %p109
      %p111 = scmp.ne.s32.totalorder %s99, %s100
      %p112 = scmp.eq.s32.totalorder %s27, 3
      %p113 = por %p111, %p112
      %p115 = scmp.ne.s32.totalorder %s100, %s114
      %p116 = scmp.eq.s32.totalorder %s27, 0
      %p117 = por %p115, %p116
      %s119 = sadd.s32 %s118, 1
      %p122 = scmp.eq.s32.totalorder %s21, 3
      %p123 = scmp.ne.s32.totalorder %s118, %s120
      %p124 = scmp.eq.s32.totalorder %s21, 0
      %p125 = por %p123, %p124
      %p126 = scmp.ne.s32.totalorder %s118, %s120
      %p127 = scmp.eq.s32.totalorder %s26, 3
      %p128 = por %p126, %p127
      %p129 = scmp.ne.s32.totalorder %s120, %s121
      %p130 = scmp.eq.s32.totalorder %s26, 0
      %p131 = por %p129, %p130
      %p132 = scmp.ne.s32.totalorder %s120, %s121
      %p133 = scmp.eq.s32.totalorder %s27, 3
      %p134 = por %p132, %p133
      %p136 = scmp.ne.s32.totalorder %s121, %s135
      %p137 = scmp.eq.s32.totalorder %s27, 0
      %p138 = por %p136, %p137
      %s140 = sadd.s32 %s139, 1
      %p143 = scmp.eq.s32.totalorder %s21, 3
      %p144 = scmp.ne.s32.totalorder %s139, %s141
      %p145 = scmp.eq.s32.totalorder %s21, 0
      %p146 = por %p144, %p145
      %p147 = scmp.ne.s32.totalorder %s139, %s141
      %p148 = scmp.eq.s32.totalorder %s26, 3
      %p149 = por %p147, %p148
      %p150 = scmp.ne.s32.totalorder %s141, %s142
      %p151 = scmp.eq.s32.totalorder %s26, 0
      %p152 = por %p150, %p151
      %p153 = scmp.ne.s32.totalorder %s141, %s142
      %p154 = scmp.eq.s32.totalorder %s27, 3
      %p155 = por %p153, %p154
      %p157 = scmp.ne.s32.totalorder %s142, %s156
      %p158 = scmp.eq.s32.totalorder %s27, 0
      %p159 = por %p157, %p158
      %s161 = sadd.s32 %s160, 1
      %p164 = scmp.eq.s32.totalorder %s21, 3
      %p165 = scmp.ne.s32.totalorder %s160, %s162
      %p166 = scmp.eq.s32.totalorder %s21, 0
      %p167 = por %p165, %p166
      %p168 = scmp.ne.s32.totalorder %s160, %s162
      %p169 = scmp.eq.s32.totalorder %s26, 3
      %p170 = por %p168, %p169
      %p171 = scmp.ne.s32.totalorder %s162, %s163
      %p172 = scmp.eq.s32.totalorder %s26, 0
      %p173 = por %p171, %p172
      %p174 = scmp.ne.s32.totalorder %s162, %s163
      %p175 = scmp.eq.s32.totalorder %s27, 3
      %p176 = por %p174, %p175
      %p178 = scmp.ne.s32.totalorder %s163, %s177
      %p179 = scmp.eq.s32.totalorder %s27, 0
      %p180 = por %p178, %p179
      %s182 = sadd.s32 %s181, 1
      %p185 = scmp.eq.s32.totalorder %s21, 3
      %p186 = scmp.ne.s32.totalorder %s181, %s183
      %p187 = scmp.eq.s32.totalorder %s21, 0
      %p188 = por %p186, %p187
      %p189 = scmp.ne.s32.totalorder %s181, %s183
      %p190 = scmp.eq.s32.totalorder %s26, 3
      %p191 = por %p189, %p190
      %p192 = scmp.ne.s32.totalorder %s183, %s184
      %p193 = scmp.eq.s32.totalorder %s26, 0
      %p194 = por %p192, %p193
      %p195 = scmp.ne.s32.totalorder %s183, %s184
      %p196 = scmp.eq.s32.totalorder %s27, 3
      %p197 = por %p195, %p196
      %p199 = scmp.ne.s32.totalorder %s184, %s198
      %p200 = scmp.eq.s32.totalorder %s27, 0
      %p201 = por %p199, %p200
      %s203 = sadd.s32 %s202, 1
      %p206 = scmp.eq.s32.totalorder %s21, 3
      %p207 = scmp.ne.s32.totalorder %s202, %s204
      %p208 = scmp.eq.s32.totalorder %s21, 0
      %p209 = por %p207, %p208
      %p210 = scmp.ne.s32.totalorder %s202, %s204
      %p211 = scmp.eq.s32.totalorder %s26, 3
      %p212 = por %p210, %p211
      %p213 = scmp.ne.s32.totalorder %s204, %s205
      %p214 = scmp.eq.s32.totalorder %s26, 0
      %p215 = por %p213, %p214
      %p216 = scmp.ne.s32.totalorder %s204, %s205
      %p217 = scmp.eq.s32.totalorder %s27, 3
      %p218 = por %p216, %p217
      %p220 = scmp.ne.s32.totalorder %s205, %s219
      %p221 = scmp.eq.s32.totalorder %s27, 0
      %p222 = por %p220, %p221
      %s224 = sadd.s32 %s223, 1
      %p227 = scmp.eq.s32.totalorder %s21, 3
      %p228 = scmp.ne.s32.totalorder %s223, %s225
      %p229 = scmp.eq.s32.totalorder %s21, 0
      %p230 = por %p228, %p229
      %p231 = scmp.ne.s32.totalorder %s223, %s225
      %p232 = scmp.eq.s32.totalorder %s26, 3
      %p233 = por %p231, %p232
      %p234 = scmp.ne.s32.totalorder %s225, %s226
      %p235 = scmp.eq.s32.totalorder %s26, 0
      %p236 = por %p234, %p235
      %p237 = scmp.ne.s32.totalorder %s225, %s226
      %p238 = scmp.eq.s32.totalorder %s27, 3
      %p239 = por %p237, %p238
      %p241 = scmp.ne.s32.totalorder %s226, %s240
      %p242 = scmp.eq.s32.totalorder %s27, 0
      %p243 = por %p241, %p242
      %s245 = sadd.s32 %s244, 1
      %p248 = scmp.eq.s32.totalorder %s21, 3
      %p249 = scmp.ne.s32.totalorder %s244, %s246
      %p250 = scmp.eq.s32.totalorder %s21, 0
      %p251 = por %p249, %p250
      %p252 = scmp.ne.s32.totalorder %s244, %s246
      %p253 = scmp.eq.s32.totalorder %s26, 3
      %p254 = por %p252, %p253
      %p255 = scmp.ne.s32.totalorder %s246, %s247
      %p256 = scmp.eq.s32.totalorder %s26, 0
      %p257 = por %p255, %p256
      %p258 = scmp.ne.s32.totalorder %s246, %s247
      %p259 = scmp.eq.s32.totalorder %s27, 3
      %p260 = por %p258, %p259
      %p262 = scmp.ne.s32.totalorder %s247, %s261
      %p263 = scmp.eq.s32.totalorder %s27, 0
      %p264 = por %p262, %p263
      %s266 = sadd.s32 %s265, 1
      %p269 = scmp.eq.s32.totalorder %s21, 3
      %p270 = scmp.ne.s32.totalorder %s265, %s267
      %p271 = scmp.eq.s32.totalorder %s21, 0
      %p272 = por %p270, %p271
      %p273 = scmp.ne.s32.totalorder %s265, %s267
      %p274 = scmp.eq.s32.totalorder %s26, 3
      %p275 = por %p273, %p274
      %p276 = scmp.ne.s32.totalorder %s267, %s268
      %p277 = scmp.eq.s32.totalorder %s26, 0
      %p278 = por %p276, %p277
      %p279 = scmp.ne.s32.totalorder %s267, %s268
      %p280 = scmp.eq.s32.totalorder %s27, 3
      %p281 = por %p279, %p280
      %p283 = scmp.ne.s32.totalorder %s268, %s282
      %p284 = scmp.eq.s32.totalorder %s27, 0
      %p285 = por %p283, %p284
      %s287 = sadd.s32 %s286, 1
      %p290 = scmp.eq.s32.totalorder %s21, 3
      %p291 = scmp.ne.s32.totalorder %s286, %s288
      %p292 = scmp.eq.s32.totalorder %s21, 0
      %p293 = por %p291, %p292
      %p294 = scmp.ne.s32.totalorder %s286, %s288
      %p295 = scmp.eq.s32.totalorder %s26, 3
      %p296 = por %p294, %p295
      %p297 = scmp.ne.s32.totalorder %s288, %s289
      %p298 = scmp.eq.s32.totalorder %s26, 0
      %p299 = por %p297, %p298
      %p300 = scmp.ne.s32.totalorder %s288, %s289
      %p301 = scmp.eq.s32.totalorder %s27, 3
      %p302 = por %p300, %p301
      %p304 = scmp.ne.s32.totalorder %s289, %s303
      %p305 = scmp.eq.s32.totalorder %s27, 0
      %p306 = por %p304, %p305
      %s308 = sadd.s32 %s307, 1
      %p311 = scmp.eq.s32.totalorder %s21, 3
      %p312 = scmp.ne.s32.totalorder %s307, %s309
      %p313 = scmp.eq.s32.totalorder %s21, 0
      %p314 = por %p312, %p313
      %p315 = scmp.ne.s32.totalorder %s307, %s309
      %p316 = scmp.eq.s32.totalorder %s26, 3
      %p317 = por %p315, %p316
      %p318 = scmp.ne.s32.totalorder %s309, %s310
      %p319 = scmp.eq.s32.totalorder %s26, 0
      %p320 = por %p318, %p319
      %p321 = scmp.ne.s32.totalorder %s309, %s310
      %p322 = scmp.eq.s32.totalorder %s27, 3
      %p323 = por %p321, %p322
      %p325 = scmp.ne.s32.totalorder %s310, %s324
      %p326 = scmp.eq.s32.totalorder %s27, 0
      %p327 = por %p325, %p326
      %s328 = ssub.s32 %s28, %s40
      %s329 = ssub.s32 %s29, %s36
      %s330 = sor.u32 %s328, %s329
      %p331 = scmp.eq.s32.totalorder %s330, 0
      %s333 = sadd.s32 %s332, 1
      %s334 = scalar_select %p331, %s332, %s333
      %p337 = pneg %p331
      %p338 = scmp.eq.s32.totalorder %s21, 3
      %p339 = por %p337, %p338
      %p340 = scmp.ne.s32.totalorder %s332, %s335
      %p341 = scmp.eq.s32.totalorder %s21, 0
      %p342 = por %p340, %p341
      %p343 = scmp.ne.s32.totalorder %s332, %s335
      %p344 = scmp.eq.s32.totalorder %s26, 3
      %p345 = por %p343, %p344
      %p346 = scmp.ne.s32.totalorder %s335, %s336
      %p347 = scmp.eq.s32.totalorder %s26, 0
      %p348 = por %p346, %p347
      %p349 = scmp.ne.s32.totalorder %s335, %s336
      %p350 = scmp.eq.s32.totalorder %s27, 3
      %p351 = por %p349, %p350
      %p353 = scmp.ne.s32.totalorder %s336, %s352
      %p354 = scmp.eq.s32.totalorder %s27, 0
      %p355 = por %p353, %p354
      %s356 = ssub.s32 %s28, %s40
      %s357 = ssub.s32 %s29, %s36
      %s358 = sor.u32 %s356, %s357
      %p359 = scmp.eq.s32.totalorder %s358, 0
      %s361 = sadd.s32 %s360, 1
      %s362 = scalar_select %p359, %s360, %s361
      %p365 = pneg %p359
      %p366 = scmp.eq.s32.totalorder %s21, 3
      %p367 = por %p365, %p366
      %p368 = scmp.ne.s32.totalorder %s360, %s363
      %p369 = scmp.eq.s32.totalorder %s21, 0
      %p370 = por %p368, %p369
      %p371 = scmp.ne.s32.totalorder %s360, %s363
      %p372 = scmp.eq.s32.totalorder %s26, 3
      %p373 = por %p371, %p372
      %p374 = scmp.ne.s32.totalorder %s363, %s364
      %p375 = scmp.eq.s32.totalorder %s26, 0
      %p376 = por %p374, %p375
      %p377 = scmp.ne.s32.totalorder %s363, %s364
      %p378 = scmp.eq.s32.totalorder %s27, 3
      %p379 = por %p377, %p378
      %p381 = scmp.ne.s32.totalorder %s364, %s380
      %p382 = scmp.eq.s32.totalorder %s27, 0
      %p383 = por %p381, %p382
      %p384 = scmp.le.s32.totalorder 1, %s21
      %p385 = scmp.lt.s32.totalorder %s21, 5
      %p386 = pnand %p384, %p385
      %p387 = pneg %p386
      // Predicated region
      $region9: #{swin_transformer_block_forward.2} parent=5 // pred_check
        _
      $region10: #{swin_transformer_block_forward.2} parent=5 // pred_check_branch
        %389 = sbr.rel (%p386) target = $region12
      $region11: #{swin_transformer_block_forward.2} parent=5 // pred_region
        %s390 = ssub.s32 %s21, 1
        // Predicated region
        $region13: #{swin_transformer_block_forward.2} parent=11 // pred_check
          %p391 = pneg %p110
        $region14: #{swin_transformer_block_forward.2} parent=11 // pred_check_branch
          %393 = sbr.rel (%p391) target = $region16
        $region15: #{swin_transformer_block_forward.2} parent=11 // pred_region
          _
        $region16: #{swin_transformer_block_forward.2} parent=11 // pred_fallthru
          _
        // Predicated region
        $region17: #{swin_transformer_block_forward.2} parent=11 // pred_check
          %p394 = pneg %p131
        $region18: #{swin_transformer_block_forward.2} parent=11 // pred_check_branch
          %396 = sbr.rel (%p394) target = $region20
        $region19: #{swin_transformer_block_forward.2} parent=11 // pred_region
          _
        $region20: #{swin_transformer_block_forward.2} parent=11 // pred_fallthru
          _
        // Predicated region
        $region21: #{swin_transformer_block_forward.2} parent=11 // pred_check
          %p397 = pneg %p152
        $region22: #{swin_transformer_block_forward.2} parent=11 // pred_check_branch
          %399 = sbr.rel (%p397) target = $region24
        $region23: #{swin_transformer_block_forward.2} parent=11 // pred_region
          _
        $region24: #{swin_transformer_block_forward.2} parent=11 // pred_fallthru
          _
        // Predicated region
        $region25: #{swin_transformer_block_forward.2} parent=11 // pred_check
          %p400 = pneg %p173
        $region26: #{swin_transformer_block_forward.2} parent=11 // pred_check_branch
          %402 = sbr.rel (%p400) target = $region28
        $region27: #{swin_transformer_block_forward.2} parent=11 // pred_region
          _
        $region28: #{swin_transformer_block_forward.2} parent=11 // pred_fallthru
          _
        // Predicated region
        $region29: #{swin_transformer_block_forward.2} parent=11 // pred_check
          %p403 = pneg %p194
        $region30: #{swin_transformer_block_forward.2} parent=11 // pred_check_branch
          %405 = sbr.rel (%p403) target = $region32
        $region31: #{swin_transformer_block_forward.2} parent=11 // pred_region
          _
        $region32: #{swin_transformer_block_forward.2} parent=11 // pred_fallthru
          _
        // Predicated region
        $region33: #{swin_transformer_block_forward.2} parent=11 // pred_check
          %p406 = pneg %p215
        $region34: #{swin_transformer_block_forward.2} parent=11 // pred_check_branch
          %408 = sbr.rel (%p406) target = $region36
        $region35: #{swin_transformer_block_forward.2} parent=11 // pred_region
          _
        $region36: #{swin_transformer_block_forward.2} parent=11 // pred_fallthru
          _
        // Predicated region
        $region37: #{swin_transformer_block_forward.2} parent=11 // pred_check
          %p409 = pneg %p236
        $region38: #{swin_transformer_block_forward.2} parent=11 // pred_check_branch
          %411 = sbr.rel (%p409) target = $region40
        $region39: #{swin_transformer_block_forward.2} parent=11 // pred_region
          _
        $region40: #{swin_transformer_block_forward.2} parent=11 // pred_fallthru
          _
        // Predicated region
        $region41: #{swin_transformer_block_forward.2} parent=11 // pred_check
          %p412 = pneg %p257
        $region42: #{swin_transformer_block_forward.2} parent=11 // pred_check_branch
          %414 = sbr.rel (%p412) target = $region44
        $region43: #{swin_transformer_block_forward.2} parent=11 // pred_region
          _
        $region44: #{swin_transformer_block_forward.2} parent=11 // pred_fallthru
          _
        // Predicated region
        $region45: #{swin_transformer_block_forward.2} parent=11 // pred_check
          %p415 = pneg %p278
        $region46: #{swin_transformer_block_forward.2} parent=11 // pred_check_branch
          %417 = sbr.rel (%p415) target = $region48
        $region47: #{swin_transformer_block_forward.2} parent=11 // pred_region
          _
        $region48: #{swin_transformer_block_forward.2} parent=11 // pred_fallthru
          _
        // Predicated region
        $region49: #{swin_transformer_block_forward.2} parent=11 // pred_check
          %p418 = pneg %p299
        $region50: #{swin_transformer_block_forward.2} parent=11 // pred_check_branch
          %420 = sbr.rel (%p418) target = $region52
        $region51: #{swin_transformer_block_forward.2} parent=11 // pred_region
          _
        $region52: #{swin_transformer_block_forward.2} parent=11 // pred_fallthru
          _
        // Predicated region
        $region53: #{swin_transformer_block_forward.2} parent=11 // pred_check
          %p421 = pneg %p320
        $region54: #{swin_transformer_block_forward.2} parent=11 // pred_check_branch
          %423 = sbr.rel (%p421) target = $region56
        $region55: #{swin_transformer_block_forward.2} parent=11 // pred_region
          _
        $region56: #{swin_transformer_block_forward.2} parent=11 // pred_fallthru
          _
      $region12: #{swin_transformer_block_forward.2} parent=5 // pred_fallthru
        _
      %p424 = scmp.lt.s32.totalorder %s21, 4
      // Predicated region
      $region57: #{swin_transformer_block_forward.2} parent=5 // pred_check
        %p425 = pneg %p424
      $region58: #{swin_transformer_block_forward.2} parent=5 // pred_check_branch
        %427 = sbr.rel (%p425) target = $region60
      $region59: #{swin_transformer_block_forward.2} parent=5 // pred_region
        // Predicated region
        $region61: #{swin_transformer_block_forward.2} parent=59 // pred_check
          %p428 = pneg %p55
        $region62: #{swin_transformer_block_forward.2} parent=59 // pred_check_branch
          %430 = sbr.rel (%p428) target = $region64
        $region63: #{swin_transformer_block_forward.2} parent=59 // pred_region
          %s431 = sand.u32 %s45, 1
          %s432 = sand.u32 %s45, 1
          %s433 = smul.addr %s432, 128
          %s434 = scalar_lea.vmem [#allocation2], %s433
          %s435 = smul.u32 2, %s28
          %s436 = smul.addr %s435, 16
          %s437 = sadd.s32 %s29, %s436
          %s438 = smul.addr %s437, 8
          %s439 = scalar_lea.vmem %s0, %s438
          // Predicated region
          $region65: #{swin_transformer_block_forward.2} parent=63 // pred_check
            _
          $region66: #{swin_transformer_block_forward.2} parent=63 // pred_check_branch
            %441 = sbr.rel (0) target = $region68
          $region67: #{swin_transformer_block_forward.2} parent=63 // pred_region
            // Predicated region
            $region69: #{swin_transformer_block_forward.2} parent=67 // pred_check
              _
            $region70: #{swin_transformer_block_forward.2} parent=67 // pred_check_branch
              %443 = sbr.rel (0) target = $region72
            $region71: #{swin_transformer_block_forward.2} parent=67 // pred_region
              // Predicated region
              $region84: #{swin_transformer_block_forward.2} parent=71 // pred_check
                _
              $region85: #{swin_transformer_block_forward.2} parent=71 // pred_check_branch
                %489 = sbr.rel (0) target = $region87
              $region86: #{swin_transformer_block_forward.2} parent=71 // pred_region
                loop: start=0, step=1, limit=1
                $region88: #{swin_transformer_block_forward.2} parent=86 // loop_pre_header
                  _
                $region89: #{swin_transformer_block_forward.2} parent=86 // loop_header
                  %s491 = sphi 0, %s495
                  %p492 = scmp.ge.s32.totalorder %s491, 1
                  %s496 = sphi %s439, %s439
                  %s497 = sphi %s434, %s434
                $region90: #{swin_transformer_block_forward.2} parent=86 // loop_header_branch
                  %494 = sbr.rel (%p492) target = $region94
                $region91: #{swin_transformer_block_forward.2} parent=86 // loop_body
                  %v498 = vld [vmem:[%s496] sm:$0xff]
                  %499 = vst [vmem:[%s497] sm:$0xff] %v498
                  %v500 = vld [vmem:[%s496 + $0x10] sm:$0xff]
                  %501 = vst [vmem:[%s497 + $0x8] sm:$0xff] %v500
                  %v502 = vld [vmem:[%s496 + $0x20] sm:$0xff]
                  %503 = vst [vmem:[%s497 + $0x10] sm:$0xff] %v502
                  %v504 = vld [vmem:[%s496 + $0x30] sm:$0xff]
                  %505 = vst [vmem:[%s497 + $0x18] sm:$0xff] %v504
                  %v506 = vld [vmem:[%s496 + $0x40] sm:$0xff]
                  %507 = vst [vmem:[%s497 + $0x20] sm:$0xff] %v506
                  %v508 = vld [vmem:[%s496 + $0x50] sm:$0xff]
                  %509 = vst [vmem:[%s497 + $0x28] sm:$0xff] %v508
                  %v510 = vld [vmem:[%s496 + $0x60] sm:$0xff]
                  %511 = vst [vmem:[%s497 + $0x30] sm:$0xff] %v510
                  %v512 = vld [vmem:[%s496 + $0x70] sm:$0xff]
                  %513 = vst [vmem:[%s497 + $0x38] sm:$0xff] %v512
                  %v514 = vld [vmem:[%s496 + $0x80] sm:$0xff]
                  %515 = vst [vmem:[%s497 + $0x40] sm:$0xff] %v514
                  %v516 = vld [vmem:[%s496 + $0x90] sm:$0xff]
                  %517 = vst [vmem:[%s497 + $0x48] sm:$0xff] %v516
                  %v518 = vld [vmem:[%s496 + $0xa0] sm:$0xff]
                  %519 = vst [vmem:[%s497 + $0x50] sm:$0xff] %v518
                  %v520 = vld [vmem:[%s496 + $0xb0] sm:$0xff]
                  %521 = vst [vmem:[%s497 + $0x58] sm:$0xff] %v520
                  %v522 = vld [vmem:[%s496 + $0xc0] sm:$0xff]
                  %523 = vst [vmem:[%s497 + $0x60] sm:$0xff] %v522
                  %v524 = vld [vmem:[%s496 + $0xd0] sm:$0xff]
                  %525 = vst [vmem:[%s497 + $0x68] sm:$0xff] %v524
                  %v526 = vld [vmem:[%s496 + $0xe0] sm:$0xff]
                  %527 = vst [vmem:[%s497 + $0x70] sm:$0xff] %v526
                  %v528 = vld [vmem:[%s496 + $0xf0] sm:$0xff]
                  %529 = vst [vmem:[%s497 + $0x78] sm:$0xff] %v528
                $region92: #{swin_transformer_block_forward.2} parent=86 // loop_footer
                  %s495 = sadd.s32 1, %s491
                $region93: #{swin_transformer_block_forward.2} parent=86 // loop_footer_branch
                  %490 = sbr.rel target = $region89
                $region94: #{swin_transformer_block_forward.2} parent=86 // loop_exit
                  _
              $region87: #{swin_transformer_block_forward.2} parent=71 // pred_fallthru
                _
              // Predicated region
              $region95: #{swin_transformer_block_forward.2} parent=71 // pred_check
                _
              $region96: #{swin_transformer_block_forward.2} parent=71 // pred_check_branch
                %531 = sbr.rel target = $region98
              $region97: #{swin_transformer_block_forward.2} parent=71 // pred_region
                _
              $region98: #{swin_transformer_block_forward.2} parent=71 // pred_fallthru
                _
            $region72: #{swin_transformer_block_forward.2} parent=67 // pred_fallthru
              _
            // Predicated region
            $region73: #{swin_transformer_block_forward.2} parent=67 // pred_check
              _
            $region74: #{swin_transformer_block_forward.2} parent=67 // pred_check_branch
              %445 = sbr.rel target = $region76
            $region75: #{swin_transformer_block_forward.2} parent=67 // pred_region
              %s447 = ssub.s32 256, 1
              loop: start=0, step=1, limit=1
              $region77: #{swin_transformer_block_forward.2} parent=75 // loop_pre_header
                _
              $region78: #{swin_transformer_block_forward.2} parent=75 // loop_header
                %s449 = sphi 0, %s453
                %p450 = scmp.ge.s32.totalorder %s449, 1
                %s454 = sphi %s439, %s439
                %s455 = sphi %s434, %s434
              $region79: #{swin_transformer_block_forward.2} parent=75 // loop_header_branch
                %452 = sbr.rel (%p450) target = $region83
              $region80: #{swin_transformer_block_forward.2} parent=75 // loop_body
                %v456 = vld [vmem:[%s454] sm:%s447]
                %457 = vst [vmem:[%s455] sm:%s447] %v456
                %v458 = vld [vmem:[%s454 + $0x10] sm:%s447]
                %459 = vst [vmem:[%s455 + $0x8] sm:%s447] %v458
                %v460 = vld [vmem:[%s454 + $0x20] sm:%s447]
                %461 = vst [vmem:[%s455 + $0x10] sm:%s447] %v460
                %v462 = vld [vmem:[%s454 + $0x30] sm:%s447]
                %463 = vst [vmem:[%s455 + $0x18] sm:%s447] %v462
                %v464 = vld [vmem:[%s454 + $0x40] sm:%s447]
                %465 = vst [vmem:[%s455 + $0x20] sm:%s447] %v464
                %v466 = vld [vmem:[%s454 + $0x50] sm:%s447]
                %467 = vst [vmem:[%s455 + $0x28] sm:%s447] %v466
                %v468 = vld [vmem:[%s454 + $0x60] sm:%s447]
                %469 = vst [vmem:[%s455 + $0x30] sm:%s447] %v468
                %v470 = vld [vmem:[%s454 + $0x70] sm:%s447]
                %471 = vst [vmem:[%s455 + $0x38] sm:%s447] %v470
                %v472 = vld [vmem:[%s454 + $0x80] sm:%s447]
                %473 = vst [vmem:[%s455 + $0x40] sm:%s447] %v472
                %v474 = vld [vmem:[%s454 + $0x90] sm:%s447]
                %475 = vst [vmem:[%s455 + $0x48] sm:%s447] %v474
                %v476 = vld [vmem:[%s454 + $0xa0] sm:%s447]
                %477 = vst [vmem:[%s455 + $0x50] sm:%s447] %v476
                %v478 = vld [vmem:[%s454 + $0xb0] sm:%s447]
                %479 = vst [vmem:[%s455 + $0x58] sm:%s447] %v478
                %v480 = vld [vmem:[%s454 + $0xc0] sm:%s447]
                %481 = vst [vmem:[%s455 + $0x60] sm:%s447] %v480
                %v482 = vld [vmem:[%s454 + $0xd0] sm:%s447]
                %483 = vst [vmem:[%s455 + $0x68] sm:%s447] %v482
                %v484 = vld [vmem:[%s454 + $0xe0] sm:%s447]
                %485 = vst [vmem:[%s455 + $0x70] sm:%s447] %v484
                %v486 = vld [vmem:[%s454 + $0xf0] sm:%s447]
                %487 = vst [vmem:[%s455 + $0x78] sm:%s447] %v486
              $region81: #{swin_transformer_block_forward.2} parent=75 // loop_footer
                %s453 = sadd.s32 1, %s449
              $region82: #{swin_transformer_block_forward.2} parent=75 // loop_footer_branch
                %448 = sbr.rel target = $region78
              $region83: #{swin_transformer_block_forward.2} parent=75 // loop_exit
                _
            $region76: #{swin_transformer_block_forward.2} parent=67 // pred_fallthru
              _
          $region68: #{swin_transformer_block_forward.2} parent=63 // pred_fallthru
            _
          %532 = vnop
        $region64: #{swin_transformer_block_forward.2} parent=59 // pred_fallthru
          _
        // Predicated region
        $region99: #{swin_transformer_block_forward.2} parent=59 // pred_check
          %p533 = pneg %p83
        $region100: #{swin_transformer_block_forward.2} parent=59 // pred_check_branch
          %535 = sbr.rel (%p533) target = $region102
        $region101: #{swin_transformer_block_forward.2} parent=59 // pred_region
          %s536 = sand.u32 %s73, 1
          %s537 = sand.u32 %s73, 1
          %s538 = smul.addr %s537, 128
          %s539 = scalar_lea.vmem [#allocation3], %s538
          %s540 = smul.u32 2, %s28
          %s541 = smul.addr %s540, 16
          %s542 = sadd.s32 %s29, %s541
          %s543 = smul.addr %s542, 8
          %s544 = scalar_lea.vmem %s1, %s543
          // Predicated region
          $region103: #{swin_transformer_block_forward.2} parent=101 // pred_check
            _
          $region104: #{swin_transformer_block_forward.2} parent=101 // pred_check_branch
            %546 = sbr.rel (0) target = $region106
          $region105: #{swin_transformer_block_forward.2} parent=101 // pred_region
            // Predicated region
            $region107: #{swin_transformer_block_forward.2} parent=105 // pred_check
              _
            $region108: #{swin_transformer_block_forward.2} parent=105 // pred_check_branch
              %548 = sbr.rel (0) target = $region110
            $region109: #{swin_transformer_block_forward.2} parent=105 // pred_region
              // Predicated region
              $region122: #{swin_transformer_block_forward.2} parent=109 // pred_check
                _
              $region123: #{swin_transformer_block_forward.2} parent=109 // pred_check_branch
                %594 = sbr.rel (0) target = $region125
              $region124: #{swin_transformer_block_forward.2} parent=109 // pred_region
                loop: start=0, step=1, limit=1
                $region126: #{swin_transformer_block_forward.2} parent=124 // loop_pre_header
                  _
                $region127: #{swin_transformer_block_forward.2} parent=124 // loop_header
                  %s596 = sphi 0, %s600
                  %p597 = scmp.ge.s32.totalorder %s596, 1
                  %s601 = sphi %s544, %s544
                  %s602 = sphi %s539, %s539
                $region128: #{swin_transformer_block_forward.2} parent=124 // loop_header_branch
                  %599 = sbr.rel (%p597) target = $region132
                $region129: #{swin_transformer_block_forward.2} parent=124 // loop_body
                  %v603 = vld [vmem:[%s601] sm:$0xff]
                  %604 = vst [vmem:[%s602] sm:$0xff] %v603
                  %v605 = vld [vmem:[%s601 + $0x10] sm:$0xff]
                  %606 = vst [vmem:[%s602 + $0x8] sm:$0xff] %v605
                  %v607 = vld [vmem:[%s601 + $0x20] sm:$0xff]
                  %608 = vst [vmem:[%s602 + $0x10] sm:$0xff] %v607
                  %v609 = vld [vmem:[%s601 + $0x30] sm:$0xff]
                  %610 = vst [vmem:[%s602 + $0x18] sm:$0xff] %v609
                  %v611 = vld [vmem:[%s601 + $0x40] sm:$0xff]
                  %612 = vst [vmem:[%s602 + $0x20] sm:$0xff] %v611
                  %v613 = vld [vmem:[%s601 + $0x50] sm:$0xff]
                  %614 = vst [vmem:[%s602 + $0x28] sm:$0xff] %v613
                  %v615 = vld [vmem:[%s601 + $0x60] sm:$0xff]
                  %616 = vst [vmem:[%s602 + $0x30] sm:$0xff] %v615
                  %v617 = vld [vmem:[%s601 + $0x70] sm:$0xff]
                  %618 = vst [vmem:[%s602 + $0x38] sm:$0xff] %v617
                  %v619 = vld [vmem:[%s601 + $0x80] sm:$0xff]
                  %620 = vst [vmem:[%s602 + $0x40] sm:$0xff] %v619
                  %v621 = vld [vmem:[%s601 + $0x90] sm:$0xff]
                  %622 = vst [vmem:[%s602 + $0x48] sm:$0xff] %v621
                  %v623 = vld [vmem:[%s601 + $0xa0] sm:$0xff]
                  %624 = vst [vmem:[%s602 + $0x50] sm:$0xff] %v623
                  %v625 = vld [vmem:[%s601 + $0xb0] sm:$0xff]
                  %626 = vst [vmem:[%s602 + $0x58] sm:$0xff] %v625
                  %v627 = vld [vmem:[%s601 + $0xc0] sm:$0xff]
                  %628 = vst [vmem:[%s602 + $0x60] sm:$0xff] %v627
                  %v629 = vld [vmem:[%s601 + $0xd0] sm:$0xff]
                  %630 = vst [vmem:[%s602 + $0x68] sm:$0xff] %v629
                  %v631 = vld [vmem:[%s601 + $0xe0] sm:$0xff]
                  %632 = vst [vmem:[%s602 + $0x70] sm:$0xff] %v631
                  %v633 = vld [vmem:[%s601 + $0xf0] sm:$0xff]
                  %634 = vst [vmem:[%s602 + $0x78] sm:$0xff] %v633
                $region130: #{swin_transformer_block_forward.2} parent=124 // loop_footer
                  %s600 = sadd.s32 1, %s596
                $region131: #{swin_transformer_block_forward.2} parent=124 // loop_footer_branch
                  %595 = sbr.rel target = $region127
                $region132: #{swin_transformer_block_forward.2} parent=124 // loop_exit
                  _
              $region125: #{swin_transformer_block_forward.2} parent=109 // pred_fallthru
                _
              // Predicated region
              $region133: #{swin_transformer_block_forward.2} parent=109 // pred_check
                _
              $region134: #{swin_transformer_block_forward.2} parent=109 // pred_check_branch
                %636 = sbr.rel target = $region136
              $region135: #{swin_transformer_block_forward.2} parent=109 // pred_region
                _
              $region136: #{swin_transformer_block_forward.2} parent=109 // pred_fallthru
                _
            $region110: #{swin_transformer_block_forward.2} parent=105 // pred_fallthru
              _
            // Predicated region
            $region111: #{swin_transformer_block_forward.2} parent=105 // pred_check
              _
            $region112: #{swin_transformer_block_forward.2} parent=105 // pred_check_branch
              %550 = sbr.rel target = $region114
            $region113: #{swin_transformer_block_forward.2} parent=105 // pred_region
              %s552 = ssub.s32 256, 1
              loop: start=0, step=1, limit=1
              $region115: #{swin_transformer_block_forward.2} parent=113 // loop_pre_header
                _
              $region116: #{swin_transformer_block_forward.2} parent=113 // loop_header
                %s554 = sphi 0, %s558
                %p555 = scmp.ge.s32.totalorder %s554, 1
                %s559 = sphi %s544, %s544
                %s560 = sphi %s539, %s539
              $region117: #{swin_transformer_block_forward.2} parent=113 // loop_header_branch
                %557 = sbr.rel (%p555) target = $region121
              $region118: #{swin_transformer_block_forward.2} parent=113 // loop_body
                %v561 = vld [vmem:[%s559] sm:%s552]
                %562 = vst [vmem:[%s560] sm:%s552] %v561
                %v563 = vld [vmem:[%s559 + $0x10] sm:%s552]
                %564 = vst [vmem:[%s560 + $0x8] sm:%s552] %v563
                %v565 = vld [vmem:[%s559 + $0x20] sm:%s552]
                %566 = vst [vmem:[%s560 + $0x10] sm:%s552] %v565
                %v567 = vld [vmem:[%s559 + $0x30] sm:%s552]
                %568 = vst [vmem:[%s560 + $0x18] sm:%s552] %v567
                %v569 = vld [vmem:[%s559 + $0x40] sm:%s552]
                %570 = vst [vmem:[%s560 + $0x20] sm:%s552] %v569
                %v571 = vld [vmem:[%s559 + $0x50] sm:%s552]
                %572 = vst [vmem:[%s560 + $0x28] sm:%s552] %v571
                %v573 = vld [vmem:[%s559 + $0x60] sm:%s552]
                %574 = vst [vmem:[%s560 + $0x30] sm:%s552] %v573
                %v575 = vld [vmem:[%s559 + $0x70] sm:%s552]
                %576 = vst [vmem:[%s560 + $0x38] sm:%s552] %v575
                %v577 = vld [vmem:[%s559 + $0x80] sm:%s552]
                %578 = vst [vmem:[%s560 + $0x40] sm:%s552] %v577
                %v579 = vld [vmem:[%s559 + $0x90] sm:%s552]
                %580 = vst [vmem:[%s560 + $0x48] sm:%s552] %v579
                %v581 = vld [vmem:[%s559 + $0xa0] sm:%s552]
                %582 = vst [vmem:[%s560 + $0x50] sm:%s552] %v581
                %v583 = vld [vmem:[%s559 + $0xb0] sm:%s552]
                %584 = vst [vmem:[%s560 + $0x58] sm:%s552] %v583
                %v585 = vld [vmem:[%s559 + $0xc0] sm:%s552]
                %586 = vst [vmem:[%s560 + $0x60] sm:%s552] %v585
                %v587 = vld [vmem:[%s559 + $0xd0] sm:%s552]
                %588 = vst [vmem:[%s560 + $0x68] sm:%s552] %v587
                %v589 = vld [vmem:[%s559 + $0xe0] sm:%s552]
                %590 = vst [vmem:[%s560 + $0x70] sm:%s552] %v589
                %v591 = vld [vmem:[%s559 + $0xf0] sm:%s552]
                %592 = vst [vmem:[%s560 + $0x78] sm:%s552] %v591
              $region119: #{swin_transformer_block_forward.2} parent=113 // loop_footer
                %s558 = sadd.s32 1, %s554
              $region120: #{swin_transformer_block_forward.2} parent=113 // loop_footer_branch
                %553 = sbr.rel target = $region116
              $region121: #{swin_transformer_block_forward.2} parent=113 // loop_exit
                _
            $region114: #{swin_transformer_block_forward.2} parent=105 // pred_fallthru
              _
          $region106: #{swin_transformer_block_forward.2} parent=101 // pred_fallthru
            _
          %637 = vnop
        $region102: #{swin_transformer_block_forward.2} parent=59 // pred_fallthru
          _
      $region60: #{swin_transformer_block_forward.2} parent=5 // pred_fallthru
        _
      %p638 = scmp.le.s32.totalorder 1, %s21
      %p639 = scmp.lt.s32.totalorder %s21, 5
      %p640 = pnand %p638, %p639
      %p641 = pneg %p640
      // Predicated region
      $region137: #{swin_transformer_block_forward.2} parent=5 // pred_check
        _
      $region138: #{swin_transformer_block_forward.2} parent=5 // pred_check_branch
        %643 = sbr.rel (%p640) target = $region140
      $region139: #{swin_transformer_block_forward.2} parent=5 // pred_region
        %s644 = ssub.s32 %s21, 1
        %s645 = sand.u32 %s48, 1
        %s646 = sand.u32 %s48, 1
        %s647 = smul.addr %s646, 128
        %s648 = scalar_lea.vmem [#allocation2], %s647
        // Predicated region
        $region141: #{swin_transformer_block_forward.2} parent=139 // pred_check
          %p649 = pneg %p61
        $region142: #{swin_transformer_block_forward.2} parent=139 // pred_check_branch
          %651 = sbr.rel (%p649) target = $region144
        $region143: #{swin_transformer_block_forward.2} parent=139 // pred_region
          _
        $region144: #{swin_transformer_block_forward.2} parent=139 // pred_fallthru
          _
        %s652 = sand.u32 %s76, 1
        %s653 = sand.u32 %s76, 1
        %s654 = smul.addr %s653, 128
        %s655 = scalar_lea.vmem [#allocation3], %s654
        // Predicated region
        $region145: #{swin_transformer_block_forward.2} parent=139 // pred_check
          %p656 = pneg %p89
        $region146: #{swin_transformer_block_forward.2} parent=139 // pred_check_branch
          %658 = sbr.rel (%p656) target = $region148
        $region147: #{swin_transformer_block_forward.2} parent=139 // pred_region
          _
        $region148: #{swin_transformer_block_forward.2} parent=139 // pred_fallthru
          _
        %s659 = sand.u32 %s48, 1
        %s660 = sand.u32 %s48, 1
        %s661 = smul.addr %s660, 128
        %s662 = scalar_lea.vmem [#allocation2], %s661
        %p663 = pneg %p61
        %p664 = pneg %p58
        %s665 = sand.u32 %s76, 1
        %s666 = sand.u32 %s76, 1
        %s667 = smul.addr %s666, 128
        %s668 = scalar_lea.vmem [#allocation3], %s667
        %p669 = pneg %p89
        %p670 = pneg %p86
        %p671 = pneg %p110
        %p672 = pneg %p107
        %p673 = pneg %p131
        %p674 = pneg %p128
        %p675 = pneg %p152
        %p676 = pneg %p149
        %p677 = pneg %p173
        %p678 = pneg %p170
        %p679 = pneg %p194
        %p680 = pneg %p191
        %p681 = pneg %p215
        %p682 = pneg %p212
        %p683 = pneg %p236
        %p684 = pneg %p233
        %p685 = pneg %p257
        %p686 = pneg %p254
        %p687 = pneg %p278
        %p688 = pneg %p275
        %p689 = pneg %p299
        %p690 = pneg %p296
        %p691 = pneg %p320
        %p692 = pneg %p317
        %p693 = pneg %p348
        %p694 = pneg %p345
        %s695 = sand.u32 %s335, 1
        %s696 = sand.u32 %s335, 1
        %s697 = smul.addr %s696, 128
        %s698 = scalar_lea.vmem [#allocation4], %s697
        %p699 = pneg %p376
        %p700 = pneg %p373
        %s701 = sand.u32 %s363, 1
        %s702 = sand.u32 %s363, 1
        %s703 = smul.addr %s702, 128
        %s704 = scalar_lea.vmem [#allocation5], %s703
        %s705 = smul.u32 2, %s30
        %s706 = smul.u32 2, %s30
        %s707 = smul.u32 2, %s30
        %s708 = smul.u32 2, %s30
        %v710 = vld [vmem:[%s2] sm:$0x1]
        %v711 = vld [vmem:[%s3] sm:$0x1]
        %v712 = vld [vmem:[%s648] sm:$0xff]
        %v713 = vld [vmem:[%s648 + $0x8] sm:$0xff]
        %v714 = vld [vmem:[%s648 + $0x10] sm:$0xff]
        %v715 = vld [vmem:[%s648 + $0x18] sm:$0xff]
        %v716 = vld [vmem:[%s648 + $0x20] sm:$0xff]
        %v717 = vld [vmem:[%s648 + $0x28] sm:$0xff]
        %v718 = vld [vmem:[%s648 + $0x30] sm:$0xff]
        %v719 = vld [vmem:[%s648 + $0x38] sm:$0xff]
        %v720 = vld [vmem:[%s648 + $0x40] sm:$0xff]
        %v721 = vld [vmem:[%s648 + $0x48] sm:$0xff]
        %v722 = vld [vmem:[%s648 + $0x50] sm:$0xff]
        %v723 = vld [vmem:[%s648 + $0x58] sm:$0xff]
        %v724 = vld [vmem:[%s648 + $0x60] sm:$0xff]
        %v725 = vld [vmem:[%s648 + $0x68] sm:$0xff]
        %v726 = vld [vmem:[%s648 + $0x70] sm:$0xff]
        %v727 = vld [vmem:[%s648 + $0x78] sm:$0xff]
        %v728 = vld [vmem:[%s655] sm:$0xff]
        %v729 = vld [vmem:[%s655 + $0x8] sm:$0xff]
        %v730 = vld [vmem:[%s655 + $0x10] sm:$0xff]
        %v731 = vld [vmem:[%s655 + $0x18] sm:$0xff]
        %v732 = vld [vmem:[%s655 + $0x20] sm:$0xff]
        %v733 = vld [vmem:[%s655 + $0x28] sm:$0xff]
        %v734 = vld [vmem:[%s655 + $0x30] sm:$0xff]
        %v735 = vld [vmem:[%s655 + $0x38] sm:$0xff]
        %v736 = vld [vmem:[%s655 + $0x40] sm:$0xff]
        %v737 = vld [vmem:[%s655 + $0x48] sm:$0xff]
        %v738 = vld [vmem:[%s655 + $0x50] sm:$0xff]
        %v739 = vld [vmem:[%s655 + $0x58] sm:$0xff]
        %v740 = vld [vmem:[%s655 + $0x60] sm:$0xff]
        %v741 = vld [vmem:[%s655 + $0x68] sm:$0xff]
        %v742 = vld [vmem:[%s655 + $0x70] sm:$0xff]
        %v743 = vld [vmem:[%s655 + $0x78] sm:$0xff]
        %vm744 = vcmask 261120
        %v745 = vsel %vm744, %v712, 0.0
        %746 = vadd.xlane.f32.xlu0 %v745
        %v747 = vpop.xlane.xlu0 %746
        %v748 = vsel %vm744, %v713, 0.0
        %749 = vadd.xlane.f32.xlu0 %v748
        %v750 = vpop.xlane.xlu0 %749
        %v751 = vsel %vm744, %v714, 0.0
        %752 = vadd.xlane.f32.xlu0 %v751
        %v753 = vpop.xlane.xlu0 %752
        %v754 = vsel %vm744, %v715, 0.0
        %755 = vadd.xlane.f32.xlu0 %v754
        %v756 = vpop.xlane.xlu0 %755
        %v757 = vsel %vm744, %v716, 0.0
        %758 = vadd.xlane.f32.xlu0 %v757
        %v759 = vpop.xlane.xlu0 %758
        %v760 = vsel %vm744, %v717, 0.0
        %761 = vadd.xlane.f32.xlu0 %v760
        %v762 = vpop.xlane.xlu0 %761
        %v763 = vsel %vm744, %v718, 0.0
        %764 = vadd.xlane.f32.xlu0 %v763
        %v765 = vpop.xlane.xlu0 %764
        %v766 = vsel %vm744, %v719, 0.0
        %767 = vadd.xlane.f32.xlu0 %v766
        %v768 = vpop.xlane.xlu0 %767
        %v769 = vsel %vm744, %v720, 0.0
        %770 = vadd.xlane.f32.xlu0 %v769
        %v771 = vpop.xlane.xlu0 %770
        %v772 = vsel %vm744, %v721, 0.0
        %773 = vadd.xlane.f32.xlu0 %v772
        %v774 = vpop.xlane.xlu0 %773
        %v775 = vsel %vm744, %v722, 0.0
        %776 = vadd.xlane.f32.xlu0 %v775
        %v777 = vpop.xlane.xlu0 %776
        %v778 = vsel %vm744, %v723, 0.0
        %779 = vadd.xlane.f32.xlu0 %v778
        %v780 = vpop.xlane.xlu0 %779
        %v781 = vsel %vm744, %v724, 0.0
        %782 = vadd.xlane.f32.xlu0 %v781
        %v783 = vpop.xlane.xlu0 %782
        %v784 = vsel %vm744, %v725, 0.0
        %785 = vadd.xlane.f32.xlu0 %v784
        %v786 = vpop.xlane.xlu0 %785
        %v787 = vsel %vm744, %v726, 0.0
        %788 = vadd.xlane.f32.xlu0 %v787
        %v789 = vpop.xlane.xlu0 %788
        %v790 = vsel %vm744, %v727, 0.0
        %791 = vadd.xlane.f32.xlu0 %v790
        %v792 = vpop.xlane.xlu0 %791
        %v793 = vrcp.pop 32.0
        %v794 = vmul.f32 %v747, %v793
        %v795 = vmul.f32 %v750, %v793
        %v796 = vmul.f32 %v753, %v793
        %v797 = vmul.f32 %v756, %v793
        %v798 = vmul.f32 %v759, %v793
        %v799 = vmul.f32 %v762, %v793
        %v800 = vmul.f32 %v765, %v793
        %v801 = vmul.f32 %v768, %v793
        %v802 = vmul.f32 %v771, %v793
        %v803 = vmul.f32 %v774, %v793
        %v804 = vmul.f32 %v777, %v793
        %v805 = vmul.f32 %v780, %v793
        %v806 = vmul.f32 %v783, %v793
        %v807 = vmul.f32 %v786, %v793
        %v808 = vmul.f32 %v789, %v793
        %v809 = vmul.f32 %v792, %v793
        %v810 = vsub.f32 %v712, %v794
        %v811 = vsub.f32 %v713, %v795
        %v812 = vsub.f32 %v714, %v796
        %v813 = vsub.f32 %v715, %v797
        %v814 = vsub.f32 %v716, %v798
        %v815 = vsub.f32 %v717, %v799
        %v816 = vsub.f32 %v718, %v800
        %v817 = vsub.f32 %v719, %v801
        %v818 = vsub.f32 %v720, %v802
        %v819 = vsub.f32 %v721, %v803
        %v820 = vsub.f32 %v722, %v804
        %v821 = vsub.f32 %v723, %v805
        %v822 = vsub.f32 %v724, %v806
        %v823 = vsub.f32 %v725, %v807
        %v824 = vsub.f32 %v726, %v808
        %v825 = vsub.f32 %v727, %v809
        %v826 = vmul.f32 %v810, %v810
        %v827 = vmul.f32 %v811, %v811
        %v828 = vmul.f32 %v812, %v812
        %v829 = vmul.f32 %v813, %v813
        %v830 = vmul.f32 %v814, %v814
        %v831 = vmul.f32 %v815, %v815
        %v832 = vmul.f32 %v816, %v816
        %v833 = vmul.f32 %v817, %v817
        %v834 = vmul.f32 %v818, %v818
        %v835 = vmul.f32 %v819, %v819
        %v836 = vmul.f32 %v820, %v820
        %v837 = vmul.f32 %v821, %v821
        %v838 = vmul.f32 %v822, %v822
        %v839 = vmul.f32 %v823, %v823
        %v840 = vmul.f32 %v824, %v824
        %v841 = vmul.f32 %v825, %v825
        %v842 = vsel %vm744, %v826, 0.0
        %843 = vadd.xlane.f32.xlu0 %v842
        %v844 = vpop.xlane.xlu0 %843
        %v845 = vsel %vm744, %v827, 0.0
        %846 = vadd.xlane.f32.xlu0 %v845
        %v847 = vpop.xlane.xlu0 %846
        %v848 = vsel %vm744, %v828, 0.0
        %849 = vadd.xlane.f32.xlu0 %v848
        %v850 = vpop.xlane.xlu0 %849
        %v851 = vsel %vm744, %v829, 0.0
        %852 = vadd.xlane.f32.xlu0 %v851
        %v853 = vpop.xlane.xlu0 %852
        %v854 = vsel %vm744, %v830, 0.0
        %855 = vadd.xlane.f32.xlu0 %v854
        %v856 = vpop.xlane.xlu0 %855
        %v857 = vsel %vm744, %v831, 0.0
        %858 = vadd.xlane.f32.xlu0 %v857
        %v859 = vpop.xlane.xlu0 %858
        %v860 = vsel %vm744, %v832, 0.0
        %861 = vadd.xlane.f32.xlu0 %v860
        %v862 = vpop.xlane.xlu0 %861
        %v863 = vsel %vm744, %v833, 0.0
        %864 = vadd.xlane.f32.xlu0 %v863
        %v865 = vpop.xlane.xlu0 %864
        %v866 = vsel %vm744, %v834, 0.0
        %867 = vadd.xlane.f32.xlu0 %v866
        %v868 = vpop.xlane.xlu0 %867
        %v869 = vsel %vm744, %v835, 0.0
        %870 = vadd.xlane.f32.xlu0 %v869
        %v871 = vpop.xlane.xlu0 %870
        %v872 = vsel %vm744, %v836, 0.0
        %873 = vadd.xlane.f32.xlu0 %v872
        %v874 = vpop.xlane.xlu0 %873
        %v875 = vsel %vm744, %v837, 0.0
        %876 = vadd.xlane.f32.xlu0 %v875
        %v877 = vpop.xlane.xlu0 %876
        %v878 = vsel %vm744, %v838, 0.0
        %879 = vadd.xlane.f32.xlu0 %v878
        %v880 = vpop.xlane.xlu0 %879
        %v881 = vsel %vm744, %v839, 0.0
        %882 = vadd.xlane.f32.xlu0 %v881
        %v883 = vpop.xlane.xlu0 %882
        %v884 = vsel %vm744, %v840, 0.0
        %885 = vadd.xlane.f32.xlu0 %v884
        %v886 = vpop.xlane.xlu0 %885
        %v887 = vsel %vm744, %v841, 0.0
        %888 = vadd.xlane.f32.xlu0 %v887
        %v889 = vpop.xlane.xlu0 %888
        %v890 = vmul.f32 %v844, %v793
        %v891 = vmul.f32 %v847, %v793
        %v892 = vmul.f32 %v850, %v793
        %v893 = vmul.f32 %v853, %v793
        %v894 = vmul.f32 %v856, %v793
        %v895 = vmul.f32 %v859, %v793
        %v896 = vmul.f32 %v862, %v793
        %v897 = vmul.f32 %v865, %v793
        %v898 = vmul.f32 %v868, %v793
        %v899 = vmul.f32 %v871, %v793
        %v900 = vmul.f32 %v874, %v793
        %v901 = vmul.f32 %v877, %v793
        %v902 = vmul.f32 %v880, %v793
        %v903 = vmul.f32 %v883, %v793
        %v904 = vmul.f32 %v886, %v793
        %v905 = vmul.f32 %v889, %v793
        %v906 = vadd.f32 %v890, 1e-05
        %v907 = vadd.f32 %v891, 1e-05
        %v908 = vadd.f32 %v892, 1e-05
        %v909 = vadd.f32 %v893, 1e-05
        %v910 = vadd.f32 %v894, 1e-05
        %v911 = vadd.f32 %v895, 1e-05
        %v912 = vadd.f32 %v896, 1e-05
        %v913 = vadd.f32 %v897, 1e-05
        %v914 = vadd.f32 %v898, 1e-05
        %v915 = vadd.f32 %v899, 1e-05
        %v916 = vadd.f32 %v900, 1e-05
        %v917 = vadd.f32 %v901, 1e-05
        %v918 = vadd.f32 %v902, 1e-05
        %v919 = vadd.f32 %v903, 1e-05
        %v920 = vadd.f32 %v904, 1e-05
        %v921 = vadd.f32 %v905, 1e-05
        %v922 = vrsqrt.pop %v906
        %v923 = vrsqrt.pop %v907
        %v924 = vrsqrt.pop %v908
        %v925 = vrsqrt.pop %v909
        %v926 = vrsqrt.pop %v910
        %v927 = vrsqrt.pop %v911
        %v928 = vrsqrt.pop %v912
        %v929 = vrsqrt.pop %v913
        %v930 = vrsqrt.pop %v914
        %v931 = vrsqrt.pop %v915
        %v932 = vrsqrt.pop %v916
        %v933 = vrsqrt.pop %v917
        %v934 = vrsqrt.pop %v918
        %v935 = vrsqrt.pop %v919
        %v936 = vrsqrt.pop %v920
        %v937 = vrsqrt.pop %v921
        %v938 = vmul.f32 %v810, %v922
        %v939 = vmul.f32 %v811, %v923
        %v940 = vmul.f32 %v812, %v924
        %v941 = vmul.f32 %v813, %v925
        %v942 = vmul.f32 %v814, %v926
        %v943 = vmul.f32 %v815, %v927
        %v944 = vmul.f32 %v816, %v928
        %v945 = vmul.f32 %v817, %v929
        %v946 = vmul.f32 %v818, %v930
        %v947 = vmul.f32 %v819, %v931
        %v948 = vmul.f32 %v820, %v932
        %v949 = vmul.f32 %v821, %v933
        %v950 = vmul.f32 %v822, %v934
        %v951 = vmul.f32 %v823, %v935
        %v952 = vmul.f32 %v824, %v936
        %v953 = vmul.f32 %v825, %v937
        %v955 = vlaneseq
        %v956 = vshrl.u32 %v955, 7
        %v957 = vsub.s32 0, %v956
        %v958 = vrot.slane %v710, %v957
        %v960 = vmul.f32 %v938, %v958
        %v961 = vmul.f32 %v939, %v958
        %v962 = vmul.f32 %v940, %v958
        %v963 = vmul.f32 %v941, %v958
        %v964 = vmul.f32 %v942, %v958
        %v965 = vmul.f32 %v943, %v958
        %v966 = vmul.f32 %v944, %v958
        %v967 = vmul.f32 %v945, %v958
        %v968 = vmul.f32 %v946, %v958
        %v969 = vmul.f32 %v947, %v958
        %v970 = vmul.f32 %v948, %v958
        %v971 = vmul.f32 %v949, %v958
        %v972 = vmul.f32 %v950, %v958
        %v973 = vmul.f32 %v951, %v958
        %v974 = vmul.f32 %v952, %v958
        %v975 = vmul.f32 %v953, %v958
        %v977 = vlaneseq
        %v978 = vshrl.u32 %v977, 7
        %v979 = vsub.s32 0, %v978
        %v980 = vrot.slane %v711, %v979
        %v982 = vadd.f32 %v960, %v980
        %v983 = vadd.f32 %v961, %v980
        %v984 = vadd.f32 %v962, %v980
        %v985 = vadd.f32 %v963, %v980
        %v986 = vadd.f32 %v964, %v980
        %v987 = vadd.f32 %v965, %v980
        %v988 = vadd.f32 %v966, %v980
        %v989 = vadd.f32 %v967, %v980
        %v990 = vadd.f32 %v968, %v980
        %v991 = vadd.f32 %v969, %v980
        %v992 = vadd.f32 %v970, %v980
        %v993 = vadd.f32 %v971, %v980
        %v994 = vadd.f32 %v972, %v980
        %v995 = vadd.f32 %v973, %v980
        %v996 = vadd.f32 %v974, %v980
        %v997 = vadd.f32 %v975, %v980
        %v998 = vsel %vm744, %v728, 0.0
        %999 = vadd.xlane.f32.xlu0 %v998
        %v1000 = vpop.xlane.xlu0 %999
        %v1001 = vsel %vm744, %v729, 0.0
        %1002 = vadd.xlane.f32.xlu0 %v1001
        %v1003 = vpop.xlane.xlu0 %1002
        %v1004 = vsel %vm744, %v730, 0.0
        %1005 = vadd.xlane.f32.xlu0 %v1004
        %v1006 = vpop.xlane.xlu0 %1005
        %v1007 = vsel %vm744, %v731, 0.0
        %1008 = vadd.xlane.f32.xlu0 %v1007
        %v1009 = vpop.xlane.xlu0 %1008
        %v1010 = vsel %vm744, %v732, 0.0
        %1011 = vadd.xlane.f32.xlu0 %v1010
        %v1012 = vpop.xlane.xlu0 %1011
        %v1013 = vsel %vm744, %v733, 0.0
        %1014 = vadd.xlane.f32.xlu0 %v1013
        %v1015 = vpop.xlane.xlu0 %1014
        %v1016 = vsel %vm744, %v734, 0.0
        %1017 = vadd.xlane.f32.xlu0 %v1016
        %v1018 = vpop.xlane.xlu0 %1017
        %v1019 = vsel %vm744, %v735, 0.0
        %1020 = vadd.xlane.f32.xlu0 %v1019
        %v1021 = vpop.xlane.xlu0 %1020
        %v1022 = vsel %vm744, %v736, 0.0
        %1023 = vadd.xlane.f32.xlu0 %v1022
        %v1024 = vpop.xlane.xlu0 %1023
        %v1025 = vsel %vm744, %v737, 0.0
        %1026 = vadd.xlane.f32.xlu0 %v1025
        %v1027 = vpop.xlane.xlu0 %1026
        %v1028 = vsel %vm744, %v738, 0.0
        %1029 = vadd.xlane.f32.xlu0 %v1028
        %v1030 = vpop.xlane.xlu0 %1029
        %v1031 = vsel %vm744, %v739, 0.0
        %1032 = vadd.xlane.f32.xlu0 %v1031
        %v1033 = vpop.xlane.xlu0 %1032
        %v1034 = vsel %vm744, %v740, 0.0
        %1035 = vadd.xlane.f32.xlu0 %v1034
        %v1036 = vpop.xlane.xlu0 %1035
        %v1037 = vsel %vm744, %v741, 0.0
        %1038 = vadd.xlane.f32.xlu0 %v1037
        %v1039 = vpop.xlane.xlu0 %1038
        %v1040 = vsel %vm744, %v742, 0.0
        %1041 = vadd.xlane.f32.xlu0 %v1040
        %v1042 = vpop.xlane.xlu0 %1041
        %v1043 = vsel %vm744, %v743, 0.0
        %1044 = vadd.xlane.f32.xlu0 %v1043
        %v1045 = vpop.xlane.xlu0 %1044
        %v1046 = vmul.f32 %v1000, %v793
        %v1047 = vmul.f32 %v1003, %v793
        %v1048 = vmul.f32 %v1006, %v793
        %v1049 = vmul.f32 %v1009, %v793
        %v1050 = vmul.f32 %v1012, %v793
        %v1051 = vmul.f32 %v1015, %v793
        %v1052 = vmul.f32 %v1018, %v793
        %v1053 = vmul.f32 %v1021, %v793
        %v1054 = vmul.f32 %v1024, %v793
        %v1055 = vmul.f32 %v1027, %v793
        %v1056 = vmul.f32 %v1030, %v793
        %v1057 = vmul.f32 %v1033, %v793
        %v1058 = vmul.f32 %v1036, %v793
        %v1059 = vmul.f32 %v1039, %v793
        %v1060 = vmul.f32 %v1042, %v793
        %v1061 = vmul.f32 %v1045, %v793
        %v1062 = vsub.f32 %v728, %v1046
        %v1063 = vsub.f32 %v729, %v1047
        %v1064 = vsub.f32 %v730, %v1048
        %v1065 = vsub.f32 %v731, %v1049
        %v1066 = vsub.f32 %v732, %v1050
        %v1067 = vsub.f32 %v733, %v1051
        %v1068 = vsub.f32 %v734, %v1052
        %v1069 = vsub.f32 %v735, %v1053
        %v1070 = vsub.f32 %v736, %v1054
        %v1071 = vsub.f32 %v737, %v1055
        %v1072 = vsub.f32 %v738, %v1056
        %v1073 = vsub.f32 %v739, %v1057
        %v1074 = vsub.f32 %v740, %v1058
        %v1075 = vsub.f32 %v741, %v1059
        %v1076 = vsub.f32 %v742, %v1060
        %v1077 = vsub.f32 %v743, %v1061
        %v1078 = vmul.f32 %v1062, %v1062
        %v1079 = vmul.f32 %v1063, %v1063
        %v1080 = vmul.f32 %v1064, %v1064
        %v1081 = vmul.f32 %v1065, %v1065
        %v1082 = vmul.f32 %v1066, %v1066
        %v1083 = vmul.f32 %v1067, %v1067
        %v1084 = vmul.f32 %v1068, %v1068
        %v1085 = vmul.f32 %v1069, %v1069
        %v1086 = vmul.f32 %v1070, %v1070
        %v1087 = vmul.f32 %v1071, %v1071
        %v1088 = vmul.f32 %v1072, %v1072
        %v1089 = vmul.f32 %v1073, %v1073
        %v1090 = vmul.f32 %v1074, %v1074
        %v1091 = vmul.f32 %v1075, %v1075
        %v1092 = vmul.f32 %v1076, %v1076
        %v1093 = vmul.f32 %v1077, %v1077
        %v1094 = vsel %vm744, %v1078, 0.0
        %1095 = vadd.xlane.f32.xlu0 %v1094
        %v1096 = vpop.xlane.xlu0 %1095
        %v1097 = vsel %vm744, %v1079, 0.0
        %1098 = vadd.xlane.f32.xlu0 %v1097
        %v1099 = vpop.xlane.xlu0 %1098
        %v1100 = vsel %vm744, %v1080, 0.0
        %1101 = vadd.xlane.f32.xlu0 %v1100
        %v1102 = vpop.xlane.xlu0 %1101
        %v1103 = vsel %vm744, %v1081, 0.0
        %1104 = vadd.xlane.f32.xlu0 %v1103
        %v1105 = vpop.xlane.xlu0 %1104
        %v1106 = vsel %vm744, %v1082, 0.0
        %1107 = vadd.xlane.f32.xlu0 %v1106
        %v1108 = vpop.xlane.xlu0 %1107
        %v1109 = vsel %vm744, %v1083, 0.0
        %1110 = vadd.xlane.f32.xlu0 %v1109
        %v1111 = vpop.xlane.xlu0 %1110
        %v1112 = vsel %vm744, %v1084, 0.0
        %1113 = vadd.xlane.f32.xlu0 %v1112
        %v1114 = vpop.xlane.xlu0 %1113
        %v1115 = vsel %vm744, %v1085, 0.0
        %1116 = vadd.xlane.f32.xlu0 %v1115
        %v1117 = vpop.xlane.xlu0 %1116
        %v1118 = vsel %vm744, %v1086, 0.0
        %1119 = vadd.xlane.f32.xlu0 %v1118
        %v1120 = vpop.xlane.xlu0 %1119
        %v1121 = vsel %vm744, %v1087, 0.0
        %1122 = vadd.xlane.f32.xlu0 %v1121
        %v1123 = vpop.xlane.xlu0 %1122
        %v1124 = vsel %vm744, %v1088, 0.0
        %1125 = vadd.xlane.f32.xlu0 %v1124
        %v1126 = vpop.xlane.xlu0 %1125
        %v1127 = vsel %vm744, %v1089, 0.0
        %1128 = vadd.xlane.f32.xlu0 %v1127
        %v1129 = vpop.xlane.xlu0 %1128
        %v1130 = vsel %vm744, %v1090, 0.0
        %1131 = vadd.xlane.f32.xlu0 %v1130
        %v1132 = vpop.xlane.xlu0 %1131
        %v1133 = vsel %vm744, %v1091, 0.0
        %1134 = vadd.xlane.f32.xlu0 %v1133
        %v1135 = vpop.xlane.xlu0 %1134
        %v1136 = vsel %vm744, %v1092, 0.0
        %1137 = vadd.xlane.f32.xlu0 %v1136
        %v1138 = vpop.xlane.xlu0 %1137
        %v1139 = vsel %vm744, %v1093, 0.0
        %1140 = vadd.xlane.f32.xlu0 %v1139
        %v1141 = vpop.xlane.xlu0 %1140
        %v1142 = vmul.f32 %v1096, %v793
        %v1143 = vmul.f32 %v1099, %v793
        %v1144 = vmul.f32 %v1102, %v793
        %v1145 = vmul.f32 %v1105, %v793
        %v1146 = vmul.f32 %v1108, %v793
        %v1147 = vmul.f32 %v1111, %v793
        %v1148 = vmul.f32 %v1114, %v793
        %v1149 = vmul.f32 %v1117, %v793
        %v1150 = vmul.f32 %v1120, %v793
        %v1151 = vmul.f32 %v1123, %v793
        %v1152 = vmul.f32 %v1126, %v793
        %v1153 = vmul.f32 %v1129, %v793
        %v1154 = vmul.f32 %v1132, %v793
        %v1155 = vmul.f32 %v1135, %v793
        %v1156 = vmul.f32 %v1138, %v793
        %v1157 = vmul.f32 %v1141, %v793
        %v1158 = vadd.f32 %v1142, 1e-05
        %v1159 = vadd.f32 %v1143, 1e-05
        %v1160 = vadd.f32 %v1144, 1e-05
        %v1161 = vadd.f32 %v1145, 1e-05
        %v1162 = vadd.f32 %v1146, 1e-05
        %v1163 = vadd.f32 %v1147, 1e-05
        %v1164 = vadd.f32 %v1148, 1e-05
        %v1165 = vadd.f32 %v1149, 1e-05
        %v1166 = vadd.f32 %v1150, 1e-05
        %v1167 = vadd.f32 %v1151, 1e-05
        %v1168 = vadd.f32 %v1152, 1e-05
        %v1169 = vadd.f32 %v1153, 1e-05
        %v1170 = vadd.f32 %v1154, 1e-05
        %v1171 = vadd.f32 %v1155, 1e-05
        %v1172 = vadd.f32 %v1156, 1e-05
        %v1173 = vadd.f32 %v1157, 1e-05
        %v1174 = vrsqrt.pop %v1158
        %v1175 = vrsqrt.pop %v1159
        %v1176 = vrsqrt.pop %v1160
        %v1177 = vrsqrt.pop %v1161
        %v1178 = vrsqrt.pop %v1162
        %v1179 = vrsqrt.pop %v1163
        %v1180 = vrsqrt.pop %v1164
        %v1181 = vrsqrt.pop %v1165
        %v1182 = vrsqrt.pop %v1166
        %v1183 = vrsqrt.pop %v1167
        %v1184 = vrsqrt.pop %v1168
        %v1185 = vrsqrt.pop %v1169
        %v1186 = vrsqrt.pop %v1170
        %v1187 = vrsqrt.pop %v1171
        %v1188 = vrsqrt.pop %v1172
        %v1189 = vrsqrt.pop %v1173
        %v1190 = vmul.f32 %v1062, %v1174
        %v1191 = vmul.f32 %v1063, %v1175
        %v1192 = vmul.f32 %v1064, %v1176
        %v1193 = vmul.f32 %v1065, %v1177
        %v1194 = vmul.f32 %v1066, %v1178
        %v1195 = vmul.f32 %v1067, %v1179
        %v1196 = vmul.f32 %v1068, %v1180
        %v1197 = vmul.f32 %v1069, %v1181
        %v1198 = vmul.f32 %v1070, %v1182
        %v1199 = vmul.f32 %v1071, %v1183
        %v1200 = vmul.f32 %v1072, %v1184
        %v1201 = vmul.f32 %v1073, %v1185
        %v1202 = vmul.f32 %v1074, %v1186
        %v1203 = vmul.f32 %v1075, %v1187
        %v1204 = vmul.f32 %v1076, %v1188
        %v1205 = vmul.f32 %v1077, %v1189
        %v1206 = vmul.f32 %v1190, %v958
        %v1207 = vmul.f32 %v1191, %v958
        %v1208 = vmul.f32 %v1192, %v958
        %v1209 = vmul.f32 %v1193, %v958
        %v1210 = vmul.f32 %v1194, %v958
        %v1211 = vmul.f32 %v1195, %v958
        %v1212 = vmul.f32 %v1196, %v958
        %v1213 = vmul.f32 %v1197, %v958
        %v1214 = vmul.f32 %v1198, %v958
        %v1215 = vmul.f32 %v1199, %v958
        %v1216 = vmul.f32 %v1200, %v958
        %v1217 = vmul.f32 %v1201, %v958
        %v1218 = vmul.f32 %v1202, %v958
        %v1219 = vmul.f32 %v1203, %v958
        %v1220 = vmul.f32 %v1204, %v958
        %v1221 = vmul.f32 %v1205, %v958
        %v1222 = vadd.f32 %v1206, %v980
        %v1223 = vadd.f32 %v1207, %v980
        %v1224 = vadd.f32 %v1208, %v980
        %v1225 = vadd.f32 %v1209, %v980
        %v1226 = vadd.f32 %v1210, %v980
        %v1227 = vadd.f32 %v1211, %v980
        %v1228 = vadd.f32 %v1212, %v980
        %v1229 = vadd.f32 %v1213, %v980
        %v1230 = vadd.f32 %v1214, %v980
        %v1231 = vadd.f32 %v1215, %v980
        %v1232 = vadd.f32 %v1216, %v980
        %v1233 = vadd.f32 %v1217, %v980
        %v1234 = vadd.f32 %v1218, %v980
        %v1235 = vadd.f32 %v1219, %v980
        %v1236 = vadd.f32 %v1220, %v980
        %v1237 = vadd.f32 %v1221, %v980
        %v1238 = vpack.c.bf16 %v983, %v982
        %v1239 = vpack.c.bf16 %v985, %v984
        %v1240 = vpack.c.bf16 %v987, %v986
        %v1241 = vpack.c.bf16 %v989, %v988
        %v1242 = vpack.c.bf16 %v991, %v990
        %v1243 = vpack.c.bf16 %v993, %v992
        %v1244 = vpack.c.bf16 %v995, %v994
        %v1245 = vpack.c.bf16 %v997, %v996
        %v1246 = vld [vmem:[%s4] sm:$0xf]
        %v1247 = vld [vmem:[%s4 + $0x4] sm:$0xf]
        %v1248 = vld [vmem:[%s4 + $0x8] sm:$0xf]
        %v1249 = vld [vmem:[%s4 + $0xc] sm:$0xf]
        %v1250 = vld [vmem:[%s5] sm:$0x1]
        %v1252 = vlaneseq
        %v1253 = vshrl.u32 %v1252, 7
        %v1254 = vsub.s32 0, %v1253
        %v1255 = vrot.slane %v1250, %v1254
        %v1261 = vunpack.c.l.b16 %v1246
        %v1262 = vunpack.c.l.b16 %v1247
        %v1263 = vunpack.c.l.b16 %v1248
        %v1264 = vunpack.c.l.b16 %v1249
        %v1265 = vpack.c.b16 %v1262, %v1261
        %v1266 = vpack.c.b16 %v1264, %v1263
        %v1270 = vsel %vm744, %v1238, 0
        %v1273 = vsel %vm744, %v1239, 0
        %v1276 = vsel %vm744, %v1240, 0
        %v1279 = vsel %vm744, %v1241, 0
        %v1282 = vsel %vm744, %v1242, 0
        %v1285 = vsel %vm744, %v1243, 0
        %v1288 = vsel %vm744, %v1244, 0
        %v1291 = vsel %vm744, %v1245, 0
        %1293 = vmatprep.subr.bf16.mxu0 0
        %1294 = vmatpush1.bf16.msra.mxu0 0
        %1295 = vmatprep.subr.bf16.mxu0 0
        %1296 = vmatpush1.bf16.msra.mxu0 0
        %1297 = vmatprep.subr.bf16.mxu0 0
        %1298 = vmatpush1.bf16.msra.mxu0 0
        %1299 = vmatprep.subr.bf16.mxu0 0
        %1300 = vmatpush1.bf16.msra.mxu0 0
        %1301 = vmatprep.subr.bf16.mxu0 0
        %1302 = vmatpush1.bf16.msra.mxu0 0
        %1303 = vmatprep.subr.bf16.mxu0 0
        %1304 = vmatpush1.bf16.msra.mxu0 0
        %1305 = vmatprep.subr.bf16.mxu0 0
        %1306 = vmatpush1.bf16.msra.mxu0 %v1266
        %1307 = vmatprep.subr.bf16.mxu0 0
        %1308 = vmatpush1.bf16.msra.mxu0 %v1265
        %1309 = vmatprep.subr.bf16.mxu0 0
        %1310 = vmatpush2.bf16.msra.mxu0 0
        %1311 = vmatprep.subr.bf16.mxu0 0
        %1312 = vmatpush2.bf16.msra.mxu0 0
        %1313 = vmatprep.subr.bf16.mxu0 0
        %1314 = vmatpush2.bf16.msra.mxu0 0
        %1315 = vmatprep.subr.bf16.mxu0 0
        %1316 = vmatpush2.bf16.msra.mxu0 0
        %1317 = vmatprep.subr.bf16.mxu0 0
        %1318 = vmatpush2.bf16.msra.mxu0 0
        %1319 = vmatprep.subr.bf16.mxu0 0
        %1320 = vmatpush2.bf16.msra.mxu0 0
        %1321 = vmatprep.subr.bf16.mxu0 0
        %1322 = vmatpush2.bf16.msra.mxu0 0
        %1323 = vmatprep.subr.bf16.mxu0 0
        %1324 = vmatpush2.bf16.msra.mxu0 0
        %1325 = vmatprep.mubr.bf16.mxu0 0
        %1326 = vmatmul.mubr.bf16.gmra.mxu0 %v1270
        %v1327 = vpop.f32.mrf.mxu0
        %v1328 = vadd.f32 %v1255, %v1327
        %v1329 = vpop.f32.mrf.mxu0
        %v1330 = vpop.f32.mrf.mxu0
        %v1331 = vadd.f32 %v1255, %v1330
        %v1332 = vpop.f32.mrf.mxu0
        %1333 = vmatprep.mubr.bf16.mxu0 0
        %1334 = vmatmul.mubr.bf16.gmra.mxu0 %v1273
        %v1335 = vpop.f32.mrf.mxu0
        %v1336 = vadd.f32 %v1255, %v1335
        %v1337 = vpop.f32.mrf.mxu0
        %v1338 = vpop.f32.mrf.mxu0
        %v1339 = vadd.f32 %v1255, %v1338
        %v1340 = vpop.f32.mrf.mxu0
        %1341 = vmatprep.mubr.bf16.mxu0 0
        %1342 = vmatmul.mubr.bf16.gmra.mxu0 %v1276
        %v1343 = vpop.f32.mrf.mxu0
        %v1344 = vadd.f32 %v1255, %v1343
        %v1345 = vpop.f32.mrf.mxu0
        %v1346 = vpop.f32.mrf.mxu0
        %v1347 = vadd.f32 %v1255, %v1346
        %v1348 = vpop.f32.mrf.mxu0
        %1349 = vmatprep.mubr.bf16.mxu0 0
        %1350 = vmatmul.mubr.bf16.gmra.mxu0 %v1279
        %v1351 = vpop.f32.mrf.mxu0
        %v1352 = vadd.f32 %v1255, %v1351
        %v1353 = vpop.f32.mrf.mxu0
        %v1354 = vpop.f32.mrf.mxu0
        %v1355 = vadd.f32 %v1255, %v1354
        %v1356 = vpop.f32.mrf.mxu0
        %1357 = vmatprep.mubr.bf16.mxu0 0
        %1358 = vmatmul.mubr.bf16.gmra.mxu0 %v1282
        %v1359 = vpop.f32.mrf.mxu0
        %v1360 = vadd.f32 %v1255, %v1359
        %v1361 = vpop.f32.mrf.mxu0
        %v1362 = vpop.f32.mrf.mxu0
        %v1363 = vadd.f32 %v1255, %v1362
        %v1364 = vpop.f32.mrf.mxu0
        %1365 = vmatprep.mubr.bf16.mxu0 0
        %1366 = vmatmul.mubr.bf16.gmra.mxu0 %v1285
        %v1367 = vpop.f32.mrf.mxu0
        %v1368 = vadd.f32 %v1255, %v1367
        %v1369 = vpop.f32.mrf.mxu0
        %v1370 = vpop.f32.mrf.mxu0
        %v1371 = vadd.f32 %v1255, %v1370
        %v1372 = vpop.f32.mrf.mxu0
        %1373 = vmatprep.mubr.bf16.mxu0 0
        %1374 = vmatmul.mubr.bf16.gmra.mxu0 %v1288
        %v1375 = vpop.f32.mrf.mxu0
        %v1376 = vadd.f32 %v1255, %v1375
        %v1377 = vpop.f32.mrf.mxu0
        %v1378 = vpop.f32.mrf.mxu0
        %v1379 = vadd.f32 %v1255, %v1378
        %v1380 = vpop.f32.mrf.mxu0
        %1381 = vmatprep.mubr.bf16.mxu0 0
        %1382 = vmatmul.mubr.bf16.gmra.mxu0 %v1291
        %v1383 = vpop.f32.mrf.mxu0
        %v1384 = vadd.f32 %v1255, %v1383
        %v1385 = vpop.f32.mrf.mxu0
        %v1386 = vpop.f32.mrf.mxu0
        %v1387 = vadd.f32 %v1255, %v1386
        %v1388 = vpop.f32.mrf.mxu0
        %1389 = vdwg.mxu0
        %v1390 = vpack.c.bf16 %v1223, %v1222
        %v1391 = vpack.c.bf16 %v1225, %v1224
        %v1392 = vpack.c.bf16 %v1227, %v1226
        %v1393 = vpack.c.bf16 %v1229, %v1228
        %v1394 = vpack.c.bf16 %v1231, %v1230
        %v1395 = vpack.c.bf16 %v1233, %v1232
        %v1396 = vpack.c.bf16 %v1235, %v1234
        %v1397 = vpack.c.bf16 %v1237, %v1236
        %v1398 = vld [vmem:[%s6] sm:$0xf]
        %v1399 = vld [vmem:[%s6 + $0x4] sm:$0xf]
        %v1400 = vld [vmem:[%s6 + $0x8] sm:$0xf]
        %v1401 = vld [vmem:[%s6 + $0xc] sm:$0xf]
        %v1402 = vld [vmem:[%s7] sm:$0x1]
        %v1404 = vlaneseq
        %v1405 = vshrl.u32 %v1404, 7
        %v1406 = vsub.s32 0, %v1405
        %v1407 = vrot.slane %v1402, %v1406
        %v1413 = vunpack.c.l.b16 %v1398
        %v1414 = vunpack.c.l.b16 %v1399
        %v1415 = vunpack.c.l.b16 %v1400
        %v1416 = vunpack.c.l.b16 %v1401
        %v1417 = vpack.c.b16 %v1414, %v1413
        %v1418 = vpack.c.b16 %v1416, %v1415
        %v1422 = vsel %vm744, %v1390, 0
        %v1425 = vsel %vm744, %v1391, 0
        %v1428 = vsel %vm744, %v1392, 0
        %v1431 = vsel %vm744, %v1393, 0
        %v1434 = vsel %vm744, %v1394, 0
        %v1437 = vsel %vm744, %v1395, 0
        %v1440 = vsel %vm744, %v1396, 0
        %v1443 = vsel %vm744, %v1397, 0
        %1445 = vmatprep.subr.bf16.mxu0 0
        %1446 = vmatpush1.bf16.msra.mxu0 0
        %1447 = vmatprep.subr.bf16.mxu0 0
        %1448 = vmatpush1.bf16.msra.mxu0 0
        %1449 = vmatprep.subr.bf16.mxu0 0
        %1450 = vmatpush1.bf16.msra.mxu0 0
        %1451 = vmatprep.subr.bf16.mxu0 0
        %1452 = vmatpush1.bf16.msra.mxu0 0
        %1453 = vmatprep.subr.bf16.mxu0 0
        %1454 = vmatpush1.bf16.msra.mxu0 0
        %1455 = vmatprep.subr.bf16.mxu0 0
        %1456 = vmatpush1.bf16.msra.mxu0 0
        %1457 = vmatprep.subr.bf16.mxu0 0
        %1458 = vmatpush1.bf16.msra.mxu0 %v1418
        %1459 = vmatprep.subr.bf16.mxu0 0
        %1460 = vmatpush1.bf16.msra.mxu0 %v1417
        %1461 = vmatprep.subr.bf16.mxu0 0
        %1462 = vmatpush2.bf16.msra.mxu0 0
        %1463 = vmatprep.subr.bf16.mxu0 0
        %1464 = vmatpush2.bf16.msra.mxu0 0
        %1465 = vmatprep.subr.bf16.mxu0 0
        %1466 = vmatpush2.bf16.msra.mxu0 0
        %1467 = vmatprep.subr.bf16.mxu0 0
        %1468 = vmatpush2.bf16.msra.mxu0 0
        %1469 = vmatprep.subr.bf16.mxu0 0
        %1470 = vmatpush2.bf16.msra.mxu0 0
        %1471 = vmatprep.subr.bf16.mxu0 0
        %1472 = vmatpush2.bf16.msra.mxu0 0
        %1473 = vmatprep.subr.bf16.mxu0 0
        %1474 = vmatpush2.bf16.msra.mxu0 0
        %1475 = vmatprep.subr.bf16.mxu0 0
        %1476 = vmatpush2.bf16.msra.mxu0 0
        %1477 = vmatprep.mubr.bf16.mxu0 0
        %1478 = vmatmul.mubr.bf16.gmra.mxu0 %v1422
        %v1479 = vpop.f32.mrf.mxu0
        %v1480 = vadd.f32 %v1407, %v1479
        %v1481 = vpop.f32.mrf.mxu0
        %v1482 = vpop.f32.mrf.mxu0
        %v1483 = vadd.f32 %v1407, %v1482
        %v1484 = vpop.f32.mrf.mxu0
        %1485 = vmatprep.mubr.bf16.mxu0 0
        %1486 = vmatmul.mubr.bf16.gmra.mxu0 %v1425
        %v1487 = vpop.f32.mrf.mxu0
        %v1488 = vadd.f32 %v1407, %v1487
        %v1489 = vpop.f32.mrf.mxu0
        %v1490 = vpop.f32.mrf.mxu0
        %v1491 = vadd.f32 %v1407, %v1490
        %v1492 = vpop.f32.mrf.mxu0
        %1493 = vmatprep.mubr.bf16.mxu0 0
        %1494 = vmatmul.mubr.bf16.gmra.mxu0 %v1428
        %v1495 = vpop.f32.mrf.mxu0
        %v1496 = vadd.f32 %v1407, %v1495
        %v1497 = vpop.f32.mrf.mxu0
        %v1498 = vpop.f32.mrf.mxu0
        %v1499 = vadd.f32 %v1407, %v1498
        %v1500 = vpop.f32.mrf.mxu0
        %1501 = vmatprep.mubr.bf16.mxu0 0
        %1502 = vmatmul.mubr.bf16.gmra.mxu0 %v1431
        %v1503 = vpop.f32.mrf.mxu0
        %v1504 = vadd.f32 %v1407, %v1503
        %v1505 = vpop.f32.mrf.mxu0
        %v1506 = vpop.f32.mrf.mxu0
        %v1507 = vadd.f32 %v1407, %v1506
        %v1508 = vpop.f32.mrf.mxu0
        %1509 = vmatprep.mubr.bf16.mxu0 0
        %1510 = vmatmul.mubr.bf16.gmra.mxu0 %v1434
        %v1511 = vpop.f32.mrf.mxu0
        %v1512 = vadd.f32 %v1407, %v1511
        %v1513 = vpop.f32.mrf.mxu0
        %v1514 = vpop.f32.mrf.mxu0
        %v1515 = vadd.f32 %v1407, %v1514
        %v1516 = vpop.f32.mrf.mxu0
        %1517 = vmatprep.mubr.bf16.mxu0 0
        %1518 = vmatmul.mubr.bf16.gmra.mxu0 %v1437
        %v1519 = vpop.f32.mrf.mxu0
        %v1520 = vadd.f32 %v1407, %v1519
        %v1521 = vpop.f32.mrf.mxu0
        %v1522 = vpop.f32.mrf.mxu0
        %v1523 = vadd.f32 %v1407, %v1522
        %v1524 = vpop.f32.mrf.mxu0
        %1525 = vmatprep.mubr.bf16.mxu0 0
        %1526 = vmatmul.mubr.bf16.gmra.mxu0 %v1440
        %v1527 = vpop.f32.mrf.mxu0
        %v1528 = vadd.f32 %v1407, %v1527
        %v1529 = vpop.f32.mrf.mxu0
        %v1530 = vpop.f32.mrf.mxu0
        %v1531 = vadd.f32 %v1407, %v1530
        %v1532 = vpop.f32.mrf.mxu0
        %1533 = vmatprep.mubr.bf16.mxu0 0
        %1534 = vmatmul.mubr.bf16.gmra.mxu0 %v1443
        %v1535 = vpop.f32.mrf.mxu0
        %v1536 = vadd.f32 %v1407, %v1535
        %v1537 = vpop.f32.mrf.mxu0
        %v1538 = vpop.f32.mrf.mxu0
        %v1539 = vadd.f32 %v1407, %v1538
        %v1540 = vpop.f32.mrf.mxu0
        %1541 = vdwg.mxu0
        %v1542 = vpack.c.bf16 %v1331, %v1328
        %v1543 = vpack.c.bf16 %v1339, %v1336
        %v1544 = vpack.c.bf16 %v1347, %v1344
        %v1545 = vpack.c.bf16 %v1355, %v1352
        %v1546 = vpack.c.bf16 %v1363, %v1360
        %v1547 = vpack.c.bf16 %v1371, %v1368
        %v1548 = vpack.c.bf16 %v1379, %v1376
        %v1549 = vpack.c.bf16 %v1387, %v1384
        %v1550 = vpack.c.bf16 %v1483, %v1480
        %v1551 = vpack.c.bf16 %v1491, %v1488
        %v1552 = vpack.c.bf16 %v1499, %v1496
        %v1553 = vpack.c.bf16 %v1507, %v1504
        %v1554 = vpack.c.bf16 %v1515, %v1512
        %v1555 = vpack.c.bf16 %v1523, %v1520
        %v1556 = vpack.c.bf16 %v1531, %v1528
        %v1557 = vpack.c.bf16 %v1539, %v1536
        %v1558 = vld [vmem:[%s12] sm:$0xff]
        %v1559 = vld [vmem:[%s12 + $0x8] sm:$0xff]
        %v1560 = vld [vmem:[%s12 + $0x10] sm:$0xff]
        %v1561 = vld [vmem:[%s12 + $0x18] sm:$0xff]
        %v1562 = vld [vmem:[%s12 + $0x20] sm:$0xff]
        %v1563 = vld [vmem:[%s12 + $0x28] sm:$0xff]
        %v1564 = vld [vmem:[%s12 + $0x30] sm:$0xff]
        %v1565 = vld [vmem:[%s12 + $0x38] sm:$0xff]
        %1570 = vrot.lane.b32.xlu0 %v1542, 96
        %v1571 = vpop.permute.xlu0 %1570
        %1572 = vrot.lane.b32.xlu0 %v1543, 96
        %v1573 = vpop.permute.xlu0 %1572
        %1574 = vrot.lane.b32.xlu0 %v1544, 96
        %v1575 = vpop.permute.xlu0 %1574
        %1576 = vrot.lane.b32.xlu0 %v1545, 96
        %v1577 = vpop.permute.xlu0 %1576
        %vm1578 = vcmask 64512
        %v1580 = vsel %vm1578, %v1542, 0
        %v1583 = vsel %vm1578, %v1543, 0
        %v1586 = vsel %vm1578, %v1544, 0
        %v1589 = vsel %vm1578, %v1545, 0
        %v1592 = vsel %vm1578, %v1571, 0
        %v1595 = vsel %vm1578, %v1573, 0
        %v1598 = vsel %vm1578, %v1575, 0
        %v1601 = vsel %vm1578, %v1577, 0
        %1603 = vmatprep.subr.bf16.mxu0 0
        %1604 = vmatpush1.bf16.xpose.msra.mxu0 0
        %1605 = vmatprep.subr.bf16.mxu0 0
        %1606 = vmatpush1.bf16.xpose.msra.mxu0 0
        %1607 = vmatprep.subr.bf16.mxu0 0
        %1608 = vmatpush1.bf16.xpose.msra.mxu0 0
        %1609 = vmatprep.subr.bf16.mxu0 0
        %1610 = vmatpush1.bf16.xpose.msra.mxu0 0
        %1611 = vmatprep.subr.bf16.mxu0 0
        %1612 = vmatpush1.bf16.xpose.msra.mxu0 %v1601
        %1613 = vmatprep.subr.bf16.mxu0 0
        %1614 = vmatpush1.bf16.xpose.msra.mxu0 %v1598
        %1615 = vmatprep.subr.bf16.mxu0 0
        %1616 = vmatpush1.bf16.xpose.msra.mxu0 %v1595
        %1617 = vmatprep.subr.bf16.mxu0 0
        %1618 = vmatpush1.bf16.xpose.msra.mxu0 %v1592
        %1619 = vmatprep.subr.bf16.mxu0 0
        %1620 = vmatpush2.bf16.xpose.msra.mxu0 0
        %1621 = vmatprep.subr.bf16.mxu0 0
        %1622 = vmatpush2.bf16.xpose.msra.mxu0 0
        %1623 = vmatprep.subr.bf16.mxu0 0
        %1624 = vmatpush2.bf16.xpose.msra.mxu0 0
        %1625 = vmatprep.subr.bf16.mxu0 0
        %1626 = vmatpush2.bf16.xpose.msra.mxu0 0
        %1627 = vmatprep.subr.bf16.mxu0 0
        %1628 = vmatpush2.bf16.xpose.msra.mxu0 0
        %1629 = vmatprep.subr.bf16.mxu0 0
        %1630 = vmatpush2.bf16.xpose.msra.mxu0 0
        %1631 = vmatprep.subr.bf16.mxu0 0
        %1632 = vmatpush2.bf16.xpose.msra.mxu0 0
        %1633 = vmatprep.subr.bf16.mxu0 0
        %1634 = vmatpush2.bf16.xpose.msra.mxu0 0
        %1635 = vmatprep.mubr.bf16.mxu0 0
        %1636 = vmatmul.mubr.bf16.gmra.mxu0 %v1580
        %v1637 = vpop.f32.mrf.mxu0
        %v1638 = vadd.f32 %v1558, %v1637
        %v1639 = vpop.f32.mrf.mxu0
        %v1640 = vpop.f32.mrf.mxu0
        %v1641 = vadd.f32 %v1559, %v1640
        %v1642 = vpop.f32.mrf.mxu0
        %1643 = vmatprep.mubr.bf16.mxu0 0
        %1644 = vmatmul.mubr.bf16.gmra.mxu0 %v1583
        %v1645 = vpop.f32.mrf.mxu0
        %v1646 = vadd.f32 %v1560, %v1645
        %v1647 = vpop.f32.mrf.mxu0
        %v1648 = vpop.f32.mrf.mxu0
        %v1649 = vadd.f32 %v1561, %v1648
        %v1650 = vpop.f32.mrf.mxu0
        %1651 = vmatprep.mubr.bf16.mxu0 0
        %1652 = vmatmul.mubr.bf16.gmra.mxu0 %v1586
        %v1653 = vpop.f32.mrf.mxu0
        %v1654 = vadd.f32 %v1562, %v1653
        %v1655 = vpop.f32.mrf.mxu0
        %v1656 = vpop.f32.mrf.mxu0
        %v1657 = vadd.f32 %v1563, %v1656
        %v1658 = vpop.f32.mrf.mxu0
        %1659 = vmatprep.mubr.bf16.mxu0 0
        %1660 = vmatmul.mubr.bf16.gmra.mxu0 %v1589
        %v1661 = vpop.f32.mrf.mxu0
        %v1662 = vadd.f32 %v1564, %v1661
        %v1663 = vpop.f32.mrf.mxu0
        %v1664 = vpop.f32.mrf.mxu0
        %v1665 = vadd.f32 %v1565, %v1664
        %v1666 = vpop.f32.mrf.mxu0
        %1667 = vdwg.mxu0
        %1672 = vrot.lane.b32.xlu0 %v1546, 96
        %v1673 = vpop.permute.xlu0 %1672
        %1674 = vrot.lane.b32.xlu0 %v1547, 96
        %v1675 = vpop.permute.xlu0 %1674
        %1676 = vrot.lane.b32.xlu0 %v1548, 96
        %v1677 = vpop.permute.xlu0 %1676
        %1678 = vrot.lane.b32.xlu0 %v1549, 96
        %v1679 = vpop.permute.xlu0 %1678
        %v1681 = vsel %vm1578, %v1546, 0
        %v1684 = vsel %vm1578, %v1547, 0
        %v1687 = vsel %vm1578, %v1548, 0
        %v1690 = vsel %vm1578, %v1549, 0
        %v1693 = vsel %vm1578, %v1673, 0
        %v1696 = vsel %vm1578, %v1675, 0
        %v1699 = vsel %vm1578, %v1677, 0
        %v1702 = vsel %vm1578, %v1679, 0
        %1704 = vmatprep.subr.bf16.mxu0 0
        %1705 = vmatpush1.bf16.xpose.msra.mxu0 0
        %1706 = vmatprep.subr.bf16.mxu0 0
        %1707 = vmatpush1.bf16.xpose.msra.mxu0 0
        %1708 = vmatprep.subr.bf16.mxu0 0
        %1709 = vmatpush1.bf16.xpose.msra.mxu0 0
        %1710 = vmatprep.subr.bf16.mxu0 0
        %1711 = vmatpush1.bf16.xpose.msra.mxu0 0
        %1712 = vmatprep.subr.bf16.mxu0 0
        %1713 = vmatpush1.bf16.xpose.msra.mxu0 %v1702
        %1714 = vmatprep.subr.bf16.mxu0 0
        %1715 = vmatpush1.bf16.xpose.msra.mxu0 %v1699
        %1716 = vmatprep.subr.bf16.mxu0 0
        %1717 = vmatpush1.bf16.xpose.msra.mxu0 %v1696
        %1718 = vmatprep.subr.bf16.mxu0 0
        %1719 = vmatpush1.bf16.xpose.msra.mxu0 %v1693
        %1720 = vmatprep.subr.bf16.mxu0 0
        %1721 = vmatpush2.bf16.xpose.msra.mxu0 0
        %1722 = vmatprep.subr.bf16.mxu0 0
        %1723 = vmatpush2.bf16.xpose.msra.mxu0 0
        %1724 = vmatprep.subr.bf16.mxu0 0
        %1725 = vmatpush2.bf16.xpose.msra.mxu0 0
        %1726 = vmatprep.subr.bf16.mxu0 0
        %1727 = vmatpush2.bf16.xpose.msra.mxu0 0
        %1728 = vmatprep.subr.bf16.mxu0 0
        %1729 = vmatpush2.bf16.xpose.msra.mxu0 0
        %1730 = vmatprep.subr.bf16.mxu0 0
        %1731 = vmatpush2.bf16.xpose.msra.mxu0 0
        %1732 = vmatprep.subr.bf16.mxu0 0
        %1733 = vmatpush2.bf16.xpose.msra.mxu0 0
        %1734 = vmatprep.subr.bf16.mxu0 0
        %1735 = vmatpush2.bf16.xpose.msra.mxu0 0
        %1736 = vmatprep.mubr.bf16.mxu0 0
        %1737 = vmatmul.mubr.bf16.gmra.mxu0 %v1681
        %v1738 = vpop.f32.mrf.mxu0
        %v1739 = vadd.f32 %v1558, %v1738
        %v1740 = vpop.f32.mrf.mxu0
        %v1741 = vpop.f32.mrf.mxu0
        %v1742 = vadd.f32 %v1559, %v1741
        %v1743 = vpop.f32.mrf.mxu0
        %1744 = vmatprep.mubr.bf16.mxu0 0
        %1745 = vmatmul.mubr.bf16.gmra.mxu0 %v1684
        %v1746 = vpop.f32.mrf.mxu0
        %v1747 = vadd.f32 %v1560, %v1746
        %v1748 = vpop.f32.mrf.mxu0
        %v1749 = vpop.f32.mrf.mxu0
        %v1750 = vadd.f32 %v1561, %v1749
        %v1751 = vpop.f32.mrf.mxu0
        %1752 = vmatprep.mubr.bf16.mxu0 0
        %1753 = vmatmul.mubr.bf16.gmra.mxu0 %v1687
        %v1754 = vpop.f32.mrf.mxu0
        %v1755 = vadd.f32 %v1562, %v1754
        %v1756 = vpop.f32.mrf.mxu0
        %v1757 = vpop.f32.mrf.mxu0
        %v1758 = vadd.f32 %v1563, %v1757
        %v1759 = vpop.f32.mrf.mxu0
        %1760 = vmatprep.mubr.bf16.mxu0 0
        %1761 = vmatmul.mubr.bf16.gmra.mxu0 %v1690
        %v1762 = vpop.f32.mrf.mxu0
        %v1763 = vadd.f32 %v1564, %v1762
        %v1764 = vpop.f32.mrf.mxu0
        %v1765 = vpop.f32.mrf.mxu0
        %v1766 = vadd.f32 %v1565, %v1765
        %v1767 = vpop.f32.mrf.mxu0
        %1768 = vdwg.mxu0
        %vm1769 = vcmask 523264
        %v1770 = vsel %vm1769, %v1638, -inf
        %1771 = vmax.xlane.f32.xlu0 %v1770
        %v1772 = vpop.xlane.xlu0 %1771
        %v1773 = vsel %vm1769, %v1641, -inf
        %1774 = vmax.xlane.f32.xlu0 %v1773
        %v1775 = vpop.xlane.xlu0 %1774
        %v1776 = vsel %vm1769, %v1646, -inf
        %1777 = vmax.xlane.f32.xlu0 %v1776
        %v1778 = vpop.xlane.xlu0 %1777
        %v1779 = vsel %vm1769, %v1649, -inf
        %1780 = vmax.xlane.f32.xlu0 %v1779
        %v1781 = vpop.xlane.xlu0 %1780
        %v1782 = vsel %vm1769, %v1654, -inf
        %1783 = vmax.xlane.f32.xlu0 %v1782
        %v1784 = vpop.xlane.xlu0 %1783
        %v1785 = vsel %vm1769, %v1657, -inf
        %1786 = vmax.xlane.f32.xlu0 %v1785
        %v1787 = vpop.xlane.xlu0 %1786
        %v1788 = vsel %vm1769, %v1662, -inf
        %1789 = vmax.xlane.f32.xlu0 %v1788
        %v1790 = vpop.xlane.xlu0 %1789
        %v1791 = vsel %vm1769, %v1665, -inf
        %1792 = vmax.xlane.f32.xlu0 %v1791
        %v1793 = vpop.xlane.xlu0 %1792
        %v1794 = vsel %vm1769, %v1739, -inf
        %1795 = vmax.xlane.f32.xlu0 %v1794
        %v1796 = vpop.xlane.xlu0 %1795
        %v1797 = vsel %vm1769, %v1742, -inf
        %1798 = vmax.xlane.f32.xlu0 %v1797
        %v1799 = vpop.xlane.xlu0 %1798
        %v1800 = vsel %vm1769, %v1747, -inf
        %1801 = vmax.xlane.f32.xlu0 %v1800
        %v1802 = vpop.xlane.xlu0 %1801
        %v1803 = vsel %vm1769, %v1750, -inf
        %1804 = vmax.xlane.f32.xlu0 %v1803
        %v1805 = vpop.xlane.xlu0 %1804
        %v1806 = vsel %vm1769, %v1755, -inf
        %1807 = vmax.xlane.f32.xlu0 %v1806
        %v1808 = vpop.xlane.xlu0 %1807
        %v1809 = vsel %vm1769, %v1758, -inf
        %1810 = vmax.xlane.f32.xlu0 %v1809
        %v1811 = vpop.xlane.xlu0 %1810
        %v1812 = vsel %vm1769, %v1763, -inf
        %1813 = vmax.xlane.f32.xlu0 %v1812
        %v1814 = vpop.xlane.xlu0 %1813
        %v1815 = vsel %vm1769, %v1766, -inf
        %1816 = vmax.xlane.f32.xlu0 %v1815
        %v1817 = vpop.xlane.xlu0 %1816
        %v1818 = vsub.f32 %v1638, %v1772
        %v1819 = vsub.f32 %v1641, %v1775
        %v1820 = vsub.f32 %v1646, %v1778
        %v1821 = vsub.f32 %v1649, %v1781
        %v1822 = vsub.f32 %v1654, %v1784
        %v1823 = vsub.f32 %v1657, %v1787
        %v1824 = vsub.f32 %v1662, %v1790
        %v1825 = vsub.f32 %v1665, %v1793
        %v1826 = vsub.f32 %v1739, %v1796
        %v1827 = vsub.f32 %v1742, %v1799
        %v1828 = vsub.f32 %v1747, %v1802
        %v1829 = vsub.f32 %v1750, %v1805
        %v1830 = vsub.f32 %v1755, %v1808
        %v1831 = vsub.f32 %v1758, %v1811
        %v1832 = vsub.f32 %v1763, %v1814
        %v1833 = vsub.f32 %v1766, %v1817
        %v1834 = vmul.f32 %v1818, 1.442695
        %v1835 = vpow.pop %v1834
        %v1836 = vmul.f32 %v1819, 1.442695
        %v1837 = vpow.pop %v1836
        %v1838 = vmul.f32 %v1820, 1.442695
        %v1839 = vpow.pop %v1838
        %v1840 = vmul.f32 %v1821, 1.442695
        %v1841 = vpow.pop %v1840
        %v1842 = vmul.f32 %v1822, 1.442695
        %v1843 = vpow.pop %v1842
        %v1844 = vmul.f32 %v1823, 1.442695
        %v1845 = vpow.pop %v1844
        %v1846 = vmul.f32 %v1824, 1.442695
        %v1847 = vpow.pop %v1846
        %v1848 = vmul.f32 %v1825, 1.442695
        %v1849 = vpow.pop %v1848
        %v1850 = vmul.f32 %v1826, 1.442695
        %v1851 = vpow.pop %v1850
        %v1852 = vmul.f32 %v1827, 1.442695
        %v1853 = vpow.pop %v1852
        %v1854 = vmul.f32 %v1828, 1.442695
        %v1855 = vpow.pop %v1854
        %v1856 = vmul.f32 %v1829, 1.442695
        %v1857 = vpow.pop %v1856
        %v1858 = vmul.f32 %v1830, 1.442695
        %v1859 = vpow.pop %v1858
        %v1860 = vmul.f32 %v1831, 1.442695
        %v1861 = vpow.pop %v1860
        %v1862 = vmul.f32 %v1832, 1.442695
        %v1863 = vpow.pop %v1862
        %v1864 = vmul.f32 %v1833, 1.442695
        %v1865 = vpow.pop %v1864
        %v1866 = vsel %vm1769, %v1835, 0.0
        %1867 = vadd.xlane.f32.xlu0 %v1866
        %v1868 = vpop.xlane.xlu0 %1867
        %v1869 = vsel %vm1769, %v1837, 0.0
        %1870 = vadd.xlane.f32.xlu0 %v1869
        %v1871 = vpop.xlane.xlu0 %1870
        %v1872 = vsel %vm1769, %v1839, 0.0
        %1873 = vadd.xlane.f32.xlu0 %v1872
        %v1874 = vpop.xlane.xlu0 %1873
        %v1875 = vsel %vm1769, %v1841, 0.0
        %1876 = vadd.xlane.f32.xlu0 %v1875
        %v1877 = vpop.xlane.xlu0 %1876
        %v1878 = vsel %vm1769, %v1843, 0.0
        %1879 = vadd.xlane.f32.xlu0 %v1878
        %v1880 = vpop.xlane.xlu0 %1879
        %v1881 = vsel %vm1769, %v1845, 0.0
        %1882 = vadd.xlane.f32.xlu0 %v1881
        %v1883 = vpop.xlane.xlu0 %1882
        %v1884 = vsel %vm1769, %v1847, 0.0
        %1885 = vadd.xlane.f32.xlu0 %v1884
        %v1886 = vpop.xlane.xlu0 %1885
        %v1887 = vsel %vm1769, %v1849, 0.0
        %1888 = vadd.xlane.f32.xlu0 %v1887
        %v1889 = vpop.xlane.xlu0 %1888
        %v1890 = vsel %vm1769, %v1851, 0.0
        %1891 = vadd.xlane.f32.xlu0 %v1890
        %v1892 = vpop.xlane.xlu0 %1891
        %v1893 = vsel %vm1769, %v1853, 0.0
        %1894 = vadd.xlane.f32.xlu0 %v1893
        %v1895 = vpop.xlane.xlu0 %1894
        %v1896 = vsel %vm1769, %v1855, 0.0
        %1897 = vadd.xlane.f32.xlu0 %v1896
        %v1898 = vpop.xlane.xlu0 %1897
        %v1899 = vsel %vm1769, %v1857, 0.0
        %1900 = vadd.xlane.f32.xlu0 %v1899
        %v1901 = vpop.xlane.xlu0 %1900
        %v1902 = vsel %vm1769, %v1859, 0.0
        %1903 = vadd.xlane.f32.xlu0 %v1902
        %v1904 = vpop.xlane.xlu0 %1903
        %v1905 = vsel %vm1769, %v1861, 0.0
        %1906 = vadd.xlane.f32.xlu0 %v1905
        %v1907 = vpop.xlane.xlu0 %1906
        %v1908 = vsel %vm1769, %v1863, 0.0
        %1909 = vadd.xlane.f32.xlu0 %v1908
        %v1910 = vpop.xlane.xlu0 %1909
        %v1911 = vsel %vm1769, %v1865, 0.0
        %1912 = vadd.xlane.f32.xlu0 %v1911
        %v1913 = vpop.xlane.xlu0 %1912
        %v1914 = vrcp.pop %v1868
        %v1915 = vrcp.pop %v1871
        %v1916 = vrcp.pop %v1874
        %v1917 = vrcp.pop %v1877
        %v1918 = vrcp.pop %v1880
        %v1919 = vrcp.pop %v1883
        %v1920 = vrcp.pop %v1886
        %v1921 = vrcp.pop %v1889
        %v1922 = vrcp.pop %v1892
        %v1923 = vrcp.pop %v1895
        %v1924 = vrcp.pop %v1898
        %v1925 = vrcp.pop %v1901
        %v1926 = vrcp.pop %v1904
        %v1927 = vrcp.pop %v1907
        %v1928 = vrcp.pop %v1910
        %v1929 = vrcp.pop %v1913
        %v1930 = vmul.f32 %v1835, %v1914
        %v1931 = vmul.f32 %v1837, %v1915
        %v1932 = vmul.f32 %v1839, %v1916
        %v1933 = vmul.f32 %v1841, %v1917
        %v1934 = vmul.f32 %v1843, %v1918
        %v1935 = vmul.f32 %v1845, %v1919
        %v1936 = vmul.f32 %v1847, %v1920
        %v1937 = vmul.f32 %v1849, %v1921
        %v1938 = vmul.f32 %v1851, %v1922
        %v1939 = vmul.f32 %v1853, %v1923
        %v1940 = vmul.f32 %v1855, %v1924
        %v1941 = vmul.f32 %v1857, %v1925
        %v1942 = vmul.f32 %v1859, %v1926
        %v1943 = vmul.f32 %v1861, %v1927
        %v1944 = vmul.f32 %v1863, %v1928
        %v1945 = vmul.f32 %v1865, %v1929
        %v1946 = vsel %vm1769, %v1930, -inf
        %1947 = vmax.xlane.f32.xlu0 %v1946
        %v1948 = vpop.xlane.xlu0 %1947
        %v1949 = vsel %vm1769, %v1931, -inf
        %1950 = vmax.xlane.f32.xlu0 %v1949
        %v1951 = vpop.xlane.xlu0 %1950
        %v1952 = vsel %vm1769, %v1932, -inf
        %1953 = vmax.xlane.f32.xlu0 %v1952
        %v1954 = vpop.xlane.xlu0 %1953
        %v1955 = vsel %vm1769, %v1933, -inf
        %1956 = vmax.xlane.f32.xlu0 %v1955
        %v1957 = vpop.xlane.xlu0 %1956
        %v1958 = vsel %vm1769, %v1934, -inf
        %1959 = vmax.xlane.f32.xlu0 %v1958
        %v1960 = vpop.xlane.xlu0 %1959
        %v1961 = vsel %vm1769, %v1935, -inf
        %1962 = vmax.xlane.f32.xlu0 %v1961
        %v1963 = vpop.xlane.xlu0 %1962
        %v1964 = vsel %vm1769, %v1936, -inf
        %1965 = vmax.xlane.f32.xlu0 %v1964
        %v1966 = vpop.xlane.xlu0 %1965
        %v1967 = vsel %vm1769, %v1937, -inf
        %1968 = vmax.xlane.f32.xlu0 %v1967
        %v1969 = vpop.xlane.xlu0 %1968
        %v1970 = vsel %vm1769, %v1938, -inf
        %1971 = vmax.xlane.f32.xlu0 %v1970
        %v1972 = vpop.xlane.xlu0 %1971
        %v1973 = vsel %vm1769, %v1939, -inf
        %1974 = vmax.xlane.f32.xlu0 %v1973
        %v1975 = vpop.xlane.xlu0 %1974
        %v1976 = vsel %vm1769, %v1940, -inf
        %1977 = vmax.xlane.f32.xlu0 %v1976
        %v1978 = vpop.xlane.xlu0 %1977
        %v1979 = vsel %vm1769, %v1941, -inf
        %1980 = vmax.xlane.f32.xlu0 %v1979
        %v1981 = vpop.xlane.xlu0 %1980
        %v1982 = vsel %vm1769, %v1942, -inf
        %1983 = vmax.xlane.f32.xlu0 %v1982
        %v1984 = vpop.xlane.xlu0 %1983
        %v1985 = vsel %vm1769, %v1943, -inf
        %1986 = vmax.xlane.f32.xlu0 %v1985
        %v1987 = vpop.xlane.xlu0 %1986
        %v1988 = vsel %vm1769, %v1944, -inf
        %1989 = vmax.xlane.f32.xlu0 %v1988
        %v1990 = vpop.xlane.xlu0 %1989
        %v1991 = vsel %vm1769, %v1945, -inf
        %1992 = vmax.xlane.f32.xlu0 %v1991
        %v1993 = vpop.xlane.xlu0 %1992
        %v1994 = vsub.f32 %v1930, %v1948
        %v1995 = vsub.f32 %v1931, %v1951
        %v1996 = vsub.f32 %v1932, %v1954
        %v1997 = vsub.f32 %v1933, %v1957
        %v1998 = vsub.f32 %v1934, %v1960
        %v1999 = vsub.f32 %v1935, %v1963
        %v2000 = vsub.f32 %v1936, %v1966
        %v2001 = vsub.f32 %v1937, %v1969
        %v2002 = vsub.f32 %v1938, %v1972
        %v2003 = vsub.f32 %v1939, %v1975
        %v2004 = vsub.f32 %v1940, %v1978
        %v2005 = vsub.f32 %v1941, %v1981
        %v2006 = vsub.f32 %v1942, %v1984
        %v2007 = vsub.f32 %v1943, %v1987
        %v2008 = vsub.f32 %v1944, %v1990
        %v2009 = vsub.f32 %v1945, %v1993
        %v2010 = vmul.f32 %v1994, 1.442695
        %v2011 = vpow.pop %v2010
        %v2012 = vmul.f32 %v1995, 1.442695
        %v2013 = vpow.pop %v2012
        %v2014 = vmul.f32 %v1996, 1.442695
        %v2015 = vpow.pop %v2014
        %v2016 = vmul.f32 %v1997, 1.442695
        %v2017 = vpow.pop %v2016
        %v2018 = vmul.f32 %v1998, 1.442695
        %v2019 = vpow.pop %v2018
        %v2020 = vmul.f32 %v1999, 1.442695
        %v2021 = vpow.pop %v2020
        %v2022 = vmul.f32 %v2000, 1.442695
        %v2023 = vpow.pop %v2022
        %v2024 = vmul.f32 %v2001, 1.442695
        %v2025 = vpow.pop %v2024
        %v2026 = vmul.f32 %v2002, 1.442695
        %v2027 = vpow.pop %v2026
        %v2028 = vmul.f32 %v2003, 1.442695
        %v2029 = vpow.pop %v2028
        %v2030 = vmul.f32 %v2004, 1.442695
        %v2031 = vpow.pop %v2030
        %v2032 = vmul.f32 %v2005, 1.442695
        %v2033 = vpow.pop %v2032
        %v2034 = vmul.f32 %v2006, 1.442695
        %v2035 = vpow.pop %v2034
        %v2036 = vmul.f32 %v2007, 1.442695
        %v2037 = vpow.pop %v2036
        %v2038 = vmul.f32 %v2008, 1.442695
        %v2039 = vpow.pop %v2038
        %v2040 = vmul.f32 %v2009, 1.442695
        %v2041 = vpow.pop %v2040
        %v2042 = vsel %vm1769, %v2011, 0.0
        %2043 = vadd.xlane.f32.xlu0 %v2042
        %v2044 = vpop.xlane.xlu0 %2043
        %v2045 = vsel %vm1769, %v2013, 0.0
        %2046 = vadd.xlane.f32.xlu0 %v2045
        %v2047 = vpop.xlane.xlu0 %2046
        %v2048 = vsel %vm1769, %v2015, 0.0
        %2049 = vadd.xlane.f32.xlu0 %v2048
        %v2050 = vpop.xlane.xlu0 %2049
        %v2051 = vsel %vm1769, %v2017, 0.0
        %2052 = vadd.xlane.f32.xlu0 %v2051
        %v2053 = vpop.xlane.xlu0 %2052
        %v2054 = vsel %vm1769, %v2019, 0.0
        %2055 = vadd.xlane.f32.xlu0 %v2054
        %v2056 = vpop.xlane.xlu0 %2055
        %v2057 = vsel %vm1769, %v2021, 0.0
        %2058 = vadd.xlane.f32.xlu0 %v2057
        %v2059 = vpop.xlane.xlu0 %2058
        %v2060 = vsel %vm1769, %v2023, 0.0
        %2061 = vadd.xlane.f32.xlu0 %v2060
        %v2062 = vpop.xlane.xlu0 %2061
        %v2063 = vsel %vm1769, %v2025, 0.0
        %2064 = vadd.xlane.f32.xlu0 %v2063
        %v2065 = vpop.xlane.xlu0 %2064
        %v2066 = vsel %vm1769, %v2027, 0.0
        %2067 = vadd.xlane.f32.xlu0 %v2066
        %v2068 = vpop.xlane.xlu0 %2067
        %v2069 = vsel %vm1769, %v2029, 0.0
        %2070 = vadd.xlane.f32.xlu0 %v2069
        %v2071 = vpop.xlane.xlu0 %2070
        %v2072 = vsel %vm1769, %v2031, 0.0
        %2073 = vadd.xlane.f32.xlu0 %v2072
        %v2074 = vpop.xlane.xlu0 %2073
        %v2075 = vsel %vm1769, %v2033, 0.0
        %2076 = vadd.xlane.f32.xlu0 %v2075
        %v2077 = vpop.xlane.xlu0 %2076
        %v2078 = vsel %vm1769, %v2035, 0.0
        %2079 = vadd.xlane.f32.xlu0 %v2078
        %v2080 = vpop.xlane.xlu0 %2079
        %v2081 = vsel %vm1769, %v2037, 0.0
        %2082 = vadd.xlane.f32.xlu0 %v2081
        %v2083 = vpop.xlane.xlu0 %2082
        %v2084 = vsel %vm1769, %v2039, 0.0
        %2085 = vadd.xlane.f32.xlu0 %v2084
        %v2086 = vpop.xlane.xlu0 %2085
        %v2087 = vsel %vm1769, %v2041, 0.0
        %2088 = vadd.xlane.f32.xlu0 %v2087
        %v2089 = vpop.xlane.xlu0 %2088
        %v2090 = vrcp.pop %v2044
        %v2091 = vrcp.pop %v2047
        %v2092 = vrcp.pop %v2050
        %v2093 = vrcp.pop %v2053
        %v2094 = vrcp.pop %v2056
        %v2095 = vrcp.pop %v2059
        %v2096 = vrcp.pop %v2062
        %v2097 = vrcp.pop %v2065
        %v2098 = vrcp.pop %v2068
        %v2099 = vrcp.pop %v2071
        %v2100 = vrcp.pop %v2074
        %v2101 = vrcp.pop %v2077
        %v2102 = vrcp.pop %v2080
        %v2103 = vrcp.pop %v2083
        %v2104 = vrcp.pop %v2086
        %v2105 = vrcp.pop %v2089
        %v2106 = vmul.f32 %v2011, %v2090
        %v2107 = vmul.f32 %v2013, %v2091
        %v2108 = vmul.f32 %v2015, %v2092
        %v2109 = vmul.f32 %v2017, %v2093
        %v2110 = vmul.f32 %v2019, %v2094
        %v2111 = vmul.f32 %v2021, %v2095
        %v2112 = vmul.f32 %v2023, %v2096
        %v2113 = vmul.f32 %v2025, %v2097
        %v2114 = vmul.f32 %v2027, %v2098
        %v2115 = vmul.f32 %v2029, %v2099
        %v2116 = vmul.f32 %v2031, %v2100
        %v2117 = vmul.f32 %v2033, %v2101
        %v2118 = vmul.f32 %v2035, %v2102
        %v2119 = vmul.f32 %v2037, %v2103
        %v2120 = vmul.f32 %v2039, %v2104
        %v2121 = vmul.f32 %v2041, %v2105
        %v2122 = vpack.c.bf16 %v1931, %v1930
        %v2123 = vpack.c.bf16 %v1933, %v1932
        %v2124 = vpack.c.bf16 %v1935, %v1934
        %v2125 = vpack.c.bf16 %v1937, %v1936
        %v2126 = vpack.c.bf16 %v1939, %v1938
        %v2127 = vpack.c.bf16 %v1941, %v1940
        %v2128 = vpack.c.bf16 %v1943, %v1942
        %v2129 = vpack.c.bf16 %v1945, %v1944
        %2130 = vrot.lane.b32.xlu0 %v1542, 64
        %v2131 = vpop.permute.xlu0 %2130
        %2132 = vrot.lane.b32.xlu0 %v1543, 64
        %v2133 = vpop.permute.xlu0 %2132
        %2134 = vrot.lane.b32.xlu0 %v1544, 64
        %v2135 = vpop.permute.xlu0 %2134
        %2136 = vrot.lane.b32.xlu0 %v1545, 64
        %v2137 = vpop.permute.xlu0 %2136
        %v2143 = vsel %vm1769, %v2122, 0
        %v2146 = vsel %vm1769, %v2123, 0
        %v2149 = vsel %vm1769, %v2124, 0
        %v2152 = vsel %vm1769, %v2125, 0
        %2154 = vmatprep.subr.bf16.mxu0 0
        %2155 = vmatpush1.bf16.msra.mxu0 0
        %2156 = vmatprep.subr.bf16.mxu0 0
        %2157 = vmatpush1.bf16.msra.mxu0 0
        %2158 = vmatprep.subr.bf16.mxu0 0
        %2159 = vmatpush1.bf16.msra.mxu0 0
        %2160 = vmatprep.subr.bf16.mxu0 0
        %2161 = vmatpush1.bf16.msra.mxu0 0
        %2162 = vmatprep.subr.bf16.mxu0 0
        %2163 = vmatpush1.bf16.msra.mxu0 %v2137
        %2164 = vmatprep.subr.bf16.mxu0 0
        %2165 = vmatpush1.bf16.msra.mxu0 %v2135
        %2166 = vmatprep.subr.bf16.mxu0 0
        %2167 = vmatpush1.bf16.msra.mxu0 %v2133
        %2168 = vmatprep.subr.bf16.mxu0 0
        %2169 = vmatpush1.bf16.msra.mxu0 %v2131
        %2170 = vmatprep.subr.bf16.mxu0 0
        %2171 = vmatpush2.bf16.msra.mxu0 0
        %2172 = vmatprep.subr.bf16.mxu0 0
        %2173 = vmatpush2.bf16.msra.mxu0 0
        %2174 = vmatprep.subr.bf16.mxu0 0
        %2175 = vmatpush2.bf16.msra.mxu0 0
        %2176 = vmatprep.subr.bf16.mxu0 0
        %2177 = vmatpush2.bf16.msra.mxu0 0
        %2178 = vmatprep.subr.bf16.mxu0 0
        %2179 = vmatpush2.bf16.msra.mxu0 0
        %2180 = vmatprep.subr.bf16.mxu0 0
        %2181 = vmatpush2.bf16.msra.mxu0 0
        %2182 = vmatprep.subr.bf16.mxu0 0
        %2183 = vmatpush2.bf16.msra.mxu0 0
        %2184 = vmatprep.subr.bf16.mxu0 0
        %2185 = vmatpush2.bf16.msra.mxu0 0
        %2186 = vmatprep.mubr.bf16.mxu0 0
        %2187 = vmatmul.mubr.bf16.gmra.mxu0 %v2143
        %v2188 = vpop.f32.mrf.mxu0
        %v2189 = vadd.f32 0.0, %v2188
        %v2190 = vpop.f32.mrf.mxu0
        %v2191 = vpop.f32.mrf.mxu0
        %v2192 = vadd.f32 0.0, %v2191
        %v2193 = vpop.f32.mrf.mxu0
        %2194 = vmatprep.mubr.bf16.mxu0 0
        %2195 = vmatmul.mubr.bf16.gmra.mxu0 %v2146
        %v2196 = vpop.f32.mrf.mxu0
        %v2197 = vadd.f32 0.0, %v2196
        %v2198 = vpop.f32.mrf.mxu0
        %v2199 = vpop.f32.mrf.mxu0
        %v2200 = vadd.f32 0.0, %v2199
        %v2201 = vpop.f32.mrf.mxu0
        %2202 = vmatprep.mubr.bf16.mxu0 0
        %2203 = vmatmul.mubr.bf16.gmra.mxu0 %v2149
        %v2204 = vpop.f32.mrf.mxu0
        %v2205 = vadd.f32 0.0, %v2204
        %v2206 = vpop.f32.mrf.mxu0
        %v2207 = vpop.f32.mrf.mxu0
        %v2208 = vadd.f32 0.0, %v2207
        %v2209 = vpop.f32.mrf.mxu0
        %2210 = vmatprep.mubr.bf16.mxu0 0
        %2211 = vmatmul.mubr.bf16.gmra.mxu0 %v2152
        %v2212 = vpop.f32.mrf.mxu0
        %v2213 = vadd.f32 0.0, %v2212
        %v2214 = vpop.f32.mrf.mxu0
        %v2215 = vpop.f32.mrf.mxu0
        %v2216 = vadd.f32 0.0, %v2215
        %v2217 = vpop.f32.mrf.mxu0
        %2218 = vdwg.mxu0
        %2219 = vrot.lane.b32.xlu0 %v1546, 64
        %v2220 = vpop.permute.xlu0 %2219
        %2221 = vrot.lane.b32.xlu0 %v1547, 64
        %v2222 = vpop.permute.xlu0 %2221
        %2223 = vrot.lane.b32.xlu0 %v1548, 64
        %v2224 = vpop.permute.xlu0 %2223
        %2225 = vrot.lane.b32.xlu0 %v1549, 64
        %v2226 = vpop.permute.xlu0 %2225
        %v2232 = vsel %vm1769, %v2126, 0
        %v2235 = vsel %vm1769, %v2127, 0
        %v2238 = vsel %vm1769, %v2128, 0
        %v2241 = vsel %vm1769, %v2129, 0
        %2243 = vmatprep.subr.bf16.mxu0 0
        %2244 = vmatpush1.bf16.msra.mxu0 0
        %2245 = vmatprep.subr.bf16.mxu0 0
        %2246 = vmatpush1.bf16.msra.mxu0 0
        %2247 = vmatprep.subr.bf16.mxu0 0
        %2248 = vmatpush1.bf16.msra.mxu0 0
        %2249 = vmatprep.subr.bf16.mxu0 0
        %2250 = vmatpush1.bf16.msra.mxu0 0
        %2251 = vmatprep.subr.bf16.mxu0 0
        %2252 = vmatpush1.bf16.msra.mxu0 %v2226
        %2253 = vmatprep.subr.bf16.mxu0 0
        %2254 = vmatpush1.bf16.msra.mxu0 %v2224
        %2255 = vmatprep.subr.bf16.mxu0 0
        %2256 = vmatpush1.bf16.msra.mxu0 %v2222
        %2257 = vmatprep.subr.bf16.mxu0 0
        %2258 = vmatpush1.bf16.msra.mxu0 %v2220
        %2259 = vmatprep.subr.bf16.mxu0 0
        %2260 = vmatpush2.bf16.msra.mxu0 0
        %2261 = vmatprep.subr.bf16.mxu0 0
        %2262 = vmatpush2.bf16.msra.mxu0 0
        %2263 = vmatprep.subr.bf16.mxu0 0
        %2264 = vmatpush2.bf16.msra.mxu0 0
        %2265 = vmatprep.subr.bf16.mxu0 0
        %2266 = vmatpush2.bf16.msra.mxu0 0
        %2267 = vmatprep.subr.bf16.mxu0 0
        %2268 = vmatpush2.bf16.msra.mxu0 0
        %2269 = vmatprep.subr.bf16.mxu0 0
        %2270 = vmatpush2.bf16.msra.mxu0 0
        %2271 = vmatprep.subr.bf16.mxu0 0
        %2272 = vmatpush2.bf16.msra.mxu0 0
        %2273 = vmatprep.subr.bf16.mxu0 0
        %2274 = vmatpush2.bf16.msra.mxu0 0
        %2275 = vmatprep.mubr.bf16.mxu0 0
        %2276 = vmatmul.mubr.bf16.gmra.mxu0 %v2232
        %v2277 = vpop.f32.mrf.mxu0
        %v2278 = vadd.f32 0.0, %v2277
        %v2279 = vpop.f32.mrf.mxu0
        %v2280 = vpop.f32.mrf.mxu0
        %v2281 = vadd.f32 0.0, %v2280
        %v2282 = vpop.f32.mrf.mxu0
        %2283 = vmatprep.mubr.bf16.mxu0 0
        %2284 = vmatmul.mubr.bf16.gmra.mxu0 %v2235
        %v2285 = vpop.f32.mrf.mxu0
        %v2286 = vadd.f32 0.0, %v2285
        %v2287 = vpop.f32.mrf.mxu0
        %v2288 = vpop.f32.mrf.mxu0
        %v2289 = vadd.f32 0.0, %v2288
        %v2290 = vpop.f32.mrf.mxu0
        %2291 = vmatprep.mubr.bf16.mxu0 0
        %2292 = vmatmul.mubr.bf16.gmra.mxu0 %v2238
        %v2293 = vpop.f32.mrf.mxu0
        %v2294 = vadd.f32 0.0, %v2293
        %v2295 = vpop.f32.mrf.mxu0
        %v2296 = vpop.f32.mrf.mxu0
        %v2297 = vadd.f32 0.0, %v2296
        %v2298 = vpop.f32.mrf.mxu0
        %2299 = vmatprep.mubr.bf16.mxu0 0
        %2300 = vmatmul.mubr.bf16.gmra.mxu0 %v2241
        %v2301 = vpop.f32.mrf.mxu0
        %v2302 = vadd.f32 0.0, %v2301
        %v2303 = vpop.f32.mrf.mxu0
        %v2304 = vpop.f32.mrf.mxu0
        %v2305 = vadd.f32 0.0, %v2304
        %v2306 = vpop.f32.mrf.mxu0
        %2307 = vdwg.mxu0
        %v2308 = vpack.c.bf16 %v2107, %v2106
        %v2309 = vpack.c.bf16 %v2109, %v2108
        %v2310 = vpack.c.bf16 %v2111, %v2110
        %v2311 = vpack.c.bf16 %v2113, %v2112
        %v2312 = vpack.c.bf16 %v2115, %v2114
        %v2313 = vpack.c.bf16 %v2117, %v2116
        %v2314 = vpack.c.bf16 %v2119, %v2118
        %v2315 = vpack.c.bf16 %v2121, %v2120
        %v2317 = vsel %vm1769, %v2308, 0
        %v2320 = vsel %vm1769, %v2309, 0
        %v2323 = vsel %vm1769, %v2310, 0
        %v2326 = vsel %vm1769, %v2311, 0
        %2328 = vmatprep.subr.bf16.mxu0 0
        %2329 = vmatpush1.bf16.msra.mxu0 0
        %2330 = vmatprep.subr.bf16.mxu0 0
        %2331 = vmatpush1.bf16.msra.mxu0 0
        %2332 = vmatprep.subr.bf16.mxu0 0
        %2333 = vmatpush1.bf16.msra.mxu0 0
        %2334 = vmatprep.subr.bf16.mxu0 0
        %2335 = vmatpush1.bf16.msra.mxu0 0
        %2336 = vmatprep.subr.bf16.mxu0 0
        %2337 = vmatpush1.bf16.msra.mxu0 %v1553
        %2338 = vmatprep.subr.bf16.mxu0 0
        %2339 = vmatpush1.bf16.msra.mxu0 %v1552
        %2340 = vmatprep.subr.bf16.mxu0 0
        %2341 = vmatpush1.bf16.msra.mxu0 %v1551
        %2342 = vmatprep.subr.bf16.mxu0 0
        %2343 = vmatpush1.bf16.msra.mxu0 %v1550
        %2344 = vmatprep.subr.bf16.mxu0 0
        %2345 = vmatpush2.bf16.msra.mxu0 0
        %2346 = vmatprep.subr.bf16.mxu0 0
        %2347 = vmatpush2.bf16.msra.mxu0 0
        %2348 = vmatprep.subr.bf16.mxu0 0
        %2349 = vmatpush2.bf16.msra.mxu0 0
        %2350 = vmatprep.subr.bf16.mxu0 0
        %2351 = vmatpush2.bf16.msra.mxu0 0
        %2352 = vmatprep.subr.bf16.mxu0 0
        %2353 = vmatpush2.bf16.msra.mxu0 0
        %2354 = vmatprep.subr.bf16.mxu0 0
        %2355 = vmatpush2.bf16.msra.mxu0 0
        %2356 = vmatprep.subr.bf16.mxu0 0
        %2357 = vmatpush2.bf16.msra.mxu0 0
        %2358 = vmatprep.subr.bf16.mxu0 0
        %2359 = vmatpush2.bf16.msra.mxu0 0
        %2360 = vmatprep.mubr.bf16.mxu0 0
        %2361 = vmatmul.mubr.bf16.gmra.mxu0 %v2317
        %v2362 = vpop.f32.mrf.mxu0
        %v2363 = vadd.f32 0.0, %v2362
        %v2364 = vpop.f32.mrf.mxu0
        %v2365 = vpop.f32.mrf.mxu0
        %v2366 = vadd.f32 0.0, %v2365
        %v2367 = vpop.f32.mrf.mxu0
        %2368 = vmatprep.mubr.bf16.mxu0 0
        %2369 = vmatmul.mubr.bf16.gmra.mxu0 %v2320
        %v2370 = vpop.f32.mrf.mxu0
        %v2371 = vadd.f32 0.0, %v2370
        %v2372 = vpop.f32.mrf.mxu0
        %v2373 = vpop.f32.mrf.mxu0
        %v2374 = vadd.f32 0.0, %v2373
        %v2375 = vpop.f32.mrf.mxu0
        %2376 = vmatprep.mubr.bf16.mxu0 0
        %2377 = vmatmul.mubr.bf16.gmra.mxu0 %v2323
        %v2378 = vpop.f32.mrf.mxu0
        %v2379 = vadd.f32 0.0, %v2378
        %v2380 = vpop.f32.mrf.mxu0
        %v2381 = vpop.f32.mrf.mxu0
        %v2382 = vadd.f32 0.0, %v2381
        %v2383 = vpop.f32.mrf.mxu0
        %2384 = vmatprep.mubr.bf16.mxu0 0
        %2385 = vmatmul.mubr.bf16.gmra.mxu0 %v2326
        %v2386 = vpop.f32.mrf.mxu0
        %v2387 = vadd.f32 0.0, %v2386
        %v2388 = vpop.f32.mrf.mxu0
        %v2389 = vpop.f32.mrf.mxu0
        %v2390 = vadd.f32 0.0, %v2389
        %v2391 = vpop.f32.mrf.mxu0
        %2392 = vdwg.mxu0
        %v2394 = vsel %vm1769, %v2312, 0
        %v2397 = vsel %vm1769, %v2313, 0
        %v2400 = vsel %vm1769, %v2314, 0
        %v2403 = vsel %vm1769, %v2315, 0
        %2405 = vmatprep.subr.bf16.mxu0 0
        %2406 = vmatpush1.bf16.msra.mxu0 0
        %2407 = vmatprep.subr.bf16.mxu0 0
        %2408 = vmatpush1.bf16.msra.mxu0 0
        %2409 = vmatprep.subr.bf16.mxu0 0
        %2410 = vmatpush1.bf16.msra.mxu0 0
        %2411 = vmatprep.subr.bf16.mxu0 0
        %2412 = vmatpush1.bf16.msra.mxu0 0
        %2413 = vmatprep.subr.bf16.mxu0 0
        %2414 = vmatpush1.bf16.msra.mxu0 %v1557
        %2415 = vmatprep.subr.bf16.mxu0 0
        %2416 = vmatpush1.bf16.msra.mxu0 %v1556
        %2417 = vmatprep.subr.bf16.mxu0 0
        %2418 = vmatpush1.bf16.msra.mxu0 %v1555
        %2419 = vmatprep.subr.bf16.mxu0 0
        %2420 = vmatpush1.bf16.msra.mxu0 %v1554
        %2421 = vmatprep.subr.bf16.mxu0 0
        %2422 = vmatpush2.bf16.msra.mxu0 0
        %2423 = vmatprep.subr.bf16.mxu0 0
        %2424 = vmatpush2.bf16.msra.mxu0 0
        %2425 = vmatprep.subr.bf16.mxu0 0
        %2426 = vmatpush2.bf16.msra.mxu0 0
        %2427 = vmatprep.subr.bf16.mxu0 0
        %2428 = vmatpush2.bf16.msra.mxu0 0
        %2429 = vmatprep.subr.bf16.mxu0 0
        %2430 = vmatpush2.bf16.msra.mxu0 0
        %2431 = vmatprep.subr.bf16.mxu0 0
        %2432 = vmatpush2.bf16.msra.mxu0 0
        %2433 = vmatprep.subr.bf16.mxu0 0
        %2434 = vmatpush2.bf16.msra.mxu0 0
        %2435 = vmatprep.subr.bf16.mxu0 0
        %2436 = vmatpush2.bf16.msra.mxu0 0
        %2437 = vmatprep.mubr.bf16.mxu0 0
        %2438 = vmatmul.mubr.bf16.gmra.mxu0 %v2394
        %v2439 = vpop.f32.mrf.mxu0
        %v2440 = vadd.f32 0.0, %v2439
        %v2441 = vpop.f32.mrf.mxu0
        %v2442 = vpop.f32.mrf.mxu0
        %v2443 = vadd.f32 0.0, %v2442
        %v2444 = vpop.f32.mrf.mxu0
        %2445 = vmatprep.mubr.bf16.mxu0 0
        %2446 = vmatmul.mubr.bf16.gmra.mxu0 %v2397
        %v2447 = vpop.f32.mrf.mxu0
        %v2448 = vadd.f32 0.0, %v2447
        %v2449 = vpop.f32.mrf.mxu0
        %v2450 = vpop.f32.mrf.mxu0
        %v2451 = vadd.f32 0.0, %v2450
        %v2452 = vpop.f32.mrf.mxu0
        %2453 = vmatprep.mubr.bf16.mxu0 0
        %2454 = vmatmul.mubr.bf16.gmra.mxu0 %v2400
        %v2455 = vpop.f32.mrf.mxu0
        %v2456 = vadd.f32 0.0, %v2455
        %v2457 = vpop.f32.mrf.mxu0
        %v2458 = vpop.f32.mrf.mxu0
        %v2459 = vadd.f32 0.0, %v2458
        %v2460 = vpop.f32.mrf.mxu0
        %2461 = vmatprep.mubr.bf16.mxu0 0
        %2462 = vmatmul.mubr.bf16.gmra.mxu0 %v2403
        %v2463 = vpop.f32.mrf.mxu0
        %v2464 = vadd.f32 0.0, %v2463
        %v2465 = vpop.f32.mrf.mxu0
        %v2466 = vpop.f32.mrf.mxu0
        %v2467 = vadd.f32 0.0, %v2466
        %v2468 = vpop.f32.mrf.mxu0
        %2469 = vdwg.mxu0
        %s2470 = scalar_lea.vmem %s12, 64
        %v2471 = vld [vmem:[%s2470] sm:$0xff]
        %v2472 = vld [vmem:[%s2470 + $0x8] sm:$0xff]
        %v2473 = vld [vmem:[%s2470 + $0x10] sm:$0xff]
        %v2474 = vld [vmem:[%s2470 + $0x18] sm:$0xff]
        %v2475 = vld [vmem:[%s2470 + $0x20] sm:$0xff]
        %v2476 = vld [vmem:[%s2470 + $0x28] sm:$0xff]
        %v2477 = vld [vmem:[%s2470 + $0x30] sm:$0xff]
        %v2478 = vld [vmem:[%s2470 + $0x38] sm:$0xff]
        %2479 = vrot.lane.b32.xlu0 %v1542, 120
        %v2480 = vpop.permute.xlu0 %2479
        %2481 = vrot.lane.b32.xlu0 %v1543, 120
        %v2482 = vpop.permute.xlu0 %2481
        %2483 = vrot.lane.b32.xlu0 %v1544, 120
        %v2484 = vpop.permute.xlu0 %2483
        %2485 = vrot.lane.b32.xlu0 %v1545, 120
        %v2486 = vpop.permute.xlu0 %2485
        %2487 = vrot.lane.b32.xlu0 %v1542, 88
        %v2488 = vpop.permute.xlu0 %2487
        %2489 = vrot.lane.b32.xlu0 %v1543, 88
        %v2490 = vpop.permute.xlu0 %2489
        %2491 = vrot.lane.b32.xlu0 %v1544, 88
        %v2492 = vpop.permute.xlu0 %2491
        %2493 = vrot.lane.b32.xlu0 %v1545, 88
        %v2494 = vpop.permute.xlu0 %2493
        %v2496 = vsel %vm1578, %v2480, 0
        %v2499 = vsel %vm1578, %v2482, 0
        %v2502 = vsel %vm1578, %v2484, 0
        %v2505 = vsel %vm1578, %v2486, 0
        %v2508 = vsel %vm1578, %v2488, 0
        %v2511 = vsel %vm1578, %v2490, 0
        %v2514 = vsel %vm1578, %v2492, 0
        %v2517 = vsel %vm1578, %v2494, 0
        %2519 = vmatprep.subr.bf16.mxu0 0
        %2520 = vmatpush1.bf16.xpose.msra.mxu0 0
        %2521 = vmatprep.subr.bf16.mxu0 0
        %2522 = vmatpush1.bf16.xpose.msra.mxu0 0
        %2523 = vmatprep.subr.bf16.mxu0 0
        %2524 = vmatpush1.bf16.xpose.msra.mxu0 0
        %2525 = vmatprep.subr.bf16.mxu0 0
        %2526 = vmatpush1.bf16.xpose.msra.mxu0 0
        %2527 = vmatprep.subr.bf16.mxu0 0
        %2528 = vmatpush1.bf16.xpose.msra.mxu0 %v2517
        %2529 = vmatprep.subr.bf16.mxu0 0
        %2530 = vmatpush1.bf16.xpose.msra.mxu0 %v2514
        %2531 = vmatprep.subr.bf16.mxu0 0
        %2532 = vmatpush1.bf16.xpose.msra.mxu0 %v2511
        %2533 = vmatprep.subr.bf16.mxu0 0
        %2534 = vmatpush1.bf16.xpose.msra.mxu0 %v2508
        %2535 = vmatprep.subr.bf16.mxu0 0
        %2536 = vmatpush2.bf16.xpose.msra.mxu0 0
        %2537 = vmatprep.subr.bf16.mxu0 0
        %2538 = vmatpush2.bf16.xpose.msra.mxu0 0
        %2539 = vmatprep.subr.bf16.mxu0 0
        %2540 = vmatpush2.bf16.xpose.msra.mxu0 0
        %2541 = vmatprep.subr.bf16.mxu0 0
        %2542 = vmatpush2.bf16.xpose.msra.mxu0 0
        %2543 = vmatprep.subr.bf16.mxu0 0
        %2544 = vmatpush2.bf16.xpose.msra.mxu0 0
        %2545 = vmatprep.subr.bf16.mxu0 0
        %2546 = vmatpush2.bf16.xpose.msra.mxu0 0
        %2547 = vmatprep.subr.bf16.mxu0 0
        %2548 = vmatpush2.bf16.xpose.msra.mxu0 0
        %2549 = vmatprep.subr.bf16.mxu0 0
        %2550 = vmatpush2.bf16.xpose.msra.mxu0 0
        %2551 = vmatprep.mubr.bf16.mxu0 0
        %2552 = vmatmul.mubr.bf16.gmra.mxu0 %v2496
        %v2553 = vpop.f32.mrf.mxu0
        %v2554 = vadd.f32 %v2471, %v2553
        %v2555 = vpop.f32.mrf.mxu0
        %v2556 = vpop.f32.mrf.mxu0
        %v2557 = vadd.f32 %v2472, %v2556
        %v2558 = vpop.f32.mrf.mxu0
        %2559 = vmatprep.mubr.bf16.mxu0 0
        %2560 = vmatmul.mubr.bf16.gmra.mxu0 %v2499
        %v2561 = vpop.f32.mrf.mxu0
        %v2562 = vadd.f32 %v2473, %v2561
        %v2563 = vpop.f32.mrf.mxu0
        %v2564 = vpop.f32.mrf.mxu0
        %v2565 = vadd.f32 %v2474, %v2564
        %v2566 = vpop.f32.mrf.mxu0
        %2567 = vmatprep.mubr.bf16.mxu0 0
        %2568 = vmatmul.mubr.bf16.gmra.mxu0 %v2502
        %v2569 = vpop.f32.mrf.mxu0
        %v2570 = vadd.f32 %v2475, %v2569
        %v2571 = vpop.f32.mrf.mxu0
        %v2572 = vpop.f32.mrf.mxu0
        %v2573 = vadd.f32 %v2476, %v2572
        %v2574 = vpop.f32.mrf.mxu0
        %2575 = vmatprep.mubr.bf16.mxu0 0
        %2576 = vmatmul.mubr.bf16.gmra.mxu0 %v2505
        %v2577 = vpop.f32.mrf.mxu0
        %v2578 = vadd.f32 %v2477, %v2577
        %v2579 = vpop.f32.mrf.mxu0
        %v2580 = vpop.f32.mrf.mxu0
        %v2581 = vadd.f32 %v2478, %v2580
        %v2582 = vpop.f32.mrf.mxu0
        %2583 = vdwg.mxu0
        %2584 = vrot.lane.b32.xlu0 %v1546, 120
        %v2585 = vpop.permute.xlu0 %2584
        %2586 = vrot.lane.b32.xlu0 %v1547, 120
        %v2587 = vpop.permute.xlu0 %2586
        %2588 = vrot.lane.b32.xlu0 %v1548, 120
        %v2589 = vpop.permute.xlu0 %2588
        %2590 = vrot.lane.b32.xlu0 %v1549, 120
        %v2591 = vpop.permute.xlu0 %2590
        %2592 = vrot.lane.b32.xlu0 %v1546, 88
        %v2593 = vpop.permute.xlu0 %2592
        %2594 = vrot.lane.b32.xlu0 %v1547, 88
        %v2595 = vpop.permute.xlu0 %2594
        %2596 = vrot.lane.b32.xlu0 %v1548, 88
        %v2597 = vpop.permute.xlu0 %2596
        %2598 = vrot.lane.b32.xlu0 %v1549, 88
        %v2599 = vpop.permute.xlu0 %2598
        %v2601 = vsel %vm1578, %v2585, 0
        %v2604 = vsel %vm1578, %v2587, 0
        %v2607 = vsel %vm1578, %v2589, 0
        %v2610 = vsel %vm1578, %v2591, 0
        %v2613 = vsel %vm1578, %v2593, 0
        %v2616 = vsel %vm1578, %v2595, 0
        %v2619 = vsel %vm1578, %v2597, 0
        %v2622 = vsel %vm1578, %v2599, 0
        %2624 = vmatprep.subr.bf16.mxu0 0
        %2625 = vmatpush1.bf16.xpose.msra.mxu0 0
        %2626 = vmatprep.subr.bf16.mxu0 0
        %2627 = vmatpush1.bf16.xpose.msra.mxu0 0
        %2628 = vmatprep.subr.bf16.mxu0 0
        %2629 = vmatpush1.bf16.xpose.msra.mxu0 0
        %2630 = vmatprep.subr.bf16.mxu0 0
        %2631 = vmatpush1.bf16.xpose.msra.mxu0 0
        %2632 = vmatprep.subr.bf16.mxu0 0
        %2633 = vmatpush1.bf16.xpose.msra.mxu0 %v2622
        %2634 = vmatprep.subr.bf16.mxu0 0
        %2635 = vmatpush1.bf16.xpose.msra.mxu0 %v2619
        %2636 = vmatprep.subr.bf16.mxu0 0
        %2637 = vmatpush1.bf16.xpose.msra.mxu0 %v2616
        %2638 = vmatprep.subr.bf16.mxu0 0
        %2639 = vmatpush1.bf16.xpose.msra.mxu0 %v2613
        %2640 = vmatprep.subr.bf16.mxu0 0
        %2641 = vmatpush2.bf16.xpose.msra.mxu0 0
        %2642 = vmatprep.subr.bf16.mxu0 0
        %2643 = vmatpush2.bf16.xpose.msra.mxu0 0
        %2644 = vmatprep.subr.bf16.mxu0 0
        %2645 = vmatpush2.bf16.xpose.msra.mxu0 0
        %2646 = vmatprep.subr.bf16.mxu0 0
        %2647 = vmatpush2.bf16.xpose.msra.mxu0 0
        %2648 = vmatprep.subr.bf16.mxu0 0
        %2649 = vmatpush2.bf16.xpose.msra.mxu0 0
        %2650 = vmatprep.subr.bf16.mxu0 0
        %2651 = vmatpush2.bf16.xpose.msra.mxu0 0
        %2652 = vmatprep.subr.bf16.mxu0 0
        %2653 = vmatpush2.bf16.xpose.msra.mxu0 0
        %2654 = vmatprep.subr.bf16.mxu0 0
        %2655 = vmatpush2.bf16.xpose.msra.mxu0 0
        %2656 = vmatprep.mubr.bf16.mxu0 0
        %2657 = vmatmul.mubr.bf16.gmra.mxu0 %v2601
        %v2658 = vpop.f32.mrf.mxu0
        %v2659 = vadd.f32 %v2471, %v2658
        %v2660 = vpop.f32.mrf.mxu0
        %v2661 = vpop.f32.mrf.mxu0
        %v2662 = vadd.f32 %v2472, %v2661
        %v2663 = vpop.f32.mrf.mxu0
        %2664 = vmatprep.mubr.bf16.mxu0 0
        %2665 = vmatmul.mubr.bf16.gmra.mxu0 %v2604
        %v2666 = vpop.f32.mrf.mxu0
        %v2667 = vadd.f32 %v2473, %v2666
        %v2668 = vpop.f32.mrf.mxu0
        %v2669 = vpop.f32.mrf.mxu0
        %v2670 = vadd.f32 %v2474, %v2669
        %v2671 = vpop.f32.mrf.mxu0
        %2672 = vmatprep.mubr.bf16.mxu0 0
        %2673 = vmatmul.mubr.bf16.gmra.mxu0 %v2607
        %v2674 = vpop.f32.mrf.mxu0
        %v2675 = vadd.f32 %v2475, %v2674
        %v2676 = vpop.f32.mrf.mxu0
        %v2677 = vpop.f32.mrf.mxu0
        %v2678 = vadd.f32 %v2476, %v2677
        %v2679 = vpop.f32.mrf.mxu0
        %2680 = vmatprep.mubr.bf16.mxu0 0
        %2681 = vmatmul.mubr.bf16.gmra.mxu0 %v2610
        %v2682 = vpop.f32.mrf.mxu0
        %v2683 = vadd.f32 %v2477, %v2682
        %v2684 = vpop.f32.mrf.mxu0
        %v2685 = vpop.f32.mrf.mxu0
        %v2686 = vadd.f32 %v2478, %v2685
        %v2687 = vpop.f32.mrf.mxu0
        %2688 = vdwg.mxu0
        %v2689 = vsel %vm1769, %v2554, -inf
        %2690 = vmax.xlane.f32.xlu0 %v2689
        %v2691 = vpop.xlane.xlu0 %2690
        %v2692 = vsel %vm1769, %v2557, -inf
        %2693 = vmax.xlane.f32.xlu0 %v2692
        %v2694 = vpop.xlane.xlu0 %2693
        %v2695 = vsel %vm1769, %v2562, -inf
        %2696 = vmax.xlane.f32.xlu0 %v2695
        %v2697 = vpop.xlane.xlu0 %2696
        %v2698 = vsel %vm1769, %v2565, -inf
        %2699 = vmax.xlane.f32.xlu0 %v2698
        %v2700 = vpop.xlane.xlu0 %2699
        %v2701 = vsel %vm1769, %v2570, -inf
        %2702 = vmax.xlane.f32.xlu0 %v2701
        %v2703 = vpop.xlane.xlu0 %2702
        %v2704 = vsel %vm1769, %v2573, -inf
        %2705 = vmax.xlane.f32.xlu0 %v2704
        %v2706 = vpop.xlane.xlu0 %2705
        %v2707 = vsel %vm1769, %v2578, -inf
        %2708 = vmax.xlane.f32.xlu0 %v2707
        %v2709 = vpop.xlane.xlu0 %2708
        %v2710 = vsel %vm1769, %v2581, -inf
        %2711 = vmax.xlane.f32.xlu0 %v2710
        %v2712 = vpop.xlane.xlu0 %2711
        %v2713 = vsel %vm1769, %v2659, -inf
        %2714 = vmax.xlane.f32.xlu0 %v2713
        %v2715 = vpop.xlane.xlu0 %2714
        %v2716 = vsel %vm1769, %v2662, -inf
        %2717 = vmax.xlane.f32.xlu0 %v2716
        %v2718 = vpop.xlane.xlu0 %2717
        %v2719 = vsel %vm1769, %v2667, -inf
        %2720 = vmax.xlane.f32.xlu0 %v2719
        %v2721 = vpop.xlane.xlu0 %2720
        %v2722 = vsel %vm1769, %v2670, -inf
        %2723 = vmax.xlane.f32.xlu0 %v2722
        %v2724 = vpop.xlane.xlu0 %2723
        %v2725 = vsel %vm1769, %v2675, -inf
        %2726 = vmax.xlane.f32.xlu0 %v2725
        %v2727 = vpop.xlane.xlu0 %2726
        %v2728 = vsel %vm1769, %v2678, -inf
        %2729 = vmax.xlane.f32.xlu0 %v2728
        %v2730 = vpop.xlane.xlu0 %2729
        %v2731 = vsel %vm1769, %v2683, -inf
        %2732 = vmax.xlane.f32.xlu0 %v2731
        %v2733 = vpop.xlane.xlu0 %2732
        %v2734 = vsel %vm1769, %v2686, -inf
        %2735 = vmax.xlane.f32.xlu0 %v2734
        %v2736 = vpop.xlane.xlu0 %2735
        %v2737 = vsub.f32 %v2554, %v2691
        %v2738 = vsub.f32 %v2557, %v2694
        %v2739 = vsub.f32 %v2562, %v2697
        %v2740 = vsub.f32 %v2565, %v2700
        %v2741 = vsub.f32 %v2570, %v2703
        %v2742 = vsub.f32 %v2573, %v2706
        %v2743 = vsub.f32 %v2578, %v2709
        %v2744 = vsub.f32 %v2581, %v2712
        %v2745 = vsub.f32 %v2659, %v2715
        %v2746 = vsub.f32 %v2662, %v2718
        %v2747 = vsub.f32 %v2667, %v2721
        %v2748 = vsub.f32 %v2670, %v2724
        %v2749 = vsub.f32 %v2675, %v2727
        %v2750 = vsub.f32 %v2678, %v2730
        %v2751 = vsub.f32 %v2683, %v2733
        %v2752 = vsub.f32 %v2686, %v2736
        %v2753 = vmul.f32 %v2737, 1.442695
        %v2754 = vpow.pop %v2753
        %v2755 = vmul.f32 %v2738, 1.442695
        %v2756 = vpow.pop %v2755
        %v2757 = vmul.f32 %v2739, 1.442695
        %v2758 = vpow.pop %v2757
        %v2759 = vmul.f32 %v2740, 1.442695
        %v2760 = vpow.pop %v2759
        %v2761 = vmul.f32 %v2741, 1.442695
        %v2762 = vpow.pop %v2761
        %v2763 = vmul.f32 %v2742, 1.442695
        %v2764 = vpow.pop %v2763
        %v2765 = vmul.f32 %v2743, 1.442695
        %v2766 = vpow.pop %v2765
        %v2767 = vmul.f32 %v2744, 1.442695
        %v2768 = vpow.pop %v2767
        %v2769 = vmul.f32 %v2745, 1.442695
        %v2770 = vpow.pop %v2769
        %v2771 = vmul.f32 %v2746, 1.442695
        %v2772 = vpow.pop %v2771
        %v2773 = vmul.f32 %v2747, 1.442695
        %v2774 = vpow.pop %v2773
        %v2775 = vmul.f32 %v2748, 1.442695
        %v2776 = vpow.pop %v2775
        %v2777 = vmul.f32 %v2749, 1.442695
        %v2778 = vpow.pop %v2777
        %v2779 = vmul.f32 %v2750, 1.442695
        %v2780 = vpow.pop %v2779
        %v2781 = vmul.f32 %v2751, 1.442695
        %v2782 = vpow.pop %v2781
        %v2783 = vmul.f32 %v2752, 1.442695
        %v2784 = vpow.pop %v2783
        %v2785 = vsel %vm1769, %v2754, 0.0
        %2786 = vadd.xlane.f32.xlu0 %v2785
        %v2787 = vpop.xlane.xlu0 %2786
        %v2788 = vsel %vm1769, %v2756, 0.0
        %2789 = vadd.xlane.f32.xlu0 %v2788
        %v2790 = vpop.xlane.xlu0 %2789
        %v2791 = vsel %vm1769, %v2758, 0.0
        %2792 = vadd.xlane.f32.xlu0 %v2791
        %v2793 = vpop.xlane.xlu0 %2792
        %v2794 = vsel %vm1769, %v2760, 0.0
        %2795 = vadd.xlane.f32.xlu0 %v2794
        %v2796 = vpop.xlane.xlu0 %2795
        %v2797 = vsel %vm1769, %v2762, 0.0
        %2798 = vadd.xlane.f32.xlu0 %v2797
        %v2799 = vpop.xlane.xlu0 %2798
        %v2800 = vsel %vm1769, %v2764, 0.0
        %2801 = vadd.xlane.f32.xlu0 %v2800
        %v2802 = vpop.xlane.xlu0 %2801
        %v2803 = vsel %vm1769, %v2766, 0.0
        %2804 = vadd.xlane.f32.xlu0 %v2803
        %v2805 = vpop.xlane.xlu0 %2804
        %v2806 = vsel %vm1769, %v2768, 0.0
        %2807 = vadd.xlane.f32.xlu0 %v2806
        %v2808 = vpop.xlane.xlu0 %2807
        %v2809 = vsel %vm1769, %v2770, 0.0
        %2810 = vadd.xlane.f32.xlu0 %v2809
        %v2811 = vpop.xlane.xlu0 %2810
        %v2812 = vsel %vm1769, %v2772, 0.0
        %2813 = vadd.xlane.f32.xlu0 %v2812
        %v2814 = vpop.xlane.xlu0 %2813
        %v2815 = vsel %vm1769, %v2774, 0.0
        %2816 = vadd.xlane.f32.xlu0 %v2815
        %v2817 = vpop.xlane.xlu0 %2816
        %v2818 = vsel %vm1769, %v2776, 0.0
        %2819 = vadd.xlane.f32.xlu0 %v2818
        %v2820 = vpop.xlane.xlu0 %2819
        %v2821 = vsel %vm1769, %v2778, 0.0
        %2822 = vadd.xlane.f32.xlu0 %v2821
        %v2823 = vpop.xlane.xlu0 %2822
        %v2824 = vsel %vm1769, %v2780, 0.0
        %2825 = vadd.xlane.f32.xlu0 %v2824
        %v2826 = vpop.xlane.xlu0 %2825
        %v2827 = vsel %vm1769, %v2782, 0.0
        %2828 = vadd.xlane.f32.xlu0 %v2827
        %v2829 = vpop.xlane.xlu0 %2828
        %v2830 = vsel %vm1769, %v2784, 0.0
        %2831 = vadd.xlane.f32.xlu0 %v2830
        %v2832 = vpop.xlane.xlu0 %2831
        %v2833 = vrcp.pop %v2787
        %v2834 = vrcp.pop %v2790
        %v2835 = vrcp.pop %v2793
        %v2836 = vrcp.pop %v2796
        %v2837 = vrcp.pop %v2799
        %v2838 = vrcp.pop %v2802
        %v2839 = vrcp.pop %v2805
        %v2840 = vrcp.pop %v2808
        %v2841 = vrcp.pop %v2811
        %v2842 = vrcp.pop %v2814
        %v2843 = vrcp.pop %v2817
        %v2844 = vrcp.pop %v2820
        %v2845 = vrcp.pop %v2823
        %v2846 = vrcp.pop %v2826
        %v2847 = vrcp.pop %v2829
        %v2848 = vrcp.pop %v2832
        %v2849 = vmul.f32 %v2754, %v2833
        %v2850 = vmul.f32 %v2756, %v2834
        %v2851 = vmul.f32 %v2758, %v2835
        %v2852 = vmul.f32 %v2760, %v2836
        %v2853 = vmul.f32 %v2762, %v2837
        %v2854 = vmul.f32 %v2764, %v2838
        %v2855 = vmul.f32 %v2766, %v2839
        %v2856 = vmul.f32 %v2768, %v2840
        %v2857 = vmul.f32 %v2770, %v2841
        %v2858 = vmul.f32 %v2772, %v2842
        %v2859 = vmul.f32 %v2774, %v2843
        %v2860 = vmul.f32 %v2776, %v2844
        %v2861 = vmul.f32 %v2778, %v2845
        %v2862 = vmul.f32 %v2780, %v2846
        %v2863 = vmul.f32 %v2782, %v2847
        %v2864 = vmul.f32 %v2784, %v2848
        %v2865 = vsel %vm1769, %v2849, -inf
        %2866 = vmax.xlane.f32.xlu0 %v2865
        %v2867 = vpop.xlane.xlu0 %2866
        %v2868 = vsel %vm1769, %v2850, -inf
        %2869 = vmax.xlane.f32.xlu0 %v2868
        %v2870 = vpop.xlane.xlu0 %2869
        %v2871 = vsel %vm1769, %v2851, -inf
        %2872 = vmax.xlane.f32.xlu0 %v2871
        %v2873 = vpop.xlane.xlu0 %2872
        %v2874 = vsel %vm1769, %v2852, -inf
        %2875 = vmax.xlane.f32.xlu0 %v2874
        %v2876 = vpop.xlane.xlu0 %2875
        %v2877 = vsel %vm1769, %v2853, -inf
        %2878 = vmax.xlane.f32.xlu0 %v2877
        %v2879 = vpop.xlane.xlu0 %2878
        %v2880 = vsel %vm1769, %v2854, -inf
        %2881 = vmax.xlane.f32.xlu0 %v2880
        %v2882 = vpop.xlane.xlu0 %2881
        %v2883 = vsel %vm1769, %v2855, -inf
        %2884 = vmax.xlane.f32.xlu0 %v2883
        %v2885 = vpop.xlane.xlu0 %2884
        %v2886 = vsel %vm1769, %v2856, -inf
        %2887 = vmax.xlane.f32.xlu0 %v2886
        %v2888 = vpop.xlane.xlu0 %2887
        %v2889 = vsel %vm1769, %v2857, -inf
        %2890 = vmax.xlane.f32.xlu0 %v2889
        %v2891 = vpop.xlane.xlu0 %2890
        %v2892 = vsel %vm1769, %v2858, -inf
        %2893 = vmax.xlane.f32.xlu0 %v2892
        %v2894 = vpop.xlane.xlu0 %2893
        %v2895 = vsel %vm1769, %v2859, -inf
        %2896 = vmax.xlane.f32.xlu0 %v2895
        %v2897 = vpop.xlane.xlu0 %2896
        %v2898 = vsel %vm1769, %v2860, -inf
        %2899 = vmax.xlane.f32.xlu0 %v2898
        %v2900 = vpop.xlane.xlu0 %2899
        %v2901 = vsel %vm1769, %v2861, -inf
        %2902 = vmax.xlane.f32.xlu0 %v2901
        %v2903 = vpop.xlane.xlu0 %2902
        %v2904 = vsel %vm1769, %v2862, -inf
        %2905 = vmax.xlane.f32.xlu0 %v2904
        %v2906 = vpop.xlane.xlu0 %2905
        %v2907 = vsel %vm1769, %v2863, -inf
        %2908 = vmax.xlane.f32.xlu0 %v2907
        %v2909 = vpop.xlane.xlu0 %2908
        %v2910 = vsel %vm1769, %v2864, -inf
        %2911 = vmax.xlane.f32.xlu0 %v2910
        %v2912 = vpop.xlane.xlu0 %2911
        %v2913 = vsub.f32 %v2849, %v2867
        %v2914 = vsub.f32 %v2850, %v2870
        %v2915 = vsub.f32 %v2851, %v2873
        %v2916 = vsub.f32 %v2852, %v2876
        %v2917 = vsub.f32 %v2853, %v2879
        %v2918 = vsub.f32 %v2854, %v2882
        %v2919 = vsub.f32 %v2855, %v2885
        %v2920 = vsub.f32 %v2856, %v2888
        %v2921 = vsub.f32 %v2857, %v2891
        %v2922 = vsub.f32 %v2858, %v2894
        %v2923 = vsub.f32 %v2859, %v2897
        %v2924 = vsub.f32 %v2860, %v2900
        %v2925 = vsub.f32 %v2861, %v2903
        %v2926 = vsub.f32 %v2862, %v2906
        %v2927 = vsub.f32 %v2863, %v2909
        %v2928 = vsub.f32 %v2864, %v2912
        %v2929 = vmul.f32 %v2913, 1.442695
        %v2930 = vpow.pop %v2929
        %v2931 = vmul.f32 %v2914, 1.442695
        %v2932 = vpow.pop %v2931
        %v2933 = vmul.f32 %v2915, 1.442695
        %v2934 = vpow.pop %v2933
        %v2935 = vmul.f32 %v2916, 1.442695
        %v2936 = vpow.pop %v2935
        %v2937 = vmul.f32 %v2917, 1.442695
        %v2938 = vpow.pop %v2937
        %v2939 = vmul.f32 %v2918, 1.442695
        %v2940 = vpow.pop %v2939
        %v2941 = vmul.f32 %v2919, 1.442695
        %v2942 = vpow.pop %v2941
        %v2943 = vmul.f32 %v2920, 1.442695
        %v2944 = vpow.pop %v2943
        %v2945 = vmul.f32 %v2921, 1.442695
        %v2946 = vpow.pop %v2945
        %v2947 = vmul.f32 %v2922, 1.442695
        %v2948 = vpow.pop %v2947
        %v2949 = vmul.f32 %v2923, 1.442695
        %v2950 = vpow.pop %v2949
        %v2951 = vmul.f32 %v2924, 1.442695
        %v2952 = vpow.pop %v2951
        %v2953 = vmul.f32 %v2925, 1.442695
        %v2954 = vpow.pop %v2953
        %v2955 = vmul.f32 %v2926, 1.442695
        %v2956 = vpow.pop %v2955
        %v2957 = vmul.f32 %v2927, 1.442695
        %v2958 = vpow.pop %v2957
        %v2959 = vmul.f32 %v2928, 1.442695
        %v2960 = vpow.pop %v2959
        %v2961 = vsel %vm1769, %v2930, 0.0
        %2962 = vadd.xlane.f32.xlu0 %v2961
        %v2963 = vpop.xlane.xlu0 %2962
        %v2964 = vsel %vm1769, %v2932, 0.0
        %2965 = vadd.xlane.f32.xlu0 %v2964
        %v2966 = vpop.xlane.xlu0 %2965
        %v2967 = vsel %vm1769, %v2934, 0.0
        %2968 = vadd.xlane.f32.xlu0 %v2967
        %v2969 = vpop.xlane.xlu0 %2968
        %v2970 = vsel %vm1769, %v2936, 0.0
        %2971 = vadd.xlane.f32.xlu0 %v2970
        %v2972 = vpop.xlane.xlu0 %2971
        %v2973 = vsel %vm1769, %v2938, 0.0
        %2974 = vadd.xlane.f32.xlu0 %v2973
        %v2975 = vpop.xlane.xlu0 %2974
        %v2976 = vsel %vm1769, %v2940, 0.0
        %2977 = vadd.xlane.f32.xlu0 %v2976
        %v2978 = vpop.xlane.xlu0 %2977
        %v2979 = vsel %vm1769, %v2942, 0.0
        %2980 = vadd.xlane.f32.xlu0 %v2979
        %v2981 = vpop.xlane.xlu0 %2980
        %v2982 = vsel %vm1769, %v2944, 0.0
        %2983 = vadd.xlane.f32.xlu0 %v2982
        %v2984 = vpop.xlane.xlu0 %2983
        %v2985 = vsel %vm1769, %v2946, 0.0
        %2986 = vadd.xlane.f32.xlu0 %v2985
        %v2987 = vpop.xlane.xlu0 %2986
        %v2988 = vsel %vm1769, %v2948, 0.0
        %2989 = vadd.xlane.f32.xlu0 %v2988
        %v2990 = vpop.xlane.xlu0 %2989
        %v2991 = vsel %vm1769, %v2950, 0.0
        %2992 = vadd.xlane.f32.xlu0 %v2991
        %v2993 = vpop.xlane.xlu0 %2992
        %v2994 = vsel %vm1769, %v2952, 0.0
        %2995 = vadd.xlane.f32.xlu0 %v2994
        %v2996 = vpop.xlane.xlu0 %2995
        %v2997 = vsel %vm1769, %v2954, 0.0
        %2998 = vadd.xlane.f32.xlu0 %v2997
        %v2999 = vpop.xlane.xlu0 %2998
        %v3000 = vsel %vm1769, %v2956, 0.0
        %3001 = vadd.xlane.f32.xlu0 %v3000
        %v3002 = vpop.xlane.xlu0 %3001
        %v3003 = vsel %vm1769, %v2958, 0.0
        %3004 = vadd.xlane.f32.xlu0 %v3003
        %v3005 = vpop.xlane.xlu0 %3004
        %v3006 = vsel %vm1769, %v2960, 0.0
        %3007 = vadd.xlane.f32.xlu0 %v3006
        %v3008 = vpop.xlane.xlu0 %3007
        %v3009 = vrcp.pop %v2963
        %v3010 = vrcp.pop %v2966
        %v3011 = vrcp.pop %v2969
        %v3012 = vrcp.pop %v2972
        %v3013 = vrcp.pop %v2975
        %v3014 = vrcp.pop %v2978
        %v3015 = vrcp.pop %v2981
        %v3016 = vrcp.pop %v2984
        %v3017 = vrcp.pop %v2987
        %v3018 = vrcp.pop %v2990
        %v3019 = vrcp.pop %v2993
        %v3020 = vrcp.pop %v2996
        %v3021 = vrcp.pop %v2999
        %v3022 = vrcp.pop %v3002
        %v3023 = vrcp.pop %v3005
        %v3024 = vrcp.pop %v3008
        %v3025 = vmul.f32 %v2930, %v3009
        %v3026 = vmul.f32 %v2932, %v3010
        %v3027 = vmul.f32 %v2934, %v3011
        %v3028 = vmul.f32 %v2936, %v3012
        %v3029 = vmul.f32 %v2938, %v3013
        %v3030 = vmul.f32 %v2940, %v3014
        %v3031 = vmul.f32 %v2942, %v3015
        %v3032 = vmul.f32 %v2944, %v3016
        %v3033 = vmul.f32 %v2946, %v3017
        %v3034 = vmul.f32 %v2948, %v3018
        %v3035 = vmul.f32 %v2950, %v3019
        %v3036 = vmul.f32 %v2952, %v3020
        %v3037 = vmul.f32 %v2954, %v3021
        %v3038 = vmul.f32 %v2956, %v3022
        %v3039 = vmul.f32 %v2958, %v3023
        %v3040 = vmul.f32 %v2960, %v3024
        %v3041 = vpack.c.bf16 %v2850, %v2849
        %v3042 = vpack.c.bf16 %v2852, %v2851
        %v3043 = vpack.c.bf16 %v2854, %v2853
        %v3044 = vpack.c.bf16 %v2856, %v2855
        %v3045 = vpack.c.bf16 %v2858, %v2857
        %v3046 = vpack.c.bf16 %v2860, %v2859
        %v3047 = vpack.c.bf16 %v2862, %v2861
        %v3048 = vpack.c.bf16 %v2864, %v2863
        %3049 = vrot.lane.b32.xlu0 %v1542, 56
        %v3050 = vpop.permute.xlu0 %3049
        %3051 = vrot.lane.b32.xlu0 %v1543, 56
        %v3052 = vpop.permute.xlu0 %3051
        %3053 = vrot.lane.b32.xlu0 %v1544, 56
        %v3054 = vpop.permute.xlu0 %3053
        %3055 = vrot.lane.b32.xlu0 %v1545, 56
        %v3056 = vpop.permute.xlu0 %3055
        %v3062 = vsel %vm1769, %v3041, 0
        %v3065 = vsel %vm1769, %v3042, 0
        %v3068 = vsel %vm1769, %v3043, 0
        %v3071 = vsel %vm1769, %v3044, 0
        %3073 = vmatprep.subr.bf16.mxu0 0
        %3074 = vmatpush1.bf16.msra.mxu0 0
        %3075 = vmatprep.subr.bf16.mxu0 0
        %3076 = vmatpush1.bf16.msra.mxu0 0
        %3077 = vmatprep.subr.bf16.mxu0 0
        %3078 = vmatpush1.bf16.msra.mxu0 0
        %3079 = vmatprep.subr.bf16.mxu0 0
        %3080 = vmatpush1.bf16.msra.mxu0 0
        %3081 = vmatprep.subr.bf16.mxu0 0
        %3082 = vmatpush1.bf16.msra.mxu0 %v3056
        %3083 = vmatprep.subr.bf16.mxu0 0
        %3084 = vmatpush1.bf16.msra.mxu0 %v3054
        %3085 = vmatprep.subr.bf16.mxu0 0
        %3086 = vmatpush1.bf16.msra.mxu0 %v3052
        %3087 = vmatprep.subr.bf16.mxu0 0
        %3088 = vmatpush1.bf16.msra.mxu0 %v3050
        %3089 = vmatprep.subr.bf16.mxu0 0
        %3090 = vmatpush2.bf16.msra.mxu0 0
        %3091 = vmatprep.subr.bf16.mxu0 0
        %3092 = vmatpush2.bf16.msra.mxu0 0
        %3093 = vmatprep.subr.bf16.mxu0 0
        %3094 = vmatpush2.bf16.msra.mxu0 0
        %3095 = vmatprep.subr.bf16.mxu0 0
        %3096 = vmatpush2.bf16.msra.mxu0 0
        %3097 = vmatprep.subr.bf16.mxu0 0
        %3098 = vmatpush2.bf16.msra.mxu0 0
        %3099 = vmatprep.subr.bf16.mxu0 0
        %3100 = vmatpush2.bf16.msra.mxu0 0
        %3101 = vmatprep.subr.bf16.mxu0 0
        %3102 = vmatpush2.bf16.msra.mxu0 0
        %3103 = vmatprep.subr.bf16.mxu0 0
        %3104 = vmatpush2.bf16.msra.mxu0 0
        %3105 = vmatprep.mubr.bf16.mxu0 0
        %3106 = vmatmul.mubr.bf16.gmra.mxu0 %v3062
        %v3107 = vpop.f32.mrf.mxu0
        %v3108 = vadd.f32 0.0, %v3107
        %v3109 = vpop.f32.mrf.mxu0
        %v3110 = vpop.f32.mrf.mxu0
        %v3111 = vadd.f32 0.0, %v3110
        %v3112 = vpop.f32.mrf.mxu0
        %3113 = vmatprep.mubr.bf16.mxu0 0
        %3114 = vmatmul.mubr.bf16.gmra.mxu0 %v3065
        %v3115 = vpop.f32.mrf.mxu0
        %v3116 = vadd.f32 0.0, %v3115
        %v3117 = vpop.f32.mrf.mxu0
        %v3118 = vpop.f32.mrf.mxu0
        %v3119 = vadd.f32 0.0, %v3118
        %v3120 = vpop.f32.mrf.mxu0
        %3121 = vmatprep.mubr.bf16.mxu0 0
        %3122 = vmatmul.mubr.bf16.gmra.mxu0 %v3068
        %v3123 = vpop.f32.mrf.mxu0
        %v3124 = vadd.f32 0.0, %v3123
        %v3125 = vpop.f32.mrf.mxu0
        %v3126 = vpop.f32.mrf.mxu0
        %v3127 = vadd.f32 0.0, %v3126
        %v3128 = vpop.f32.mrf.mxu0
        %3129 = vmatprep.mubr.bf16.mxu0 0
        %3130 = vmatmul.mubr.bf16.gmra.mxu0 %v3071
        %v3131 = vpop.f32.mrf.mxu0
        %v3132 = vadd.f32 0.0, %v3131
        %v3133 = vpop.f32.mrf.mxu0
        %v3134 = vpop.f32.mrf.mxu0
        %v3135 = vadd.f32 0.0, %v3134
        %v3136 = vpop.f32.mrf.mxu0
        %3137 = vdwg.mxu0
        %3138 = vrot.lane.b32.xlu0 %v1546, 56
        %v3139 = vpop.permute.xlu0 %3138
        %3140 = vrot.lane.b32.xlu0 %v1547, 56
        %v3141 = vpop.permute.xlu0 %3140
        %3142 = vrot.lane.b32.xlu0 %v1548, 56
        %v3143 = vpop.permute.xlu0 %3142
        %3144 = vrot.lane.b32.xlu0 %v1549, 56
        %v3145 = vpop.permute.xlu0 %3144
        %v3151 = vsel %vm1769, %v3045, 0
        %v3154 = vsel %vm1769, %v3046, 0
        %v3157 = vsel %vm1769, %v3047, 0
        %v3160 = vsel %vm1769, %v3048, 0
        %3162 = vmatprep.subr.bf16.mxu0 0
        %3163 = vmatpush1.bf16.msra.mxu0 0
        %3164 = vmatprep.subr.bf16.mxu0 0
        %3165 = vmatpush1.bf16.msra.mxu0 0
        %3166 = vmatprep.subr.bf16.mxu0 0
        %3167 = vmatpush1.bf16.msra.mxu0 0
        %3168 = vmatprep.subr.bf16.mxu0 0
        %3169 = vmatpush1.bf16.msra.mxu0 0
        %3170 = vmatprep.subr.bf16.mxu0 0
        %3171 = vmatpush1.bf16.msra.mxu0 %v3145
        %3172 = vmatprep.subr.bf16.mxu0 0
        %3173 = vmatpush1.bf16.msra.mxu0 %v3143
        %3174 = vmatprep.subr.bf16.mxu0 0
        %3175 = vmatpush1.bf16.msra.mxu0 %v3141
        %3176 = vmatprep.subr.bf16.mxu0 0
        %3177 = vmatpush1.bf16.msra.mxu0 %v3139
        %3178 = vmatprep.subr.bf16.mxu0 0
        %3179 = vmatpush2.bf16.msra.mxu0 0
        %3180 = vmatprep.subr.bf16.mxu0 0
        %3181 = vmatpush2.bf16.msra.mxu0 0
        %3182 = vmatprep.subr.bf16.mxu0 0
        %3183 = vmatpush2.bf16.msra.mxu0 0
        %3184 = vmatprep.subr.bf16.mxu0 0
        %3185 = vmatpush2.bf16.msra.mxu0 0
        %3186 = vmatprep.subr.bf16.mxu0 0
        %3187 = vmatpush2.bf16.msra.mxu0 0
        %3188 = vmatprep.subr.bf16.mxu0 0
        %3189 = vmatpush2.bf16.msra.mxu0 0
        %3190 = vmatprep.subr.bf16.mxu0 0
        %3191 = vmatpush2.bf16.msra.mxu0 0
        %3192 = vmatprep.subr.bf16.mxu0 0
        %3193 = vmatpush2.bf16.msra.mxu0 0
        %3194 = vmatprep.mubr.bf16.mxu0 0
        %3195 = vmatmul.mubr.bf16.gmra.mxu0 %v3151
        %v3196 = vpop.f32.mrf.mxu0
        %v3197 = vadd.f32 0.0, %v3196
        %v3198 = vpop.f32.mrf.mxu0
        %v3199 = vpop.f32.mrf.mxu0
        %v3200 = vadd.f32 0.0, %v3199
        %v3201 = vpop.f32.mrf.mxu0
        %3202 = vmatprep.mubr.bf16.mxu0 0
        %3203 = vmatmul.mubr.bf16.gmra.mxu0 %v3154
        %v3204 = vpop.f32.mrf.mxu0
        %v3205 = vadd.f32 0.0, %v3204
        %v3206 = vpop.f32.mrf.mxu0
        %v3207 = vpop.f32.mrf.mxu0
        %v3208 = vadd.f32 0.0, %v3207
        %v3209 = vpop.f32.mrf.mxu0
        %3210 = vmatprep.mubr.bf16.mxu0 0
        %3211 = vmatmul.mubr.bf16.gmra.mxu0 %v3157
        %v3212 = vpop.f32.mrf.mxu0
        %v3213 = vadd.f32 0.0, %v3212
        %v3214 = vpop.f32.mrf.mxu0
        %v3215 = vpop.f32.mrf.mxu0
        %v3216 = vadd.f32 0.0, %v3215
        %v3217 = vpop.f32.mrf.mxu0
        %3218 = vmatprep.mubr.bf16.mxu0 0
        %3219 = vmatmul.mubr.bf16.gmra.mxu0 %v3160
        %v3220 = vpop.f32.mrf.mxu0
        %v3221 = vadd.f32 0.0, %v3220
        %v3222 = vpop.f32.mrf.mxu0
        %v3223 = vpop.f32.mrf.mxu0
        %v3224 = vadd.f32 0.0, %v3223
        %v3225 = vpop.f32.mrf.mxu0
        %3226 = vdwg.mxu0
        %v3227 = vpack.c.bf16 %v3026, %v3025
        %v3228 = vpack.c.bf16 %v3028, %v3027
        %v3229 = vpack.c.bf16 %v3030, %v3029
        %v3230 = vpack.c.bf16 %v3032, %v3031
        %v3231 = vpack.c.bf16 %v3034, %v3033
        %v3232 = vpack.c.bf16 %v3036, %v3035
        %v3233 = vpack.c.bf16 %v3038, %v3037
        %v3234 = vpack.c.bf16 %v3040, %v3039
        %3239 = vrot.lane.b32.xlu0 %v1550, 120
        %v3240 = vpop.permute.xlu0 %3239
        %3241 = vrot.lane.b32.xlu0 %v1551, 120
        %v3242 = vpop.permute.xlu0 %3241
        %3243 = vrot.lane.b32.xlu0 %v1552, 120
        %v3244 = vpop.permute.xlu0 %3243
        %3245 = vrot.lane.b32.xlu0 %v1553, 120
        %v3246 = vpop.permute.xlu0 %3245
        %v3252 = vsel %vm1769, %v3227, 0
        %v3255 = vsel %vm1769, %v3228, 0
        %v3258 = vsel %vm1769, %v3229, 0
        %v3261 = vsel %vm1769, %v3230, 0
        %3263 = vmatprep.subr.bf16.mxu0 0
        %3264 = vmatpush1.bf16.msra.mxu0 0
        %3265 = vmatprep.subr.bf16.mxu0 0
        %3266 = vmatpush1.bf16.msra.mxu0 0
        %3267 = vmatprep.subr.bf16.mxu0 0
        %3268 = vmatpush1.bf16.msra.mxu0 0
        %3269 = vmatprep.subr.bf16.mxu0 0
        %3270 = vmatpush1.bf16.msra.mxu0 0
        %3271 = vmatprep.subr.bf16.mxu0 0
        %3272 = vmatpush1.bf16.msra.mxu0 %v3246
        %3273 = vmatprep.subr.bf16.mxu0 0
        %3274 = vmatpush1.bf16.msra.mxu0 %v3244
        %3275 = vmatprep.subr.bf16.mxu0 0
        %3276 = vmatpush1.bf16.msra.mxu0 %v3242
        %3277 = vmatprep.subr.bf16.mxu0 0
        %3278 = vmatpush1.bf16.msra.mxu0 %v3240
        %3279 = vmatprep.subr.bf16.mxu0 0
        %3280 = vmatpush2.bf16.msra.mxu0 0
        %3281 = vmatprep.subr.bf16.mxu0 0
        %3282 = vmatpush2.bf16.msra.mxu0 0
        %3283 = vmatprep.subr.bf16.mxu0 0
        %3284 = vmatpush2.bf16.msra.mxu0 0
        %3285 = vmatprep.subr.bf16.mxu0 0
        %3286 = vmatpush2.bf16.msra.mxu0 0
        %3287 = vmatprep.subr.bf16.mxu0 0
        %3288 = vmatpush2.bf16.msra.mxu0 0
        %3289 = vmatprep.subr.bf16.mxu0 0
        %3290 = vmatpush2.bf16.msra.mxu0 0
        %3291 = vmatprep.subr.bf16.mxu0 0
        %3292 = vmatpush2.bf16.msra.mxu0 0
        %3293 = vmatprep.subr.bf16.mxu0 0
        %3294 = vmatpush2.bf16.msra.mxu0 0
        %3295 = vmatprep.mubr.bf16.mxu0 0
        %3296 = vmatmul.mubr.bf16.gmra.mxu0 %v3252
        %v3297 = vpop.f32.mrf.mxu0
        %v3298 = vadd.f32 0.0, %v3297
        %v3299 = vpop.f32.mrf.mxu0
        %v3300 = vpop.f32.mrf.mxu0
        %v3301 = vadd.f32 0.0, %v3300
        %v3302 = vpop.f32.mrf.mxu0
        %3303 = vmatprep.mubr.bf16.mxu0 0
        %3304 = vmatmul.mubr.bf16.gmra.mxu0 %v3255
        %v3305 = vpop.f32.mrf.mxu0
        %v3306 = vadd.f32 0.0, %v3305
        %v3307 = vpop.f32.mrf.mxu0
        %v3308 = vpop.f32.mrf.mxu0
        %v3309 = vadd.f32 0.0, %v3308
        %v3310 = vpop.f32.mrf.mxu0
        %3311 = vmatprep.mubr.bf16.mxu0 0
        %3312 = vmatmul.mubr.bf16.gmra.mxu0 %v3258
        %v3313 = vpop.f32.mrf.mxu0
        %v3314 = vadd.f32 0.0, %v3313
        %v3315 = vpop.f32.mrf.mxu0
        %v3316 = vpop.f32.mrf.mxu0
        %v3317 = vadd.f32 0.0, %v3316
        %v3318 = vpop.f32.mrf.mxu0
        %3319 = vmatprep.mubr.bf16.mxu0 0
        %3320 = vmatmul.mubr.bf16.gmra.mxu0 %v3261
        %v3321 = vpop.f32.mrf.mxu0
        %v3322 = vadd.f32 0.0, %v3321
        %v3323 = vpop.f32.mrf.mxu0
        %v3324 = vpop.f32.mrf.mxu0
        %v3325 = vadd.f32 0.0, %v3324
        %v3326 = vpop.f32.mrf.mxu0
        %3327 = vdwg.mxu0
        %3332 = vrot.lane.b32.xlu0 %v1554, 120
        %v3333 = vpop.permute.xlu0 %3332
        %3334 = vrot.lane.b32.xlu0 %v1555, 120
        %v3335 = vpop.permute.xlu0 %3334
        %3336 = vrot.lane.b32.xlu0 %v1556, 120
        %v3337 = vpop.permute.xlu0 %3336
        %3338 = vrot.lane.b32.xlu0 %v1557, 120
        %v3339 = vpop.permute.xlu0 %3338
        %v3345 = vsel %vm1769, %v3231, 0
        %v3348 = vsel %vm1769, %v3232, 0
        %v3351 = vsel %vm1769, %v3233, 0
        %v3354 = vsel %vm1769, %v3234, 0
        %3356 = vmatprep.subr.bf16.mxu0 0
        %3357 = vmatpush1.bf16.msra.mxu0 0
        %3358 = vmatprep.subr.bf16.mxu0 0
        %3359 = vmatpush1.bf16.msra.mxu0 0
        %3360 = vmatprep.subr.bf16.mxu0 0
        %3361 = vmatpush1.bf16.msra.mxu0 0
        %3362 = vmatprep.subr.bf16.mxu0 0
        %3363 = vmatpush1.bf16.msra.mxu0 0
        %3364 = vmatprep.subr.bf16.mxu0 0
        %3365 = vmatpush1.bf16.msra.mxu0 %v3339
        %3366 = vmatprep.subr.bf16.mxu0 0
        %3367 = vmatpush1.bf16.msra.mxu0 %v3337
        %3368 = vmatprep.subr.bf16.mxu0 0
        %3369 = vmatpush1.bf16.msra.mxu0 %v3335
        %3370 = vmatprep.subr.bf16.mxu0 0
        %3371 = vmatpush1.bf16.msra.mxu0 %v3333
        %3372 = vmatprep.subr.bf16.mxu0 0
        %3373 = vmatpush2.bf16.msra.mxu0 0
        %3374 = vmatprep.subr.bf16.mxu0 0
        %3375 = vmatpush2.bf16.msra.mxu0 0
        %3376 = vmatprep.subr.bf16.mxu0 0
        %3377 = vmatpush2.bf16.msra.mxu0 0
        %3378 = vmatprep.subr.bf16.mxu0 0
        %3379 = vmatpush2.bf16.msra.mxu0 0
        %3380 = vmatprep.subr.bf16.mxu0 0
        %3381 = vmatpush2.bf16.msra.mxu0 0
        %3382 = vmatprep.subr.bf16.mxu0 0
        %3383 = vmatpush2.bf16.msra.mxu0 0
        %3384 = vmatprep.subr.bf16.mxu0 0
        %3385 = vmatpush2.bf16.msra.mxu0 0
        %3386 = vmatprep.subr.bf16.mxu0 0
        %3387 = vmatpush2.bf16.msra.mxu0 0
        %3388 = vmatprep.mubr.bf16.mxu0 0
        %3389 = vmatmul.mubr.bf16.gmra.mxu0 %v3345
        %v3390 = vpop.f32.mrf.mxu0
        %v3391 = vadd.f32 0.0, %v3390
        %v3392 = vpop.f32.mrf.mxu0
        %v3393 = vpop.f32.mrf.mxu0
        %v3394 = vadd.f32 0.0, %v3393
        %v3395 = vpop.f32.mrf.mxu0
        %3396 = vmatprep.mubr.bf16.mxu0 0
        %3397 = vmatmul.mubr.bf16.gmra.mxu0 %v3348
        %v3398 = vpop.f32.mrf.mxu0
        %v3399 = vadd.f32 0.0, %v3398
        %v3400 = vpop.f32.mrf.mxu0
        %v3401 = vpop.f32.mrf.mxu0
        %v3402 = vadd.f32 0.0, %v3401
        %v3403 = vpop.f32.mrf.mxu0
        %3404 = vmatprep.mubr.bf16.mxu0 0
        %3405 = vmatmul.mubr.bf16.gmra.mxu0 %v3351
        %v3406 = vpop.f32.mrf.mxu0
        %v3407 = vadd.f32 0.0, %v3406
        %v3408 = vpop.f32.mrf.mxu0
        %v3409 = vpop.f32.mrf.mxu0
        %v3410 = vadd.f32 0.0, %v3409
        %v3411 = vpop.f32.mrf.mxu0
        %3412 = vmatprep.mubr.bf16.mxu0 0
        %3413 = vmatmul.mubr.bf16.gmra.mxu0 %v3354
        %v3414 = vpop.f32.mrf.mxu0
        %v3415 = vadd.f32 0.0, %v3414
        %v3416 = vpop.f32.mrf.mxu0
        %v3417 = vpop.f32.mrf.mxu0
        %v3418 = vadd.f32 0.0, %v3417
        %v3419 = vpop.f32.mrf.mxu0
        %3420 = vdwg.mxu0
        %s3421 = scalar_lea.vmem %s12, 128
        %v3422 = vld [vmem:[%s3421] sm:$0xff]
        %v3423 = vld [vmem:[%s3421 + $0x8] sm:$0xff]
        %v3424 = vld [vmem:[%s3421 + $0x10] sm:$0xff]
        %v3425 = vld [vmem:[%s3421 + $0x18] sm:$0xff]
        %v3426 = vld [vmem:[%s3421 + $0x20] sm:$0xff]
        %v3427 = vld [vmem:[%s3421 + $0x28] sm:$0xff]
        %v3428 = vld [vmem:[%s3421 + $0x30] sm:$0xff]
        %v3429 = vld [vmem:[%s3421 + $0x38] sm:$0xff]
        %3430 = vrot.lane.b32.xlu0 %v1542, 112
        %v3431 = vpop.permute.xlu0 %3430
        %3432 = vrot.lane.b32.xlu0 %v1543, 112
        %v3433 = vpop.permute.xlu0 %3432
        %3434 = vrot.lane.b32.xlu0 %v1544, 112
        %v3435 = vpop.permute.xlu0 %3434
        %3436 = vrot.lane.b32.xlu0 %v1545, 112
        %v3437 = vpop.permute.xlu0 %3436
        %3438 = vrot.lane.b32.xlu0 %v1542, 80
        %v3439 = vpop.permute.xlu0 %3438
        %3440 = vrot.lane.b32.xlu0 %v1543, 80
        %v3441 = vpop.permute.xlu0 %3440
        %3442 = vrot.lane.b32.xlu0 %v1544, 80
        %v3443 = vpop.permute.xlu0 %3442
        %3444 = vrot.lane.b32.xlu0 %v1545, 80
        %v3445 = vpop.permute.xlu0 %3444
        %v3447 = vsel %vm1578, %v3431, 0
        %v3450 = vsel %vm1578, %v3433, 0
        %v3453 = vsel %vm1578, %v3435, 0
        %v3456 = vsel %vm1578, %v3437, 0
        %v3459 = vsel %vm1578, %v3439, 0
        %v3462 = vsel %vm1578, %v3441, 0
        %v3465 = vsel %vm1578, %v3443, 0
        %v3468 = vsel %vm1578, %v3445, 0
        %3470 = vmatprep.subr.bf16.mxu0 0
        %3471 = vmatpush1.bf16.xpose.msra.mxu0 0
        %3472 = vmatprep.subr.bf16.mxu0 0
        %3473 = vmatpush1.bf16.xpose.msra.mxu0 0
        %3474 = vmatprep.subr.bf16.mxu0 0
        %3475 = vmatpush1.bf16.xpose.msra.mxu0 0
        %3476 = vmatprep.subr.bf16.mxu0 0
        %3477 = vmatpush1.bf16.xpose.msra.mxu0 0
        %3478 = vmatprep.subr.bf16.mxu0 0
        %3479 = vmatpush1.bf16.xpose.msra.mxu0 %v3468
        %3480 = vmatprep.subr.bf16.mxu0 0
        %3481 = vmatpush1.bf16.xpose.msra.mxu0 %v3465
        %3482 = vmatprep.subr.bf16.mxu0 0
        %3483 = vmatpush1.bf16.xpose.msra.mxu0 %v3462
        %3484 = vmatprep.subr.bf16.mxu0 0
        %3485 = vmatpush1.bf16.xpose.msra.mxu0 %v3459
        %3486 = vmatprep.subr.bf16.mxu0 0
        %3487 = vmatpush2.bf16.xpose.msra.mxu0 0
        %3488 = vmatprep.subr.bf16.mxu0 0
        %3489 = vmatpush2.bf16.xpose.msra.mxu0 0
        %3490 = vmatprep.subr.bf16.mxu0 0
        %3491 = vmatpush2.bf16.xpose.msra.mxu0 0
        %3492 = vmatprep.subr.bf16.mxu0 0
        %3493 = vmatpush2.bf16.xpose.msra.mxu0 0
        %3494 = vmatprep.subr.bf16.mxu0 0
        %3495 = vmatpush2.bf16.xpose.msra.mxu0 0
        %3496 = vmatprep.subr.bf16.mxu0 0
        %3497 = vmatpush2.bf16.xpose.msra.mxu0 0
        %3498 = vmatprep.subr.bf16.mxu0 0
        %3499 = vmatpush2.bf16.xpose.msra.mxu0 0
        %3500 = vmatprep.subr.bf16.mxu0 0
        %3501 = vmatpush2.bf16.xpose.msra.mxu0 0
        %3502 = vmatprep.mubr.bf16.mxu0 0
        %3503 = vmatmul.mubr.bf16.gmra.mxu0 %v3447
        %v3504 = vpop.f32.mrf.mxu0
        %v3505 = vadd.f32 %v3422, %v3504
        %v3506 = vpop.f32.mrf.mxu0
        %v3507 = vpop.f32.mrf.mxu0
        %v3508 = vadd.f32 %v3423, %v3507
        %v3509 = vpop.f32.mrf.mxu0
        %3510 = vmatprep.mubr.bf16.mxu0 0
        %3511 = vmatmul.mubr.bf16.gmra.mxu0 %v3450
        %v3512 = vpop.f32.mrf.mxu0
        %v3513 = vadd.f32 %v3424, %v3512
        %v3514 = vpop.f32.mrf.mxu0
        %v3515 = vpop.f32.mrf.mxu0
        %v3516 = vadd.f32 %v3425, %v3515
        %v3517 = vpop.f32.mrf.mxu0
        %3518 = vmatprep.mubr.bf16.mxu0 0
        %3519 = vmatmul.mubr.bf16.gmra.mxu0 %v3453
        %v3520 = vpop.f32.mrf.mxu0
        %v3521 = vadd.f32 %v3426, %v3520
        %v3522 = vpop.f32.mrf.mxu0
        %v3523 = vpop.f32.mrf.mxu0
        %v3524 = vadd.f32 %v3427, %v3523
        %v3525 = vpop.f32.mrf.mxu0
        %3526 = vmatprep.mubr.bf16.mxu0 0
        %3527 = vmatmul.mubr.bf16.gmra.mxu0 %v3456
        %v3528 = vpop.f32.mrf.mxu0
        %v3529 = vadd.f32 %v3428, %v3528
        %v3530 = vpop.f32.mrf.mxu0
        %v3531 = vpop.f32.mrf.mxu0
        %v3532 = vadd.f32 %v3429, %v3531
        %v3533 = vpop.f32.mrf.mxu0
        %3534 = vdwg.mxu0
        %3535 = vrot.lane.b32.xlu0 %v1546, 112
        %v3536 = vpop.permute.xlu0 %3535
        %3537 = vrot.lane.b32.xlu0 %v1547, 112
        %v3538 = vpop.permute.xlu0 %3537
        %3539 = vrot.lane.b32.xlu0 %v1548, 112
        %v3540 = vpop.permute.xlu0 %3539
        %3541 = vrot.lane.b32.xlu0 %v1549, 112
        %v3542 = vpop.permute.xlu0 %3541
        %3543 = vrot.lane.b32.xlu0 %v1546, 80
        %v3544 = vpop.permute.xlu0 %3543
        %3545 = vrot.lane.b32.xlu0 %v1547, 80
        %v3546 = vpop.permute.xlu0 %3545
        %3547 = vrot.lane.b32.xlu0 %v1548, 80
        %v3548 = vpop.permute.xlu0 %3547
        %3549 = vrot.lane.b32.xlu0 %v1549, 80
        %v3550 = vpop.permute.xlu0 %3549
        %v3552 = vsel %vm1578, %v3536, 0
        %v3555 = vsel %vm1578, %v3538, 0
        %v3558 = vsel %vm1578, %v3540, 0
        %v3561 = vsel %vm1578, %v3542, 0
        %v3564 = vsel %vm1578, %v3544, 0
        %v3567 = vsel %vm1578, %v3546, 0
        %v3570 = vsel %vm1578, %v3548, 0
        %v3573 = vsel %vm1578, %v3550, 0
        %3575 = vmatprep.subr.bf16.mxu0 0
        %3576 = vmatpush1.bf16.xpose.msra.mxu0 0
        %3577 = vmatprep.subr.bf16.mxu0 0
        %3578 = vmatpush1.bf16.xpose.msra.mxu0 0
        %3579 = vmatprep.subr.bf16.mxu0 0
        %3580 = vmatpush1.bf16.xpose.msra.mxu0 0
        %3581 = vmatprep.subr.bf16.mxu0 0
        %3582 = vmatpush1.bf16.xpose.msra.mxu0 0
        %3583 = vmatprep.subr.bf16.mxu0 0
        %3584 = vmatpush1.bf16.xpose.msra.mxu0 %v3573
        %3585 = vmatprep.subr.bf16.mxu0 0
        %3586 = vmatpush1.bf16.xpose.msra.mxu0 %v3570
        %3587 = vmatprep.subr.bf16.mxu0 0
        %3588 = vmatpush1.bf16.xpose.msra.mxu0 %v3567
        %3589 = vmatprep.subr.bf16.mxu0 0
        %3590 = vmatpush1.bf16.xpose.msra.mxu0 %v3564
        %3591 = vmatprep.subr.bf16.mxu0 0
        %3592 = vmatpush2.bf16.xpose.msra.mxu0 0
        %3593 = vmatprep.subr.bf16.mxu0 0
        %3594 = vmatpush2.bf16.xpose.msra.mxu0 0
        %3595 = vmatprep.subr.bf16.mxu0 0
        %3596 = vmatpush2.bf16.xpose.msra.mxu0 0
        %3597 = vmatprep.subr.bf16.mxu0 0
        %3598 = vmatpush2.bf16.xpose.msra.mxu0 0
        %3599 = vmatprep.subr.bf16.mxu0 0
        %3600 = vmatpush2.bf16.xpose.msra.mxu0 0
        %3601 = vmatprep.subr.bf16.mxu0 0
        %3602 = vmatpush2.bf16.xpose.msra.mxu0 0
        %3603 = vmatprep.subr.bf16.mxu0 0
        %3604 = vmatpush2.bf16.xpose.msra.mxu0 0
        %3605 = vmatprep.subr.bf16.mxu0 0
        %3606 = vmatpush2.bf16.xpose.msra.mxu0 0
        %3607 = vmatprep.mubr.bf16.mxu0 0
        %3608 = vmatmul.mubr.bf16.gmra.mxu0 %v3552
        %v3609 = vpop.f32.mrf.mxu0
        %v3610 = vadd.f32 %v3422, %v3609
        %v3611 = vpop.f32.mrf.mxu0
        %v3612 = vpop.f32.mrf.mxu0
        %v3613 = vadd.f32 %v3423, %v3612
        %v3614 = vpop.f32.mrf.mxu0
        %3615 = vmatprep.mubr.bf16.mxu0 0
        %3616 = vmatmul.mubr.bf16.gmra.mxu0 %v3555
        %v3617 = vpop.f32.mrf.mxu0
        %v3618 = vadd.f32 %v3424, %v3617
        %v3619 = vpop.f32.mrf.mxu0
        %v3620 = vpop.f32.mrf.mxu0
        %v3621 = vadd.f32 %v3425, %v3620
        %v3622 = vpop.f32.mrf.mxu0
        %3623 = vmatprep.mubr.bf16.mxu0 0
        %3624 = vmatmul.mubr.bf16.gmra.mxu0 %v3558
        %v3625 = vpop.f32.mrf.mxu0
        %v3626 = vadd.f32 %v3426, %v3625
        %v3627 = vpop.f32.mrf.mxu0
        %v3628 = vpop.f32.mrf.mxu0
        %v3629 = vadd.f32 %v3427, %v3628
        %v3630 = vpop.f32.mrf.mxu0
        %3631 = vmatprep.mubr.bf16.mxu0 0
        %3632 = vmatmul.mubr.bf16.gmra.mxu0 %v3561
        %v3633 = vpop.f32.mrf.mxu0
        %v3634 = vadd.f32 %v3428, %v3633
        %v3635 = vpop.f32.mrf.mxu0
        %v3636 = vpop.f32.mrf.mxu0
        %v3637 = vadd.f32 %v3429, %v3636
        %v3638 = vpop.f32.mrf.mxu0
        %3639 = vdwg.mxu0
        %v3640 = vsel %vm1769, %v3505, -inf
        %3641 = vmax.xlane.f32.xlu0 %v3640
        %v3642 = vpop.xlane.xlu0 %3641
        %v3643 = vsel %vm1769, %v3508, -inf
        %3644 = vmax.xlane.f32.xlu0 %v3643
        %v3645 = vpop.xlane.xlu0 %3644
        %v3646 = vsel %vm1769, %v3513, -inf
        %3647 = vmax.xlane.f32.xlu0 %v3646
        %v3648 = vpop.xlane.xlu0 %3647
        %v3649 = vsel %vm1769, %v3516, -inf
        %3650 = vmax.xlane.f32.xlu0 %v3649
        %v3651 = vpop.xlane.xlu0 %3650
        %v3652 = vsel %vm1769, %v3521, -inf
        %3653 = vmax.xlane.f32.xlu0 %v3652
        %v3654 = vpop.xlane.xlu0 %3653
        %v3655 = vsel %vm1769, %v3524, -inf
        %3656 = vmax.xlane.f32.xlu0 %v3655
        %v3657 = vpop.xlane.xlu0 %3656
        %v3658 = vsel %vm1769, %v3529, -inf
        %3659 = vmax.xlane.f32.xlu0 %v3658
        %v3660 = vpop.xlane.xlu0 %3659
        %v3661 = vsel %vm1769, %v3532, -inf
        %3662 = vmax.xlane.f32.xlu0 %v3661
        %v3663 = vpop.xlane.xlu0 %3662
        %v3664 = vsel %vm1769, %v3610, -inf
        %3665 = vmax.xlane.f32.xlu0 %v3664
        %v3666 = vpop.xlane.xlu0 %3665
        %v3667 = vsel %vm1769, %v3613, -inf
        %3668 = vmax.xlane.f32.xlu0 %v3667
        %v3669 = vpop.xlane.xlu0 %3668
        %v3670 = vsel %vm1769, %v3618, -inf
        %3671 = vmax.xlane.f32.xlu0 %v3670
        %v3672 = vpop.xlane.xlu0 %3671
        %v3673 = vsel %vm1769, %v3621, -inf
        %3674 = vmax.xlane.f32.xlu0 %v3673
        %v3675 = vpop.xlane.xlu0 %3674
        %v3676 = vsel %vm1769, %v3626, -inf
        %3677 = vmax.xlane.f32.xlu0 %v3676
        %v3678 = vpop.xlane.xlu0 %3677
        %v3679 = vsel %vm1769, %v3629, -inf
        %3680 = vmax.xlane.f32.xlu0 %v3679
        %v3681 = vpop.xlane.xlu0 %3680
        %v3682 = vsel %vm1769, %v3634, -inf
        %3683 = vmax.xlane.f32.xlu0 %v3682
        %v3684 = vpop.xlane.xlu0 %3683
        %v3685 = vsel %vm1769, %v3637, -inf
        %3686 = vmax.xlane.f32.xlu0 %v3685
        %v3687 = vpop.xlane.xlu0 %3686
        %v3688 = vsub.f32 %v3505, %v3642
        %v3689 = vsub.f32 %v3508, %v3645
        %v3690 = vsub.f32 %v3513, %v3648
        %v3691 = vsub.f32 %v3516, %v3651
        %v3692 = vsub.f32 %v3521, %v3654
        %v3693 = vsub.f32 %v3524, %v3657
        %v3694 = vsub.f32 %v3529, %v3660
        %v3695 = vsub.f32 %v3532, %v3663
        %v3696 = vsub.f32 %v3610, %v3666
        %v3697 = vsub.f32 %v3613, %v3669
        %v3698 = vsub.f32 %v3618, %v3672
        %v3699 = vsub.f32 %v3621, %v3675
        %v3700 = vsub.f32 %v3626, %v3678
        %v3701 = vsub.f32 %v3629, %v3681
        %v3702 = vsub.f32 %v3634, %v3684
        %v3703 = vsub.f32 %v3637, %v3687
        %v3704 = vmul.f32 %v3688, 1.442695
        %v3705 = vpow.pop %v3704
        %v3706 = vmul.f32 %v3689, 1.442695
        %v3707 = vpow.pop %v3706
        %v3708 = vmul.f32 %v3690, 1.442695
        %v3709 = vpow.pop %v3708
        %v3710 = vmul.f32 %v3691, 1.442695
        %v3711 = vpow.pop %v3710
        %v3712 = vmul.f32 %v3692, 1.442695
        %v3713 = vpow.pop %v3712
        %v3714 = vmul.f32 %v3693, 1.442695
        %v3715 = vpow.pop %v3714
        %v3716 = vmul.f32 %v3694, 1.442695
        %v3717 = vpow.pop %v3716
        %v3718 = vmul.f32 %v3695, 1.442695
        %v3719 = vpow.pop %v3718
        %v3720 = vmul.f32 %v3696, 1.442695
        %v3721 = vpow.pop %v3720
        %v3722 = vmul.f32 %v3697, 1.442695
        %v3723 = vpow.pop %v3722
        %v3724 = vmul.f32 %v3698, 1.442695
        %v3725 = vpow.pop %v3724
        %v3726 = vmul.f32 %v3699, 1.442695
        %v3727 = vpow.pop %v3726
        %v3728 = vmul.f32 %v3700, 1.442695
        %v3729 = vpow.pop %v3728
        %v3730 = vmul.f32 %v3701, 1.442695
        %v3731 = vpow.pop %v3730
        %v3732 = vmul.f32 %v3702, 1.442695
        %v3733 = vpow.pop %v3732
        %v3734 = vmul.f32 %v3703, 1.442695
        %v3735 = vpow.pop %v3734
        %v3736 = vsel %vm1769, %v3705, 0.0
        %3737 = vadd.xlane.f32.xlu0 %v3736
        %v3738 = vpop.xlane.xlu0 %3737
        %v3739 = vsel %vm1769, %v3707, 0.0
        %3740 = vadd.xlane.f32.xlu0 %v3739
        %v3741 = vpop.xlane.xlu0 %3740
        %v3742 = vsel %vm1769, %v3709, 0.0
        %3743 = vadd.xlane.f32.xlu0 %v3742
        %v3744 = vpop.xlane.xlu0 %3743
        %v3745 = vsel %vm1769, %v3711, 0.0
        %3746 = vadd.xlane.f32.xlu0 %v3745
        %v3747 = vpop.xlane.xlu0 %3746
        %v3748 = vsel %vm1769, %v3713, 0.0
        %3749 = vadd.xlane.f32.xlu0 %v3748
        %v3750 = vpop.xlane.xlu0 %3749
        %v3751 = vsel %vm1769, %v3715, 0.0
        %3752 = vadd.xlane.f32.xlu0 %v3751
        %v3753 = vpop.xlane.xlu0 %3752
        %v3754 = vsel %vm1769, %v3717, 0.0
        %3755 = vadd.xlane.f32.xlu0 %v3754
        %v3756 = vpop.xlane.xlu0 %3755
        %v3757 = vsel %vm1769, %v3719, 0.0
        %3758 = vadd.xlane.f32.xlu0 %v3757
        %v3759 = vpop.xlane.xlu0 %3758
        %v3760 = vsel %vm1769, %v3721, 0.0
        %3761 = vadd.xlane.f32.xlu0 %v3760
        %v3762 = vpop.xlane.xlu0 %3761
        %v3763 = vsel %vm1769, %v3723, 0.0
        %3764 = vadd.xlane.f32.xlu0 %v3763
        %v3765 = vpop.xlane.xlu0 %3764
        %v3766 = vsel %vm1769, %v3725, 0.0
        %3767 = vadd.xlane.f32.xlu0 %v3766
        %v3768 = vpop.xlane.xlu0 %3767
        %v3769 = vsel %vm1769, %v3727, 0.0
        %3770 = vadd.xlane.f32.xlu0 %v3769
        %v3771 = vpop.xlane.xlu0 %3770
        %v3772 = vsel %vm1769, %v3729, 0.0
        %3773 = vadd.xlane.f32.xlu0 %v3772
        %v3774 = vpop.xlane.xlu0 %3773
        %v3775 = vsel %vm1769, %v3731, 0.0
        %3776 = vadd.xlane.f32.xlu0 %v3775
        %v3777 = vpop.xlane.xlu0 %3776
        %v3778 = vsel %vm1769, %v3733, 0.0
        %3779 = vadd.xlane.f32.xlu0 %v3778
        %v3780 = vpop.xlane.xlu0 %3779
        %v3781 = vsel %vm1769, %v3735, 0.0
        %3782 = vadd.xlane.f32.xlu0 %v3781
        %v3783 = vpop.xlane.xlu0 %3782
        %v3784 = vrcp.pop %v3738
        %v3785 = vrcp.pop %v3741
        %v3786 = vrcp.pop %v3744
        %v3787 = vrcp.pop %v3747
        %v3788 = vrcp.pop %v3750
        %v3789 = vrcp.pop %v3753
        %v3790 = vrcp.pop %v3756
        %v3791 = vrcp.pop %v3759
        %v3792 = vrcp.pop %v3762
        %v3793 = vrcp.pop %v3765
        %v3794 = vrcp.pop %v3768
        %v3795 = vrcp.pop %v3771
        %v3796 = vrcp.pop %v3774
        %v3797 = vrcp.pop %v3777
        %v3798 = vrcp.pop %v3780
        %v3799 = vrcp.pop %v3783
        %v3800 = vmul.f32 %v3705, %v3784
        %v3801 = vmul.f32 %v3707, %v3785
        %v3802 = vmul.f32 %v3709, %v3786
        %v3803 = vmul.f32 %v3711, %v3787
        %v3804 = vmul.f32 %v3713, %v3788
        %v3805 = vmul.f32 %v3715, %v3789
        %v3806 = vmul.f32 %v3717, %v3790
        %v3807 = vmul.f32 %v3719, %v3791
        %v3808 = vmul.f32 %v3721, %v3792
        %v3809 = vmul.f32 %v3723, %v3793
        %v3810 = vmul.f32 %v3725, %v3794
        %v3811 = vmul.f32 %v3727, %v3795
        %v3812 = vmul.f32 %v3729, %v3796
        %v3813 = vmul.f32 %v3731, %v3797
        %v3814 = vmul.f32 %v3733, %v3798
        %v3815 = vmul.f32 %v3735, %v3799
        %v3816 = vsel %vm1769, %v3800, -inf
        %3817 = vmax.xlane.f32.xlu0 %v3816
        %v3818 = vpop.xlane.xlu0 %3817
        %v3819 = vsel %vm1769, %v3801, -inf
        %3820 = vmax.xlane.f32.xlu0 %v3819
        %v3821 = vpop.xlane.xlu0 %3820
        %v3822 = vsel %vm1769, %v3802, -inf
        %3823 = vmax.xlane.f32.xlu0 %v3822
        %v3824 = vpop.xlane.xlu0 %3823
        %v3825 = vsel %vm1769, %v3803, -inf
        %3826 = vmax.xlane.f32.xlu0 %v3825
        %v3827 = vpop.xlane.xlu0 %3826
        %v3828 = vsel %vm1769, %v3804, -inf
        %3829 = vmax.xlane.f32.xlu0 %v3828
        %v3830 = vpop.xlane.xlu0 %3829
        %v3831 = vsel %vm1769, %v3805, -inf
        %3832 = vmax.xlane.f32.xlu0 %v3831
        %v3833 = vpop.xlane.xlu0 %3832
        %v3834 = vsel %vm1769, %v3806, -inf
        %3835 = vmax.xlane.f32.xlu0 %v3834
        %v3836 = vpop.xlane.xlu0 %3835
        %v3837 = vsel %vm1769, %v3807, -inf
        %3838 = vmax.xlane.f32.xlu0 %v3837
        %v3839 = vpop.xlane.xlu0 %3838
        %v3840 = vsel %vm1769, %v3808, -inf
        %3841 = vmax.xlane.f32.xlu0 %v3840
        %v3842 = vpop.xlane.xlu0 %3841
        %v3843 = vsel %vm1769, %v3809, -inf
        %3844 = vmax.xlane.f32.xlu0 %v3843
        %v3845 = vpop.xlane.xlu0 %3844
        %v3846 = vsel %vm1769, %v3810, -inf
        %3847 = vmax.xlane.f32.xlu0 %v3846
        %v3848 = vpop.xlane.xlu0 %3847
        %v3849 = vsel %vm1769, %v3811, -inf
        %3850 = vmax.xlane.f32.xlu0 %v3849
        %v3851 = vpop.xlane.xlu0 %3850
        %v3852 = vsel %vm1769, %v3812, -inf
        %3853 = vmax.xlane.f32.xlu0 %v3852
        %v3854 = vpop.xlane.xlu0 %3853
        %v3855 = vsel %vm1769, %v3813, -inf
        %3856 = vmax.xlane.f32.xlu0 %v3855
        %v3857 = vpop.xlane.xlu0 %3856
        %v3858 = vsel %vm1769, %v3814, -inf
        %3859 = vmax.xlane.f32.xlu0 %v3858
        %v3860 = vpop.xlane.xlu0 %3859
        %v3861 = vsel %vm1769, %v3815, -inf
        %3862 = vmax.xlane.f32.xlu0 %v3861
        %v3863 = vpop.xlane.xlu0 %3862
        %v3864 = vsub.f32 %v3800, %v3818
        %v3865 = vsub.f32 %v3801, %v3821
        %v3866 = vsub.f32 %v3802, %v3824
        %v3867 = vsub.f32 %v3803, %v3827
        %v3868 = vsub.f32 %v3804, %v3830
        %v3869 = vsub.f32 %v3805, %v3833
        %v3870 = vsub.f32 %v3806, %v3836
        %v3871 = vsub.f32 %v3807, %v3839
        %v3872 = vsub.f32 %v3808, %v3842
        %v3873 = vsub.f32 %v3809, %v3845
        %v3874 = vsub.f32 %v3810, %v3848
        %v3875 = vsub.f32 %v3811, %v3851
        %v3876 = vsub.f32 %v3812, %v3854
        %v3877 = vsub.f32 %v3813, %v3857
        %v3878 = vsub.f32 %v3814, %v3860
        %v3879 = vsub.f32 %v3815, %v3863
        %v3880 = vmul.f32 %v3864, 1.442695
        %v3881 = vpow.pop %v3880
        %v3882 = vmul.f32 %v3865, 1.442695
        %v3883 = vpow.pop %v3882
        %v3884 = vmul.f32 %v3866, 1.442695
        %v3885 = vpow.pop %v3884
        %v3886 = vmul.f32 %v3867, 1.442695
        %v3887 = vpow.pop %v3886
        %v3888 = vmul.f32 %v3868, 1.442695
        %v3889 = vpow.pop %v3888
        %v3890 = vmul.f32 %v3869, 1.442695
        %v3891 = vpow.pop %v3890
        %v3892 = vmul.f32 %v3870, 1.442695
        %v3893 = vpow.pop %v3892
        %v3894 = vmul.f32 %v3871, 1.442695
        %v3895 = vpow.pop %v3894
        %v3896 = vmul.f32 %v3872, 1.442695
        %v3897 = vpow.pop %v3896
        %v3898 = vmul.f32 %v3873, 1.442695
        %v3899 = vpow.pop %v3898
        %v3900 = vmul.f32 %v3874, 1.442695
        %v3901 = vpow.pop %v3900
        %v3902 = vmul.f32 %v3875, 1.442695
        %v3903 = vpow.pop %v3902
        %v3904 = vmul.f32 %v3876, 1.442695
        %v3905 = vpow.pop %v3904
        %v3906 = vmul.f32 %v3877, 1.442695
        %v3907 = vpow.pop %v3906
        %v3908 = vmul.f32 %v3878, 1.442695
        %v3909 = vpow.pop %v3908
        %v3910 = vmul.f32 %v3879, 1.442695
        %v3911 = vpow.pop %v3910
        %v3912 = vsel %vm1769, %v3881, 0.0
        %3913 = vadd.xlane.f32.xlu0 %v3912
        %v3914 = vpop.xlane.xlu0 %3913
        %v3915 = vsel %vm1769, %v3883, 0.0
        %3916 = vadd.xlane.f32.xlu0 %v3915
        %v3917 = vpop.xlane.xlu0 %3916
        %v3918 = vsel %vm1769, %v3885, 0.0
        %3919 = vadd.xlane.f32.xlu0 %v3918
        %v3920 = vpop.xlane.xlu0 %3919
        %v3921 = vsel %vm1769, %v3887, 0.0
        %3922 = vadd.xlane.f32.xlu0 %v3921
        %v3923 = vpop.xlane.xlu0 %3922
        %v3924 = vsel %vm1769, %v3889, 0.0
        %3925 = vadd.xlane.f32.xlu0 %v3924
        %v3926 = vpop.xlane.xlu0 %3925
        %v3927 = vsel %vm1769, %v3891, 0.0
        %3928 = vadd.xlane.f32.xlu0 %v3927
        %v3929 = vpop.xlane.xlu0 %3928
        %v3930 = vsel %vm1769, %v3893, 0.0
        %3931 = vadd.xlane.f32.xlu0 %v3930
        %v3932 = vpop.xlane.xlu0 %3931
        %v3933 = vsel %vm1769, %v3895, 0.0
        %3934 = vadd.xlane.f32.xlu0 %v3933
        %v3935 = vpop.xlane.xlu0 %3934
        %v3936 = vsel %vm1769, %v3897, 0.0
        %3937 = vadd.xlane.f32.xlu0 %v3936
        %v3938 = vpop.xlane.xlu0 %3937
        %v3939 = vsel %vm1769, %v3899, 0.0
        %3940 = vadd.xlane.f32.xlu0 %v3939
        %v3941 = vpop.xlane.xlu0 %3940
        %v3942 = vsel %vm1769, %v3901, 0.0
        %3943 = vadd.xlane.f32.xlu0 %v3942
        %v3944 = vpop.xlane.xlu0 %3943
        %v3945 = vsel %vm1769, %v3903, 0.0
        %3946 = vadd.xlane.f32.xlu0 %v3945
        %v3947 = vpop.xlane.xlu0 %3946
        %v3948 = vsel %vm1769, %v3905, 0.0
        %3949 = vadd.xlane.f32.xlu0 %v3948
        %v3950 = vpop.xlane.xlu0 %3949
        %v3951 = vsel %vm1769, %v3907, 0.0
        %3952 = vadd.xlane.f32.xlu0 %v3951
        %v3953 = vpop.xlane.xlu0 %3952
        %v3954 = vsel %vm1769, %v3909, 0.0
        %3955 = vadd.xlane.f32.xlu0 %v3954
        %v3956 = vpop.xlane.xlu0 %3955
        %v3957 = vsel %vm1769, %v3911, 0.0
        %3958 = vadd.xlane.f32.xlu0 %v3957
        %v3959 = vpop.xlane.xlu0 %3958
        %v3960 = vrcp.pop %v3914
        %v3961 = vrcp.pop %v3917
        %v3962 = vrcp.pop %v3920
        %v3963 = vrcp.pop %v3923
        %v3964 = vrcp.pop %v3926
        %v3965 = vrcp.pop %v3929
        %v3966 = vrcp.pop %v3932
        %v3967 = vrcp.pop %v3935
        %v3968 = vrcp.pop %v3938
        %v3969 = vrcp.pop %v3941
        %v3970 = vrcp.pop %v3944
        %v3971 = vrcp.pop %v3947
        %v3972 = vrcp.pop %v3950
        %v3973 = vrcp.pop %v3953
        %v3974 = vrcp.pop %v3956
        %v3975 = vrcp.pop %v3959
        %v3976 = vmul.f32 %v3881, %v3960
        %v3977 = vmul.f32 %v3883, %v3961
        %v3978 = vmul.f32 %v3885, %v3962
        %v3979 = vmul.f32 %v3887, %v3963
        %v3980 = vmul.f32 %v3889, %v3964
        %v3981 = vmul.f32 %v3891, %v3965
        %v3982 = vmul.f32 %v3893, %v3966
        %v3983 = vmul.f32 %v3895, %v3967
        %v3984 = vmul.f32 %v3897, %v3968
        %v3985 = vmul.f32 %v3899, %v3969
        %v3986 = vmul.f32 %v3901, %v3970
        %v3987 = vmul.f32 %v3903, %v3971
        %v3988 = vmul.f32 %v3905, %v3972
        %v3989 = vmul.f32 %v3907, %v3973
        %v3990 = vmul.f32 %v3909, %v3974
        %v3991 = vmul.f32 %v3911, %v3975
        %v3992 = vpack.c.bf16 %v3801, %v3800
        %v3993 = vpack.c.bf16 %v3803, %v3802
        %v3994 = vpack.c.bf16 %v3805, %v3804
        %v3995 = vpack.c.bf16 %v3807, %v3806
        %v3996 = vpack.c.bf16 %v3809, %v3808
        %v3997 = vpack.c.bf16 %v3811, %v3810
        %v3998 = vpack.c.bf16 %v3813, %v3812
        %v3999 = vpack.c.bf16 %v3815, %v3814
        %4000 = vrot.lane.b32.xlu0 %v1542, 48
        %v4001 = vpop.permute.xlu0 %4000
        %4002 = vrot.lane.b32.xlu0 %v1543, 48
        %v4003 = vpop.permute.xlu0 %4002
        %4004 = vrot.lane.b32.xlu0 %v1544, 48
        %v4005 = vpop.permute.xlu0 %4004
        %4006 = vrot.lane.b32.xlu0 %v1545, 48
        %v4007 = vpop.permute.xlu0 %4006
        %v4013 = vsel %vm1769, %v3992, 0
        %v4016 = vsel %vm1769, %v3993, 0
        %v4019 = vsel %vm1769, %v3994, 0
        %v4022 = vsel %vm1769, %v3995, 0
        %4024 = vmatprep.subr.bf16.mxu0 0
        %4025 = vmatpush1.bf16.msra.mxu0 0
        %4026 = vmatprep.subr.bf16.mxu0 0
        %4027 = vmatpush1.bf16.msra.mxu0 0
        %4028 = vmatprep.subr.bf16.mxu0 0
        %4029 = vmatpush1.bf16.msra.mxu0 0
        %4030 = vmatprep.subr.bf16.mxu0 0
        %4031 = vmatpush1.bf16.msra.mxu0 0
        %4032 = vmatprep.subr.bf16.mxu0 0
        %4033 = vmatpush1.bf16.msra.mxu0 %v4007
        %4034 = vmatprep.subr.bf16.mxu0 0
        %4035 = vmatpush1.bf16.msra.mxu0 %v4005
        %4036 = vmatprep.subr.bf16.mxu0 0
        %4037 = vmatpush1.bf16.msra.mxu0 %v4003
        %4038 = vmatprep.subr.bf16.mxu0 0
        %4039 = vmatpush1.bf16.msra.mxu0 %v4001
        %4040 = vmatprep.subr.bf16.mxu0 0
        %4041 = vmatpush2.bf16.msra.mxu0 0
        %4042 = vmatprep.subr.bf16.mxu0 0
        %4043 = vmatpush2.bf16.msra.mxu0 0
        %4044 = vmatprep.subr.bf16.mxu0 0
        %4045 = vmatpush2.bf16.msra.mxu0 0
        %4046 = vmatprep.subr.bf16.mxu0 0
        %4047 = vmatpush2.bf16.msra.mxu0 0
        %4048 = vmatprep.subr.bf16.mxu0 0
        %4049 = vmatpush2.bf16.msra.mxu0 0
        %4050 = vmatprep.subr.bf16.mxu0 0
        %4051 = vmatpush2.bf16.msra.mxu0 0
        %4052 = vmatprep.subr.bf16.mxu0 0
        %4053 = vmatpush2.bf16.msra.mxu0 0
        %4054 = vmatprep.subr.bf16.mxu0 0
        %4055 = vmatpush2.bf16.msra.mxu0 0
        %4056 = vmatprep.mubr.bf16.mxu0 0
        %4057 = vmatmul.mubr.bf16.gmra.mxu0 %v4013
        %v4058 = vpop.f32.mrf.mxu0
        %v4059 = vadd.f32 0.0, %v4058
        %v4060 = vpop.f32.mrf.mxu0
        %v4061 = vpop.f32.mrf.mxu0
        %v4062 = vadd.f32 0.0, %v4061
        %v4063 = vpop.f32.mrf.mxu0
        %4064 = vmatprep.mubr.bf16.mxu0 0
        %4065 = vmatmul.mubr.bf16.gmra.mxu0 %v4016
        %v4066 = vpop.f32.mrf.mxu0
        %v4067 = vadd.f32 0.0, %v4066
        %v4068 = vpop.f32.mrf.mxu0
        %v4069 = vpop.f32.mrf.mxu0
        %v4070 = vadd.f32 0.0, %v4069
        %v4071 = vpop.f32.mrf.mxu0
        %4072 = vmatprep.mubr.bf16.mxu0 0
        %4073 = vmatmul.mubr.bf16.gmra.mxu0 %v4019
        %v4074 = vpop.f32.mrf.mxu0
        %v4075 = vadd.f32 0.0, %v4074
        %v4076 = vpop.f32.mrf.mxu0
        %v4077 = vpop.f32.mrf.mxu0
        %v4078 = vadd.f32 0.0, %v4077
        %v4079 = vpop.f32.mrf.mxu0
        %4080 = vmatprep.mubr.bf16.mxu0 0
        %4081 = vmatmul.mubr.bf16.gmra.mxu0 %v4022
        %v4082 = vpop.f32.mrf.mxu0
        %v4083 = vadd.f32 0.0, %v4082
        %v4084 = vpop.f32.mrf.mxu0
        %v4085 = vpop.f32.mrf.mxu0
        %v4086 = vadd.f32 0.0, %v4085
        %v4087 = vpop.f32.mrf.mxu0
        %4088 = vdwg.mxu0
        %4089 = vrot.lane.b32.xlu0 %v1546, 48
        %v4090 = vpop.permute.xlu0 %4089
        %4091 = vrot.lane.b32.xlu0 %v1547, 48
        %v4092 = vpop.permute.xlu0 %4091
        %4093 = vrot.lane.b32.xlu0 %v1548, 48
        %v4094 = vpop.permute.xlu0 %4093
        %4095 = vrot.lane.b32.xlu0 %v1549, 48
        %v4096 = vpop.permute.xlu0 %4095
        %v4102 = vsel %vm1769, %v3996, 0
        %v4105 = vsel %vm1769, %v3997, 0
        %v4108 = vsel %vm1769, %v3998, 0
        %v4111 = vsel %vm1769, %v3999, 0
        %4113 = vmatprep.subr.bf16.mxu0 0
        %4114 = vmatpush1.bf16.msra.mxu0 0
        %4115 = vmatprep.subr.bf16.mxu0 0
        %4116 = vmatpush1.bf16.msra.mxu0 0
        %4117 = vmatprep.subr.bf16.mxu0 0
        %4118 = vmatpush1.bf16.msra.mxu0 0
        %4119 = vmatprep.subr.bf16.mxu0 0
        %4120 = vmatpush1.bf16.msra.mxu0 0
        %4121 = vmatprep.subr.bf16.mxu0 0
        %4122 = vmatpush1.bf16.msra.mxu0 %v4096
        %4123 = vmatprep.subr.bf16.mxu0 0
        %4124 = vmatpush1.bf16.msra.mxu0 %v4094
        %4125 = vmatprep.subr.bf16.mxu0 0
        %4126 = vmatpush1.bf16.msra.mxu0 %v4092
        %4127 = vmatprep.subr.bf16.mxu0 0
        %4128 = vmatpush1.bf16.msra.mxu0 %v4090
        %4129 = vmatprep.subr.bf16.mxu0 0
        %4130 = vmatpush2.bf16.msra.mxu0 0
        %4131 = vmatprep.subr.bf16.mxu0 0
        %4132 = vmatpush2.bf16.msra.mxu0 0
        %4133 = vmatprep.subr.bf16.mxu0 0
        %4134 = vmatpush2.bf16.msra.mxu0 0
        %4135 = vmatprep.subr.bf16.mxu0 0
        %4136 = vmatpush2.bf16.msra.mxu0 0
        %4137 = vmatprep.subr.bf16.mxu0 0
        %4138 = vmatpush2.bf16.msra.mxu0 0
        %4139 = vmatprep.subr.bf16.mxu0 0
        %4140 = vmatpush2.bf16.msra.mxu0 0
        %4141 = vmatprep.subr.bf16.mxu0 0
        %4142 = vmatpush2.bf16.msra.mxu0 0
        %4143 = vmatprep.subr.bf16.mxu0 0
        %4144 = vmatpush2.bf16.msra.mxu0 0
        %4145 = vmatprep.mubr.bf16.mxu0 0
        %4146 = vmatmul.mubr.bf16.gmra.mxu0 %v4102
        %v4147 = vpop.f32.mrf.mxu0
        %v4148 = vadd.f32 0.0, %v4147
        %v4149 = vpop.f32.mrf.mxu0
        %v4150 = vpop.f32.mrf.mxu0
        %v4151 = vadd.f32 0.0, %v4150
        %v4152 = vpop.f32.mrf.mxu0
        %4153 = vmatprep.mubr.bf16.mxu0 0
        %4154 = vmatmul.mubr.bf16.gmra.mxu0 %v4105
        %v4155 = vpop.f32.mrf.mxu0
        %v4156 = vadd.f32 0.0, %v4155
        %v4157 = vpop.f32.mrf.mxu0
        %v4158 = vpop.f32.mrf.mxu0
        %v4159 = vadd.f32 0.0, %v4158
        %v4160 = vpop.f32.mrf.mxu0
        %4161 = vmatprep.mubr.bf16.mxu0 0
        %4162 = vmatmul.mubr.bf16.gmra.mxu0 %v4108
        %v4163 = vpop.f32.mrf.mxu0
        %v4164 = vadd.f32 0.0, %v4163
        %v4165 = vpop.f32.mrf.mxu0
        %v4166 = vpop.f32.mrf.mxu0
        %v4167 = vadd.f32 0.0, %v4166
        %v4168 = vpop.f32.mrf.mxu0
        %4169 = vmatprep.mubr.bf16.mxu0 0
        %4170 = vmatmul.mubr.bf16.gmra.mxu0 %v4111
        %v4171 = vpop.f32.mrf.mxu0
        %v4172 = vadd.f32 0.0, %v4171
        %v4173 = vpop.f32.mrf.mxu0
        %v4174 = vpop.f32.mrf.mxu0
        %v4175 = vadd.f32 0.0, %v4174
        %v4176 = vpop.f32.mrf.mxu0
        %4177 = vdwg.mxu0
        %v4178 = vpack.c.bf16 %v3977, %v3976
        %v4179 = vpack.c.bf16 %v3979, %v3978
        %v4180 = vpack.c.bf16 %v3981, %v3980
        %v4181 = vpack.c.bf16 %v3983, %v3982
        %v4182 = vpack.c.bf16 %v3985, %v3984
        %v4183 = vpack.c.bf16 %v3987, %v3986
        %v4184 = vpack.c.bf16 %v3989, %v3988
        %v4185 = vpack.c.bf16 %v3991, %v3990
        %4186 = vrot.lane.b32.xlu0 %v1550, 112
        %v4187 = vpop.permute.xlu0 %4186
        %4188 = vrot.lane.b32.xlu0 %v1551, 112
        %v4189 = vpop.permute.xlu0 %4188
        %4190 = vrot.lane.b32.xlu0 %v1552, 112
        %v4191 = vpop.permute.xlu0 %4190
        %4192 = vrot.lane.b32.xlu0 %v1553, 112
        %v4193 = vpop.permute.xlu0 %4192
        %v4199 = vsel %vm1769, %v4178, 0
        %v4202 = vsel %vm1769, %v4179, 0
        %v4205 = vsel %vm1769, %v4180, 0
        %v4208 = vsel %vm1769, %v4181, 0
        %4210 = vmatprep.subr.bf16.mxu0 0
        %4211 = vmatpush1.bf16.msra.mxu0 0
        %4212 = vmatprep.subr.bf16.mxu0 0
        %4213 = vmatpush1.bf16.msra.mxu0 0
        %4214 = vmatprep.subr.bf16.mxu0 0
        %4215 = vmatpush1.bf16.msra.mxu0 0
        %4216 = vmatprep.subr.bf16.mxu0 0
        %4217 = vmatpush1.bf16.msra.mxu0 0
        %4218 = vmatprep.subr.bf16.mxu0 0
        %4219 = vmatpush1.bf16.msra.mxu0 %v4193
        %4220 = vmatprep.subr.bf16.mxu0 0
        %4221 = vmatpush1.bf16.msra.mxu0 %v4191
        %4222 = vmatprep.subr.bf16.mxu0 0
        %4223 = vmatpush1.bf16.msra.mxu0 %v4189
        %4224 = vmatprep.subr.bf16.mxu0 0
        %4225 = vmatpush1.bf16.msra.mxu0 %v4187
        %4226 = vmatprep.subr.bf16.mxu0 0
        %4227 = vmatpush2.bf16.msra.mxu0 0
        %4228 = vmatprep.subr.bf16.mxu0 0
        %4229 = vmatpush2.bf16.msra.mxu0 0
        %4230 = vmatprep.subr.bf16.mxu0 0
        %4231 = vmatpush2.bf16.msra.mxu0 0
        %4232 = vmatprep.subr.bf16.mxu0 0
        %4233 = vmatpush2.bf16.msra.mxu0 0
        %4234 = vmatprep.subr.bf16.mxu0 0
        %4235 = vmatpush2.bf16.msra.mxu0 0
        %4236 = vmatprep.subr.bf16.mxu0 0
        %4237 = vmatpush2.bf16.msra.mxu0 0
        %4238 = vmatprep.subr.bf16.mxu0 0
        %4239 = vmatpush2.bf16.msra.mxu0 0
        %4240 = vmatprep.subr.bf16.mxu0 0
        %4241 = vmatpush2.bf16.msra.mxu0 0
        %4242 = vmatprep.mubr.bf16.mxu0 0
        %4243 = vmatmul.mubr.bf16.gmra.mxu0 %v4199
        %v4244 = vpop.f32.mrf.mxu0
        %v4245 = vadd.f32 0.0, %v4244
        %v4246 = vpop.f32.mrf.mxu0
        %v4247 = vpop.f32.mrf.mxu0
        %v4248 = vadd.f32 0.0, %v4247
        %v4249 = vpop.f32.mrf.mxu0
        %4250 = vmatprep.mubr.bf16.mxu0 0
        %4251 = vmatmul.mubr.bf16.gmra.mxu0 %v4202
        %v4252 = vpop.f32.mrf.mxu0
        %v4253 = vadd.f32 0.0, %v4252
        %v4254 = vpop.f32.mrf.mxu0
        %v4255 = vpop.f32.mrf.mxu0
        %v4256 = vadd.f32 0.0, %v4255
        %v4257 = vpop.f32.mrf.mxu0
        %4258 = vmatprep.mubr.bf16.mxu0 0
        %4259 = vmatmul.mubr.bf16.gmra.mxu0 %v4205
        %v4260 = vpop.f32.mrf.mxu0
        %v4261 = vadd.f32 0.0, %v4260
        %v4262 = vpop.f32.mrf.mxu0
        %v4263 = vpop.f32.mrf.mxu0
        %v4264 = vadd.f32 0.0, %v4263
        %v4265 = vpop.f32.mrf.mxu0
        %4266 = vmatprep.mubr.bf16.mxu0 0
        %4267 = vmatmul.mubr.bf16.gmra.mxu0 %v4208
        %v4268 = vpop.f32.mrf.mxu0
        %v4269 = vadd.f32 0.0, %v4268
        %v4270 = vpop.f32.mrf.mxu0
        %v4271 = vpop.f32.mrf.mxu0
        %v4272 = vadd.f32 0.0, %v4271
        %v4273 = vpop.f32.mrf.mxu0
        %4274 = vdwg.mxu0
        %4275 = vrot.lane.b32.xlu0 %v1554, 112
        %v4276 = vpop.permute.xlu0 %4275
        %4277 = vrot.lane.b32.xlu0 %v1555, 112
        %v4278 = vpop.permute.xlu0 %4277
        %4279 = vrot.lane.b32.xlu0 %v1556, 112
        %v4280 = vpop.permute.xlu0 %4279
        %4281 = vrot.lane.b32.xlu0 %v1557, 112
        %v4282 = vpop.permute.xlu0 %4281
        %v4288 = vsel %vm1769, %v4182, 0
        %v4291 = vsel %vm1769, %v4183, 0
        %v4294 = vsel %vm1769, %v4184, 0
        %v4297 = vsel %vm1769, %v4185, 0
        %4299 = vmatprep.subr.bf16.mxu0 0
        %4300 = vmatpush1.bf16.msra.mxu0 0
        %4301 = vmatprep.subr.bf16.mxu0 0
        %4302 = vmatpush1.bf16.msra.mxu0 0
        %4303 = vmatprep.subr.bf16.mxu0 0
        %4304 = vmatpush1.bf16.msra.mxu0 0
        %4305 = vmatprep.subr.bf16.mxu0 0
        %4306 = vmatpush1.bf16.msra.mxu0 0
        %4307 = vmatprep.subr.bf16.mxu0 0
        %4308 = vmatpush1.bf16.msra.mxu0 %v4282
        %4309 = vmatprep.subr.bf16.mxu0 0
        %4310 = vmatpush1.bf16.msra.mxu0 %v4280
        %4311 = vmatprep.subr.bf16.mxu0 0
        %4312 = vmatpush1.bf16.msra.mxu0 %v4278
        %4313 = vmatprep.subr.bf16.mxu0 0
        %4314 = vmatpush1.bf16.msra.mxu0 %v4276
        %4315 = vmatprep.subr.bf16.mxu0 0
        %4316 = vmatpush2.bf16.msra.mxu0 0
        %4317 = vmatprep.subr.bf16.mxu0 0
        %4318 = vmatpush2.bf16.msra.mxu0 0
        %4319 = vmatprep.subr.bf16.mxu0 0
        %4320 = vmatpush2.bf16.msra.mxu0 0
        %4321 = vmatprep.subr.bf16.mxu0 0
        %4322 = vmatpush2.bf16.msra.mxu0 0
        %4323 = vmatprep.subr.bf16.mxu0 0
        %4324 = vmatpush2.bf16.msra.mxu0 0
        %4325 = vmatprep.subr.bf16.mxu0 0
        %4326 = vmatpush2.bf16.msra.mxu0 0
        %4327 = vmatprep.subr.bf16.mxu0 0
        %4328 = vmatpush2.bf16.msra.mxu0 0
        %4329 = vmatprep.subr.bf16.mxu0 0
        %4330 = vmatpush2.bf16.msra.mxu0 0
        %4331 = vmatprep.mubr.bf16.mxu0 0
        %4332 = vmatmul.mubr.bf16.gmra.mxu0 %v4288
        %v4333 = vpop.f32.mrf.mxu0
        %v4334 = vadd.f32 0.0, %v4333
        %v4335 = vpop.f32.mrf.mxu0
        %v4336 = vpop.f32.mrf.mxu0
        %v4337 = vadd.f32 0.0, %v4336
        %v4338 = vpop.f32.mrf.mxu0
        %4339 = vmatprep.mubr.bf16.mxu0 0
        %4340 = vmatmul.mubr.bf16.gmra.mxu0 %v4291
        %v4341 = vpop.f32.mrf.mxu0
        %v4342 = vadd.f32 0.0, %v4341
        %v4343 = vpop.f32.mrf.mxu0
        %v4344 = vpop.f32.mrf.mxu0
        %v4345 = vadd.f32 0.0, %v4344
        %v4346 = vpop.f32.mrf.mxu0
        %4347 = vmatprep.mubr.bf16.mxu0 0
        %4348 = vmatmul.mubr.bf16.gmra.mxu0 %v4294
        %v4349 = vpop.f32.mrf.mxu0
        %v4350 = vadd.f32 0.0, %v4349
        %v4351 = vpop.f32.mrf.mxu0
        %v4352 = vpop.f32.mrf.mxu0
        %v4353 = vadd.f32 0.0, %v4352
        %v4354 = vpop.f32.mrf.mxu0
        %4355 = vmatprep.mubr.bf16.mxu0 0
        %4356 = vmatmul.mubr.bf16.gmra.mxu0 %v4297
        %v4357 = vpop.f32.mrf.mxu0
        %v4358 = vadd.f32 0.0, %v4357
        %v4359 = vpop.f32.mrf.mxu0
        %v4360 = vpop.f32.mrf.mxu0
        %v4361 = vadd.f32 0.0, %v4360
        %v4362 = vpop.f32.mrf.mxu0
        %4363 = vdwg.mxu0
        %s4364 = scalar_lea.vmem %s12, 192
        %v4365 = vld [vmem:[%s4364] sm:$0xff]
        %v4366 = vld [vmem:[%s4364 + $0x8] sm:$0xff]
        %v4367 = vld [vmem:[%s4364 + $0x10] sm:$0xff]
        %v4368 = vld [vmem:[%s4364 + $0x18] sm:$0xff]
        %v4369 = vld [vmem:[%s4364 + $0x20] sm:$0xff]
        %v4370 = vld [vmem:[%s4364 + $0x28] sm:$0xff]
        %v4371 = vld [vmem:[%s4364 + $0x30] sm:$0xff]
        %v4372 = vld [vmem:[%s4364 + $0x38] sm:$0xff]
        %4373 = vrot.lane.b32.xlu0 %v1542, 104
        %v4374 = vpop.permute.xlu0 %4373
        %4375 = vrot.lane.b32.xlu0 %v1543, 104
        %v4376 = vpop.permute.xlu0 %4375
        %4377 = vrot.lane.b32.xlu0 %v1544, 104
        %v4378 = vpop.permute.xlu0 %4377
        %4379 = vrot.lane.b32.xlu0 %v1545, 104
        %v4380 = vpop.permute.xlu0 %4379
        %4381 = vrot.lane.b32.xlu0 %v1542, 72
        %v4382 = vpop.permute.xlu0 %4381
        %4383 = vrot.lane.b32.xlu0 %v1543, 72
        %v4384 = vpop.permute.xlu0 %4383
        %4385 = vrot.lane.b32.xlu0 %v1544, 72
        %v4386 = vpop.permute.xlu0 %4385
        %4387 = vrot.lane.b32.xlu0 %v1545, 72
        %v4388 = vpop.permute.xlu0 %4387
        %v4390 = vsel %vm1578, %v4374, 0
        %v4393 = vsel %vm1578, %v4376, 0
        %v4396 = vsel %vm1578, %v4378, 0
        %v4399 = vsel %vm1578, %v4380, 0
        %v4402 = vsel %vm1578, %v4382, 0
        %v4405 = vsel %vm1578, %v4384, 0
        %v4408 = vsel %vm1578, %v4386, 0
        %v4411 = vsel %vm1578, %v4388, 0
        %4413 = vmatprep.subr.bf16.mxu0 0
        %4414 = vmatpush1.bf16.xpose.msra.mxu0 0
        %4415 = vmatprep.subr.bf16.mxu0 0
        %4416 = vmatpush1.bf16.xpose.msra.mxu0 0
        %4417 = vmatprep.subr.bf16.mxu0 0
        %4418 = vmatpush1.bf16.xpose.msra.mxu0 0
        %4419 = vmatprep.subr.bf16.mxu0 0
        %4420 = vmatpush1.bf16.xpose.msra.mxu0 0
        %4421 = vmatprep.subr.bf16.mxu0 0
        %4422 = vmatpush1.bf16.xpose.msra.mxu0 %v4411
        %4423 = vmatprep.subr.bf16.mxu0 0
        %4424 = vmatpush1.bf16.xpose.msra.mxu0 %v4408
        %4425 = vmatprep.subr.bf16.mxu0 0
        %4426 = vmatpush1.bf16.xpose.msra.mxu0 %v4405
        %4427 = vmatprep.subr.bf16.mxu0 0
        %4428 = vmatpush1.bf16.xpose.msra.mxu0 %v4402
        %4429 = vmatprep.subr.bf16.mxu0 0
        %4430 = vmatpush2.bf16.xpose.msra.mxu0 0
        %4431 = vmatprep.subr.bf16.mxu0 0
        %4432 = vmatpush2.bf16.xpose.msra.mxu0 0
        %4433 = vmatprep.subr.bf16.mxu0 0
        %4434 = vmatpush2.bf16.xpose.msra.mxu0 0
        %4435 = vmatprep.subr.bf16.mxu0 0
        %4436 = vmatpush2.bf16.xpose.msra.mxu0 0
        %4437 = vmatprep.subr.bf16.mxu0 0
        %4438 = vmatpush2.bf16.xpose.msra.mxu0 0
        %4439 = vmatprep.subr.bf16.mxu0 0
        %4440 = vmatpush2.bf16.xpose.msra.mxu0 0
        %4441 = vmatprep.subr.bf16.mxu0 0
        %4442 = vmatpush2.bf16.xpose.msra.mxu0 0
        %4443 = vmatprep.subr.bf16.mxu0 0
        %4444 = vmatpush2.bf16.xpose.msra.mxu0 0
        %4445 = vmatprep.mubr.bf16.mxu0 0
        %4446 = vmatmul.mubr.bf16.gmra.mxu0 %v4390
        %v4447 = vpop.f32.mrf.mxu0
        %v4448 = vadd.f32 %v4365, %v4447
        %v4449 = vpop.f32.mrf.mxu0
        %v4450 = vpop.f32.mrf.mxu0
        %v4451 = vadd.f32 %v4366, %v4450
        %v4452 = vpop.f32.mrf.mxu0
        %4453 = vmatprep.mubr.bf16.mxu0 0
        %4454 = vmatmul.mubr.bf16.gmra.mxu0 %v4393
        %v4455 = vpop.f32.mrf.mxu0
        %v4456 = vadd.f32 %v4367, %v4455
        %v4457 = vpop.f32.mrf.mxu0
        %v4458 = vpop.f32.mrf.mxu0
        %v4459 = vadd.f32 %v4368, %v4458
        %v4460 = vpop.f32.mrf.mxu0
        %4461 = vmatprep.mubr.bf16.mxu0 0
        %4462 = vmatmul.mubr.bf16.gmra.mxu0 %v4396
        %v4463 = vpop.f32.mrf.mxu0
        %v4464 = vadd.f32 %v4369, %v4463
        %v4465 = vpop.f32.mrf.mxu0
        %v4466 = vpop.f32.mrf.mxu0
        %v4467 = vadd.f32 %v4370, %v4466
        %v4468 = vpop.f32.mrf.mxu0
        %4469 = vmatprep.mubr.bf16.mxu0 0
        %4470 = vmatmul.mubr.bf16.gmra.mxu0 %v4399
        %v4471 = vpop.f32.mrf.mxu0
        %v4472 = vadd.f32 %v4371, %v4471
        %v4473 = vpop.f32.mrf.mxu0
        %v4474 = vpop.f32.mrf.mxu0
        %v4475 = vadd.f32 %v4372, %v4474
        %v4476 = vpop.f32.mrf.mxu0
        %4477 = vdwg.mxu0
        %4478 = vrot.lane.b32.xlu0 %v1546, 104
        %v4479 = vpop.permute.xlu0 %4478
        %4480 = vrot.lane.b32.xlu0 %v1547, 104
        %v4481 = vpop.permute.xlu0 %4480
        %4482 = vrot.lane.b32.xlu0 %v1548, 104
        %v4483 = vpop.permute.xlu0 %4482
        %4484 = vrot.lane.b32.xlu0 %v1549, 104
        %v4485 = vpop.permute.xlu0 %4484
        %4486 = vrot.lane.b32.xlu0 %v1546, 72
        %v4487 = vpop.permute.xlu0 %4486
        %4488 = vrot.lane.b32.xlu0 %v1547, 72
        %v4489 = vpop.permute.xlu0 %4488
        %4490 = vrot.lane.b32.xlu0 %v1548, 72
        %v4491 = vpop.permute.xlu0 %4490
        %4492 = vrot.lane.b32.xlu0 %v1549, 72
        %v4493 = vpop.permute.xlu0 %4492
        %v4495 = vsel %vm1578, %v4479, 0
        %v4498 = vsel %vm1578, %v4481, 0
        %v4501 = vsel %vm1578, %v4483, 0
        %v4504 = vsel %vm1578, %v4485, 0
        %v4507 = vsel %vm1578, %v4487, 0
        %v4510 = vsel %vm1578, %v4489, 0
        %v4513 = vsel %vm1578, %v4491, 0
        %v4516 = vsel %vm1578, %v4493, 0
        %4518 = vmatprep.subr.bf16.mxu0 0
        %4519 = vmatpush1.bf16.xpose.msra.mxu0 0
        %4520 = vmatprep.subr.bf16.mxu0 0
        %4521 = vmatpush1.bf16.xpose.msra.mxu0 0
        %4522 = vmatprep.subr.bf16.mxu0 0
        %4523 = vmatpush1.bf16.xpose.msra.mxu0 0
        %4524 = vmatprep.subr.bf16.mxu0 0
        %4525 = vmatpush1.bf16.xpose.msra.mxu0 0
        %4526 = vmatprep.subr.bf16.mxu0 0
        %4527 = vmatpush1.bf16.xpose.msra.mxu0 %v4516
        %4528 = vmatprep.subr.bf16.mxu0 0
        %4529 = vmatpush1.bf16.xpose.msra.mxu0 %v4513
        %4530 = vmatprep.subr.bf16.mxu0 0
        %4531 = vmatpush1.bf16.xpose.msra.mxu0 %v4510
        %4532 = vmatprep.subr.bf16.mxu0 0
        %4533 = vmatpush1.bf16.xpose.msra.mxu0 %v4507
        %4534 = vmatprep.subr.bf16.mxu0 0
        %4535 = vmatpush2.bf16.xpose.msra.mxu0 0
        %4536 = vmatprep.subr.bf16.mxu0 0
        %4537 = vmatpush2.bf16.xpose.msra.mxu0 0
        %4538 = vmatprep.subr.bf16.mxu0 0
        %4539 = vmatpush2.bf16.xpose.msra.mxu0 0
        %4540 = vmatprep.subr.bf16.mxu0 0
        %4541 = vmatpush2.bf16.xpose.msra.mxu0 0
        %4542 = vmatprep.subr.bf16.mxu0 0
        %4543 = vmatpush2.bf16.xpose.msra.mxu0 0
        %4544 = vmatprep.subr.bf16.mxu0 0
        %4545 = vmatpush2.bf16.xpose.msra.mxu0 0
        %4546 = vmatprep.subr.bf16.mxu0 0
        %4547 = vmatpush2.bf16.xpose.msra.mxu0 0
        %4548 = vmatprep.subr.bf16.mxu0 0
        %4549 = vmatpush2.bf16.xpose.msra.mxu0 0
        %4550 = vmatprep.mubr.bf16.mxu0 0
        %4551 = vmatmul.mubr.bf16.gmra.mxu0 %v4495
        %v4552 = vpop.f32.mrf.mxu0
        %v4553 = vadd.f32 %v4365, %v4552
        %v4554 = vpop.f32.mrf.mxu0
        %v4555 = vpop.f32.mrf.mxu0
        %v4556 = vadd.f32 %v4366, %v4555
        %v4557 = vpop.f32.mrf.mxu0
        %4558 = vmatprep.mubr.bf16.mxu0 0
        %4559 = vmatmul.mubr.bf16.gmra.mxu0 %v4498
        %v4560 = vpop.f32.mrf.mxu0
        %v4561 = vadd.f32 %v4367, %v4560
        %v4562 = vpop.f32.mrf.mxu0
        %v4563 = vpop.f32.mrf.mxu0
        %v4564 = vadd.f32 %v4368, %v4563
        %v4565 = vpop.f32.mrf.mxu0
        %4566 = vmatprep.mubr.bf16.mxu0 0
        %4567 = vmatmul.mubr.bf16.gmra.mxu0 %v4501
        %v4568 = vpop.f32.mrf.mxu0
        %v4569 = vadd.f32 %v4369, %v4568
        %v4570 = vpop.f32.mrf.mxu0
        %v4571 = vpop.f32.mrf.mxu0
        %v4572 = vadd.f32 %v4370, %v4571
        %v4573 = vpop.f32.mrf.mxu0
        %4574 = vmatprep.mubr.bf16.mxu0 0
        %4575 = vmatmul.mubr.bf16.gmra.mxu0 %v4504
        %v4576 = vpop.f32.mrf.mxu0
        %v4577 = vadd.f32 %v4371, %v4576
        %v4578 = vpop.f32.mrf.mxu0
        %v4579 = vpop.f32.mrf.mxu0
        %v4580 = vadd.f32 %v4372, %v4579
        %v4581 = vpop.f32.mrf.mxu0
        %4582 = vdwg.mxu0
        %v4583 = vsel %vm1769, %v4448, -inf
        %4584 = vmax.xlane.f32.xlu0 %v4583
        %v4585 = vpop.xlane.xlu0 %4584
        %v4586 = vsel %vm1769, %v4451, -inf
        %4587 = vmax.xlane.f32.xlu0 %v4586
        %v4588 = vpop.xlane.xlu0 %4587
        %v4589 = vsel %vm1769, %v4456, -inf
        %4590 = vmax.xlane.f32.xlu0 %v4589
        %v4591 = vpop.xlane.xlu0 %4590
        %v4592 = vsel %vm1769, %v4459, -inf
        %4593 = vmax.xlane.f32.xlu0 %v4592
        %v4594 = vpop.xlane.xlu0 %4593
        %v4595 = vsel %vm1769, %v4464, -inf
        %4596 = vmax.xlane.f32.xlu0 %v4595
        %v4597 = vpop.xlane.xlu0 %4596
        %v4598 = vsel %vm1769, %v4467, -inf
        %4599 = vmax.xlane.f32.xlu0 %v4598
        %v4600 = vpop.xlane.xlu0 %4599
        %v4601 = vsel %vm1769, %v4472, -inf
        %4602 = vmax.xlane.f32.xlu0 %v4601
        %v4603 = vpop.xlane.xlu0 %4602
        %v4604 = vsel %vm1769, %v4475, -inf
        %4605 = vmax.xlane.f32.xlu0 %v4604
        %v4606 = vpop.xlane.xlu0 %4605
        %v4607 = vsel %vm1769, %v4553, -inf
        %4608 = vmax.xlane.f32.xlu0 %v4607
        %v4609 = vpop.xlane.xlu0 %4608
        %v4610 = vsel %vm1769, %v4556, -inf
        %4611 = vmax.xlane.f32.xlu0 %v4610
        %v4612 = vpop.xlane.xlu0 %4611
        %v4613 = vsel %vm1769, %v4561, -inf
        %4614 = vmax.xlane.f32.xlu0 %v4613
        %v4615 = vpop.xlane.xlu0 %4614
        %v4616 = vsel %vm1769, %v4564, -inf
        %4617 = vmax.xlane.f32.xlu0 %v4616
        %v4618 = vpop.xlane.xlu0 %4617
        %v4619 = vsel %vm1769, %v4569, -inf
        %4620 = vmax.xlane.f32.xlu0 %v4619
        %v4621 = vpop.xlane.xlu0 %4620
        %v4622 = vsel %vm1769, %v4572, -inf
        %4623 = vmax.xlane.f32.xlu0 %v4622
        %v4624 = vpop.xlane.xlu0 %4623
        %v4625 = vsel %vm1769, %v4577, -inf
        %4626 = vmax.xlane.f32.xlu0 %v4625
        %v4627 = vpop.xlane.xlu0 %4626
        %v4628 = vsel %vm1769, %v4580, -inf
        %4629 = vmax.xlane.f32.xlu0 %v4628
        %v4630 = vpop.xlane.xlu0 %4629
        %v4631 = vsub.f32 %v4448, %v4585
        %v4632 = vsub.f32 %v4451, %v4588
        %v4633 = vsub.f32 %v4456, %v4591
        %v4634 = vsub.f32 %v4459, %v4594
        %v4635 = vsub.f32 %v4464, %v4597
        %v4636 = vsub.f32 %v4467, %v4600
        %v4637 = vsub.f32 %v4472, %v4603
        %v4638 = vsub.f32 %v4475, %v4606
        %v4639 = vsub.f32 %v4553, %v4609
        %v4640 = vsub.f32 %v4556, %v4612
        %v4641 = vsub.f32 %v4561, %v4615
        %v4642 = vsub.f32 %v4564, %v4618
        %v4643 = vsub.f32 %v4569, %v4621
        %v4644 = vsub.f32 %v4572, %v4624
        %v4645 = vsub.f32 %v4577, %v4627
        %v4646 = vsub.f32 %v4580, %v4630
        %v4647 = vmul.f32 %v4631, 1.442695
        %v4648 = vpow.pop %v4647
        %v4649 = vmul.f32 %v4632, 1.442695
        %v4650 = vpow.pop %v4649
        %v4651 = vmul.f32 %v4633, 1.442695
        %v4652 = vpow.pop %v4651
        %v4653 = vmul.f32 %v4634, 1.442695
        %v4654 = vpow.pop %v4653
        %v4655 = vmul.f32 %v4635, 1.442695
        %v4656 = vpow.pop %v4655
        %v4657 = vmul.f32 %v4636, 1.442695
        %v4658 = vpow.pop %v4657
        %v4659 = vmul.f32 %v4637, 1.442695
        %v4660 = vpow.pop %v4659
        %v4661 = vmul.f32 %v4638, 1.442695
        %v4662 = vpow.pop %v4661
        %v4663 = vmul.f32 %v4639, 1.442695
        %v4664 = vpow.pop %v4663
        %v4665 = vmul.f32 %v4640, 1.442695
        %v4666 = vpow.pop %v4665
        %v4667 = vmul.f32 %v4641, 1.442695
        %v4668 = vpow.pop %v4667
        %v4669 = vmul.f32 %v4642, 1.442695
        %v4670 = vpow.pop %v4669
        %v4671 = vmul.f32 %v4643, 1.442695
        %v4672 = vpow.pop %v4671
        %v4673 = vmul.f32 %v4644, 1.442695
        %v4674 = vpow.pop %v4673
        %v4675 = vmul.f32 %v4645, 1.442695
        %v4676 = vpow.pop %v4675
        %v4677 = vmul.f32 %v4646, 1.442695
        %v4678 = vpow.pop %v4677
        %v4679 = vsel %vm1769, %v4648, 0.0
        %4680 = vadd.xlane.f32.xlu0 %v4679
        %v4681 = vpop.xlane.xlu0 %4680
        %v4682 = vsel %vm1769, %v4650, 0.0
        %4683 = vadd.xlane.f32.xlu0 %v4682
        %v4684 = vpop.xlane.xlu0 %4683
        %v4685 = vsel %vm1769, %v4652, 0.0
        %4686 = vadd.xlane.f32.xlu0 %v4685
        %v4687 = vpop.xlane.xlu0 %4686
        %v4688 = vsel %vm1769, %v4654, 0.0
        %4689 = vadd.xlane.f32.xlu0 %v4688
        %v4690 = vpop.xlane.xlu0 %4689
        %v4691 = vsel %vm1769, %v4656, 0.0
        %4692 = vadd.xlane.f32.xlu0 %v4691
        %v4693 = vpop.xlane.xlu0 %4692
        %v4694 = vsel %vm1769, %v4658, 0.0
        %4695 = vadd.xlane.f32.xlu0 %v4694
        %v4696 = vpop.xlane.xlu0 %4695
        %v4697 = vsel %vm1769, %v4660, 0.0
        %4698 = vadd.xlane.f32.xlu0 %v4697
        %v4699 = vpop.xlane.xlu0 %4698
        %v4700 = vsel %vm1769, %v4662, 0.0
        %4701 = vadd.xlane.f32.xlu0 %v4700
        %v4702 = vpop.xlane.xlu0 %4701
        %v4703 = vsel %vm1769, %v4664, 0.0
        %4704 = vadd.xlane.f32.xlu0 %v4703
        %v4705 = vpop.xlane.xlu0 %4704
        %v4706 = vsel %vm1769, %v4666, 0.0
        %4707 = vadd.xlane.f32.xlu0 %v4706
        %v4708 = vpop.xlane.xlu0 %4707
        %v4709 = vsel %vm1769, %v4668, 0.0
        %4710 = vadd.xlane.f32.xlu0 %v4709
        %v4711 = vpop.xlane.xlu0 %4710
        %v4712 = vsel %vm1769, %v4670, 0.0
        %4713 = vadd.xlane.f32.xlu0 %v4712
        %v4714 = vpop.xlane.xlu0 %4713
        %v4715 = vsel %vm1769, %v4672, 0.0
        %4716 = vadd.xlane.f32.xlu0 %v4715
        %v4717 = vpop.xlane.xlu0 %4716
        %v4718 = vsel %vm1769, %v4674, 0.0
        %4719 = vadd.xlane.f32.xlu0 %v4718
        %v4720 = vpop.xlane.xlu0 %4719
        %v4721 = vsel %vm1769, %v4676, 0.0
        %4722 = vadd.xlane.f32.xlu0 %v4721
        %v4723 = vpop.xlane.xlu0 %4722
        %v4724 = vsel %vm1769, %v4678, 0.0
        %4725 = vadd.xlane.f32.xlu0 %v4724
        %v4726 = vpop.xlane.xlu0 %4725
        %v4727 = vrcp.pop %v4681
        %v4728 = vrcp.pop %v4684
        %v4729 = vrcp.pop %v4687
        %v4730 = vrcp.pop %v4690
        %v4731 = vrcp.pop %v4693
        %v4732 = vrcp.pop %v4696
        %v4733 = vrcp.pop %v4699
        %v4734 = vrcp.pop %v4702
        %v4735 = vrcp.pop %v4705
        %v4736 = vrcp.pop %v4708
        %v4737 = vrcp.pop %v4711
        %v4738 = vrcp.pop %v4714
        %v4739 = vrcp.pop %v4717
        %v4740 = vrcp.pop %v4720
        %v4741 = vrcp.pop %v4723
        %v4742 = vrcp.pop %v4726
        %v4743 = vmul.f32 %v4648, %v4727
        %v4744 = vmul.f32 %v4650, %v4728
        %v4745 = vmul.f32 %v4652, %v4729
        %v4746 = vmul.f32 %v4654, %v4730
        %v4747 = vmul.f32 %v4656, %v4731
        %v4748 = vmul.f32 %v4658, %v4732
        %v4749 = vmul.f32 %v4660, %v4733
        %v4750 = vmul.f32 %v4662, %v4734
        %v4751 = vmul.f32 %v4664, %v4735
        %v4752 = vmul.f32 %v4666, %v4736
        %v4753 = vmul.f32 %v4668, %v4737
        %v4754 = vmul.f32 %v4670, %v4738
        %v4755 = vmul.f32 %v4672, %v4739
        %v4756 = vmul.f32 %v4674, %v4740
        %v4757 = vmul.f32 %v4676, %v4741
        %v4758 = vmul.f32 %v4678, %v4742
        %v4759 = vsel %vm1769, %v4743, -inf
        %4760 = vmax.xlane.f32.xlu0 %v4759
        %v4761 = vpop.xlane.xlu0 %4760
        %v4762 = vsel %vm1769, %v4744, -inf
        %4763 = vmax.xlane.f32.xlu0 %v4762
        %v4764 = vpop.xlane.xlu0 %4763
        %v4765 = vsel %vm1769, %v4745, -inf
        %4766 = vmax.xlane.f32.xlu0 %v4765
        %v4767 = vpop.xlane.xlu0 %4766
        %v4768 = vsel %vm1769, %v4746, -inf
        %4769 = vmax.xlane.f32.xlu0 %v4768
        %v4770 = vpop.xlane.xlu0 %4769
        %v4771 = vsel %vm1769, %v4747, -inf
        %4772 = vmax.xlane.f32.xlu0 %v4771
        %v4773 = vpop.xlane.xlu0 %4772
        %v4774 = vsel %vm1769, %v4748, -inf
        %4775 = vmax.xlane.f32.xlu0 %v4774
        %v4776 = vpop.xlane.xlu0 %4775
        %v4777 = vsel %vm1769, %v4749, -inf
        %4778 = vmax.xlane.f32.xlu0 %v4777
        %v4779 = vpop.xlane.xlu0 %4778
        %v4780 = vsel %vm1769, %v4750, -inf
        %4781 = vmax.xlane.f32.xlu0 %v4780
        %v4782 = vpop.xlane.xlu0 %4781
        %v4783 = vsel %vm1769, %v4751, -inf
        %4784 = vmax.xlane.f32.xlu0 %v4783
        %v4785 = vpop.xlane.xlu0 %4784
        %v4786 = vsel %vm1769, %v4752, -inf
        %4787 = vmax.xlane.f32.xlu0 %v4786
        %v4788 = vpop.xlane.xlu0 %4787
        %v4789 = vsel %vm1769, %v4753, -inf
        %4790 = vmax.xlane.f32.xlu0 %v4789
        %v4791 = vpop.xlane.xlu0 %4790
        %v4792 = vsel %vm1769, %v4754, -inf
        %4793 = vmax.xlane.f32.xlu0 %v4792
        %v4794 = vpop.xlane.xlu0 %4793
        %v4795 = vsel %vm1769, %v4755, -inf
        %4796 = vmax.xlane.f32.xlu0 %v4795
        %v4797 = vpop.xlane.xlu0 %4796
        %v4798 = vsel %vm1769, %v4756, -inf
        %4799 = vmax.xlane.f32.xlu0 %v4798
        %v4800 = vpop.xlane.xlu0 %4799
        %v4801 = vsel %vm1769, %v4757, -inf
        %4802 = vmax.xlane.f32.xlu0 %v4801
        %v4803 = vpop.xlane.xlu0 %4802
        %v4804 = vsel %vm1769, %v4758, -inf
        %4805 = vmax.xlane.f32.xlu0 %v4804
        %v4806 = vpop.xlane.xlu0 %4805
        %v4807 = vsub.f32 %v4743, %v4761
        %v4808 = vsub.f32 %v4744, %v4764
        %v4809 = vsub.f32 %v4745, %v4767
        %v4810 = vsub.f32 %v4746, %v4770
        %v4811 = vsub.f32 %v4747, %v4773
        %v4812 = vsub.f32 %v4748, %v4776
        %v4813 = vsub.f32 %v4749, %v4779
        %v4814 = vsub.f32 %v4750, %v4782
        %v4815 = vsub.f32 %v4751, %v4785
        %v4816 = vsub.f32 %v4752, %v4788
        %v4817 = vsub.f32 %v4753, %v4791
        %v4818 = vsub.f32 %v4754, %v4794
        %v4819 = vsub.f32 %v4755, %v4797
        %v4820 = vsub.f32 %v4756, %v4800
        %v4821 = vsub.f32 %v4757, %v4803
        %v4822 = vsub.f32 %v4758, %v4806
        %v4823 = vmul.f32 %v4807, 1.442695
        %v4824 = vpow.pop %v4823
        %v4825 = vmul.f32 %v4808, 1.442695
        %v4826 = vpow.pop %v4825
        %v4827 = vmul.f32 %v4809, 1.442695
        %v4828 = vpow.pop %v4827
        %v4829 = vmul.f32 %v4810, 1.442695
        %v4830 = vpow.pop %v4829
        %v4831 = vmul.f32 %v4811, 1.442695
        %v4832 = vpow.pop %v4831
        %v4833 = vmul.f32 %v4812, 1.442695
        %v4834 = vpow.pop %v4833
        %v4835 = vmul.f32 %v4813, 1.442695
        %v4836 = vpow.pop %v4835
        %v4837 = vmul.f32 %v4814, 1.442695
        %v4838 = vpow.pop %v4837
        %v4839 = vmul.f32 %v4815, 1.442695
        %v4840 = vpow.pop %v4839
        %v4841 = vmul.f32 %v4816, 1.442695
        %v4842 = vpow.pop %v4841
        %v4843 = vmul.f32 %v4817, 1.442695
        %v4844 = vpow.pop %v4843
        %v4845 = vmul.f32 %v4818, 1.442695
        %v4846 = vpow.pop %v4845
        %v4847 = vmul.f32 %v4819, 1.442695
        %v4848 = vpow.pop %v4847
        %v4849 = vmul.f32 %v4820, 1.442695
        %v4850 = vpow.pop %v4849
        %v4851 = vmul.f32 %v4821, 1.442695
        %v4852 = vpow.pop %v4851
        %v4853 = vmul.f32 %v4822, 1.442695
        %v4854 = vpow.pop %v4853
        %v4855 = vsel %vm1769, %v4824, 0.0
        %4856 = vadd.xlane.f32.xlu0 %v4855
        %v4857 = vpop.xlane.xlu0 %4856
        %v4858 = vsel %vm1769, %v4826, 0.0
        %4859 = vadd.xlane.f32.xlu0 %v4858
        %v4860 = vpop.xlane.xlu0 %4859
        %v4861 = vsel %vm1769, %v4828, 0.0
        %4862 = vadd.xlane.f32.xlu0 %v4861
        %v4863 = vpop.xlane.xlu0 %4862
        %v4864 = vsel %vm1769, %v4830, 0.0
        %4865 = vadd.xlane.f32.xlu0 %v4864
        %v4866 = vpop.xlane.xlu0 %4865
        %v4867 = vsel %vm1769, %v4832, 0.0
        %4868 = vadd.xlane.f32.xlu0 %v4867
        %v4869 = vpop.xlane.xlu0 %4868
        %v4870 = vsel %vm1769, %v4834, 0.0
        %4871 = vadd.xlane.f32.xlu0 %v4870
        %v4872 = vpop.xlane.xlu0 %4871
        %v4873 = vsel %vm1769, %v4836, 0.0
        %4874 = vadd.xlane.f32.xlu0 %v4873
        %v4875 = vpop.xlane.xlu0 %4874
        %v4876 = vsel %vm1769, %v4838, 0.0
        %4877 = vadd.xlane.f32.xlu0 %v4876
        %v4878 = vpop.xlane.xlu0 %4877
        %v4879 = vsel %vm1769, %v4840, 0.0
        %4880 = vadd.xlane.f32.xlu0 %v4879
        %v4881 = vpop.xlane.xlu0 %4880
        %v4882 = vsel %vm1769, %v4842, 0.0
        %4883 = vadd.xlane.f32.xlu0 %v4882
        %v4884 = vpop.xlane.xlu0 %4883
        %v4885 = vsel %vm1769, %v4844, 0.0
        %4886 = vadd.xlane.f32.xlu0 %v4885
        %v4887 = vpop.xlane.xlu0 %4886
        %v4888 = vsel %vm1769, %v4846, 0.0
        %4889 = vadd.xlane.f32.xlu0 %v4888
        %v4890 = vpop.xlane.xlu0 %4889
        %v4891 = vsel %vm1769, %v4848, 0.0
        %4892 = vadd.xlane.f32.xlu0 %v4891
        %v4893 = vpop.xlane.xlu0 %4892
        %v4894 = vsel %vm1769, %v4850, 0.0
        %4895 = vadd.xlane.f32.xlu0 %v4894
        %v4896 = vpop.xlane.xlu0 %4895
        %v4897 = vsel %vm1769, %v4852, 0.0
        %4898 = vadd.xlane.f32.xlu0 %v4897
        %v4899 = vpop.xlane.xlu0 %4898
        %v4900 = vsel %vm1769, %v4854, 0.0
        %4901 = vadd.xlane.f32.xlu0 %v4900
        %v4902 = vpop.xlane.xlu0 %4901
        %v4903 = vrcp.pop %v4857
        %v4904 = vrcp.pop %v4860
        %v4905 = vrcp.pop %v4863
        %v4906 = vrcp.pop %v4866
        %v4907 = vrcp.pop %v4869
        %v4908 = vrcp.pop %v4872
        %v4909 = vrcp.pop %v4875
        %v4910 = vrcp.pop %v4878
        %v4911 = vrcp.pop %v4881
        %v4912 = vrcp.pop %v4884
        %v4913 = vrcp.pop %v4887
        %v4914 = vrcp.pop %v4890
        %v4915 = vrcp.pop %v4893
        %v4916 = vrcp.pop %v4896
        %v4917 = vrcp.pop %v4899
        %v4918 = vrcp.pop %v4902
        %v4919 = vmul.f32 %v4824, %v4903
        %v4920 = vmul.f32 %v4826, %v4904
        %v4921 = vmul.f32 %v4828, %v4905
        %v4922 = vmul.f32 %v4830, %v4906
        %v4923 = vmul.f32 %v4832, %v4907
        %v4924 = vmul.f32 %v4834, %v4908
        %v4925 = vmul.f32 %v4836, %v4909
        %v4926 = vmul.f32 %v4838, %v4910
        %v4927 = vmul.f32 %v4840, %v4911
        %v4928 = vmul.f32 %v4842, %v4912
        %v4929 = vmul.f32 %v4844, %v4913
        %v4930 = vmul.f32 %v4846, %v4914
        %v4931 = vmul.f32 %v4848, %v4915
        %v4932 = vmul.f32 %v4850, %v4916
        %v4933 = vmul.f32 %v4852, %v4917
        %v4934 = vmul.f32 %v4854, %v4918
        %v4935 = vpack.c.bf16 %v4744, %v4743
        %v4936 = vpack.c.bf16 %v4746, %v4745
        %v4937 = vpack.c.bf16 %v4748, %v4747
        %v4938 = vpack.c.bf16 %v4750, %v4749
        %v4939 = vpack.c.bf16 %v4752, %v4751
        %v4940 = vpack.c.bf16 %v4754, %v4753
        %v4941 = vpack.c.bf16 %v4756, %v4755
        %v4942 = vpack.c.bf16 %v4758, %v4757
        %4943 = vrot.lane.b32.xlu0 %v1542, 40
        %v4944 = vpop.permute.xlu0 %4943
        %4945 = vrot.lane.b32.xlu0 %v1543, 40
        %v4946 = vpop.permute.xlu0 %4945
        %4947 = vrot.lane.b32.xlu0 %v1544, 40
        %v4948 = vpop.permute.xlu0 %4947
        %4949 = vrot.lane.b32.xlu0 %v1545, 40
        %v4950 = vpop.permute.xlu0 %4949
        %v4956 = vsel %vm1769, %v4935, 0
        %v4959 = vsel %vm1769, %v4936, 0
        %v4962 = vsel %vm1769, %v4937, 0
        %v4965 = vsel %vm1769, %v4938, 0
        %4967 = vmatprep.subr.bf16.mxu0 0
        %4968 = vmatpush1.bf16.msra.mxu0 0
        %4969 = vmatprep.subr.bf16.mxu0 0
        %4970 = vmatpush1.bf16.msra.mxu0 0
        %4971 = vmatprep.subr.bf16.mxu0 0
        %4972 = vmatpush1.bf16.msra.mxu0 0
        %4973 = vmatprep.subr.bf16.mxu0 0
        %4974 = vmatpush1.bf16.msra.mxu0 0
        %4975 = vmatprep.subr.bf16.mxu0 0
        %4976 = vmatpush1.bf16.msra.mxu0 %v4950
        %4977 = vmatprep.subr.bf16.mxu0 0
        %4978 = vmatpush1.bf16.msra.mxu0 %v4948
        %4979 = vmatprep.subr.bf16.mxu0 0
        %4980 = vmatpush1.bf16.msra.mxu0 %v4946
        %4981 = vmatprep.subr.bf16.mxu0 0
        %4982 = vmatpush1.bf16.msra.mxu0 %v4944
        %4983 = vmatprep.subr.bf16.mxu0 0
        %4984 = vmatpush2.bf16.msra.mxu0 0
        %4985 = vmatprep.subr.bf16.mxu0 0
        %4986 = vmatpush2.bf16.msra.mxu0 0
        %4987 = vmatprep.subr.bf16.mxu0 0
        %4988 = vmatpush2.bf16.msra.mxu0 0
        %4989 = vmatprep.subr.bf16.mxu0 0
        %4990 = vmatpush2.bf16.msra.mxu0 0
        %4991 = vmatprep.subr.bf16.mxu0 0
        %4992 = vmatpush2.bf16.msra.mxu0 0
        %4993 = vmatprep.subr.bf16.mxu0 0
        %4994 = vmatpush2.bf16.msra.mxu0 0
        %4995 = vmatprep.subr.bf16.mxu0 0
        %4996 = vmatpush2.bf16.msra.mxu0 0
        %4997 = vmatprep.subr.bf16.mxu0 0
        %4998 = vmatpush2.bf16.msra.mxu0 0
        %4999 = vmatprep.mubr.bf16.mxu0 0
        %5000 = vmatmul.mubr.bf16.gmra.mxu0 %v4956
        %v5001 = vpop.f32.mrf.mxu0
        %v5002 = vadd.f32 0.0, %v5001
        %v5003 = vpop.f32.mrf.mxu0
        %v5004 = vpop.f32.mrf.mxu0
        %v5005 = vadd.f32 0.0, %v5004
        %v5006 = vpop.f32.mrf.mxu0
        %5007 = vmatprep.mubr.bf16.mxu0 0
        %5008 = vmatmul.mubr.bf16.gmra.mxu0 %v4959
        %v5009 = vpop.f32.mrf.mxu0
        %v5010 = vadd.f32 0.0, %v5009
        %v5011 = vpop.f32.mrf.mxu0
        %v5012 = vpop.f32.mrf.mxu0
        %v5013 = vadd.f32 0.0, %v5012
        %v5014 = vpop.f32.mrf.mxu0
        %5015 = vmatprep.mubr.bf16.mxu0 0
        %5016 = vmatmul.mubr.bf16.gmra.mxu0 %v4962
        %v5017 = vpop.f32.mrf.mxu0
        %v5018 = vadd.f32 0.0, %v5017
        %v5019 = vpop.f32.mrf.mxu0
        %v5020 = vpop.f32.mrf.mxu0
        %v5021 = vadd.f32 0.0, %v5020
        %v5022 = vpop.f32.mrf.mxu0
        %5023 = vmatprep.mubr.bf16.mxu0 0
        %5024 = vmatmul.mubr.bf16.gmra.mxu0 %v4965
        %v5025 = vpop.f32.mrf.mxu0
        %v5026 = vadd.f32 0.0, %v5025
        %v5027 = vpop.f32.mrf.mxu0
        %v5028 = vpop.f32.mrf.mxu0
        %v5029 = vadd.f32 0.0, %v5028
        %v5030 = vpop.f32.mrf.mxu0
        %5031 = vdwg.mxu0
        %5032 = vrot.lane.b32.xlu0 %v1546, 40
        %v5033 = vpop.permute.xlu0 %5032
        %5034 = vrot.lane.b32.xlu0 %v1547, 40
        %v5035 = vpop.permute.xlu0 %5034
        %5036 = vrot.lane.b32.xlu0 %v1548, 40
        %v5037 = vpop.permute.xlu0 %5036
        %5038 = vrot.lane.b32.xlu0 %v1549, 40
        %v5039 = vpop.permute.xlu0 %5038
        %v5045 = vsel %vm1769, %v4939, 0
        %v5048 = vsel %vm1769, %v4940, 0
        %v5051 = vsel %vm1769, %v4941, 0
        %v5054 = vsel %vm1769, %v4942, 0
        %5056 = vmatprep.subr.bf16.mxu0 0
        %5057 = vmatpush1.bf16.msra.mxu0 0
        %5058 = vmatprep.subr.bf16.mxu0 0
        %5059 = vmatpush1.bf16.msra.mxu0 0
        %5060 = vmatprep.subr.bf16.mxu0 0
        %5061 = vmatpush1.bf16.msra.mxu0 0
        %5062 = vmatprep.subr.bf16.mxu0 0
        %5063 = vmatpush1.bf16.msra.mxu0 0
        %5064 = vmatprep.subr.bf16.mxu0 0
        %5065 = vmatpush1.bf16.msra.mxu0 %v5039
        %5066 = vmatprep.subr.bf16.mxu0 0
        %5067 = vmatpush1.bf16.msra.mxu0 %v5037
        %5068 = vmatprep.subr.bf16.mxu0 0
        %5069 = vmatpush1.bf16.msra.mxu0 %v5035
        %5070 = vmatprep.subr.bf16.mxu0 0
        %5071 = vmatpush1.bf16.msra.mxu0 %v5033
        %5072 = vmatprep.subr.bf16.mxu0 0
        %5073 = vmatpush2.bf16.msra.mxu0 0
        %5074 = vmatprep.subr.bf16.mxu0 0
        %5075 = vmatpush2.bf16.msra.mxu0 0
        %5076 = vmatprep.subr.bf16.mxu0 0
        %5077 = vmatpush2.bf16.msra.mxu0 0
        %5078 = vmatprep.subr.bf16.mxu0 0
        %5079 = vmatpush2.bf16.msra.mxu0 0
        %5080 = vmatprep.subr.bf16.mxu0 0
        %5081 = vmatpush2.bf16.msra.mxu0 0
        %5082 = vmatprep.subr.bf16.mxu0 0
        %5083 = vmatpush2.bf16.msra.mxu0 0
        %5084 = vmatprep.subr.bf16.mxu0 0
        %5085 = vmatpush2.bf16.msra.mxu0 0
        %5086 = vmatprep.subr.bf16.mxu0 0
        %5087 = vmatpush2.bf16.msra.mxu0 0
        %5088 = vmatprep.mubr.bf16.mxu0 0
        %5089 = vmatmul.mubr.bf16.gmra.mxu0 %v5045
        %v5090 = vpop.f32.mrf.mxu0
        %v5091 = vadd.f32 0.0, %v5090
        %v5092 = vpop.f32.mrf.mxu0
        %v5093 = vpop.f32.mrf.mxu0
        %v5094 = vadd.f32 0.0, %v5093
        %v5095 = vpop.f32.mrf.mxu0
        %5096 = vmatprep.mubr.bf16.mxu0 0
        %5097 = vmatmul.mubr.bf16.gmra.mxu0 %v5048
        %v5098 = vpop.f32.mrf.mxu0
        %v5099 = vadd.f32 0.0, %v5098
        %v5100 = vpop.f32.mrf.mxu0
        %v5101 = vpop.f32.mrf.mxu0
        %v5102 = vadd.f32 0.0, %v5101
        %v5103 = vpop.f32.mrf.mxu0
        %5104 = vmatprep.mubr.bf16.mxu0 0
        %5105 = vmatmul.mubr.bf16.gmra.mxu0 %v5051
        %v5106 = vpop.f32.mrf.mxu0
        %v5107 = vadd.f32 0.0, %v5106
        %v5108 = vpop.f32.mrf.mxu0
        %v5109 = vpop.f32.mrf.mxu0
        %v5110 = vadd.f32 0.0, %v5109
        %v5111 = vpop.f32.mrf.mxu0
        %5112 = vmatprep.mubr.bf16.mxu0 0
        %5113 = vmatmul.mubr.bf16.gmra.mxu0 %v5054
        %v5114 = vpop.f32.mrf.mxu0
        %v5115 = vadd.f32 0.0, %v5114
        %v5116 = vpop.f32.mrf.mxu0
        %v5117 = vpop.f32.mrf.mxu0
        %v5118 = vadd.f32 0.0, %v5117
        %v5119 = vpop.f32.mrf.mxu0
        %5120 = vdwg.mxu0
        %v5121 = vpack.c.bf16 %v4920, %v4919
        %v5122 = vpack.c.bf16 %v4922, %v4921
        %v5123 = vpack.c.bf16 %v4924, %v4923
        %v5124 = vpack.c.bf16 %v4926, %v4925
        %v5125 = vpack.c.bf16 %v4928, %v4927
        %v5126 = vpack.c.bf16 %v4930, %v4929
        %v5127 = vpack.c.bf16 %v4932, %v4931
        %v5128 = vpack.c.bf16 %v4934, %v4933
        %5129 = vrot.lane.b32.xlu0 %v1550, 104
        %v5130 = vpop.permute.xlu0 %5129
        %5131 = vrot.lane.b32.xlu0 %v1551, 104
        %v5132 = vpop.permute.xlu0 %5131
        %5133 = vrot.lane.b32.xlu0 %v1552, 104
        %v5134 = vpop.permute.xlu0 %5133
        %5135 = vrot.lane.b32.xlu0 %v1553, 104
        %v5136 = vpop.permute.xlu0 %5135
        %v5142 = vsel %vm1769, %v5121, 0
        %v5145 = vsel %vm1769, %v5122, 0
        %v5148 = vsel %vm1769, %v5123, 0
        %v5151 = vsel %vm1769, %v5124, 0
        %5153 = vmatprep.subr.bf16.mxu0 0
        %5154 = vmatpush1.bf16.msra.mxu0 0
        %5155 = vmatprep.subr.bf16.mxu0 0
        %5156 = vmatpush1.bf16.msra.mxu0 0
        %5157 = vmatprep.subr.bf16.mxu0 0
        %5158 = vmatpush1.bf16.msra.mxu0 0
        %5159 = vmatprep.subr.bf16.mxu0 0
        %5160 = vmatpush1.bf16.msra.mxu0 0
        %5161 = vmatprep.subr.bf16.mxu0 0
        %5162 = vmatpush1.bf16.msra.mxu0 %v5136
        %5163 = vmatprep.subr.bf16.mxu0 0
        %5164 = vmatpush1.bf16.msra.mxu0 %v5134
        %5165 = vmatprep.subr.bf16.mxu0 0
        %5166 = vmatpush1.bf16.msra.mxu0 %v5132
        %5167 = vmatprep.subr.bf16.mxu0 0
        %5168 = vmatpush1.bf16.msra.mxu0 %v5130
        %5169 = vmatprep.subr.bf16.mxu0 0
        %5170 = vmatpush2.bf16.msra.mxu0 0
        %5171 = vmatprep.subr.bf16.mxu0 0
        %5172 = vmatpush2.bf16.msra.mxu0 0
        %5173 = vmatprep.subr.bf16.mxu0 0
        %5174 = vmatpush2.bf16.msra.mxu0 0
        %5175 = vmatprep.subr.bf16.mxu0 0
        %5176 = vmatpush2.bf16.msra.mxu0 0
        %5177 = vmatprep.subr.bf16.mxu0 0
        %5178 = vmatpush2.bf16.msra.mxu0 0
        %5179 = vmatprep.subr.bf16.mxu0 0
        %5180 = vmatpush2.bf16.msra.mxu0 0
        %5181 = vmatprep.subr.bf16.mxu0 0
        %5182 = vmatpush2.bf16.msra.mxu0 0
        %5183 = vmatprep.subr.bf16.mxu0 0
        %5184 = vmatpush2.bf16.msra.mxu0 0
        %5185 = vmatprep.mubr.bf16.mxu0 0
        %5186 = vmatmul.mubr.bf16.gmra.mxu0 %v5142
        %v5187 = vpop.f32.mrf.mxu0
        %v5188 = vadd.f32 0.0, %v5187
        %v5189 = vpop.f32.mrf.mxu0
        %v5190 = vpop.f32.mrf.mxu0
        %v5191 = vadd.f32 0.0, %v5190
        %v5192 = vpop.f32.mrf.mxu0
        %5193 = vmatprep.mubr.bf16.mxu0 0
        %5194 = vmatmul.mubr.bf16.gmra.mxu0 %v5145
        %v5195 = vpop.f32.mrf.mxu0
        %v5196 = vadd.f32 0.0, %v5195
        %v5197 = vpop.f32.mrf.mxu0
        %v5198 = vpop.f32.mrf.mxu0
        %v5199 = vadd.f32 0.0, %v5198
        %v5200 = vpop.f32.mrf.mxu0
        %5201 = vmatprep.mubr.bf16.mxu0 0
        %5202 = vmatmul.mubr.bf16.gmra.mxu0 %v5148
        %v5203 = vpop.f32.mrf.mxu0
        %v5204 = vadd.f32 0.0, %v5203
        %v5205 = vpop.f32.mrf.mxu0
        %v5206 = vpop.f32.mrf.mxu0
        %v5207 = vadd.f32 0.0, %v5206
        %v5208 = vpop.f32.mrf.mxu0
        %5209 = vmatprep.mubr.bf16.mxu0 0
        %5210 = vmatmul.mubr.bf16.gmra.mxu0 %v5151
        %v5211 = vpop.f32.mrf.mxu0
        %v5212 = vadd.f32 0.0, %v5211
        %v5213 = vpop.f32.mrf.mxu0
        %v5214 = vpop.f32.mrf.mxu0
        %v5215 = vadd.f32 0.0, %v5214
        %v5216 = vpop.f32.mrf.mxu0
        %5217 = vdwg.mxu0
        %5218 = vrot.lane.b32.xlu0 %v1554, 104
        %v5219 = vpop.permute.xlu0 %5218
        %5220 = vrot.lane.b32.xlu0 %v1555, 104
        %v5221 = vpop.permute.xlu0 %5220
        %5222 = vrot.lane.b32.xlu0 %v1556, 104
        %v5223 = vpop.permute.xlu0 %5222
        %5224 = vrot.lane.b32.xlu0 %v1557, 104
        %v5225 = vpop.permute.xlu0 %5224
        %v5231 = vsel %vm1769, %v5125, 0
        %v5234 = vsel %vm1769, %v5126, 0
        %v5237 = vsel %vm1769, %v5127, 0
        %v5240 = vsel %vm1769, %v5128, 0
        %5242 = vmatprep.subr.bf16.mxu0 0
        %5243 = vmatpush1.bf16.msra.mxu0 0
        %5244 = vmatprep.subr.bf16.mxu0 0
        %5245 = vmatpush1.bf16.msra.mxu0 0
        %5246 = vmatprep.subr.bf16.mxu0 0
        %5247 = vmatpush1.bf16.msra.mxu0 0
        %5248 = vmatprep.subr.bf16.mxu0 0
        %5249 = vmatpush1.bf16.msra.mxu0 0
        %5250 = vmatprep.subr.bf16.mxu0 0
        %5251 = vmatpush1.bf16.msra.mxu0 %v5225
        %5252 = vmatprep.subr.bf16.mxu0 0
        %5253 = vmatpush1.bf16.msra.mxu0 %v5223
        %5254 = vmatprep.subr.bf16.mxu0 0
        %5255 = vmatpush1.bf16.msra.mxu0 %v5221
        %5256 = vmatprep.subr.bf16.mxu0 0
        %5257 = vmatpush1.bf16.msra.mxu0 %v5219
        %5258 = vmatprep.subr.bf16.mxu0 0
        %5259 = vmatpush2.bf16.msra.mxu0 0
        %5260 = vmatprep.subr.bf16.mxu0 0
        %5261 = vmatpush2.bf16.msra.mxu0 0
        %5262 = vmatprep.subr.bf16.mxu0 0
        %5263 = vmatpush2.bf16.msra.mxu0 0
        %5264 = vmatprep.subr.bf16.mxu0 0
        %5265 = vmatpush2.bf16.msra.mxu0 0
        %5266 = vmatprep.subr.bf16.mxu0 0
        %5267 = vmatpush2.bf16.msra.mxu0 0
        %5268 = vmatprep.subr.bf16.mxu0 0
        %5269 = vmatpush2.bf16.msra.mxu0 0
        %5270 = vmatprep.subr.bf16.mxu0 0
        %5271 = vmatpush2.bf16.msra.mxu0 0
        %5272 = vmatprep.subr.bf16.mxu0 0
        %5273 = vmatpush2.bf16.msra.mxu0 0
        %5274 = vmatprep.mubr.bf16.mxu0 0
        %5275 = vmatmul.mubr.bf16.gmra.mxu0 %v5231
        %v5276 = vpop.f32.mrf.mxu0
        %v5277 = vadd.f32 0.0, %v5276
        %v5278 = vpop.f32.mrf.mxu0
        %v5279 = vpop.f32.mrf.mxu0
        %v5280 = vadd.f32 0.0, %v5279
        %v5281 = vpop.f32.mrf.mxu0
        %5282 = vmatprep.mubr.bf16.mxu0 0
        %5283 = vmatmul.mubr.bf16.gmra.mxu0 %v5234
        %v5284 = vpop.f32.mrf.mxu0
        %v5285 = vadd.f32 0.0, %v5284
        %v5286 = vpop.f32.mrf.mxu0
        %v5287 = vpop.f32.mrf.mxu0
        %v5288 = vadd.f32 0.0, %v5287
        %v5289 = vpop.f32.mrf.mxu0
        %5290 = vmatprep.mubr.bf16.mxu0 0
        %5291 = vmatmul.mubr.bf16.gmra.mxu0 %v5237
        %v5292 = vpop.f32.mrf.mxu0
        %v5293 = vadd.f32 0.0, %v5292
        %v5294 = vpop.f32.mrf.mxu0
        %v5295 = vpop.f32.mrf.mxu0
        %v5296 = vadd.f32 0.0, %v5295
        %v5297 = vpop.f32.mrf.mxu0
        %5298 = vmatprep.mubr.bf16.mxu0 0
        %5299 = vmatmul.mubr.bf16.gmra.mxu0 %v5240
        %v5300 = vpop.f32.mrf.mxu0
        %v5301 = vadd.f32 0.0, %v5300
        %v5302 = vpop.f32.mrf.mxu0
        %v5303 = vpop.f32.mrf.mxu0
        %v5304 = vadd.f32 0.0, %v5303
        %v5305 = vpop.f32.mrf.mxu0
        %5306 = vdwg.mxu0
        %5323 = vrot.lane.b32.xlu0 %v3108, 8
        %v5324 = vpop.permute.xlu0 %5323
        %5325 = vrot.lane.b32.xlu0 %v3111, 8
        %v5326 = vpop.permute.xlu0 %5325
        %5327 = vrot.lane.b32.xlu0 %v3116, 8
        %v5328 = vpop.permute.xlu0 %5327
        %5329 = vrot.lane.b32.xlu0 %v3119, 8
        %v5330 = vpop.permute.xlu0 %5329
        %5331 = vrot.lane.b32.xlu0 %v3124, 8
        %v5332 = vpop.permute.xlu0 %5331
        %5333 = vrot.lane.b32.xlu0 %v3127, 8
        %v5334 = vpop.permute.xlu0 %5333
        %5335 = vrot.lane.b32.xlu0 %v3132, 8
        %v5336 = vpop.permute.xlu0 %5335
        %5337 = vrot.lane.b32.xlu0 %v3135, 8
        %v5338 = vpop.permute.xlu0 %5337
        %5339 = vrot.lane.b32.xlu0 %v3197, 8
        %v5340 = vpop.permute.xlu0 %5339
        %5341 = vrot.lane.b32.xlu0 %v3200, 8
        %v5342 = vpop.permute.xlu0 %5341
        %5343 = vrot.lane.b32.xlu0 %v3205, 8
        %v5344 = vpop.permute.xlu0 %5343
        %5345 = vrot.lane.b32.xlu0 %v3208, 8
        %v5346 = vpop.permute.xlu0 %5345
        %5347 = vrot.lane.b32.xlu0 %v3213, 8
        %v5348 = vpop.permute.xlu0 %5347
        %5349 = vrot.lane.b32.xlu0 %v3216, 8
        %v5350 = vpop.permute.xlu0 %5349
        %5351 = vrot.lane.b32.xlu0 %v3221, 8
        %v5352 = vpop.permute.xlu0 %5351
        %5353 = vrot.lane.b32.xlu0 %v3224, 8
        %v5354 = vpop.permute.xlu0 %5353
        %5387 = vrot.lane.b32.xlu0 %v4059, 16
        %v5388 = vpop.permute.xlu0 %5387
        %5389 = vrot.lane.b32.xlu0 %v4062, 16
        %v5390 = vpop.permute.xlu0 %5389
        %5391 = vrot.lane.b32.xlu0 %v4067, 16
        %v5392 = vpop.permute.xlu0 %5391
        %5393 = vrot.lane.b32.xlu0 %v4070, 16
        %v5394 = vpop.permute.xlu0 %5393
        %5395 = vrot.lane.b32.xlu0 %v4075, 16
        %v5396 = vpop.permute.xlu0 %5395
        %5397 = vrot.lane.b32.xlu0 %v4078, 16
        %v5398 = vpop.permute.xlu0 %5397
        %5399 = vrot.lane.b32.xlu0 %v4083, 16
        %v5400 = vpop.permute.xlu0 %5399
        %5401 = vrot.lane.b32.xlu0 %v4086, 16
        %v5402 = vpop.permute.xlu0 %5401
        %5403 = vrot.lane.b32.xlu0 %v4148, 16
        %v5404 = vpop.permute.xlu0 %5403
        %5405 = vrot.lane.b32.xlu0 %v4151, 16
        %v5406 = vpop.permute.xlu0 %5405
        %5407 = vrot.lane.b32.xlu0 %v4156, 16
        %v5408 = vpop.permute.xlu0 %5407
        %5409 = vrot.lane.b32.xlu0 %v4159, 16
        %v5410 = vpop.permute.xlu0 %5409
        %5411 = vrot.lane.b32.xlu0 %v4164, 16
        %v5412 = vpop.permute.xlu0 %5411
        %5413 = vrot.lane.b32.xlu0 %v4167, 16
        %v5414 = vpop.permute.xlu0 %5413
        %5415 = vrot.lane.b32.xlu0 %v4172, 16
        %v5416 = vpop.permute.xlu0 %5415
        %5417 = vrot.lane.b32.xlu0 %v4175, 16
        %v5418 = vpop.permute.xlu0 %5417
        %5451 = vrot.lane.b32.xlu0 %v5002, 24
        %v5452 = vpop.permute.xlu0 %5451
        %5453 = vrot.lane.b32.xlu0 %v5005, 24
        %v5454 = vpop.permute.xlu0 %5453
        %5455 = vrot.lane.b32.xlu0 %v5010, 24
        %v5456 = vpop.permute.xlu0 %5455
        %5457 = vrot.lane.b32.xlu0 %v5013, 24
        %v5458 = vpop.permute.xlu0 %5457
        %5459 = vrot.lane.b32.xlu0 %v5018, 24
        %v5460 = vpop.permute.xlu0 %5459
        %5461 = vrot.lane.b32.xlu0 %v5021, 24
        %v5462 = vpop.permute.xlu0 %5461
        %5463 = vrot.lane.b32.xlu0 %v5026, 24
        %v5464 = vpop.permute.xlu0 %5463
        %5465 = vrot.lane.b32.xlu0 %v5029, 24
        %v5466 = vpop.permute.xlu0 %5465
        %5467 = vrot.lane.b32.xlu0 %v5091, 24
        %v5468 = vpop.permute.xlu0 %5467
        %5469 = vrot.lane.b32.xlu0 %v5094, 24
        %v5470 = vpop.permute.xlu0 %5469
        %5471 = vrot.lane.b32.xlu0 %v5099, 24
        %v5472 = vpop.permute.xlu0 %5471
        %5473 = vrot.lane.b32.xlu0 %v5102, 24
        %v5474 = vpop.permute.xlu0 %5473
        %5475 = vrot.lane.b32.xlu0 %v5107, 24
        %v5476 = vpop.permute.xlu0 %5475
        %5477 = vrot.lane.b32.xlu0 %v5110, 24
        %v5478 = vpop.permute.xlu0 %5477
        %5479 = vrot.lane.b32.xlu0 %v5115, 24
        %v5480 = vpop.permute.xlu0 %5479
        %5481 = vrot.lane.b32.xlu0 %v5118, 24
        %v5482 = vpop.permute.xlu0 %5481
        %v5499 = vsel %vm1578, %v2189, %v5324
        %v5500 = vsel %vm1578, %v2192, %v5326
        %v5501 = vsel %vm1578, %v2197, %v5328
        %v5502 = vsel %vm1578, %v2200, %v5330
        %v5503 = vsel %vm1578, %v2205, %v5332
        %v5504 = vsel %vm1578, %v2208, %v5334
        %v5505 = vsel %vm1578, %v2213, %v5336
        %v5506 = vsel %vm1578, %v2216, %v5338
        %v5507 = vsel %vm1578, %v2278, %v5340
        %v5508 = vsel %vm1578, %v2281, %v5342
        %v5509 = vsel %vm1578, %v2286, %v5344
        %v5510 = vsel %vm1578, %v2289, %v5346
        %v5511 = vsel %vm1578, %v2294, %v5348
        %v5512 = vsel %vm1578, %v2297, %v5350
        %v5513 = vsel %vm1578, %v2302, %v5352
        %v5514 = vsel %vm1578, %v2305, %v5354
        %vm5515 = vcmask 130048
        %v5516 = vsel %vm5515, %v5499, %v5388
        %v5517 = vsel %vm5515, %v5500, %v5390
        %v5518 = vsel %vm5515, %v5501, %v5392
        %v5519 = vsel %vm5515, %v5502, %v5394
        %v5520 = vsel %vm5515, %v5503, %v5396
        %v5521 = vsel %vm5515, %v5504, %v5398
        %v5522 = vsel %vm5515, %v5505, %v5400
        %v5523 = vsel %vm5515, %v5506, %v5402
        %v5524 = vsel %vm5515, %v5507, %v5404
        %v5525 = vsel %vm5515, %v5508, %v5406
        %v5526 = vsel %vm5515, %v5509, %v5408
        %v5527 = vsel %vm5515, %v5510, %v5410
        %v5528 = vsel %vm5515, %v5511, %v5412
        %v5529 = vsel %vm5515, %v5512, %v5414
        %v5530 = vsel %vm5515, %v5513, %v5416
        %v5531 = vsel %vm5515, %v5514, %v5418
        %vm5532 = vcmask 195584
        %v5533 = vsel %vm5532, %v5516, %v5452
        %v5534 = vsel %vm5532, %v5517, %v5454
        %v5535 = vsel %vm5532, %v5518, %v5456
        %v5536 = vsel %vm5532, %v5519, %v5458
        %v5537 = vsel %vm5532, %v5520, %v5460
        %v5538 = vsel %vm5532, %v5521, %v5462
        %v5539 = vsel %vm5532, %v5522, %v5464
        %v5540 = vsel %vm5532, %v5523, %v5466
        %v5541 = vsel %vm5532, %v5524, %v5468
        %v5542 = vsel %vm5532, %v5525, %v5470
        %v5543 = vsel %vm5532, %v5526, %v5472
        %v5544 = vsel %vm5532, %v5527, %v5474
        %v5545 = vsel %vm5532, %v5528, %v5476
        %v5546 = vsel %vm5532, %v5529, %v5478
        %v5547 = vsel %vm5532, %v5530, %v5480
        %v5548 = vsel %vm5532, %v5531, %v5482
        %5565 = vrot.lane.b32.xlu0 %v3298, 8
        %v5566 = vpop.permute.xlu0 %5565
        %5567 = vrot.lane.b32.xlu0 %v3301, 8
        %v5568 = vpop.permute.xlu0 %5567
        %5569 = vrot.lane.b32.xlu0 %v3306, 8
        %v5570 = vpop.permute.xlu0 %5569
        %5571 = vrot.lane.b32.xlu0 %v3309, 8
        %v5572 = vpop.permute.xlu0 %5571
        %5573 = vrot.lane.b32.xlu0 %v3314, 8
        %v5574 = vpop.permute.xlu0 %5573
        %5575 = vrot.lane.b32.xlu0 %v3317, 8
        %v5576 = vpop.permute.xlu0 %5575
        %5577 = vrot.lane.b32.xlu0 %v3322, 8
        %v5578 = vpop.permute.xlu0 %5577
        %5579 = vrot.lane.b32.xlu0 %v3325, 8
        %v5580 = vpop.permute.xlu0 %5579
        %5581 = vrot.lane.b32.xlu0 %v3391, 8
        %v5582 = vpop.permute.xlu0 %5581
        %5583 = vrot.lane.b32.xlu0 %v3394, 8
        %v5584 = vpop.permute.xlu0 %5583
        %5585 = vrot.lane.b32.xlu0 %v3399, 8
        %v5586 = vpop.permute.xlu0 %5585
        %5587 = vrot.lane.b32.xlu0 %v3402, 8
        %v5588 = vpop.permute.xlu0 %5587
        %5589 = vrot.lane.b32.xlu0 %v3407, 8
        %v5590 = vpop.permute.xlu0 %5589
        %5591 = vrot.lane.b32.xlu0 %v3410, 8
        %v5592 = vpop.permute.xlu0 %5591
        %5593 = vrot.lane.b32.xlu0 %v3415, 8
        %v5594 = vpop.permute.xlu0 %5593
        %5595 = vrot.lane.b32.xlu0 %v3418, 8
        %v5596 = vpop.permute.xlu0 %5595
        %5629 = vrot.lane.b32.xlu0 %v4245, 16
        %v5630 = vpop.permute.xlu0 %5629
        %5631 = vrot.lane.b32.xlu0 %v4248, 16
        %v5632 = vpop.permute.xlu0 %5631
        %5633 = vrot.lane.b32.xlu0 %v4253, 16
        %v5634 = vpop.permute.xlu0 %5633
        %5635 = vrot.lane.b32.xlu0 %v4256, 16
        %v5636 = vpop.permute.xlu0 %5635
        %5637 = vrot.lane.b32.xlu0 %v4261, 16
        %v5638 = vpop.permute.xlu0 %5637
        %5639 = vrot.lane.b32.xlu0 %v4264, 16
        %v5640 = vpop.permute.xlu0 %5639
        %5641 = vrot.lane.b32.xlu0 %v4269, 16
        %v5642 = vpop.permute.xlu0 %5641
        %5643 = vrot.lane.b32.xlu0 %v4272, 16
        %v5644 = vpop.permute.xlu0 %5643
        %5645 = vrot.lane.b32.xlu0 %v4334, 16
        %v5646 = vpop.permute.xlu0 %5645
        %5647 = vrot.lane.b32.xlu0 %v4337, 16
        %v5648 = vpop.permute.xlu0 %5647
        %5649 = vrot.lane.b32.xlu0 %v4342, 16
        %v5650 = vpop.permute.xlu0 %5649
        %5651 = vrot.lane.b32.xlu0 %v4345, 16
        %v5652 = vpop.permute.xlu0 %5651
        %5653 = vrot.lane.b32.xlu0 %v4350, 16
        %v5654 = vpop.permute.xlu0 %5653
        %5655 = vrot.lane.b32.xlu0 %v4353, 16
        %v5656 = vpop.permute.xlu0 %5655
        %5657 = vrot.lane.b32.xlu0 %v4358, 16
        %v5658 = vpop.permute.xlu0 %5657
        %5659 = vrot.lane.b32.xlu0 %v4361, 16
        %v5660 = vpop.permute.xlu0 %5659
        %5693 = vrot.lane.b32.xlu0 %v5188, 24
        %v5694 = vpop.permute.xlu0 %5693
        %5695 = vrot.lane.b32.xlu0 %v5191, 24
        %v5696 = vpop.permute.xlu0 %5695
        %5697 = vrot.lane.b32.xlu0 %v5196, 24
        %v5698 = vpop.permute.xlu0 %5697
        %5699 = vrot.lane.b32.xlu0 %v5199, 24
        %v5700 = vpop.permute.xlu0 %5699
        %5701 = vrot.lane.b32.xlu0 %v5204, 24
        %v5702 = vpop.permute.xlu0 %5701
        %5703 = vrot.lane.b32.xlu0 %v5207, 24
        %v5704 = vpop.permute.xlu0 %5703
        %5705 = vrot.lane.b32.xlu0 %v5212, 24
        %v5706 = vpop.permute.xlu0 %5705
        %5707 = vrot.lane.b32.xlu0 %v5215, 24
        %v5708 = vpop.permute.xlu0 %5707
        %5709 = vrot.lane.b32.xlu0 %v5277, 24
        %v5710 = vpop.permute.xlu0 %5709
        %5711 = vrot.lane.b32.xlu0 %v5280, 24
        %v5712 = vpop.permute.xlu0 %5711
        %5713 = vrot.lane.b32.xlu0 %v5285, 24
        %v5714 = vpop.permute.xlu0 %5713
        %5715 = vrot.lane.b32.xlu0 %v5288, 24
        %v5716 = vpop.permute.xlu0 %5715
        %5717 = vrot.lane.b32.xlu0 %v5293, 24
        %v5718 = vpop.permute.xlu0 %5717
        %5719 = vrot.lane.b32.xlu0 %v5296, 24
        %v5720 = vpop.permute.xlu0 %5719
        %5721 = vrot.lane.b32.xlu0 %v5301, 24
        %v5722 = vpop.permute.xlu0 %5721
        %5723 = vrot.lane.b32.xlu0 %v5304, 24
        %v5724 = vpop.permute.xlu0 %5723
        %v5741 = vsel %vm1578, %v2363, %v5566
        %v5742 = vsel %vm1578, %v2366, %v5568
        %v5743 = vsel %vm1578, %v2371, %v5570
        %v5744 = vsel %vm1578, %v2374, %v5572
        %v5745 = vsel %vm1578, %v2379, %v5574
        %v5746 = vsel %vm1578, %v2382, %v5576
        %v5747 = vsel %vm1578, %v2387, %v5578
        %v5748 = vsel %vm1578, %v2390, %v5580
        %v5749 = vsel %vm1578, %v2440, %v5582
        %v5750 = vsel %vm1578, %v2443, %v5584
        %v5751 = vsel %vm1578, %v2448, %v5586
        %v5752 = vsel %vm1578, %v2451, %v5588
        %v5753 = vsel %vm1578, %v2456, %v5590
        %v5754 = vsel %vm1578, %v2459, %v5592
        %v5755 = vsel %vm1578, %v2464, %v5594
        %v5756 = vsel %vm1578, %v2467, %v5596
        %v5757 = vsel %vm5515, %v5741, %v5630
        %v5758 = vsel %vm5515, %v5742, %v5632
        %v5759 = vsel %vm5515, %v5743, %v5634
        %v5760 = vsel %vm5515, %v5744, %v5636
        %v5761 = vsel %vm5515, %v5745, %v5638
        %v5762 = vsel %vm5515, %v5746, %v5640
        %v5763 = vsel %vm5515, %v5747, %v5642
        %v5764 = vsel %vm5515, %v5748, %v5644
        %v5765 = vsel %vm5515, %v5749, %v5646
        %v5766 = vsel %vm5515, %v5750, %v5648
        %v5767 = vsel %vm5515, %v5751, %v5650
        %v5768 = vsel %vm5515, %v5752, %v5652
        %v5769 = vsel %vm5515, %v5753, %v5654
        %v5770 = vsel %vm5515, %v5754, %v5656
        %v5771 = vsel %vm5515, %v5755, %v5658
        %v5772 = vsel %vm5515, %v5756, %v5660
        %v5773 = vsel %vm5532, %v5757, %v5694
        %v5774 = vsel %vm5532, %v5758, %v5696
        %v5775 = vsel %vm5532, %v5759, %v5698
        %v5776 = vsel %vm5532, %v5760, %v5700
        %v5777 = vsel %vm5532, %v5761, %v5702
        %v5778 = vsel %vm5532, %v5762, %v5704
        %v5779 = vsel %vm5532, %v5763, %v5706
        %v5780 = vsel %vm5532, %v5764, %v5708
        %v5781 = vsel %vm5532, %v5765, %v5710
        %v5782 = vsel %vm5532, %v5766, %v5712
        %v5783 = vsel %vm5532, %v5767, %v5714
        %v5784 = vsel %vm5532, %v5768, %v5716
        %v5785 = vsel %vm5532, %v5769, %v5718
        %v5786 = vsel %vm5532, %v5770, %v5720
        %v5787 = vsel %vm5532, %v5771, %v5722
        %v5788 = vsel %vm5532, %v5772, %v5724
        %v5789 = vpack.c.bf16 %v5534, %v5533
        %v5790 = vpack.c.bf16 %v5536, %v5535
        %v5791 = vpack.c.bf16 %v5538, %v5537
        %v5792 = vpack.c.bf16 %v5540, %v5539
        %v5793 = vpack.c.bf16 %v5542, %v5541
        %v5794 = vpack.c.bf16 %v5544, %v5543
        %v5795 = vpack.c.bf16 %v5546, %v5545
        %v5796 = vpack.c.bf16 %v5548, %v5547
        %v5797 = vld [vmem:[%s8] sm:$0xf]
        %v5798 = vld [vmem:[%s8 + $0x4] sm:$0xf]
        %v5799 = vld [vmem:[%s8 + $0x8] sm:$0xf]
        %v5800 = vld [vmem:[%s8 + $0xc] sm:$0xf]
        %v5801 = vld [vmem:[%s9] sm:$0x1]
        %v5803 = vlaneseq
        %v5804 = vshrl.u32 %v5803, 7
        %v5805 = vsub.s32 0, %v5804
        %v5806 = vrot.slane %v5801, %v5805
        %v5812 = vunpack.c.l.b16 %v5797
        %v5813 = vunpack.c.l.b16 %v5798
        %v5814 = vunpack.c.l.b16 %v5799
        %v5815 = vunpack.c.l.b16 %v5800
        %v5816 = vpack.c.b16 %v5813, %v5812
        %v5817 = vpack.c.b16 %v5815, %v5814
        %v5821 = vsel %vm744, %v5789, 0
        %v5824 = vsel %vm744, %v5790, 0
        %v5827 = vsel %vm744, %v5791, 0
        %v5830 = vsel %vm744, %v5792, 0
        %v5833 = vsel %vm744, %v5793, 0
        %v5836 = vsel %vm744, %v5794, 0
        %v5839 = vsel %vm744, %v5795, 0
        %v5842 = vsel %vm744, %v5796, 0
        %5844 = vmatprep.subr.bf16.mxu0 0
        %5845 = vmatpush1.bf16.msra.mxu0 0
        %5846 = vmatprep.subr.bf16.mxu0 0
        %5847 = vmatpush1.bf16.msra.mxu0 0
        %5848 = vmatprep.subr.bf16.mxu0 0
        %5849 = vmatpush1.bf16.msra.mxu0 0
        %5850 = vmatprep.subr.bf16.mxu0 0
        %5851 = vmatpush1.bf16.msra.mxu0 0
        %5852 = vmatprep.subr.bf16.mxu0 0
        %5853 = vmatpush1.bf16.msra.mxu0 0
        %5854 = vmatprep.subr.bf16.mxu0 0
        %5855 = vmatpush1.bf16.msra.mxu0 0
        %5856 = vmatprep.subr.bf16.mxu0 0
        %5857 = vmatpush1.bf16.msra.mxu0 %v5817
        %5858 = vmatprep.subr.bf16.mxu0 0
        %5859 = vmatpush1.bf16.msra.mxu0 %v5816
        %5860 = vmatprep.subr.bf16.mxu0 0
        %5861 = vmatpush2.bf16.msra.mxu0 0
        %5862 = vmatprep.subr.bf16.mxu0 0
        %5863 = vmatpush2.bf16.msra.mxu0 0
        %5864 = vmatprep.subr.bf16.mxu0 0
        %5865 = vmatpush2.bf16.msra.mxu0 0
        %5866 = vmatprep.subr.bf16.mxu0 0
        %5867 = vmatpush2.bf16.msra.mxu0 0
        %5868 = vmatprep.subr.bf16.mxu0 0
        %5869 = vmatpush2.bf16.msra.mxu0 0
        %5870 = vmatprep.subr.bf16.mxu0 0
        %5871 = vmatpush2.bf16.msra.mxu0 0
        %5872 = vmatprep.subr.bf16.mxu0 0
        %5873 = vmatpush2.bf16.msra.mxu0 0
        %5874 = vmatprep.subr.bf16.mxu0 0
        %5875 = vmatpush2.bf16.msra.mxu0 0
        %5876 = vmatprep.mubr.bf16.mxu0 0
        %5877 = vmatmul.mubr.bf16.gmra.mxu0 %v5821
        %v5878 = vpop.f32.mrf.mxu0
        %v5879 = vadd.f32 %v5806, %v5878
        %v5880 = vpop.f32.mrf.mxu0
        %v5881 = vpop.f32.mrf.mxu0
        %v5882 = vadd.f32 %v5806, %v5881
        %v5883 = vpop.f32.mrf.mxu0
        %5884 = vmatprep.mubr.bf16.mxu0 0
        %5885 = vmatmul.mubr.bf16.gmra.mxu0 %v5824
        %v5886 = vpop.f32.mrf.mxu0
        %v5887 = vadd.f32 %v5806, %v5886
        %v5888 = vpop.f32.mrf.mxu0
        %v5889 = vpop.f32.mrf.mxu0
        %v5890 = vadd.f32 %v5806, %v5889
        %v5891 = vpop.f32.mrf.mxu0
        %5892 = vmatprep.mubr.bf16.mxu0 0
        %5893 = vmatmul.mubr.bf16.gmra.mxu0 %v5827
        %v5894 = vpop.f32.mrf.mxu0
        %v5895 = vadd.f32 %v5806, %v5894
        %v5896 = vpop.f32.mrf.mxu0
        %v5897 = vpop.f32.mrf.mxu0
        %v5898 = vadd.f32 %v5806, %v5897
        %v5899 = vpop.f32.mrf.mxu0
        %5900 = vmatprep.mubr.bf16.mxu0 0
        %5901 = vmatmul.mubr.bf16.gmra.mxu0 %v5830
        %v5902 = vpop.f32.mrf.mxu0
        %v5903 = vadd.f32 %v5806, %v5902
        %v5904 = vpop.f32.mrf.mxu0
        %v5905 = vpop.f32.mrf.mxu0
        %v5906 = vadd.f32 %v5806, %v5905
        %v5907 = vpop.f32.mrf.mxu0
        %5908 = vmatprep.mubr.bf16.mxu0 0
        %5909 = vmatmul.mubr.bf16.gmra.mxu0 %v5833
        %v5910 = vpop.f32.mrf.mxu0
        %v5911 = vadd.f32 %v5806, %v5910
        %v5912 = vpop.f32.mrf.mxu0
        %v5913 = vpop.f32.mrf.mxu0
        %v5914 = vadd.f32 %v5806, %v5913
        %v5915 = vpop.f32.mrf.mxu0
        %5916 = vmatprep.mubr.bf16.mxu0 0
        %5917 = vmatmul.mubr.bf16.gmra.mxu0 %v5836
        %v5918 = vpop.f32.mrf.mxu0
        %v5919 = vadd.f32 %v5806, %v5918
        %v5920 = vpop.f32.mrf.mxu0
        %v5921 = vpop.f32.mrf.mxu0
        %v5922 = vadd.f32 %v5806, %v5921
        %v5923 = vpop.f32.mrf.mxu0
        %5924 = vmatprep.mubr.bf16.mxu0 0
        %5925 = vmatmul.mubr.bf16.gmra.mxu0 %v5839
        %v5926 = vpop.f32.mrf.mxu0
        %v5927 = vadd.f32 %v5806, %v5926
        %v5928 = vpop.f32.mrf.mxu0
        %v5929 = vpop.f32.mrf.mxu0
        %v5930 = vadd.f32 %v5806, %v5929
        %v5931 = vpop.f32.mrf.mxu0
        %5932 = vmatprep.mubr.bf16.mxu0 0
        %5933 = vmatmul.mubr.bf16.gmra.mxu0 %v5842
        %v5934 = vpop.f32.mrf.mxu0
        %v5935 = vadd.f32 %v5806, %v5934
        %v5936 = vpop.f32.mrf.mxu0
        %v5937 = vpop.f32.mrf.mxu0
        %v5938 = vadd.f32 %v5806, %v5937
        %v5939 = vpop.f32.mrf.mxu0
        %5940 = vdwg.mxu0
        %v5941 = vadd.f32 %v5879, %v712
        %v5942 = vadd.f32 %v5882, %v713
        %v5943 = vadd.f32 %v5887, %v714
        %v5944 = vadd.f32 %v5890, %v715
        %v5945 = vadd.f32 %v5895, %v716
        %v5946 = vadd.f32 %v5898, %v717
        %v5947 = vadd.f32 %v5903, %v718
        %v5948 = vadd.f32 %v5906, %v719
        %v5949 = vadd.f32 %v5911, %v720
        %v5950 = vadd.f32 %v5914, %v721
        %v5951 = vadd.f32 %v5919, %v722
        %v5952 = vadd.f32 %v5922, %v723
        %v5953 = vadd.f32 %v5927, %v724
        %v5954 = vadd.f32 %v5930, %v725
        %v5955 = vadd.f32 %v5935, %v726
        %v5956 = vadd.f32 %v5938, %v727
        %v5957 = vpack.c.bf16 %v5774, %v5773
        %v5958 = vpack.c.bf16 %v5776, %v5775
        %v5959 = vpack.c.bf16 %v5778, %v5777
        %v5960 = vpack.c.bf16 %v5780, %v5779
        %v5961 = vpack.c.bf16 %v5782, %v5781
        %v5962 = vpack.c.bf16 %v5784, %v5783
        %v5963 = vpack.c.bf16 %v5786, %v5785
        %v5964 = vpack.c.bf16 %v5788, %v5787
        %v5965 = vld [vmem:[%s10] sm:$0xf]
        %v5966 = vld [vmem:[%s10 + $0x4] sm:$0xf]
        %v5967 = vld [vmem:[%s10 + $0x8] sm:$0xf]
        %v5968 = vld [vmem:[%s10 + $0xc] sm:$0xf]
        %v5969 = vld [vmem:[%s11] sm:$0x1]
        %v5971 = vlaneseq
        %v5972 = vshrl.u32 %v5971, 7
        %v5973 = vsub.s32 0, %v5972
        %v5974 = vrot.slane %v5969, %v5973
        %v5980 = vunpack.c.l.b16 %v5965
        %v5981 = vunpack.c.l.b16 %v5966
        %v5982 = vunpack.c.l.b16 %v5967
        %v5983 = vunpack.c.l.b16 %v5968
        %v5984 = vpack.c.b16 %v5981, %v5980
        %v5985 = vpack.c.b16 %v5983, %v5982
        %v5989 = vsel %vm744, %v5957, 0
        %v5992 = vsel %vm744, %v5958, 0
        %v5995 = vsel %vm744, %v5959, 0
        %v5998 = vsel %vm744, %v5960, 0
        %v6001 = vsel %vm744, %v5961, 0
        %v6004 = vsel %vm744, %v5962, 0
        %v6007 = vsel %vm744, %v5963, 0
        %v6010 = vsel %vm744, %v5964, 0
        %6012 = vmatprep.subr.bf16.mxu0 0
        %6013 = vmatpush1.bf16.msra.mxu0 0
        %6014 = vmatprep.subr.bf16.mxu0 0
        %6015 = vmatpush1.bf16.msra.mxu0 0
        %6016 = vmatprep.subr.bf16.mxu0 0
        %6017 = vmatpush1.bf16.msra.mxu0 0
        %6018 = vmatprep.subr.bf16.mxu0 0
        %6019 = vmatpush1.bf16.msra.mxu0 0
        %6020 = vmatprep.subr.bf16.mxu0 0
        %6021 = vmatpush1.bf16.msra.mxu0 0
        %6022 = vmatprep.subr.bf16.mxu0 0
        %6023 = vmatpush1.bf16.msra.mxu0 0
        %6024 = vmatprep.subr.bf16.mxu0 0
        %6025 = vmatpush1.bf16.msra.mxu0 %v5985
        %6026 = vmatprep.subr.bf16.mxu0 0
        %6027 = vmatpush1.bf16.msra.mxu0 %v5984
        %6028 = vmatprep.subr.bf16.mxu0 0
        %6029 = vmatpush2.bf16.msra.mxu0 0
        %6030 = vmatprep.subr.bf16.mxu0 0
        %6031 = vmatpush2.bf16.msra.mxu0 0
        %6032 = vmatprep.subr.bf16.mxu0 0
        %6033 = vmatpush2.bf16.msra.mxu0 0
        %6034 = vmatprep.subr.bf16.mxu0 0
        %6035 = vmatpush2.bf16.msra.mxu0 0
        %6036 = vmatprep.subr.bf16.mxu0 0
        %6037 = vmatpush2.bf16.msra.mxu0 0
        %6038 = vmatprep.subr.bf16.mxu0 0
        %6039 = vmatpush2.bf16.msra.mxu0 0
        %6040 = vmatprep.subr.bf16.mxu0 0
        %6041 = vmatpush2.bf16.msra.mxu0 0
        %6042 = vmatprep.subr.bf16.mxu0 0
        %6043 = vmatpush2.bf16.msra.mxu0 0
        %6044 = vmatprep.mubr.bf16.mxu0 0
        %6045 = vmatmul.mubr.bf16.gmra.mxu0 %v5989
        %v6046 = vpop.f32.mrf.mxu0
        %v6047 = vadd.f32 %v5974, %v6046
        %v6048 = vpop.f32.mrf.mxu0
        %v6049 = vpop.f32.mrf.mxu0
        %v6050 = vadd.f32 %v5974, %v6049
        %v6051 = vpop.f32.mrf.mxu0
        %6052 = vmatprep.mubr.bf16.mxu0 0
        %6053 = vmatmul.mubr.bf16.gmra.mxu0 %v5992
        %v6054 = vpop.f32.mrf.mxu0
        %v6055 = vadd.f32 %v5974, %v6054
        %v6056 = vpop.f32.mrf.mxu0
        %v6057 = vpop.f32.mrf.mxu0
        %v6058 = vadd.f32 %v5974, %v6057
        %v6059 = vpop.f32.mrf.mxu0
        %6060 = vmatprep.mubr.bf16.mxu0 0
        %6061 = vmatmul.mubr.bf16.gmra.mxu0 %v5995
        %v6062 = vpop.f32.mrf.mxu0
        %v6063 = vadd.f32 %v5974, %v6062
        %v6064 = vpop.f32.mrf.mxu0
        %v6065 = vpop.f32.mrf.mxu0
        %v6066 = vadd.f32 %v5974, %v6065
        %v6067 = vpop.f32.mrf.mxu0
        %6068 = vmatprep.mubr.bf16.mxu0 0
        %6069 = vmatmul.mubr.bf16.gmra.mxu0 %v5998
        %v6070 = vpop.f32.mrf.mxu0
        %v6071 = vadd.f32 %v5974, %v6070
        %v6072 = vpop.f32.mrf.mxu0
        %v6073 = vpop.f32.mrf.mxu0
        %v6074 = vadd.f32 %v5974, %v6073
        %v6075 = vpop.f32.mrf.mxu0
        %6076 = vmatprep.mubr.bf16.mxu0 0
        %6077 = vmatmul.mubr.bf16.gmra.mxu0 %v6001
        %v6078 = vpop.f32.mrf.mxu0
        %v6079 = vadd.f32 %v5974, %v6078
        %v6080 = vpop.f32.mrf.mxu0
        %v6081 = vpop.f32.mrf.mxu0
        %v6082 = vadd.f32 %v5974, %v6081
        %v6083 = vpop.f32.mrf.mxu0
        %6084 = vmatprep.mubr.bf16.mxu0 0
        %6085 = vmatmul.mubr.bf16.gmra.mxu0 %v6004
        %v6086 = vpop.f32.mrf.mxu0
        %v6087 = vadd.f32 %v5974, %v6086
        %v6088 = vpop.f32.mrf.mxu0
        %v6089 = vpop.f32.mrf.mxu0
        %v6090 = vadd.f32 %v5974, %v6089
        %v6091 = vpop.f32.mrf.mxu0
        %6092 = vmatprep.mubr.bf16.mxu0 0
        %6093 = vmatmul.mubr.bf16.gmra.mxu0 %v6007
        %v6094 = vpop.f32.mrf.mxu0
        %v6095 = vadd.f32 %v5974, %v6094
        %v6096 = vpop.f32.mrf.mxu0
        %v6097 = vpop.f32.mrf.mxu0
        %v6098 = vadd.f32 %v5974, %v6097
        %v6099 = vpop.f32.mrf.mxu0
        %6100 = vmatprep.mubr.bf16.mxu0 0
        %6101 = vmatmul.mubr.bf16.gmra.mxu0 %v6010
        %v6102 = vpop.f32.mrf.mxu0
        %v6103 = vadd.f32 %v5974, %v6102
        %v6104 = vpop.f32.mrf.mxu0
        %v6105 = vpop.f32.mrf.mxu0
        %v6106 = vadd.f32 %v5974, %v6105
        %v6107 = vpop.f32.mrf.mxu0
        %6108 = vdwg.mxu0
        %v6109 = vadd.f32 %v6047, %v728
        %v6110 = vadd.f32 %v6050, %v729
        %v6111 = vadd.f32 %v6055, %v730
        %v6112 = vadd.f32 %v6058, %v731
        %v6113 = vadd.f32 %v6063, %v732
        %v6114 = vadd.f32 %v6066, %v733
        %v6115 = vadd.f32 %v6071, %v734
        %v6116 = vadd.f32 %v6074, %v735
        %v6117 = vadd.f32 %v6079, %v736
        %v6118 = vadd.f32 %v6082, %v737
        %v6119 = vadd.f32 %v6087, %v738
        %v6120 = vadd.f32 %v6090, %v739
        %v6121 = vadd.f32 %v6095, %v740
        %v6122 = vadd.f32 %v6098, %v741
        %v6123 = vadd.f32 %v6103, %v742
        %v6124 = vadd.f32 %v6106, %v743
        %6125 = vst.msk [vmem:[%s698] sm:$0xff] %vm744, %v5941
        %6126 = vst.msk [vmem:[%s698 + $0x8] sm:$0xff] %vm744, %v5942
        %6127 = vst.msk [vmem:[%s698 + $0x10] sm:$0xff] %vm744, %v5943
        %6128 = vst.msk [vmem:[%s698 + $0x18] sm:$0xff] %vm744, %v5944
        %6129 = vst.msk [vmem:[%s698 + $0x20] sm:$0xff] %vm744, %v5945
        %6130 = vst.msk [vmem:[%s698 + $0x28] sm:$0xff] %vm744, %v5946
        %6131 = vst.msk [vmem:[%s698 + $0x30] sm:$0xff] %vm744, %v5947
        %6132 = vst.msk [vmem:[%s698 + $0x38] sm:$0xff] %vm744, %v5948
        %6133 = vst.msk [vmem:[%s698 + $0x40] sm:$0xff] %vm744, %v5949
        %6134 = vst.msk [vmem:[%s698 + $0x48] sm:$0xff] %vm744, %v5950
        %6135 = vst.msk [vmem:[%s698 + $0x50] sm:$0xff] %vm744, %v5951
        %6136 = vst.msk [vmem:[%s698 + $0x58] sm:$0xff] %vm744, %v5952
        %6137 = vst.msk [vmem:[%s698 + $0x60] sm:$0xff] %vm744, %v5953
        %6138 = vst.msk [vmem:[%s698 + $0x68] sm:$0xff] %vm744, %v5954
        %6139 = vst.msk [vmem:[%s698 + $0x70] sm:$0xff] %vm744, %v5955
        %6140 = vst.msk [vmem:[%s698 + $0x78] sm:$0xff] %vm744, %v5956
        %6141 = vst.msk [vmem:[%s704] sm:$0xff] %vm744, %v6109
        %6142 = vst.msk [vmem:[%s704 + $0x8] sm:$0xff] %vm744, %v6110
        %6143 = vst.msk [vmem:[%s704 + $0x10] sm:$0xff] %vm744, %v6111
        %6144 = vst.msk [vmem:[%s704 + $0x18] sm:$0xff] %vm744, %v6112
        %6145 = vst.msk [vmem:[%s704 + $0x20] sm:$0xff] %vm744, %v6113
        %6146 = vst.msk [vmem:[%s704 + $0x28] sm:$0xff] %vm744, %v6114
        %6147 = vst.msk [vmem:[%s704 + $0x30] sm:$0xff] %vm744, %v6115
        %6148 = vst.msk [vmem:[%s704 + $0x38] sm:$0xff] %vm744, %v6116
        %6149 = vst.msk [vmem:[%s704 + $0x40] sm:$0xff] %vm744, %v6117
        %6150 = vst.msk [vmem:[%s704 + $0x48] sm:$0xff] %vm744, %v6118
        %6151 = vst.msk [vmem:[%s704 + $0x50] sm:$0xff] %vm744, %v6119
        %6152 = vst.msk [vmem:[%s704 + $0x58] sm:$0xff] %vm744, %v6120
        %6153 = vst.msk [vmem:[%s704 + $0x60] sm:$0xff] %vm744, %v6121
        %6154 = vst.msk [vmem:[%s704 + $0x68] sm:$0xff] %vm744, %v6122
        %6155 = vst.msk [vmem:[%s704 + $0x70] sm:$0xff] %vm744, %v6123
        %6156 = vst.msk [vmem:[%s704 + $0x78] sm:$0xff] %vm744, %v6124
        %s6157 = sand.u32 %s335, 1
        %s6158 = sand.u32 %s335, 1
        %s6159 = smul.addr %s6158, 128
        %s6160 = scalar_lea.vmem [#allocation4], %s6159
        %s6161 = sand.u32 %s363, 1
        %s6162 = sand.u32 %s363, 1
        %s6163 = smul.addr %s6162, 128
        %s6164 = scalar_lea.vmem [#allocation5], %s6163
        // Predicated region
        $region149: #{swin_transformer_block_forward.2} parent=139 // pred_check
          %p6165 = pneg %p345
        $region150: #{swin_transformer_block_forward.2} parent=139 // pred_check_branch
          %6167 = sbr.rel (%p6165) target = $region152
        $region151: #{swin_transformer_block_forward.2} parent=139 // pred_region
          %s6168 = smul.u32 2, %s30
          %s6169 = smul.addr %s6168, 16
          %s6170 = sadd.s32 %s31, %s6169
          %s6171 = smul.addr %s6170, 8
          %s6172 = scalar_lea.vmem %s13, %s6171
          // Predicated region
          $region153: #{swin_transformer_block_forward.2} parent=151 // pred_check
            _
          $region154: #{swin_transformer_block_forward.2} parent=151 // pred_check_branch
            %6174 = sbr.rel (0) target = $region156
          $region155: #{swin_transformer_block_forward.2} parent=151 // pred_region
            // Predicated region
            $region157: #{swin_transformer_block_forward.2} parent=155 // pred_check
              _
            $region158: #{swin_transformer_block_forward.2} parent=155 // pred_check_branch
              %6176 = sbr.rel (0) target = $region160
            $region159: #{swin_transformer_block_forward.2} parent=155 // pred_region
              // Predicated region
              $region172: #{swin_transformer_block_forward.2} parent=159 // pred_check
                _
              $region173: #{swin_transformer_block_forward.2} parent=159 // pred_check_branch
                %6222 = sbr.rel (0) target = $region175
              $region174: #{swin_transformer_block_forward.2} parent=159 // pred_region
                loop: start=0, step=1, limit=1
                $region176: #{swin_transformer_block_forward.2} parent=174 // loop_pre_header
                  _
                $region177: #{swin_transformer_block_forward.2} parent=174 // loop_header
                  %s6224 = sphi 0, %s6228
                  %p6225 = scmp.ge.s32.totalorder %s6224, 1
                  %s6229 = sphi %s6160, %s6160
                  %s6230 = sphi %s6172, %s6172
                $region178: #{swin_transformer_block_forward.2} parent=174 // loop_header_branch
                  %6227 = sbr.rel (%p6225) target = $region182
                $region179: #{swin_transformer_block_forward.2} parent=174 // loop_body
                  %v6231 = vld [vmem:[%s6229] sm:$0xff]
                  %6232 = vst [vmem:[%s6230] sm:$0xff] %v6231
                  %v6233 = vld [vmem:[%s6229 + $0x8] sm:$0xff]
                  %6234 = vst [vmem:[%s6230 + $0x10] sm:$0xff] %v6233
                  %v6235 = vld [vmem:[%s6229 + $0x10] sm:$0xff]
                  %6236 = vst [vmem:[%s6230 + $0x20] sm:$0xff] %v6235
                  %v6237 = vld [vmem:[%s6229 + $0x18] sm:$0xff]
                  %6238 = vst [vmem:[%s6230 + $0x30] sm:$0xff] %v6237
                  %v6239 = vld [vmem:[%s6229 + $0x20] sm:$0xff]
                  %6240 = vst [vmem:[%s6230 + $0x40] sm:$0xff] %v6239
                  %v6241 = vld [vmem:[%s6229 + $0x28] sm:$0xff]
                  %6242 = vst [vmem:[%s6230 + $0x50] sm:$0xff] %v6241
                  %v6243 = vld [vmem:[%s6229 + $0x30] sm:$0xff]
                  %6244 = vst [vmem:[%s6230 + $0x60] sm:$0xff] %v6243
                  %v6245 = vld [vmem:[%s6229 + $0x38] sm:$0xff]
                  %6246 = vst [vmem:[%s6230 + $0x70] sm:$0xff] %v6245
                  %v6247 = vld [vmem:[%s6229 + $0x40] sm:$0xff]
                  %6248 = vst [vmem:[%s6230 + $0x80] sm:$0xff] %v6247
                  %v6249 = vld [vmem:[%s6229 + $0x48] sm:$0xff]
                  %6250 = vst [vmem:[%s6230 + $0x90] sm:$0xff] %v6249
                  %v6251 = vld [vmem:[%s6229 + $0x50] sm:$0xff]
                  %6252 = vst [vmem:[%s6230 + $0xa0] sm:$0xff] %v6251
                  %v6253 = vld [vmem:[%s6229 + $0x58] sm:$0xff]
                  %6254 = vst [vmem:[%s6230 + $0xb0] sm:$0xff] %v6253
                  %v6255 = vld [vmem:[%s6229 + $0x60] sm:$0xff]
                  %6256 = vst [vmem:[%s6230 + $0xc0] sm:$0xff] %v6255
                  %v6257 = vld [vmem:[%s6229 + $0x68] sm:$0xff]
                  %6258 = vst [vmem:[%s6230 + $0xd0] sm:$0xff] %v6257
                  %v6259 = vld [vmem:[%s6229 + $0x70] sm:$0xff]
                  %6260 = vst [vmem:[%s6230 + $0xe0] sm:$0xff] %v6259
                  %v6261 = vld [vmem:[%s6229 + $0x78] sm:$0xff]
                  %6262 = vst [vmem:[%s6230 + $0xf0] sm:$0xff] %v6261
                $region180: #{swin_transformer_block_forward.2} parent=174 // loop_footer
                  %s6228 = sadd.s32 1, %s6224
                $region181: #{swin_transformer_block_forward.2} parent=174 // loop_footer_branch
                  %6223 = sbr.rel target = $region177
                $region182: #{swin_transformer_block_forward.2} parent=174 // loop_exit
                  _
              $region175: #{swin_transformer_block_forward.2} parent=159 // pred_fallthru
                _
              // Predicated region
              $region183: #{swin_transformer_block_forward.2} parent=159 // pred_check
                _
              $region184: #{swin_transformer_block_forward.2} parent=159 // pred_check_branch
                %6264 = sbr.rel target = $region186
              $region185: #{swin_transformer_block_forward.2} parent=159 // pred_region
                _
              $region186: #{swin_transformer_block_forward.2} parent=159 // pred_fallthru
                _
            $region160: #{swin_transformer_block_forward.2} parent=155 // pred_fallthru
              _
            // Predicated region
            $region161: #{swin_transformer_block_forward.2} parent=155 // pred_check
              _
            $region162: #{swin_transformer_block_forward.2} parent=155 // pred_check_branch
              %6178 = sbr.rel target = $region164
            $region163: #{swin_transformer_block_forward.2} parent=155 // pred_region
              %s6180 = ssub.s32 256, 1
              loop: start=0, step=1, limit=1
              $region165: #{swin_transformer_block_forward.2} parent=163 // loop_pre_header
                _
              $region166: #{swin_transformer_block_forward.2} parent=163 // loop_header
                %s6182 = sphi 0, %s6186
                %p6183 = scmp.ge.s32.totalorder %s6182, 1
                %s6187 = sphi %s6160, %s6160
                %s6188 = sphi %s6172, %s6172
              $region167: #{swin_transformer_block_forward.2} parent=163 // loop_header_branch
                %6185 = sbr.rel (%p6183) target = $region171
              $region168: #{swin_transformer_block_forward.2} parent=163 // loop_body
                %v6189 = vld [vmem:[%s6187] sm:%s6180]
                %6190 = vst [vmem:[%s6188] sm:%s6180] %v6189
                %v6191 = vld [vmem:[%s6187 + $0x8] sm:%s6180]
                %6192 = vst [vmem:[%s6188 + $0x10] sm:%s6180] %v6191
                %v6193 = vld [vmem:[%s6187 + $0x10] sm:%s6180]
                %6194 = vst [vmem:[%s6188 + $0x20] sm:%s6180] %v6193
                %v6195 = vld [vmem:[%s6187 + $0x18] sm:%s6180]
                %6196 = vst [vmem:[%s6188 + $0x30] sm:%s6180] %v6195
                %v6197 = vld [vmem:[%s6187 + $0x20] sm:%s6180]
                %6198 = vst [vmem:[%s6188 + $0x40] sm:%s6180] %v6197
                %v6199 = vld [vmem:[%s6187 + $0x28] sm:%s6180]
                %6200 = vst [vmem:[%s6188 + $0x50] sm:%s6180] %v6199
                %v6201 = vld [vmem:[%s6187 + $0x30] sm:%s6180]
                %6202 = vst [vmem:[%s6188 + $0x60] sm:%s6180] %v6201
                %v6203 = vld [vmem:[%s6187 + $0x38] sm:%s6180]
                %6204 = vst [vmem:[%s6188 + $0x70] sm:%s6180] %v6203
                %v6205 = vld [vmem:[%s6187 + $0x40] sm:%s6180]
                %6206 = vst [vmem:[%s6188 + $0x80] sm:%s6180] %v6205
                %v6207 = vld [vmem:[%s6187 + $0x48] sm:%s6180]
                %6208 = vst [vmem:[%s6188 + $0x90] sm:%s6180] %v6207
                %v6209 = vld [vmem:[%s6187 + $0x50] sm:%s6180]
                %6210 = vst [vmem:[%s6188 + $0xa0] sm:%s6180] %v6209
                %v6211 = vld [vmem:[%s6187 + $0x58] sm:%s6180]
                %6212 = vst [vmem:[%s6188 + $0xb0] sm:%s6180] %v6211
                %v6213 = vld [vmem:[%s6187 + $0x60] sm:%s6180]
                %6214 = vst [vmem:[%s6188 + $0xc0] sm:%s6180] %v6213
                %v6215 = vld [vmem:[%s6187 + $0x68] sm:%s6180]
                %6216 = vst [vmem:[%s6188 + $0xd0] sm:%s6180] %v6215
                %v6217 = vld [vmem:[%s6187 + $0x70] sm:%s6180]
                %6218 = vst [vmem:[%s6188 + $0xe0] sm:%s6180] %v6217
                %v6219 = vld [vmem:[%s6187 + $0x78] sm:%s6180]
                %6220 = vst [vmem:[%s6188 + $0xf0] sm:%s6180] %v6219
              $region169: #{swin_transformer_block_forward.2} parent=163 // loop_footer
                %s6186 = sadd.s32 1, %s6182
              $region170: #{swin_transformer_block_forward.2} parent=163 // loop_footer_branch
                %6181 = sbr.rel target = $region166
              $region171: #{swin_transformer_block_forward.2} parent=163 // loop_exit
                _
            $region164: #{swin_transformer_block_forward.2} parent=155 // pred_fallthru
              _
          $region156: #{swin_transformer_block_forward.2} parent=151 // pred_fallthru
            _
          %6265 = vnop
        $region152: #{swin_transformer_block_forward.2} parent=139 // pred_fallthru
          _
        // Predicated region
        $region187: #{swin_transformer_block_forward.2} parent=139 // pred_check
          %p6266 = pneg %p373
        $region188: #{swin_transformer_block_forward.2} parent=139 // pred_check_branch
          %6268 = sbr.rel (%p6266) target = $region190
        $region189: #{swin_transformer_block_forward.2} parent=139 // pred_region
          %s6269 = smul.u32 2, %s30
          %s6270 = smul.addr %s6269, 16
          %s6271 = sadd.s32 %s31, %s6270
          %s6272 = smul.addr %s6271, 8
          %s6273 = scalar_lea.vmem %s14, %s6272
          // Predicated region
          $region191: #{swin_transformer_block_forward.2} parent=189 // pred_check
            _
          $region192: #{swin_transformer_block_forward.2} parent=189 // pred_check_branch
            %6275 = sbr.rel (0) target = $region194
          $region193: #{swin_transformer_block_forward.2} parent=189 // pred_region
            // Predicated region
            $region195: #{swin_transformer_block_forward.2} parent=193 // pred_check
              _
            $region196: #{swin_transformer_block_forward.2} parent=193 // pred_check_branch
              %6277 = sbr.rel (0) target = $region198
            $region197: #{swin_transformer_block_forward.2} parent=193 // pred_region
              // Predicated region
              $region210: #{swin_transformer_block_forward.2} parent=197 // pred_check
                _
              $region211: #{swin_transformer_block_forward.2} parent=197 // pred_check_branch
                %6323 = sbr.rel (0) target = $region213
              $region212: #{swin_transformer_block_forward.2} parent=197 // pred_region
                loop: start=0, step=1, limit=1
                $region214: #{swin_transformer_block_forward.2} parent=212 // loop_pre_header
                  _
                $region215: #{swin_transformer_block_forward.2} parent=212 // loop_header
                  %s6325 = sphi 0, %s6329
                  %p6326 = scmp.ge.s32.totalorder %s6325, 1
                  %s6330 = sphi %s6164, %s6164
                  %s6331 = sphi %s6273, %s6273
                $region216: #{swin_transformer_block_forward.2} parent=212 // loop_header_branch
                  %6328 = sbr.rel (%p6326) target = $region220
                $region217: #{swin_transformer_block_forward.2} parent=212 // loop_body
                  %v6332 = vld [vmem:[%s6330] sm:$0xff]
                  %6333 = vst [vmem:[%s6331] sm:$0xff] %v6332
                  %v6334 = vld [vmem:[%s6330 + $0x8] sm:$0xff]
                  %6335 = vst [vmem:[%s6331 + $0x10] sm:$0xff] %v6334
                  %v6336 = vld [vmem:[%s6330 + $0x10] sm:$0xff]
                  %6337 = vst [vmem:[%s6331 + $0x20] sm:$0xff] %v6336
                  %v6338 = vld [vmem:[%s6330 + $0x18] sm:$0xff]
                  %6339 = vst [vmem:[%s6331 + $0x30] sm:$0xff] %v6338
                  %v6340 = vld [vmem:[%s6330 + $0x20] sm:$0xff]
                  %6341 = vst [vmem:[%s6331 + $0x40] sm:$0xff] %v6340
                  %v6342 = vld [vmem:[%s6330 + $0x28] sm:$0xff]
                  %6343 = vst [vmem:[%s6331 + $0x50] sm:$0xff] %v6342
                  %v6344 = vld [vmem:[%s6330 + $0x30] sm:$0xff]
                  %6345 = vst [vmem:[%s6331 + $0x60] sm:$0xff] %v6344
                  %v6346 = vld [vmem:[%s6330 + $0x38] sm:$0xff]
                  %6347 = vst [vmem:[%s6331 + $0x70] sm:$0xff] %v6346
                  %v6348 = vld [vmem:[%s6330 + $0x40] sm:$0xff]
                  %6349 = vst [vmem:[%s6331 + $0x80] sm:$0xff] %v6348
                  %v6350 = vld [vmem:[%s6330 + $0x48] sm:$0xff]
                  %6351 = vst [vmem:[%s6331 + $0x90] sm:$0xff] %v6350
                  %v6352 = vld [vmem:[%s6330 + $0x50] sm:$0xff]
                  %6353 = vst [vmem:[%s6331 + $0xa0] sm:$0xff] %v6352
                  %v6354 = vld [vmem:[%s6330 + $0x58] sm:$0xff]
                  %6355 = vst [vmem:[%s6331 + $0xb0] sm:$0xff] %v6354
                  %v6356 = vld [vmem:[%s6330 + $0x60] sm:$0xff]
                  %6357 = vst [vmem:[%s6331 + $0xc0] sm:$0xff] %v6356
                  %v6358 = vld [vmem:[%s6330 + $0x68] sm:$0xff]
                  %6359 = vst [vmem:[%s6331 + $0xd0] sm:$0xff] %v6358
                  %v6360 = vld [vmem:[%s6330 + $0x70] sm:$0xff]
                  %6361 = vst [vmem:[%s6331 + $0xe0] sm:$0xff] %v6360
                  %v6362 = vld [vmem:[%s6330 + $0x78] sm:$0xff]
                  %6363 = vst [vmem:[%s6331 + $0xf0] sm:$0xff] %v6362
                $region218: #{swin_transformer_block_forward.2} parent=212 // loop_footer
                  %s6329 = sadd.s32 1, %s6325
                $region219: #{swin_transformer_block_forward.2} parent=212 // loop_footer_branch
                  %6324 = sbr.rel target = $region215
                $region220: #{swin_transformer_block_forward.2} parent=212 // loop_exit
                  _
              $region213: #{swin_transformer_block_forward.2} parent=197 // pred_fallthru
                _
              // Predicated region
              $region221: #{swin_transformer_block_forward.2} parent=197 // pred_check
                _
              $region222: #{swin_transformer_block_forward.2} parent=197 // pred_check_branch
                %6365 = sbr.rel target = $region224
              $region223: #{swin_transformer_block_forward.2} parent=197 // pred_region
                _
              $region224: #{swin_transformer_block_forward.2} parent=197 // pred_fallthru
                _
            $region198: #{swin_transformer_block_forward.2} parent=193 // pred_fallthru
              _
            // Predicated region
            $region199: #{swin_transformer_block_forward.2} parent=193 // pred_check
              _
            $region200: #{swin_transformer_block_forward.2} parent=193 // pred_check_branch
              %6279 = sbr.rel target = $region202
            $region201: #{swin_transformer_block_forward.2} parent=193 // pred_region
              %s6281 = ssub.s32 256, 1
              loop: start=0, step=1, limit=1
              $region203: #{swin_transformer_block_forward.2} parent=201 // loop_pre_header
                _
              $region204: #{swin_transformer_block_forward.2} parent=201 // loop_header
                %s6283 = sphi 0, %s6287
                %p6284 = scmp.ge.s32.totalorder %s6283, 1
                %s6288 = sphi %s6164, %s6164
                %s6289 = sphi %s6273, %s6273
              $region205: #{swin_transformer_block_forward.2} parent=201 // loop_header_branch
                %6286 = sbr.rel (%p6284) target = $region209
              $region206: #{swin_transformer_block_forward.2} parent=201 // loop_body
                %v6290 = vld [vmem:[%s6288] sm:%s6281]
                %6291 = vst [vmem:[%s6289] sm:%s6281] %v6290
                %v6292 = vld [vmem:[%s6288 + $0x8] sm:%s6281]
                %6293 = vst [vmem:[%s6289 + $0x10] sm:%s6281] %v6292
                %v6294 = vld [vmem:[%s6288 + $0x10] sm:%s6281]
                %6295 = vst [vmem:[%s6289 + $0x20] sm:%s6281] %v6294
                %v6296 = vld [vmem:[%s6288 + $0x18] sm:%s6281]
                %6297 = vst [vmem:[%s6289 + $0x30] sm:%s6281] %v6296
                %v6298 = vld [vmem:[%s6288 + $0x20] sm:%s6281]
                %6299 = vst [vmem:[%s6289 + $0x40] sm:%s6281] %v6298
                %v6300 = vld [vmem:[%s6288 + $0x28] sm:%s6281]
                %6301 = vst [vmem:[%s6289 + $0x50] sm:%s6281] %v6300
                %v6302 = vld [vmem:[%s6288 + $0x30] sm:%s6281]
                %6303 = vst [vmem:[%s6289 + $0x60] sm:%s6281] %v6302
                %v6304 = vld [vmem:[%s6288 + $0x38] sm:%s6281]
                %6305 = vst [vmem:[%s6289 + $0x70] sm:%s6281] %v6304
                %v6306 = vld [vmem:[%s6288 + $0x40] sm:%s6281]
                %6307 = vst [vmem:[%s6289 + $0x80] sm:%s6281] %v6306
                %v6308 = vld [vmem:[%s6288 + $0x48] sm:%s6281]
                %6309 = vst [vmem:[%s6289 + $0x90] sm:%s6281] %v6308
                %v6310 = vld [vmem:[%s6288 + $0x50] sm:%s6281]
                %6311 = vst [vmem:[%s6289 + $0xa0] sm:%s6281] %v6310
                %v6312 = vld [vmem:[%s6288 + $0x58] sm:%s6281]
                %6313 = vst [vmem:[%s6289 + $0xb0] sm:%s6281] %v6312
                %v6314 = vld [vmem:[%s6288 + $0x60] sm:%s6281]
                %6315 = vst [vmem:[%s6289 + $0xc0] sm:%s6281] %v6314
                %v6316 = vld [vmem:[%s6288 + $0x68] sm:%s6281]
                %6317 = vst [vmem:[%s6289 + $0xd0] sm:%s6281] %v6316
                %v6318 = vld [vmem:[%s6288 + $0x70] sm:%s6281]
                %6319 = vst [vmem:[%s6289 + $0xe0] sm:%s6281] %v6318
                %v6320 = vld [vmem:[%s6288 + $0x78] sm:%s6281]
                %6321 = vst [vmem:[%s6289 + $0xf0] sm:%s6281] %v6320
              $region207: #{swin_transformer_block_forward.2} parent=201 // loop_footer
                %s6287 = sadd.s32 1, %s6283
              $region208: #{swin_transformer_block_forward.2} parent=201 // loop_footer_branch
                %6282 = sbr.rel target = $region204
              $region209: #{swin_transformer_block_forward.2} parent=201 // loop_exit
                _
            $region202: #{swin_transformer_block_forward.2} parent=193 // pred_fallthru
              _
          $region194: #{swin_transformer_block_forward.2} parent=189 // pred_fallthru
            _
          %6366 = vnop
        $region190: #{swin_transformer_block_forward.2} parent=139 // pred_fallthru
          _
      $region140: #{swin_transformer_block_forward.2} parent=5 // pred_fallthru
        _
      %p6367 = scmp.le.s32.totalorder 2, %s21
      // Predicated region
      $region225: #{swin_transformer_block_forward.2} parent=5 // pred_check
        %p6368 = pneg %p6367
      $region226: #{swin_transformer_block_forward.2} parent=5 // pred_check_branch
        %6370 = sbr.rel (%p6368) target = $region228
      $region227: #{swin_transformer_block_forward.2} parent=5 // pred_region
        %s6371 = ssub.s32 %s21, 2
        // Predicated region
        $region229: #{swin_transformer_block_forward.2} parent=227 // pred_check
          %p6372 = pneg %p351
        $region230: #{swin_transformer_block_forward.2} parent=227 // pred_check_branch
          %6374 = sbr.rel (%p6372) target = $region232
        $region231: #{swin_transformer_block_forward.2} parent=227 // pred_region
          %s6375 = sand.u32 %s336, 1
          %s6376 = sand.u32 %s336, 1
          %s6377 = smul.addr %s6376, 128
          %s6378 = scalar_lea.vmem [#allocation4], %s6377
        $region232: #{swin_transformer_block_forward.2} parent=227 // pred_fallthru
          _
        // Predicated region
        $region233: #{swin_transformer_block_forward.2} parent=227 // pred_check
          %p6379 = pneg %p379
        $region234: #{swin_transformer_block_forward.2} parent=227 // pred_check_branch
          %6381 = sbr.rel (%p6379) target = $region236
        $region235: #{swin_transformer_block_forward.2} parent=227 // pred_region
          %s6382 = sand.u32 %s364, 1
          %s6383 = sand.u32 %s364, 1
          %s6384 = smul.addr %s6383, 128
          %s6385 = scalar_lea.vmem [#allocation5], %s6384
        $region236: #{swin_transformer_block_forward.2} parent=227 // pred_fallthru
          _
      $region228: #{swin_transformer_block_forward.2} parent=5 // pred_fallthru
        _
    $region6: #{swin_transformer_block_forward.2} parent=1 // loop_footer
      %s25 = sadd.s32 1, %s21
    $region7: #{swin_transformer_block_forward.2} parent=1 // loop_footer_branch
      %20 = sbr.rel target = $region3
    $region8: #{swin_transformer_block_forward.2} parent=1 // loop_exit
      _

</llo_original>
